<compile_context>
chip_gen: v7x
topology: tpu7x:2x2x1
jax: 0.10.0
libtpu: 0.0.40
codegen_flags: <defaults>
</compile_context>

<pallas_src>
import math

import jax
import jax.numpy as jnp
import numpy as np
from jax.experimental import pallas as pl
from jax.experimental.pallas import tpu as pltpu

# ----------------------------------------------------------------------------
# Model configuration (mirrors fine_tuner_hyper.__init__)
# ----------------------------------------------------------------------------
FC_PARAMETERS = [{"shape": [14, 8]}]            # cnt = 14*8 + 2*8 = 128
CNT = sum(fc["shape"][0] * fc["shape"][1] + 2 * fc["shape"][1]
          for fc in FC_PARAMETERS)              # 128
H_IN = W_IN = 64                                # three valid 3x3 convs -> 58x58
FC_IN = 58 * 58                                 # 3364 (nn.Linear(3364, cnt))
K_PAD = 64 * 64                                 # 4096: lane-padded flatten (k = 64*y + x)


def _elu(x):
    # ELU(alpha=1): x for x > 0, exp(x) - 1 otherwise (exp clamped for safety).
    return jnp.where(x > 0, x, jnp.exp(jnp.minimum(x, 0.0)) - 1.0)


# ----------------------------------------------------------------------------
# Fused kernel:
#   Conv2d(16,1,3)-ELU-Conv2d(1,1,3)-ELU-Conv2d(1,1,3)  (VPU, (64,64) slabs)
#   -> ELU -> lane-dense flatten -> fc -> (+ weights-half of fc2, hoisted)
#   -> fc2 -> ELU                                        (MXU, bf16 in / f32 acc)
# ----------------------------------------------------------------------------
def fused_kernel(win_ref, x_ref, c1w_ref, c1b_ref, c2w_ref, c2b_ref,
                 c3w_ref, c3b_ref, fcw_hbm_ref, fcb_ref, fc2wa_ref, fc2wb_ref,
                 fc2b_ref, out_ref, fcw_vmem, fcw_sem, pad_ref, act_ref):
    # Kick off the big fc-weight DMA immediately; it hides behind the conv chain.
    fcw_copy = pltpu.make_async_copy(fcw_hbm_ref, fcw_vmem, fcw_sem)
    fcw_copy.start()

    # Hoisted weights-half of fc2: weights @ fc2w[:, :CNT].T, hidden under the
    # conv chain (removes the (1, 2*CNT) concat and shortens the post-wait path).
    z_w = jnp.dot(win_ref[...].astype(jnp.bfloat16), fc2wa_ref[...],
                  preferred_element_type=jnp.float32)            # (1, CNT) f32

    taps = [(dy, dx) for dy in range(3) for dx in range(3)]

    # --- conv1 (16 -> 1): channel reduction first on full (64,64) slabs,
    #     then only 9 shifted-tap slices of the reduced maps.
    h1 = jnp.full((62, 62), c1b_ref[0], dtype=jnp.float32)
    for t, (dy, dx) in enumerate(taps):
        s = c1w_ref[t] * x_ref[0]
        for c in range(1, 16):
            s = s + c1w_ref[c * 9 + t] * x_ref[c]
        h1 = h1 + s[dy:dy + 62, dx:dx + 62]
    h1 = _elu(h1)

    # --- conv2 (1 -> 1): 9 taps.
    h2 = jnp.full((60, 60), c2b_ref[0], dtype=jnp.float32)
    for t, (dy, dx) in enumerate(taps):
        h2 = h2 + c2w_ref[t] * h1[dy:dy + 60, dx:dx + 60]
    h2 = _elu(h2)

    # --- conv3 (1 -> 1): 9 taps, no activation inside the Sequential.
    h3 = jnp.full((58, 58), c3b_ref[0], dtype=jnp.float32)
    for t, (dy, dx) in enumerate(taps):
        h3 = h3 + c3w_ref[t] * h2[dy:dy + 58, dx:dx + 58]

    # self.activation(mp): ELU applied on the conv tile before the flatten.
    mp_act = _elu(h3)                                            # (58, 58)

    # --- lane-dense flatten.
    # 1) zero-pad the tile into a (64, 64) scratch (real zeros in pad region,
    #    so the MXU never sees uninitialized VMEM).
    pad_ref[...] = jnp.zeros((64, 64), jnp.float32)
    pad_ref[0:58, 0:58] = mp_act
    # 2) 32 aligned, unmasked 128-lane stores: rows (2p, 2p+1) packed side by
    #    side at a 128-aligned lane offset (k = 64*y + x ordering).  All 4096
    #    lanes of act_ref are written, so no separate zero-init is needed.
    for p in range(32):
        row_a = pad_ref[2 * p:2 * p + 1, :]                      # (1, 64)
        row_b = pad_ref[2 * p + 1:2 * p + 2, :]                  # (1, 64)
        act_ref[:, 128 * p:128 * p + 128] = jnp.concatenate([row_a, row_b],
                                                            axis=1)

    # --- fc: (1, K_PAD) x (K_PAD, CNT) on the MXU (bf16 in, f32 accumulate).
    fcw_copy.wait()                                              # DMA already landed
    act = act_ref[...].astype(jnp.bfloat16)                      # (1, 4096)
    h = jnp.dot(act, fcw_vmem[...], preferred_element_type=jnp.float32)
    h = h + fcb_ref[...]                                         # (1, CNT) f32

    # --- fc2 second half + bias + ELU (weights-half already in z_w).
    z = z_w + jnp.dot(h.astype(jnp.bfloat16), fc2wb_ref[...],
                      preferred_element_type=jnp.float32) + fc2b_ref[...]
    out_ref[...] = _elu(z)                                       # (1, CNT)


def fine_tuner_fused_call(weights, x, c1w, c1b, c2w, c2b, c3w, c3b,
                          fcw_pre, fcb_r, fc2w_a, fc2w_b, fc2b_r):
    vmem = pl.BlockSpec(memory_space=pltpu.MemorySpace.VMEM)
    smem = pl.BlockSpec(memory_space=pltpu.MemorySpace.SMEM)
    hbm = pl.BlockSpec(memory_space=pl.ANY)       # manual DMA inside the kernel
    return pl.pallas_call(
        fused_kernel,
        out_shape=jax.ShapeDtypeStruct((1, CNT), jnp.float32),
        in_specs=[vmem,                 # weights (1, CNT)
                  vmem,                 # mp      (16, 64, 64)
                  smem, smem,           # conv1 w/b
                  smem, smem,           # conv2 w/b
                  smem, smem,           # conv3 w/b
                  hbm,                  # fcw_pre (K_PAD, CNT) bf16, prefetched
                  vmem,                 # fcb     (1, CNT)
                  vmem,                 # fc2w_a  (CNT, CNT) bf16 (weights half)
                  vmem,                 # fc2w_b  (CNT, CNT) bf16 (fc half)
                  vmem],                # fc2b    (1, CNT)
        out_specs=vmem,
        scratch_shapes=[
            pltpu.VMEM((K_PAD, CNT), jnp.bfloat16),    # fcw landing buffer
            pltpu.SemaphoreType.DMA(()),               # fcw DMA semaphore
            pltpu.VMEM((64, 64), jnp.float32),         # zero-padded conv tile
            pltpu.VMEM((1, K_PAD), jnp.float32),       # flattened activation row
        ],
    )(weights, x, c1w, c1b, c2w, c2b, c3w, c3b,
      fcw_pre, fcb_r, fc2w_a, fc2w_b, fc2b_r)


# ----------------------------------------------------------------------------
# One-time parameter preprocessing (pure weight layout, outside the call path)
# ----------------------------------------------------------------------------
def prepare_params(params):
    (c1w, c1b, c2w, c2b, c3w, c3b, fcw, fcb, fc2w, fc2b) = params
    # fc weight re-arranged to match the in-kernel flatten order k = 64*y + x,
    # zero at all padding positions (x >= 58 or y >= 58), cast to bf16.
    fcw3 = fcw.T.reshape(58, 58, CNT)                            # [y, x, n]
    fcw_pre = jnp.zeros((64, 64, CNT), jnp.float32).at[:58, :58, :].set(fcw3)
    fcw_pre = fcw_pre.reshape(K_PAD, CNT).astype(jnp.bfloat16)   # (4096, 128)
    # fc2 split into the weights-half and the fc-half (cat order: [weights, fc]).
    fc2w_a = fc2w[:, :CNT].T.astype(jnp.bfloat16)                # (CNT, CNT)
    fc2w_b = fc2w[:, CNT:].T.astype(jnp.bfloat16)                # (CNT, CNT)
    return (c1w.reshape(-1), c1b.reshape(-1),
            c2w.reshape(-1), c2b.reshape(-1),
            c3w.reshape(-1), c3b.reshape(-1),
            fcw_pre, fcb.reshape(1, CNT), fc2w_a, fc2w_b, fc2b.reshape(1, CNT))


@jax.jit
def fine_tuner_hyper_forward(weights, mp, prep):
    (c1w, c1b, c2w, c2b, c3w, c3b,
     fcw_pre, fcb_r, fc2w_a, fc2w_b, fc2b_r) = prep
    x = mp.reshape(16, H_IN, W_IN)        # squeeze batch of 1 (contiguous, free)
    # TODO(synk): if several (weights, mp) instances exist per step, add a
    # leading "parallel" grid axis to use both v7x TensorCores and amortize
    # launch overhead.
    return fine_tuner_fused_call(weights, x, c1w, c1b, c2w, c2b, c3w, c3b,
                                 fcw_pre, fcb_r, fc2w_a, fc2w_b, fc2b_r)


# ----------------------------------------------------------------------------
# Pure-JAX reference (for verification)
# ----------------------------------------------------------------------------
def reference_forward(weights, mp, params):
    (c1w, c1b, c2w, c2b, c3w, c3b, fcw, fcb, fc2w, fc2b) = params

    def conv2d(x, w, b):
        y = jax.lax.conv_general_dilated(
            x, w, window_strides=(1, 1), padding="VALID",
            dimension_numbers=("NCHW", "OIHW", "NCHW"),
            precision=jax.lax.Precision.HIGHEST)
        return y + b.reshape(1, -1, 1, 1)

    h = conv2d(mp, c1w, c1b)
    h = _elu(h)
    h = conv2d(h, c2w, c2b)
    h = _elu(h)
    h = conv2d(h, c3w, c3b)
    mp_flat = h.reshape(1, -1)

    fc_out = jnp.dot(_elu(mp_flat), fcw.T,
                     precision=jax.lax.Precision.HIGHEST) + fcb
    cat = jnp.concatenate([weights, fc_out], axis=1)
    out = jnp.dot(cat, fc2w.T, precision=jax.lax.Precision.HIGHEST) + fc2b
    return _elu(out)


# ----------------------------------------------------------------------------
# Deterministic parameter init (shapes from fine_tuner_hyper.__init__)
# ----------------------------------------------------------------------------
def init_params(key):
    ks = jax.random.split(key, 10)
    c1w = jax.random.normal(ks[0], (1, 16, 3, 3), jnp.float32) * 0.1
    c1b = jax.random.normal(ks[1], (1,), jnp.float32) * 0.1
    c2w = jax.random.normal(ks[2], (1, 1, 3, 3), jnp.float32) * 0.1
    c2b = jax.random.normal(ks[3], (1,), jnp.float32) * 0.1
    c3w = jax.random.normal(ks[4], (1, 1, 3, 3), jnp.float32) * 0.1
    c3b = jax.random.normal(ks[5], (1,), jnp.float32) * 0.1
    bound_fc = math.sqrt(6.0 / FC_IN)
    fcw = jax.random.uniform(ks[6], (CNT, FC_IN), jnp.float32,
                             minval=-bound_fc, maxval=bound_fc)
    fcb = jax.random.normal(ks[7], (CNT,), jnp.float32) * 0.01
    a = math.sqrt(3.0 * 2.0 / (2 * CNT * 32))
    fc2w = jax.random.uniform(ks[8], (CNT, 2 * CNT), jnp.float32,
                              minval=-a, maxval=a)
    fc2b = jax.random.normal(ks[9], (CNT,), jnp.float32) * 0.01
    return (c1w, c1b, c2w, c2b, c3w, c3b, fcw, fcb, fc2w, fc2b)


if __name__ == "__main__":
    key = jax.random.PRNGKey(0)
    kp, kw, km = jax.random.split(key, 3)

    params = init_params(kp)
    weights = jax.random.normal(kw, (1, CNT), jnp.float32)        # (1, 128)
    mp = jax.random.normal(km, (1, 16, H_IN, W_IN), jnp.float32)  # (1, 16, 64, 64)

    # One-time weight re-layout (not part of the per-call path).
    prep = jax.tree_util.tree_map(jax.block_until_ready, prepare_params(params))

    out = fine_tuner_hyper_forward(weights, mp, prep)
    out = jax.block_until_ready(out)

    ref = jax.block_until_ready(reference_forward(weights, mp, params))

    assert out.shape == (1, CNT), out.shape
    np.testing.assert_allclose(np.asarray(out), np.asarray(ref),
                               rtol=1e-2, atol=1e-2)
    print("KERNEL_OK")
</pallas_src>

<mosaic_0001>
module attributes {stable_mosaic.version = 11 : i64} {
  func.func @fused_kernel(%arg0: memref<1x128xf32, #tpu.memory_space<vmem>>, %arg1: memref<16x64x64xf32, #tpu.memory_space<vmem>>, %arg2: memref<144xf32, #tpu.memory_space<smem>>, %arg3: memref<1xf32, #tpu.memory_space<smem>>, %arg4: memref<9xf32, #tpu.memory_space<smem>>, %arg5: memref<1xf32, #tpu.memory_space<smem>>, %arg6: memref<9xf32, #tpu.memory_space<smem>>, %arg7: memref<1xf32, #tpu.memory_space<smem>>, %arg8: memref<4096x128xbf16, #tpu.memory_space<any>>, %arg9: memref<1x128xf32, #tpu.memory_space<vmem>>, %arg10: memref<128x128xbf16, #tpu.memory_space<vmem>>, %arg11: memref<128x128xbf16, #tpu.memory_space<vmem>>, %arg12: memref<1x128xf32, #tpu.memory_space<vmem>>, %arg13: memref<1x128xf32, #tpu.memory_space<vmem>>, %arg14: memref<4096x128xbf16, #tpu.memory_space<vmem>>, %arg15: memref<!tpu.dma_semaphore, #tpu.memory_space<semaphore_mem>>, %arg16: memref<64x64xf32, #tpu.memory_space<vmem>>, %arg17: memref<1x4096xf32, #tpu.memory_space<vmem>>) attributes {dimension_semantics = [], scalar_prefetch = 0 : i64, scratch_operands = 4 : i64, tpu.core_type = #tpu.core_type<tc>} {
    tpu.enqueue_dma source(%arg8 : memref<4096x128xbf16, #tpu.memory_space<any>>) target(%arg14 : memref<4096x128xbf16, #tpu.memory_space<vmem>>) target_semaphore(%arg15 : memref<!tpu.dma_semaphore, #tpu.memory_space<semaphore_mem>>)
    %c0 = arith.constant 0 : index
    %c0_0 = arith.constant 0 : index
    %0 = vector.load %arg0[%c0, %c0_0] : memref<1x128xf32, #tpu.memory_space<vmem>>, vector<1x128xf32>
    %1 = arith.truncf %0 : vector<1x128xf32> to vector<1x128xbf16>
    %c0_1 = arith.constant 0 : index
    %c0_2 = arith.constant 0 : index
    %2 = vector.load %arg10[%c0_1, %c0_2] : memref<128x128xbf16, #tpu.memory_space<vmem>>, vector<128x128xbf16>
    %cst = arith.constant dense<0.000000e+00> : vector<1x128xf32>
    %3 = tpu.matmul %1, %2, %cst {dimension_numbers = #tpu.dot_dimension_numbers<[1], [0], [0], [1], [0, 0, 1, 1], [], []>} : vector<1x128xbf16>, vector<128x128xbf16>, vector<1x128xf32> -> vector<1x128xf32>
    %c0_3 = arith.constant 0 : index
    %4 = memref.load %arg3[%c0_3] : memref<1xf32, #tpu.memory_space<smem>>
    %5 = vector.broadcast %4 : f32 to vector<62x62xf32>
    %c0_4 = arith.constant 0 : index
    %6 = memref.load %arg2[%c0_4] : memref<144xf32, #tpu.memory_space<smem>>
    %c0_5 = arith.constant 0 : index
    %c0_6 = arith.constant 0 : index
    %c0_7 = arith.constant 0 : index
    %7 = vector.load %arg1[%c0_5, %c0_6, %c0_7] : memref<16x64x64xf32, #tpu.memory_space<vmem>>, vector<1x64x64xf32>
    %8 = vector.shape_cast %7 : vector<1x64x64xf32> to vector<64x64xf32>
    %9 = vector.broadcast %6 : f32 to vector<64x64xf32>
    %10 = arith.mulf %9, %8 : vector<64x64xf32>
    %c9 = arith.constant 9 : index
    %11 = memref.load %arg2[%c9] : memref<144xf32, #tpu.memory_space<smem>>
    %c1 = arith.constant 1 : index
    %c0_8 = arith.constant 0 : index
    %c0_9 = arith.constant 0 : index
    %12 = vector.load %arg1[%c1, %c0_8, %c0_9] : memref<16x64x64xf32, #tpu.memory_space<vmem>>, vector<1x64x64xf32>
    %13 = vector.shape_cast %12 : vector<1x64x64xf32> to vector<64x64xf32>
    %14 = vector.broadcast %11 : f32 to vector<64x64xf32>
    %15 = arith.mulf %14, %13 : vector<64x64xf32>
    %16 = arith.addf %10, %15 : vector<64x64xf32>
    %c18 = arith.constant 18 : index
    %17 = memref.load %arg2[%c18] : memref<144xf32, #tpu.memory_space<smem>>
    %c2 = arith.constant 2 : index
    %c0_10 = arith.constant 0 : index
    %c0_11 = arith.constant 0 : index
    %18 = vector.load %arg1[%c2, %c0_10, %c0_11] : memref<16x64x64xf32, #tpu.memory_space<vmem>>, vector<1x64x64xf32>
    %19 = vector.shape_cast %18 : vector<1x64x64xf32> to vector<64x64xf32>
    %20 = vector.broadcast %17 : f32 to vector<64x64xf32>
    %21 = arith.mulf %20, %19 : vector<64x64xf32>
    %22 = arith.addf %16, %21 : vector<64x64xf32>
    %c27 = arith.constant 27 : index
    %23 = memref.load %arg2[%c27] : memref<144xf32, #tpu.memory_space<smem>>
    %c3 = arith.constant 3 : index
    %c0_12 = arith.constant 0 : index
    %c0_13 = arith.constant 0 : index
    %24 = vector.load %arg1[%c3, %c0_12, %c0_13] : memref<16x64x64xf32, #tpu.memory_space<vmem>>, vector<1x64x64xf32>
    %25 = vector.shape_cast %24 : vector<1x64x64xf32> to vector<64x64xf32>
    %26 = vector.broadcast %23 : f32 to vector<64x64xf32>
    %27 = arith.mulf %26, %25 : vector<64x64xf32>
    %28 = arith.addf %22, %27 : vector<64x64xf32>
    %c36 = arith.constant 36 : index
    %29 = memref.load %arg2[%c36] : memref<144xf32, #tpu.memory_space<smem>>
    %c4 = arith.constant 4 : index
    %c0_14 = arith.constant 0 : index
    %c0_15 = arith.constant 0 : index
    %30 = vector.load %arg1[%c4, %c0_14, %c0_15] : memref<16x64x64xf32, #tpu.memory_space<vmem>>, vector<1x64x64xf32>
    %31 = vector.shape_cast %30 : vector<1x64x64xf32> to vector<64x64xf32>
    %32 = vector.broadcast %29 : f32 to vector<64x64xf32>
    %33 = arith.mulf %32, %31 : vector<64x64xf32>
    %34 = arith.addf %28, %33 : vector<64x64xf32>
    %c45 = arith.constant 45 : index
    %35 = memref.load %arg2[%c45] : memref<144xf32, #tpu.memory_space<smem>>
    %c5 = arith.constant 5 : index
    %c0_16 = arith.constant 0 : index
    %c0_17 = arith.constant 0 : index
    %36 = vector.load %arg1[%c5, %c0_16, %c0_17] : memref<16x64x64xf32, #tpu.memory_space<vmem>>, vector<1x64x64xf32>
    %37 = vector.shape_cast %36 : vector<1x64x64xf32> to vector<64x64xf32>
    %38 = vector.broadcast %35 : f32 to vector<64x64xf32>
    %39 = arith.mulf %38, %37 : vector<64x64xf32>
    %40 = arith.addf %34, %39 : vector<64x64xf32>
    %c54 = arith.constant 54 : index
    %41 = memref.load %arg2[%c54] : memref<144xf32, #tpu.memory_space<smem>>
    %c6 = arith.constant 6 : index
    %c0_18 = arith.constant 0 : index
    %c0_19 = arith.constant 0 : index
    %42 = vector.load %arg1[%c6, %c0_18, %c0_19] : memref<16x64x64xf32, #tpu.memory_space<vmem>>, vector<1x64x64xf32>
    %43 = vector.shape_cast %42 : vector<1x64x64xf32> to vector<64x64xf32>
    %44 = vector.broadcast %41 : f32 to vector<64x64xf32>
    %45 = arith.mulf %44, %43 : vector<64x64xf32>
    %46 = arith.addf %40, %45 : vector<64x64xf32>
    %c63 = arith.constant 63 : index
    %47 = memref.load %arg2[%c63] : memref<144xf32, #tpu.memory_space<smem>>
    %c7 = arith.constant 7 : index
    %c0_20 = arith.constant 0 : index
    %c0_21 = arith.constant 0 : index
    %48 = vector.load %arg1[%c7, %c0_20, %c0_21] : memref<16x64x64xf32, #tpu.memory_space<vmem>>, vector<1x64x64xf32>
    %49 = vector.shape_cast %48 : vector<1x64x64xf32> to vector<64x64xf32>
    %50 = vector.broadcast %47 : f32 to vector<64x64xf32>
    %51 = arith.mulf %50, %49 : vector<64x64xf32>
    %52 = arith.addf %46, %51 : vector<64x64xf32>
    %c72 = arith.constant 72 : index
    %53 = memref.load %arg2[%c72] : memref<144xf32, #tpu.memory_space<smem>>
    %c8 = arith.constant 8 : index
    %c0_22 = arith.constant 0 : index
    %c0_23 = arith.constant 0 : index
    %54 = vector.load %arg1[%c8, %c0_22, %c0_23] : memref<16x64x64xf32, #tpu.memory_space<vmem>>, vector<1x64x64xf32>
    %55 = vector.shape_cast %54 : vector<1x64x64xf32> to vector<64x64xf32>
    %56 = vector.broadcast %53 : f32 to vector<64x64xf32>
    %57 = arith.mulf %56, %55 : vector<64x64xf32>
    %58 = arith.addf %52, %57 : vector<64x64xf32>
    %c81 = arith.constant 81 : index
    %59 = memref.load %arg2[%c81] : memref<144xf32, #tpu.memory_space<smem>>
    %c9_24 = arith.constant 9 : index
    %c0_25 = arith.constant 0 : index
    %c0_26 = arith.constant 0 : index
    %60 = vector.load %arg1[%c9_24, %c0_25, %c0_26] : memref<16x64x64xf32, #tpu.memory_space<vmem>>, vector<1x64x64xf32>
    %61 = vector.shape_cast %60 : vector<1x64x64xf32> to vector<64x64xf32>
    %62 = vector.broadcast %59 : f32 to vector<64x64xf32>
    %63 = arith.mulf %62, %61 : vector<64x64xf32>
    %64 = arith.addf %58, %63 : vector<64x64xf32>
    %c90 = arith.constant 90 : index
    %65 = memref.load %arg2[%c90] : memref<144xf32, #tpu.memory_space<smem>>
    %c10 = arith.constant 10 : index
    %c0_27 = arith.constant 0 : index
    %c0_28 = arith.constant 0 : index
    %66 = vector.load %arg1[%c10, %c0_27, %c0_28] : memref<16x64x64xf32, #tpu.memory_space<vmem>>, vector<1x64x64xf32>
    %67 = vector.shape_cast %66 : vector<1x64x64xf32> to vector<64x64xf32>
    %68 = vector.broadcast %65 : f32 to vector<64x64xf32>
    %69 = arith.mulf %68, %67 : vector<64x64xf32>
    %70 = arith.addf %64, %69 : vector<64x64xf32>
    %c99 = arith.constant 99 : index
    %71 = memref.load %arg2[%c99] : memref<144xf32, #tpu.memory_space<smem>>
    %c11 = arith.constant 11 : index
    %c0_29 = arith.constant 0 : index
    %c0_30 = arith.constant 0 : index
    %72 = vector.load %arg1[%c11, %c0_29, %c0_30] : memref<16x64x64xf32, #tpu.memory_space<vmem>>, vector<1x64x64xf32>
    %73 = vector.shape_cast %72 : vector<1x64x64xf32> to vector<64x64xf32>
    %74 = vector.broadcast %71 : f32 to vector<64x64xf32>
    %75 = arith.mulf %74, %73 : vector<64x64xf32>
    %76 = arith.addf %70, %75 : vector<64x64xf32>
    %c108 = arith.constant 108 : index
    %77 = memref.load %arg2[%c108] : memref<144xf32, #tpu.memory_space<smem>>
    %c12 = arith.constant 12 : index
    %c0_31 = arith.constant 0 : index
    %c0_32 = arith.constant 0 : index
    %78 = vector.load %arg1[%c12, %c0_31, %c0_32] : memref<16x64x64xf32, #tpu.memory_space<vmem>>, vector<1x64x64xf32>
    %79 = vector.shape_cast %78 : vector<1x64x64xf32> to vector<64x64xf32>
    %80 = vector.broadcast %77 : f32 to vector<64x64xf32>
    %81 = arith.mulf %80, %79 : vector<64x64xf32>
    %82 = arith.addf %76, %81 : vector<64x64xf32>
    %c117 = arith.constant 117 : index
    %83 = memref.load %arg2[%c117] : memref<144xf32, #tpu.memory_space<smem>>
    %c13 = arith.constant 13 : index
    %c0_33 = arith.constant 0 : index
    %c0_34 = arith.constant 0 : index
    %84 = vector.load %arg1[%c13, %c0_33, %c0_34] : memref<16x64x64xf32, #tpu.memory_space<vmem>>, vector<1x64x64xf32>
    %85 = vector.shape_cast %84 : vector<1x64x64xf32> to vector<64x64xf32>
    %86 = vector.broadcast %83 : f32 to vector<64x64xf32>
    %87 = arith.mulf %86, %85 : vector<64x64xf32>
    %88 = arith.addf %82, %87 : vector<64x64xf32>
    %c126 = arith.constant 126 : index
    %89 = memref.load %arg2[%c126] : memref<144xf32, #tpu.memory_space<smem>>
    %c14 = arith.constant 14 : index
    %c0_35 = arith.constant 0 : index
    %c0_36 = arith.constant 0 : index
    %90 = vector.load %arg1[%c14, %c0_35, %c0_36] : memref<16x64x64xf32, #tpu.memory_space<vmem>>, vector<1x64x64xf32>
    %91 = vector.shape_cast %90 : vector<1x64x64xf32> to vector<64x64xf32>
    %92 = vector.broadcast %89 : f32 to vector<64x64xf32>
    %93 = arith.mulf %92, %91 : vector<64x64xf32>
    %94 = arith.addf %88, %93 : vector<64x64xf32>
    %c135 = arith.constant 135 : index
    %95 = memref.load %arg2[%c135] : memref<144xf32, #tpu.memory_space<smem>>
    %c15 = arith.constant 15 : index
    %c0_37 = arith.constant 0 : index
    %c0_38 = arith.constant 0 : index
    %96 = vector.load %arg1[%c15, %c0_37, %c0_38] : memref<16x64x64xf32, #tpu.memory_space<vmem>>, vector<1x64x64xf32>
    %97 = vector.shape_cast %96 : vector<1x64x64xf32> to vector<64x64xf32>
    %98 = vector.broadcast %95 : f32 to vector<64x64xf32>
    %99 = arith.mulf %98, %97 : vector<64x64xf32>
    %100 = arith.addf %94, %99 : vector<64x64xf32>
    %101 = vector.extract_strided_slice %100 {offsets = [0, 0], sizes = [62, 62], strides = [1, 1]} : vector<64x64xf32> to vector<62x62xf32>
    %102 = arith.addf %5, %101 : vector<62x62xf32>
    %c1_39 = arith.constant 1 : index
    %103 = memref.load %arg2[%c1_39] : memref<144xf32, #tpu.memory_space<smem>>
    %c0_40 = arith.constant 0 : index
    %c0_41 = arith.constant 0 : index
    %c0_42 = arith.constant 0 : index
    %104 = vector.load %arg1[%c0_40, %c0_41, %c0_42] : memref<16x64x64xf32, #tpu.memory_space<vmem>>, vector<1x64x64xf32>
    %105 = vector.shape_cast %104 : vector<1x64x64xf32> to vector<64x64xf32>
    %106 = vector.broadcast %103 : f32 to vector<64x64xf32>
    %107 = arith.mulf %106, %105 : vector<64x64xf32>
    %c10_43 = arith.constant 10 : index
    %108 = memref.load %arg2[%c10_43] : memref<144xf32, #tpu.memory_space<smem>>
    %c1_44 = arith.constant 1 : index
    %c0_45 = arith.constant 0 : index
    %c0_46 = arith.constant 0 : index
    %109 = vector.load %arg1[%c1_44, %c0_45, %c0_46] : memref<16x64x64xf32, #tpu.memory_space<vmem>>, vector<1x64x64xf32>
    %110 = vector.shape_cast %109 : vector<1x64x64xf32> to vector<64x64xf32>
    %111 = vector.broadcast %108 : f32 to vector<64x64xf32>
    %112 = arith.mulf %111, %110 : vector<64x64xf32>
    %113 = arith.addf %107, %112 : vector<64x64xf32>
    %c19 = arith.constant 19 : index
    %114 = memref.load %arg2[%c19] : memref<144xf32, #tpu.memory_space<smem>>
    %c2_47 = arith.constant 2 : index
    %c0_48 = arith.constant 0 : index
    %c0_49 = arith.constant 0 : index
    %115 = vector.load %arg1[%c2_47, %c0_48, %c0_49] : memref<16x64x64xf32, #tpu.memory_space<vmem>>, vector<1x64x64xf32>
    %116 = vector.shape_cast %115 : vector<1x64x64xf32> to vector<64x64xf32>
    %117 = vector.broadcast %114 : f32 to vector<64x64xf32>
    %118 = arith.mulf %117, %116 : vector<64x64xf32>
    %119 = arith.addf %113, %118 : vector<64x64xf32>
    %c28 = arith.constant 28 : index
    %120 = memref.load %arg2[%c28] : memref<144xf32, #tpu.memory_space<smem>>
    %c3_50 = arith.constant 3 : index
    %c0_51 = arith.constant 0 : index
    %c0_52 = arith.constant 0 : index
    %121 = vector.load %arg1[%c3_50, %c0_51, %c0_52] : memref<16x64x64xf32, #tpu.memory_space<vmem>>, vector<1x64x64xf32>
    %122 = vector.shape_cast %121 : vector<1x64x64xf32> to vector<64x64xf32>
    %123 = vector.broadcast %120 : f32 to vector<64x64xf32>
    %124 = arith.mulf %123, %122 : vector<64x64xf32>
    %125 = arith.addf %119, %124 : vector<64x64xf32>
    %c37 = arith.constant 37 : index
    %126 = memref.load %arg2[%c37] : memref<144xf32, #tpu.memory_space<smem>>
    %c4_53 = arith.constant 4 : index
    %c0_54 = arith.constant 0 : index
    %c0_55 = arith.constant 0 : index
    %127 = vector.load %arg1[%c4_53, %c0_54, %c0_55] : memref<16x64x64xf32, #tpu.memory_space<vmem>>, vector<1x64x64xf32>
    %128 = vector.shape_cast %127 : vector<1x64x64xf32> to vector<64x64xf32>
    %129 = vector.broadcast %126 : f32 to vector<64x64xf32>
    %130 = arith.mulf %129, %128 : vector<64x64xf32>
    %131 = arith.addf %125, %130 : vector<64x64xf32>
    %c46 = arith.constant 46 : index
    %132 = memref.load %arg2[%c46] : memref<144xf32, #tpu.memory_space<smem>>
    %c5_56 = arith.constant 5 : index
    %c0_57 = arith.constant 0 : index
    %c0_58 = arith.constant 0 : index
    %133 = vector.load %arg1[%c5_56, %c0_57, %c0_58] : memref<16x64x64xf32, #tpu.memory_space<vmem>>, vector<1x64x64xf32>
    %134 = vector.shape_cast %133 : vector<1x64x64xf32> to vector<64x64xf32>
    %135 = vector.broadcast %132 : f32 to vector<64x64xf32>
    %136 = arith.mulf %135, %134 : vector<64x64xf32>
    %137 = arith.addf %131, %136 : vector<64x64xf32>
    %c55 = arith.constant 55 : index
    %138 = memref.load %arg2[%c55] : memref<144xf32, #tpu.memory_space<smem>>
    %c6_59 = arith.constant 6 : index
    %c0_60 = arith.constant 0 : index
    %c0_61 = arith.constant 0 : index
    %139 = vector.load %arg1[%c6_59, %c0_60, %c0_61] : memref<16x64x64xf32, #tpu.memory_space<vmem>>, vector<1x64x64xf32>
    %140 = vector.shape_cast %139 : vector<1x64x64xf32> to vector<64x64xf32>
    %141 = vector.broadcast %138 : f32 to vector<64x64xf32>
    %142 = arith.mulf %141, %140 : vector<64x64xf32>
    %143 = arith.addf %137, %142 : vector<64x64xf32>
    %c64 = arith.constant 64 : index
    %144 = memref.load %arg2[%c64] : memref<144xf32, #tpu.memory_space<smem>>
    %c7_62 = arith.constant 7 : index
    %c0_63 = arith.constant 0 : index
    %c0_64 = arith.constant 0 : index
    %145 = vector.load %arg1[%c7_62, %c0_63, %c0_64] : memref<16x64x64xf32, #tpu.memory_space<vmem>>, vector<1x64x64xf32>
    %146 = vector.shape_cast %145 : vector<1x64x64xf32> to vector<64x64xf32>
    %147 = vector.broadcast %144 : f32 to vector<64x64xf32>
    %148 = arith.mulf %147, %146 : vector<64x64xf32>
    %149 = arith.addf %143, %148 : vector<64x64xf32>
    %c73 = arith.constant 73 : index
    %150 = memref.load %arg2[%c73] : memref<144xf32, #tpu.memory_space<smem>>
    %c8_65 = arith.constant 8 : index
    %c0_66 = arith.constant 0 : index
    %c0_67 = arith.constant 0 : index
    %151 = vector.load %arg1[%c8_65, %c0_66, %c0_67] : memref<16x64x64xf32, #tpu.memory_space<vmem>>, vector<1x64x64xf32>
    %152 = vector.shape_cast %151 : vector<1x64x64xf32> to vector<64x64xf32>
    %153 = vector.broadcast %150 : f32 to vector<64x64xf32>
    %154 = arith.mulf %153, %152 : vector<64x64xf32>
    %155 = arith.addf %149, %154 : vector<64x64xf32>
    %c82 = arith.constant 82 : index
    %156 = memref.load %arg2[%c82] : memref<144xf32, #tpu.memory_space<smem>>
    %c9_68 = arith.constant 9 : index
    %c0_69 = arith.constant 0 : index
    %c0_70 = arith.constant 0 : index
    %157 = vector.load %arg1[%c9_68, %c0_69, %c0_70] : memref<16x64x64xf32, #tpu.memory_space<vmem>>, vector<1x64x64xf32>
    %158 = vector.shape_cast %157 : vector<1x64x64xf32> to vector<64x64xf32>
    %159 = vector.broadcast %156 : f32 to vector<64x64xf32>
    %160 = arith.mulf %159, %158 : vector<64x64xf32>
    %161 = arith.addf %155, %160 : vector<64x64xf32>
    %c91 = arith.constant 91 : index
    %162 = memref.load %arg2[%c91] : memref<144xf32, #tpu.memory_space<smem>>
    %c10_71 = arith.constant 10 : index
    %c0_72 = arith.constant 0 : index
    %c0_73 = arith.constant 0 : index
    %163 = vector.load %arg1[%c10_71, %c0_72, %c0_73] : memref<16x64x64xf32, #tpu.memory_space<vmem>>, vector<1x64x64xf32>
    %164 = vector.shape_cast %163 : vector<1x64x64xf32> to vector<64x64xf32>
    %165 = vector.broadcast %162 : f32 to vector<64x64xf32>
    %166 = arith.mulf %165, %164 : vector<64x64xf32>
    %167 = arith.addf %161, %166 : vector<64x64xf32>
    %c100 = arith.constant 100 : index
    %168 = memref.load %arg2[%c100] : memref<144xf32, #tpu.memory_space<smem>>
    %c11_74 = arith.constant 11 : index
    %c0_75 = arith.constant 0 : index
    %c0_76 = arith.constant 0 : index
    %169 = vector.load %arg1[%c11_74, %c0_75, %c0_76] : memref<16x64x64xf32, #tpu.memory_space<vmem>>, vector<1x64x64xf32>
    %170 = vector.shape_cast %169 : vector<1x64x64xf32> to vector<64x64xf32>
    %171 = vector.broadcast %168 : f32 to vector<64x64xf32>
    %172 = arith.mulf %171, %170 : vector<64x64xf32>
    %173 = arith.addf %167, %172 : vector<64x64xf32>
    %c109 = arith.constant 109 : index
    %174 = memref.load %arg2[%c109] : memref<144xf32, #tpu.memory_space<smem>>
    %c12_77 = arith.constant 12 : index
    %c0_78 = arith.constant 0 : index
    %c0_79 = arith.constant 0 : index
    %175 = vector.load %arg1[%c12_77, %c0_78, %c0_79] : memref<16x64x64xf32, #tpu.memory_space<vmem>>, vector<1x64x64xf32>
    %176 = vector.shape_cast %175 : vector<1x64x64xf32> to vector<64x64xf32>
    %177 = vector.broadcast %174 : f32 to vector<64x64xf32>
    %178 = arith.mulf %177, %176 : vector<64x64xf32>
    %179 = arith.addf %173, %178 : vector<64x64xf32>
    %c118 = arith.constant 118 : index
    %180 = memref.load %arg2[%c118] : memref<144xf32, #tpu.memory_space<smem>>
    %c13_80 = arith.constant 13 : index
    %c0_81 = arith.constant 0 : index
    %c0_82 = arith.constant 0 : index
    %181 = vector.load %arg1[%c13_80, %c0_81, %c0_82] : memref<16x64x64xf32, #tpu.memory_space<vmem>>, vector<1x64x64xf32>
    %182 = vector.shape_cast %181 : vector<1x64x64xf32> to vector<64x64xf32>
    %183 = vector.broadcast %180 : f32 to vector<64x64xf32>
    %184 = arith.mulf %183, %182 : vector<64x64xf32>
    %185 = arith.addf %179, %184 : vector<64x64xf32>
    %c127 = arith.constant 127 : index
    %186 = memref.load %arg2[%c127] : memref<144xf32, #tpu.memory_space<smem>>
    %c14_83 = arith.constant 14 : index
    %c0_84 = arith.constant 0 : index
    %c0_85 = arith.constant 0 : index
    %187 = vector.load %arg1[%c14_83, %c0_84, %c0_85] : memref<16x64x64xf32, #tpu.memory_space<vmem>>, vector<1x64x64xf32>
    %188 = vector.shape_cast %187 : vector<1x64x64xf32> to vector<64x64xf32>
    %189 = vector.broadcast %186 : f32 to vector<64x64xf32>
    %190 = arith.mulf %189, %188 : vector<64x64xf32>
    %191 = arith.addf %185, %190 : vector<64x64xf32>
    %c136 = arith.constant 136 : index
    %192 = memref.load %arg2[%c136] : memref<144xf32, #tpu.memory_space<smem>>
    %c15_86 = arith.constant 15 : index
    %c0_87 = arith.constant 0 : index
    %c0_88 = arith.constant 0 : index
    %193 = vector.load %arg1[%c15_86, %c0_87, %c0_88] : memref<16x64x64xf32, #tpu.memory_space<vmem>>, vector<1x64x64xf32>
    %194 = vector.shape_cast %193 : vector<1x64x64xf32> to vector<64x64xf32>
    %195 = vector.broadcast %192 : f32 to vector<64x64xf32>
    %196 = arith.mulf %195, %194 : vector<64x64xf32>
    %197 = arith.addf %191, %196 : vector<64x64xf32>
    %198 = vector.extract_strided_slice %197 {offsets = [0, 1], sizes = [62, 62], strides = [1, 1]} : vector<64x64xf32> to vector<62x62xf32>
    %199 = arith.addf %102, %198 : vector<62x62xf32>
    %c2_89 = arith.constant 2 : index
    %200 = memref.load %arg2[%c2_89] : memref<144xf32, #tpu.memory_space<smem>>
    %c0_90 = arith.constant 0 : index
    %c0_91 = arith.constant 0 : index
    %c0_92 = arith.constant 0 : index
    %201 = vector.load %arg1[%c0_90, %c0_91, %c0_92] : memref<16x64x64xf32, #tpu.memory_space<vmem>>, vector<1x64x64xf32>
    %202 = vector.shape_cast %201 : vector<1x64x64xf32> to vector<64x64xf32>
    %203 = vector.broadcast %200 : f32 to vector<64x64xf32>
    %204 = arith.mulf %203, %202 : vector<64x64xf32>
    %c11_93 = arith.constant 11 : index
    %205 = memref.load %arg2[%c11_93] : memref<144xf32, #tpu.memory_space<smem>>
    %c1_94 = arith.constant 1 : index
    %c0_95 = arith.constant 0 : index
    %c0_96 = arith.constant 0 : index
    %206 = vector.load %arg1[%c1_94, %c0_95, %c0_96] : memref<16x64x64xf32, #tpu.memory_space<vmem>>, vector<1x64x64xf32>
    %207 = vector.shape_cast %206 : vector<1x64x64xf32> to vector<64x64xf32>
    %208 = vector.broadcast %205 : f32 to vector<64x64xf32>
    %209 = arith.mulf %208, %207 : vector<64x64xf32>
    %210 = arith.addf %204, %209 : vector<64x64xf32>
    %c20 = arith.constant 20 : index
    %211 = memref.load %arg2[%c20] : memref<144xf32, #tpu.memory_space<smem>>
    %c2_97 = arith.constant 2 : index
    %c0_98 = arith.constant 0 : index
    %c0_99 = arith.constant 0 : index
    %212 = vector.load %arg1[%c2_97, %c0_98, %c0_99] : memref<16x64x64xf32, #tpu.memory_space<vmem>>, vector<1x64x64xf32>
    %213 = vector.shape_cast %212 : vector<1x64x64xf32> to vector<64x64xf32>
    %214 = vector.broadcast %211 : f32 to vector<64x64xf32>
    %215 = arith.mulf %214, %213 : vector<64x64xf32>
    %216 = arith.addf %210, %215 : vector<64x64xf32>
    %c29 = arith.constant 29 : index
    %217 = memref.load %arg2[%c29] : memref<144xf32, #tpu.memory_space<smem>>
    %c3_100 = arith.constant 3 : index
    %c0_101 = arith.constant 0 : index
    %c0_102 = arith.constant 0 : index
    %218 = vector.load %arg1[%c3_100, %c0_101, %c0_102] : memref<16x64x64xf32, #tpu.memory_space<vmem>>, vector<1x64x64xf32>
    %219 = vector.shape_cast %218 : vector<1x64x64xf32> to vector<64x64xf32>
    %220 = vector.broadcast %217 : f32 to vector<64x64xf32>
    %221 = arith.mulf %220, %219 : vector<64x64xf32>
    %222 = arith.addf %216, %221 : vector<64x64xf32>
    %c38 = arith.constant 38 : index
    %223 = memref.load %arg2[%c38] : memref<144xf32, #tpu.memory_space<smem>>
    %c4_103 = arith.constant 4 : index
    %c0_104 = arith.constant 0 : index
    %c0_105 = arith.constant 0 : index
    %224 = vector.load %arg1[%c4_103, %c0_104, %c0_105] : memref<16x64x64xf32, #tpu.memory_space<vmem>>, vector<1x64x64xf32>
    %225 = vector.shape_cast %224 : vector<1x64x64xf32> to vector<64x64xf32>
    %226 = vector.broadcast %223 : f32 to vector<64x64xf32>
    %227 = arith.mulf %226, %225 : vector<64x64xf32>
    %228 = arith.addf %222, %227 : vector<64x64xf32>
    %c47 = arith.constant 47 : index
    %229 = memref.load %arg2[%c47] : memref<144xf32, #tpu.memory_space<smem>>
    %c5_106 = arith.constant 5 : index
    %c0_107 = arith.constant 0 : index
    %c0_108 = arith.constant 0 : index
    %230 = vector.load %arg1[%c5_106, %c0_107, %c0_108] : memref<16x64x64xf32, #tpu.memory_space<vmem>>, vector<1x64x64xf32>
    %231 = vector.shape_cast %230 : vector<1x64x64xf32> to vector<64x64xf32>
    %232 = vector.broadcast %229 : f32 to vector<64x64xf32>
    %233 = arith.mulf %232, %231 : vector<64x64xf32>
    %234 = arith.addf %228, %233 : vector<64x64xf32>
    %c56 = arith.constant 56 : index
    %235 = memref.load %arg2[%c56] : memref<144xf32, #tpu.memory_space<smem>>
    %c6_109 = arith.constant 6 : index
    %c0_110 = arith.constant 0 : index
    %c0_111 = arith.constant 0 : index
    %236 = vector.load %arg1[%c6_109, %c0_110, %c0_111] : memref<16x64x64xf32, #tpu.memory_space<vmem>>, vector<1x64x64xf32>
    %237 = vector.shape_cast %236 : vector<1x64x64xf32> to vector<64x64xf32>
    %238 = vector.broadcast %235 : f32 to vector<64x64xf32>
    %239 = arith.mulf %238, %237 : vector<64x64xf32>
    %240 = arith.addf %234, %239 : vector<64x64xf32>
    %c65 = arith.constant 65 : index
    %241 = memref.load %arg2[%c65] : memref<144xf32, #tpu.memory_space<smem>>
    %c7_112 = arith.constant 7 : index
    %c0_113 = arith.constant 0 : index
    %c0_114 = arith.constant 0 : index
    %242 = vector.load %arg1[%c7_112, %c0_113, %c0_114] : memref<16x64x64xf32, #tpu.memory_space<vmem>>, vector<1x64x64xf32>
    %243 = vector.shape_cast %242 : vector<1x64x64xf32> to vector<64x64xf32>
    %244 = vector.broadcast %241 : f32 to vector<64x64xf32>
    %245 = arith.mulf %244, %243 : vector<64x64xf32>
    %246 = arith.addf %240, %245 : vector<64x64xf32>
    %c74 = arith.constant 74 : index
    %247 = memref.load %arg2[%c74] : memref<144xf32, #tpu.memory_space<smem>>
    %c8_115 = arith.constant 8 : index
    %c0_116 = arith.constant 0 : index
    %c0_117 = arith.constant 0 : index
    %248 = vector.load %arg1[%c8_115, %c0_116, %c0_117] : memref<16x64x64xf32, #tpu.memory_space<vmem>>, vector<1x64x64xf32>
    %249 = vector.shape_cast %248 : vector<1x64x64xf32> to vector<64x64xf32>
    %250 = vector.broadcast %247 : f32 to vector<64x64xf32>
    %251 = arith.mulf %250, %249 : vector<64x64xf32>
    %252 = arith.addf %246, %251 : vector<64x64xf32>
    %c83 = arith.constant 83 : index
    %253 = memref.load %arg2[%c83] : memref<144xf32, #tpu.memory_space<smem>>
    %c9_118 = arith.constant 9 : index
    %c0_119 = arith.constant 0 : index
    %c0_120 = arith.constant 0 : index
    %254 = vector.load %arg1[%c9_118, %c0_119, %c0_120] : memref<16x64x64xf32, #tpu.memory_space<vmem>>, vector<1x64x64xf32>
    %255 = vector.shape_cast %254 : vector<1x64x64xf32> to vector<64x64xf32>
    %256 = vector.broadcast %253 : f32 to vector<64x64xf32>
    %257 = arith.mulf %256, %255 : vector<64x64xf32>
    %258 = arith.addf %252, %257 : vector<64x64xf32>
    %c92 = arith.constant 92 : index
    %259 = memref.load %arg2[%c92] : memref<144xf32, #tpu.memory_space<smem>>
    %c10_121 = arith.constant 10 : index
    %c0_122 = arith.constant 0 : index
    %c0_123 = arith.constant 0 : index
    %260 = vector.load %arg1[%c10_121, %c0_122, %c0_123] : memref<16x64x64xf32, #tpu.memory_space<vmem>>, vector<1x64x64xf32>
    %261 = vector.shape_cast %260 : vector<1x64x64xf32> to vector<64x64xf32>
    %262 = vector.broadcast %259 : f32 to vector<64x64xf32>
    %263 = arith.mulf %262, %261 : vector<64x64xf32>
    %264 = arith.addf %258, %263 : vector<64x64xf32>
    %c101 = arith.constant 101 : index
    %265 = memref.load %arg2[%c101] : memref<144xf32, #tpu.memory_space<smem>>
    %c11_124 = arith.constant 11 : index
    %c0_125 = arith.constant 0 : index
    %c0_126 = arith.constant 0 : index
    %266 = vector.load %arg1[%c11_124, %c0_125, %c0_126] : memref<16x64x64xf32, #tpu.memory_space<vmem>>, vector<1x64x64xf32>
    %267 = vector.shape_cast %266 : vector<1x64x64xf32> to vector<64x64xf32>
    %268 = vector.broadcast %265 : f32 to vector<64x64xf32>
    %269 = arith.mulf %268, %267 : vector<64x64xf32>
    %270 = arith.addf %264, %269 : vector<64x64xf32>
    %c110 = arith.constant 110 : index
    %271 = memref.load %arg2[%c110] : memref<144xf32, #tpu.memory_space<smem>>
    %c12_127 = arith.constant 12 : index
    %c0_128 = arith.constant 0 : index
    %c0_129 = arith.constant 0 : index
    %272 = vector.load %arg1[%c12_127, %c0_128, %c0_129] : memref<16x64x64xf32, #tpu.memory_space<vmem>>, vector<1x64x64xf32>
    %273 = vector.shape_cast %272 : vector<1x64x64xf32> to vector<64x64xf32>
    %274 = vector.broadcast %271 : f32 to vector<64x64xf32>
    %275 = arith.mulf %274, %273 : vector<64x64xf32>
    %276 = arith.addf %270, %275 : vector<64x64xf32>
    %c119 = arith.constant 119 : index
    %277 = memref.load %arg2[%c119] : memref<144xf32, #tpu.memory_space<smem>>
    %c13_130 = arith.constant 13 : index
    %c0_131 = arith.constant 0 : index
    %c0_132 = arith.constant 0 : index
    %278 = vector.load %arg1[%c13_130, %c0_131, %c0_132] : memref<16x64x64xf32, #tpu.memory_space<vmem>>, vector<1x64x64xf32>
    %279 = vector.shape_cast %278 : vector<1x64x64xf32> to vector<64x64xf32>
    %280 = vector.broadcast %277 : f32 to vector<64x64xf32>
    %281 = arith.mulf %280, %279 : vector<64x64xf32>
    %282 = arith.addf %276, %281 : vector<64x64xf32>
    %c128 = arith.constant 128 : index
    %283 = memref.load %arg2[%c128] : memref<144xf32, #tpu.memory_space<smem>>
    %c14_133 = arith.constant 14 : index
    %c0_134 = arith.constant 0 : index
    %c0_135 = arith.constant 0 : index
    %284 = vector.load %arg1[%c14_133, %c0_134, %c0_135] : memref<16x64x64xf32, #tpu.memory_space<vmem>>, vector<1x64x64xf32>
    %285 = vector.shape_cast %284 : vector<1x64x64xf32> to vector<64x64xf32>
    %286 = vector.broadcast %283 : f32 to vector<64x64xf32>
    %287 = arith.mulf %286, %285 : vector<64x64xf32>
    %288 = arith.addf %282, %287 : vector<64x64xf32>
    %c137 = arith.constant 137 : index
    %289 = memref.load %arg2[%c137] : memref<144xf32, #tpu.memory_space<smem>>
    %c15_136 = arith.constant 15 : index
    %c0_137 = arith.constant 0 : index
    %c0_138 = arith.constant 0 : index
    %290 = vector.load %arg1[%c15_136, %c0_137, %c0_138] : memref<16x64x64xf32, #tpu.memory_space<vmem>>, vector<1x64x64xf32>
    %291 = vector.shape_cast %290 : vector<1x64x64xf32> to vector<64x64xf32>
    %292 = vector.broadcast %289 : f32 to vector<64x64xf32>
    %293 = arith.mulf %292, %291 : vector<64x64xf32>
    %294 = arith.addf %288, %293 : vector<64x64xf32>
    %295 = vector.extract_strided_slice %294 {offsets = [0, 2], sizes = [62, 62], strides = [1, 1]} : vector<64x64xf32> to vector<62x62xf32>
    %296 = arith.addf %199, %295 : vector<62x62xf32>
    %c3_139 = arith.constant 3 : index
    %297 = memref.load %arg2[%c3_139] : memref<144xf32, #tpu.memory_space<smem>>
    %c0_140 = arith.constant 0 : index
    %c0_141 = arith.constant 0 : index
    %c0_142 = arith.constant 0 : index
    %298 = vector.load %arg1[%c0_140, %c0_141, %c0_142] : memref<16x64x64xf32, #tpu.memory_space<vmem>>, vector<1x64x64xf32>
    %299 = vector.shape_cast %298 : vector<1x64x64xf32> to vector<64x64xf32>
    %300 = vector.broadcast %297 : f32 to vector<64x64xf32>
    %301 = arith.mulf %300, %299 : vector<64x64xf32>
    %c12_143 = arith.constant 12 : index
    %302 = memref.load %arg2[%c12_143] : memref<144xf32, #tpu.memory_space<smem>>
    %c1_144 = arith.constant 1 : index
    %c0_145 = arith.constant 0 : index
    %c0_146 = arith.constant 0 : index
    %303 = vector.load %arg1[%c1_144, %c0_145, %c0_146] : memref<16x64x64xf32, #tpu.memory_space<vmem>>, vector<1x64x64xf32>
    %304 = vector.shape_cast %303 : vector<1x64x64xf32> to vector<64x64xf32>
    %305 = vector.broadcast %302 : f32 to vector<64x64xf32>
    %306 = arith.mulf %305, %304 : vector<64x64xf32>
    %307 = arith.addf %301, %306 : vector<64x64xf32>
    %c21 = arith.constant 21 : index
    %308 = memref.load %arg2[%c21] : memref<144xf32, #tpu.memory_space<smem>>
    %c2_147 = arith.constant 2 : index
    %c0_148 = arith.constant 0 : index
    %c0_149 = arith.constant 0 : index
    %309 = vector.load %arg1[%c2_147, %c0_148, %c0_149] : memref<16x64x64xf32, #tpu.memory_space<vmem>>, vector<1x64x64xf32>
    %310 = vector.shape_cast %309 : vector<1x64x64xf32> to vector<64x64xf32>
    %311 = vector.broadcast %308 : f32 to vector<64x64xf32>
    %312 = arith.mulf %311, %310 : vector<64x64xf32>
    %313 = arith.addf %307, %312 : vector<64x64xf32>
    %c30 = arith.constant 30 : index
    %314 = memref.load %arg2[%c30] : memref<144xf32, #tpu.memory_space<smem>>
    %c3_150 = arith.constant 3 : index
    %c0_151 = arith.constant 0 : index
    %c0_152 = arith.constant 0 : index
    %315 = vector.load %arg1[%c3_150, %c0_151, %c0_152] : memref<16x64x64xf32, #tpu.memory_space<vmem>>, vector<1x64x64xf32>
    %316 = vector.shape_cast %315 : vector<1x64x64xf32> to vector<64x64xf32>
    %317 = vector.broadcast %314 : f32 to vector<64x64xf32>
    %318 = arith.mulf %317, %316 : vector<64x64xf32>
    %319 = arith.addf %313, %318 : vector<64x64xf32>
    %c39 = arith.constant 39 : index
    %320 = memref.load %arg2[%c39] : memref<144xf32, #tpu.memory_space<smem>>
    %c4_153 = arith.constant 4 : index
    %c0_154 = arith.constant 0 : index
    %c0_155 = arith.constant 0 : index
    %321 = vector.load %arg1[%c4_153, %c0_154, %c0_155] : memref<16x64x64xf32, #tpu.memory_space<vmem>>, vector<1x64x64xf32>
    %322 = vector.shape_cast %321 : vector<1x64x64xf32> to vector<64x64xf32>
    %323 = vector.broadcast %320 : f32 to vector<64x64xf32>
    %324 = arith.mulf %323, %322 : vector<64x64xf32>
    %325 = arith.addf %319, %324 : vector<64x64xf32>
    %c48 = arith.constant 48 : index
    %326 = memref.load %arg2[%c48] : memref<144xf32, #tpu.memory_space<smem>>
    %c5_156 = arith.constant 5 : index
    %c0_157 = arith.constant 0 : index
    %c0_158 = arith.constant 0 : index
    %327 = vector.load %arg1[%c5_156, %c0_157, %c0_158] : memref<16x64x64xf32, #tpu.memory_space<vmem>>, vector<1x64x64xf32>
    %328 = vector.shape_cast %327 : vector<1x64x64xf32> to vector<64x64xf32>
    %329 = vector.broadcast %326 : f32 to vector<64x64xf32>
    %330 = arith.mulf %329, %328 : vector<64x64xf32>
    %331 = arith.addf %325, %330 : vector<64x64xf32>
    %c57 = arith.constant 57 : index
    %332 = memref.load %arg2[%c57] : memref<144xf32, #tpu.memory_space<smem>>
    %c6_159 = arith.constant 6 : index
    %c0_160 = arith.constant 0 : index
    %c0_161 = arith.constant 0 : index
    %333 = vector.load %arg1[%c6_159, %c0_160, %c0_161] : memref<16x64x64xf32, #tpu.memory_space<vmem>>, vector<1x64x64xf32>
    %334 = vector.shape_cast %333 : vector<1x64x64xf32> to vector<64x64xf32>
    %335 = vector.broadcast %332 : f32 to vector<64x64xf32>
    %336 = arith.mulf %335, %334 : vector<64x64xf32>
    %337 = arith.addf %331, %336 : vector<64x64xf32>
    %c66 = arith.constant 66 : index
    %338 = memref.load %arg2[%c66] : memref<144xf32, #tpu.memory_space<smem>>
    %c7_162 = arith.constant 7 : index
    %c0_163 = arith.constant 0 : index
    %c0_164 = arith.constant 0 : index
    %339 = vector.load %arg1[%c7_162, %c0_163, %c0_164] : memref<16x64x64xf32, #tpu.memory_space<vmem>>, vector<1x64x64xf32>
    %340 = vector.shape_cast %339 : vector<1x64x64xf32> to vector<64x64xf32>
    %341 = vector.broadcast %338 : f32 to vector<64x64xf32>
    %342 = arith.mulf %341, %340 : vector<64x64xf32>
    %343 = arith.addf %337, %342 : vector<64x64xf32>
    %c75 = arith.constant 75 : index
    %344 = memref.load %arg2[%c75] : memref<144xf32, #tpu.memory_space<smem>>
    %c8_165 = arith.constant 8 : index
    %c0_166 = arith.constant 0 : index
    %c0_167 = arith.constant 0 : index
    %345 = vector.load %arg1[%c8_165, %c0_166, %c0_167] : memref<16x64x64xf32, #tpu.memory_space<vmem>>, vector<1x64x64xf32>
    %346 = vector.shape_cast %345 : vector<1x64x64xf32> to vector<64x64xf32>
    %347 = vector.broadcast %344 : f32 to vector<64x64xf32>
    %348 = arith.mulf %347, %346 : vector<64x64xf32>
    %349 = arith.addf %343, %348 : vector<64x64xf32>
    %c84 = arith.constant 84 : index
    %350 = memref.load %arg2[%c84] : memref<144xf32, #tpu.memory_space<smem>>
    %c9_168 = arith.constant 9 : index
    %c0_169 = arith.constant 0 : index
    %c0_170 = arith.constant 0 : index
    %351 = vector.load %arg1[%c9_168, %c0_169, %c0_170] : memref<16x64x64xf32, #tpu.memory_space<vmem>>, vector<1x64x64xf32>
    %352 = vector.shape_cast %351 : vector<1x64x64xf32> to vector<64x64xf32>
    %353 = vector.broadcast %350 : f32 to vector<64x64xf32>
    %354 = arith.mulf %353, %352 : vector<64x64xf32>
    %355 = arith.addf %349, %354 : vector<64x64xf32>
    %c93 = arith.constant 93 : index
    %356 = memref.load %arg2[%c93] : memref<144xf32, #tpu.memory_space<smem>>
    %c10_171 = arith.constant 10 : index
    %c0_172 = arith.constant 0 : index
    %c0_173 = arith.constant 0 : index
    %357 = vector.load %arg1[%c10_171, %c0_172, %c0_173] : memref<16x64x64xf32, #tpu.memory_space<vmem>>, vector<1x64x64xf32>
    %358 = vector.shape_cast %357 : vector<1x64x64xf32> to vector<64x64xf32>
    %359 = vector.broadcast %356 : f32 to vector<64x64xf32>
    %360 = arith.mulf %359, %358 : vector<64x64xf32>
    %361 = arith.addf %355, %360 : vector<64x64xf32>
    %c102 = arith.constant 102 : index
    %362 = memref.load %arg2[%c102] : memref<144xf32, #tpu.memory_space<smem>>
    %c11_174 = arith.constant 11 : index
    %c0_175 = arith.constant 0 : index
    %c0_176 = arith.constant 0 : index
    %363 = vector.load %arg1[%c11_174, %c0_175, %c0_176] : memref<16x64x64xf32, #tpu.memory_space<vmem>>, vector<1x64x64xf32>
    %364 = vector.shape_cast %363 : vector<1x64x64xf32> to vector<64x64xf32>
    %365 = vector.broadcast %362 : f32 to vector<64x64xf32>
    %366 = arith.mulf %365, %364 : vector<64x64xf32>
    %367 = arith.addf %361, %366 : vector<64x64xf32>
    %c111 = arith.constant 111 : index
    %368 = memref.load %arg2[%c111] : memref<144xf32, #tpu.memory_space<smem>>
    %c12_177 = arith.constant 12 : index
    %c0_178 = arith.constant 0 : index
    %c0_179 = arith.constant 0 : index
    %369 = vector.load %arg1[%c12_177, %c0_178, %c0_179] : memref<16x64x64xf32, #tpu.memory_space<vmem>>, vector<1x64x64xf32>
    %370 = vector.shape_cast %369 : vector<1x64x64xf32> to vector<64x64xf32>
    %371 = vector.broadcast %368 : f32 to vector<64x64xf32>
    %372 = arith.mulf %371, %370 : vector<64x64xf32>
    %373 = arith.addf %367, %372 : vector<64x64xf32>
    %c120 = arith.constant 120 : index
    %374 = memref.load %arg2[%c120] : memref<144xf32, #tpu.memory_space<smem>>
    %c13_180 = arith.constant 13 : index
    %c0_181 = arith.constant 0 : index
    %c0_182 = arith.constant 0 : index
    %375 = vector.load %arg1[%c13_180, %c0_181, %c0_182] : memref<16x64x64xf32, #tpu.memory_space<vmem>>, vector<1x64x64xf32>
    %376 = vector.shape_cast %375 : vector<1x64x64xf32> to vector<64x64xf32>
    %377 = vector.broadcast %374 : f32 to vector<64x64xf32>
    %378 = arith.mulf %377, %376 : vector<64x64xf32>
    %379 = arith.addf %373, %378 : vector<64x64xf32>
    %c129 = arith.constant 129 : index
    %380 = memref.load %arg2[%c129] : memref<144xf32, #tpu.memory_space<smem>>
    %c14_183 = arith.constant 14 : index
    %c0_184 = arith.constant 0 : index
    %c0_185 = arith.constant 0 : index
    %381 = vector.load %arg1[%c14_183, %c0_184, %c0_185] : memref<16x64x64xf32, #tpu.memory_space<vmem>>, vector<1x64x64xf32>
    %382 = vector.shape_cast %381 : vector<1x64x64xf32> to vector<64x64xf32>
    %383 = vector.broadcast %380 : f32 to vector<64x64xf32>
    %384 = arith.mulf %383, %382 : vector<64x64xf32>
    %385 = arith.addf %379, %384 : vector<64x64xf32>
    %c138 = arith.constant 138 : index
    %386 = memref.load %arg2[%c138] : memref<144xf32, #tpu.memory_space<smem>>
    %c15_186 = arith.constant 15 : index
    %c0_187 = arith.constant 0 : index
    %c0_188 = arith.constant 0 : index
    %387 = vector.load %arg1[%c15_186, %c0_187, %c0_188] : memref<16x64x64xf32, #tpu.memory_space<vmem>>, vector<1x64x64xf32>
    %388 = vector.shape_cast %387 : vector<1x64x64xf32> to vector<64x64xf32>
    %389 = vector.broadcast %386 : f32 to vector<64x64xf32>
    %390 = arith.mulf %389, %388 : vector<64x64xf32>
    %391 = arith.addf %385, %390 : vector<64x64xf32>
    %392 = vector.extract_strided_slice %391 {offsets = [1, 0], sizes = [62, 62], strides = [1, 1]} : vector<64x64xf32> to vector<62x62xf32>
    %393 = arith.addf %296, %392 : vector<62x62xf32>
    %c4_189 = arith.constant 4 : index
    %394 = memref.load %arg2[%c4_189] : memref<144xf32, #tpu.memory_space<smem>>
    %c0_190 = arith.constant 0 : index
    %c0_191 = arith.constant 0 : index
    %c0_192 = arith.constant 0 : index
    %395 = vector.load %arg1[%c0_190, %c0_191, %c0_192] : memref<16x64x64xf32, #tpu.memory_space<vmem>>, vector<1x64x64xf32>
    %396 = vector.shape_cast %395 : vector<1x64x64xf32> to vector<64x64xf32>
    %397 = vector.broadcast %394 : f32 to vector<64x64xf32>
    %398 = arith.mulf %397, %396 : vector<64x64xf32>
    %c13_193 = arith.constant 13 : index
    %399 = memref.load %arg2[%c13_193] : memref<144xf32, #tpu.memory_space<smem>>
    %c1_194 = arith.constant 1 : index
    %c0_195 = arith.constant 0 : index
    %c0_196 = arith.constant 0 : index
    %400 = vector.load %arg1[%c1_194, %c0_195, %c0_196] : memref<16x64x64xf32, #tpu.memory_space<vmem>>, vector<1x64x64xf32>
    %401 = vector.shape_cast %400 : vector<1x64x64xf32> to vector<64x64xf32>
    %402 = vector.broadcast %399 : f32 to vector<64x64xf32>
    %403 = arith.mulf %402, %401 : vector<64x64xf32>
    %404 = arith.addf %398, %403 : vector<64x64xf32>
    %c22 = arith.constant 22 : index
    %405 = memref.load %arg2[%c22] : memref<144xf32, #tpu.memory_space<smem>>
    %c2_197 = arith.constant 2 : index
    %c0_198 = arith.constant 0 : index
    %c0_199 = arith.constant 0 : index
    %406 = vector.load %arg1[%c2_197, %c0_198, %c0_199] : memref<16x64x64xf32, #tpu.memory_space<vmem>>, vector<1x64x64xf32>
    %407 = vector.shape_cast %406 : vector<1x64x64xf32> to vector<64x64xf32>
    %408 = vector.broadcast %405 : f32 to vector<64x64xf32>
    %409 = arith.mulf %408, %407 : vector<64x64xf32>
    %410 = arith.addf %404, %409 : vector<64x64xf32>
    %c31 = arith.constant 31 : index
    %411 = memref.load %arg2[%c31] : memref<144xf32, #tpu.memory_space<smem>>
    %c3_200 = arith.constant 3 : index
    %c0_201 = arith.constant 0 : index
    %c0_202 = arith.constant 0 : index
    %412 = vector.load %arg1[%c3_200, %c0_201, %c0_202] : memref<16x64x64xf32, #tpu.memory_space<vmem>>, vector<1x64x64xf32>
    %413 = vector.shape_cast %412 : vector<1x64x64xf32> to vector<64x64xf32>
    %414 = vector.broadcast %411 : f32 to vector<64x64xf32>
    %415 = arith.mulf %414, %413 : vector<64x64xf32>
    %416 = arith.addf %410, %415 : vector<64x64xf32>
    %c40 = arith.constant 40 : index
    %417 = memref.load %arg2[%c40] : memref<144xf32, #tpu.memory_space<smem>>
    %c4_203 = arith.constant 4 : index
    %c0_204 = arith.constant 0 : index
    %c0_205 = arith.constant 0 : index
    %418 = vector.load %arg1[%c4_203, %c0_204, %c0_205] : memref<16x64x64xf32, #tpu.memory_space<vmem>>, vector<1x64x64xf32>
    %419 = vector.shape_cast %418 : vector<1x64x64xf32> to vector<64x64xf32>
    %420 = vector.broadcast %417 : f32 to vector<64x64xf32>
    %421 = arith.mulf %420, %419 : vector<64x64xf32>
    %422 = arith.addf %416, %421 : vector<64x64xf32>
    %c49 = arith.constant 49 : index
    %423 = memref.load %arg2[%c49] : memref<144xf32, #tpu.memory_space<smem>>
    %c5_206 = arith.constant 5 : index
    %c0_207 = arith.constant 0 : index
    %c0_208 = arith.constant 0 : index
    %424 = vector.load %arg1[%c5_206, %c0_207, %c0_208] : memref<16x64x64xf32, #tpu.memory_space<vmem>>, vector<1x64x64xf32>
    %425 = vector.shape_cast %424 : vector<1x64x64xf32> to vector<64x64xf32>
    %426 = vector.broadcast %423 : f32 to vector<64x64xf32>
    %427 = arith.mulf %426, %425 : vector<64x64xf32>
    %428 = arith.addf %422, %427 : vector<64x64xf32>
    %c58 = arith.constant 58 : index
    %429 = memref.load %arg2[%c58] : memref<144xf32, #tpu.memory_space<smem>>
    %c6_209 = arith.constant 6 : index
    %c0_210 = arith.constant 0 : index
    %c0_211 = arith.constant 0 : index
    %430 = vector.load %arg1[%c6_209, %c0_210, %c0_211] : memref<16x64x64xf32, #tpu.memory_space<vmem>>, vector<1x64x64xf32>
    %431 = vector.shape_cast %430 : vector<1x64x64xf32> to vector<64x64xf32>
    %432 = vector.broadcast %429 : f32 to vector<64x64xf32>
    %433 = arith.mulf %432, %431 : vector<64x64xf32>
    %434 = arith.addf %428, %433 : vector<64x64xf32>
    %c67 = arith.constant 67 : index
    %435 = memref.load %arg2[%c67] : memref<144xf32, #tpu.memory_space<smem>>
    %c7_212 = arith.constant 7 : index
    %c0_213 = arith.constant 0 : index
    %c0_214 = arith.constant 0 : index
    %436 = vector.load %arg1[%c7_212, %c0_213, %c0_214] : memref<16x64x64xf32, #tpu.memory_space<vmem>>, vector<1x64x64xf32>
    %437 = vector.shape_cast %436 : vector<1x64x64xf32> to vector<64x64xf32>
    %438 = vector.broadcast %435 : f32 to vector<64x64xf32>
    %439 = arith.mulf %438, %437 : vector<64x64xf32>
    %440 = arith.addf %434, %439 : vector<64x64xf32>
    %c76 = arith.constant 76 : index
    %441 = memref.load %arg2[%c76] : memref<144xf32, #tpu.memory_space<smem>>
    %c8_215 = arith.constant 8 : index
    %c0_216 = arith.constant 0 : index
    %c0_217 = arith.constant 0 : index
    %442 = vector.load %arg1[%c8_215, %c0_216, %c0_217] : memref<16x64x64xf32, #tpu.memory_space<vmem>>, vector<1x64x64xf32>
    %443 = vector.shape_cast %442 : vector<1x64x64xf32> to vector<64x64xf32>
    %444 = vector.broadcast %441 : f32 to vector<64x64xf32>
    %445 = arith.mulf %444, %443 : vector<64x64xf32>
    %446 = arith.addf %440, %445 : vector<64x64xf32>
    %c85 = arith.constant 85 : index
    %447 = memref.load %arg2[%c85] : memref<144xf32, #tpu.memory_space<smem>>
    %c9_218 = arith.constant 9 : index
    %c0_219 = arith.constant 0 : index
    %c0_220 = arith.constant 0 : index
    %448 = vector.load %arg1[%c9_218, %c0_219, %c0_220] : memref<16x64x64xf32, #tpu.memory_space<vmem>>, vector<1x64x64xf32>
    %449 = vector.shape_cast %448 : vector<1x64x64xf32> to vector<64x64xf32>
    %450 = vector.broadcast %447 : f32 to vector<64x64xf32>
    %451 = arith.mulf %450, %449 : vector<64x64xf32>
    %452 = arith.addf %446, %451 : vector<64x64xf32>
    %c94 = arith.constant 94 : index
    %453 = memref.load %arg2[%c94] : memref<144xf32, #tpu.memory_space<smem>>
    %c10_221 = arith.constant 10 : index
    %c0_222 = arith.constant 0 : index
    %c0_223 = arith.constant 0 : index
    %454 = vector.load %arg1[%c10_221, %c0_222, %c0_223] : memref<16x64x64xf32, #tpu.memory_space<vmem>>, vector<1x64x64xf32>
    %455 = vector.shape_cast %454 : vector<1x64x64xf32> to vector<64x64xf32>
    %456 = vector.broadcast %453 : f32 to vector<64x64xf32>
    %457 = arith.mulf %456, %455 : vector<64x64xf32>
    %458 = arith.addf %452, %457 : vector<64x64xf32>
    %c103 = arith.constant 103 : index
    %459 = memref.load %arg2[%c103] : memref<144xf32, #tpu.memory_space<smem>>
    %c11_224 = arith.constant 11 : index
    %c0_225 = arith.constant 0 : index
    %c0_226 = arith.constant 0 : index
    %460 = vector.load %arg1[%c11_224, %c0_225, %c0_226] : memref<16x64x64xf32, #tpu.memory_space<vmem>>, vector<1x64x64xf32>
    %461 = vector.shape_cast %460 : vector<1x64x64xf32> to vector<64x64xf32>
    %462 = vector.broadcast %459 : f32 to vector<64x64xf32>
    %463 = arith.mulf %462, %461 : vector<64x64xf32>
    %464 = arith.addf %458, %463 : vector<64x64xf32>
    %c112 = arith.constant 112 : index
    %465 = memref.load %arg2[%c112] : memref<144xf32, #tpu.memory_space<smem>>
    %c12_227 = arith.constant 12 : index
    %c0_228 = arith.constant 0 : index
    %c0_229 = arith.constant 0 : index
    %466 = vector.load %arg1[%c12_227, %c0_228, %c0_229] : memref<16x64x64xf32, #tpu.memory_space<vmem>>, vector<1x64x64xf32>
    %467 = vector.shape_cast %466 : vector<1x64x64xf32> to vector<64x64xf32>
    %468 = vector.broadcast %465 : f32 to vector<64x64xf32>
    %469 = arith.mulf %468, %467 : vector<64x64xf32>
    %470 = arith.addf %464, %469 : vector<64x64xf32>
    %c121 = arith.constant 121 : index
    %471 = memref.load %arg2[%c121] : memref<144xf32, #tpu.memory_space<smem>>
    %c13_230 = arith.constant 13 : index
    %c0_231 = arith.constant 0 : index
    %c0_232 = arith.constant 0 : index
    %472 = vector.load %arg1[%c13_230, %c0_231, %c0_232] : memref<16x64x64xf32, #tpu.memory_space<vmem>>, vector<1x64x64xf32>
    %473 = vector.shape_cast %472 : vector<1x64x64xf32> to vector<64x64xf32>
    %474 = vector.broadcast %471 : f32 to vector<64x64xf32>
    %475 = arith.mulf %474, %473 : vector<64x64xf32>
    %476 = arith.addf %470, %475 : vector<64x64xf32>
    %c130 = arith.constant 130 : index
    %477 = memref.load %arg2[%c130] : memref<144xf32, #tpu.memory_space<smem>>
    %c14_233 = arith.constant 14 : index
    %c0_234 = arith.constant 0 : index
    %c0_235 = arith.constant 0 : index
    %478 = vector.load %arg1[%c14_233, %c0_234, %c0_235] : memref<16x64x64xf32, #tpu.memory_space<vmem>>, vector<1x64x64xf32>
    %479 = vector.shape_cast %478 : vector<1x64x64xf32> to vector<64x64xf32>
    %480 = vector.broadcast %477 : f32 to vector<64x64xf32>
    %481 = arith.mulf %480, %479 : vector<64x64xf32>
    %482 = arith.addf %476, %481 : vector<64x64xf32>
    %c139 = arith.constant 139 : index
    %483 = memref.load %arg2[%c139] : memref<144xf32, #tpu.memory_space<smem>>
    %c15_236 = arith.constant 15 : index
    %c0_237 = arith.constant 0 : index
    %c0_238 = arith.constant 0 : index
    %484 = vector.load %arg1[%c15_236, %c0_237, %c0_238] : memref<16x64x64xf32, #tpu.memory_space<vmem>>, vector<1x64x64xf32>
    %485 = vector.shape_cast %484 : vector<1x64x64xf32> to vector<64x64xf32>
    %486 = vector.broadcast %483 : f32 to vector<64x64xf32>
    %487 = arith.mulf %486, %485 : vector<64x64xf32>
    %488 = arith.addf %482, %487 : vector<64x64xf32>
    %489 = vector.extract_strided_slice %488 {offsets = [1, 1], sizes = [62, 62], strides = [1, 1]} : vector<64x64xf32> to vector<62x62xf32>
    %490 = arith.addf %393, %489 : vector<62x62xf32>
    %c5_239 = arith.constant 5 : index
    %491 = memref.load %arg2[%c5_239] : memref<144xf32, #tpu.memory_space<smem>>
    %c0_240 = arith.constant 0 : index
    %c0_241 = arith.constant 0 : index
    %c0_242 = arith.constant 0 : index
    %492 = vector.load %arg1[%c0_240, %c0_241, %c0_242] : memref<16x64x64xf32, #tpu.memory_space<vmem>>, vector<1x64x64xf32>
    %493 = vector.shape_cast %492 : vector<1x64x64xf32> to vector<64x64xf32>
    %494 = vector.broadcast %491 : f32 to vector<64x64xf32>
    %495 = arith.mulf %494, %493 : vector<64x64xf32>
    %c14_243 = arith.constant 14 : index
    %496 = memref.load %arg2[%c14_243] : memref<144xf32, #tpu.memory_space<smem>>
    %c1_244 = arith.constant 1 : index
    %c0_245 = arith.constant 0 : index
    %c0_246 = arith.constant 0 : index
    %497 = vector.load %arg1[%c1_244, %c0_245, %c0_246] : memref<16x64x64xf32, #tpu.memory_space<vmem>>, vector<1x64x64xf32>
    %498 = vector.shape_cast %497 : vector<1x64x64xf32> to vector<64x64xf32>
    %499 = vector.broadcast %496 : f32 to vector<64x64xf32>
    %500 = arith.mulf %499, %498 : vector<64x64xf32>
    %501 = arith.addf %495, %500 : vector<64x64xf32>
    %c23 = arith.constant 23 : index
    %502 = memref.load %arg2[%c23] : memref<144xf32, #tpu.memory_space<smem>>
    %c2_247 = arith.constant 2 : index
    %c0_248 = arith.constant 0 : index
    %c0_249 = arith.constant 0 : index
    %503 = vector.load %arg1[%c2_247, %c0_248, %c0_249] : memref<16x64x64xf32, #tpu.memory_space<vmem>>, vector<1x64x64xf32>
    %504 = vector.shape_cast %503 : vector<1x64x64xf32> to vector<64x64xf32>
    %505 = vector.broadcast %502 : f32 to vector<64x64xf32>
    %506 = arith.mulf %505, %504 : vector<64x64xf32>
    %507 = arith.addf %501, %506 : vector<64x64xf32>
    %c32 = arith.constant 32 : index
    %508 = memref.load %arg2[%c32] : memref<144xf32, #tpu.memory_space<smem>>
    %c3_250 = arith.constant 3 : index
    %c0_251 = arith.constant 0 : index
    %c0_252 = arith.constant 0 : index
    %509 = vector.load %arg1[%c3_250, %c0_251, %c0_252] : memref<16x64x64xf32, #tpu.memory_space<vmem>>, vector<1x64x64xf32>
    %510 = vector.shape_cast %509 : vector<1x64x64xf32> to vector<64x64xf32>
    %511 = vector.broadcast %508 : f32 to vector<64x64xf32>
    %512 = arith.mulf %511, %510 : vector<64x64xf32>
    %513 = arith.addf %507, %512 : vector<64x64xf32>
    %c41 = arith.constant 41 : index
    %514 = memref.load %arg2[%c41] : memref<144xf32, #tpu.memory_space<smem>>
    %c4_253 = arith.constant 4 : index
    %c0_254 = arith.constant 0 : index
    %c0_255 = arith.constant 0 : index
    %515 = vector.load %arg1[%c4_253, %c0_254, %c0_255] : memref<16x64x64xf32, #tpu.memory_space<vmem>>, vector<1x64x64xf32>
    %516 = vector.shape_cast %515 : vector<1x64x64xf32> to vector<64x64xf32>
    %517 = vector.broadcast %514 : f32 to vector<64x64xf32>
    %518 = arith.mulf %517, %516 : vector<64x64xf32>
    %519 = arith.addf %513, %518 : vector<64x64xf32>
    %c50 = arith.constant 50 : index
    %520 = memref.load %arg2[%c50] : memref<144xf32, #tpu.memory_space<smem>>
    %c5_256 = arith.constant 5 : index
    %c0_257 = arith.constant 0 : index
    %c0_258 = arith.constant 0 : index
    %521 = vector.load %arg1[%c5_256, %c0_257, %c0_258] : memref<16x64x64xf32, #tpu.memory_space<vmem>>, vector<1x64x64xf32>
    %522 = vector.shape_cast %521 : vector<1x64x64xf32> to vector<64x64xf32>
    %523 = vector.broadcast %520 : f32 to vector<64x64xf32>
    %524 = arith.mulf %523, %522 : vector<64x64xf32>
    %525 = arith.addf %519, %524 : vector<64x64xf32>
    %c59 = arith.constant 59 : index
    %526 = memref.load %arg2[%c59] : memref<144xf32, #tpu.memory_space<smem>>
    %c6_259 = arith.constant 6 : index
    %c0_260 = arith.constant 0 : index
    %c0_261 = arith.constant 0 : index
    %527 = vector.load %arg1[%c6_259, %c0_260, %c0_261] : memref<16x64x64xf32, #tpu.memory_space<vmem>>, vector<1x64x64xf32>
    %528 = vector.shape_cast %527 : vector<1x64x64xf32> to vector<64x64xf32>
    %529 = vector.broadcast %526 : f32 to vector<64x64xf32>
    %530 = arith.mulf %529, %528 : vector<64x64xf32>
    %531 = arith.addf %525, %530 : vector<64x64xf32>
    %c68 = arith.constant 68 : index
    %532 = memref.load %arg2[%c68] : memref<144xf32, #tpu.memory_space<smem>>
    %c7_262 = arith.constant 7 : index
    %c0_263 = arith.constant 0 : index
    %c0_264 = arith.constant 0 : index
    %533 = vector.load %arg1[%c7_262, %c0_263, %c0_264] : memref<16x64x64xf32, #tpu.memory_space<vmem>>, vector<1x64x64xf32>
    %534 = vector.shape_cast %533 : vector<1x64x64xf32> to vector<64x64xf32>
    %535 = vector.broadcast %532 : f32 to vector<64x64xf32>
    %536 = arith.mulf %535, %534 : vector<64x64xf32>
    %537 = arith.addf %531, %536 : vector<64x64xf32>
    %c77 = arith.constant 77 : index
    %538 = memref.load %arg2[%c77] : memref<144xf32, #tpu.memory_space<smem>>
    %c8_265 = arith.constant 8 : index
    %c0_266 = arith.constant 0 : index
    %c0_267 = arith.constant 0 : index
    %539 = vector.load %arg1[%c8_265, %c0_266, %c0_267] : memref<16x64x64xf32, #tpu.memory_space<vmem>>, vector<1x64x64xf32>
    %540 = vector.shape_cast %539 : vector<1x64x64xf32> to vector<64x64xf32>
    %541 = vector.broadcast %538 : f32 to vector<64x64xf32>
    %542 = arith.mulf %541, %540 : vector<64x64xf32>
    %543 = arith.addf %537, %542 : vector<64x64xf32>
    %c86 = arith.constant 86 : index
    %544 = memref.load %arg2[%c86] : memref<144xf32, #tpu.memory_space<smem>>
    %c9_268 = arith.constant 9 : index
    %c0_269 = arith.constant 0 : index
    %c0_270 = arith.constant 0 : index
    %545 = vector.load %arg1[%c9_268, %c0_269, %c0_270] : memref<16x64x64xf32, #tpu.memory_space<vmem>>, vector<1x64x64xf32>
    %546 = vector.shape_cast %545 : vector<1x64x64xf32> to vector<64x64xf32>
    %547 = vector.broadcast %544 : f32 to vector<64x64xf32>
    %548 = arith.mulf %547, %546 : vector<64x64xf32>
    %549 = arith.addf %543, %548 : vector<64x64xf32>
    %c95 = arith.constant 95 : index
    %550 = memref.load %arg2[%c95] : memref<144xf32, #tpu.memory_space<smem>>
    %c10_271 = arith.constant 10 : index
    %c0_272 = arith.constant 0 : index
    %c0_273 = arith.constant 0 : index
    %551 = vector.load %arg1[%c10_271, %c0_272, %c0_273] : memref<16x64x64xf32, #tpu.memory_space<vmem>>, vector<1x64x64xf32>
    %552 = vector.shape_cast %551 : vector<1x64x64xf32> to vector<64x64xf32>
    %553 = vector.broadcast %550 : f32 to vector<64x64xf32>
    %554 = arith.mulf %553, %552 : vector<64x64xf32>
    %555 = arith.addf %549, %554 : vector<64x64xf32>
    %c104 = arith.constant 104 : index
    %556 = memref.load %arg2[%c104] : memref<144xf32, #tpu.memory_space<smem>>
    %c11_274 = arith.constant 11 : index
    %c0_275 = arith.constant 0 : index
    %c0_276 = arith.constant 0 : index
    %557 = vector.load %arg1[%c11_274, %c0_275, %c0_276] : memref<16x64x64xf32, #tpu.memory_space<vmem>>, vector<1x64x64xf32>
    %558 = vector.shape_cast %557 : vector<1x64x64xf32> to vector<64x64xf32>
    %559 = vector.broadcast %556 : f32 to vector<64x64xf32>
    %560 = arith.mulf %559, %558 : vector<64x64xf32>
    %561 = arith.addf %555, %560 : vector<64x64xf32>
    %c113 = arith.constant 113 : index
    %562 = memref.load %arg2[%c113] : memref<144xf32, #tpu.memory_space<smem>>
    %c12_277 = arith.constant 12 : index
    %c0_278 = arith.constant 0 : index
    %c0_279 = arith.constant 0 : index
    %563 = vector.load %arg1[%c12_277, %c0_278, %c0_279] : memref<16x64x64xf32, #tpu.memory_space<vmem>>, vector<1x64x64xf32>
    %564 = vector.shape_cast %563 : vector<1x64x64xf32> to vector<64x64xf32>
    %565 = vector.broadcast %562 : f32 to vector<64x64xf32>
    %566 = arith.mulf %565, %564 : vector<64x64xf32>
    %567 = arith.addf %561, %566 : vector<64x64xf32>
    %c122 = arith.constant 122 : index
    %568 = memref.load %arg2[%c122] : memref<144xf32, #tpu.memory_space<smem>>
    %c13_280 = arith.constant 13 : index
    %c0_281 = arith.constant 0 : index
    %c0_282 = arith.constant 0 : index
    %569 = vector.load %arg1[%c13_280, %c0_281, %c0_282] : memref<16x64x64xf32, #tpu.memory_space<vmem>>, vector<1x64x64xf32>
    %570 = vector.shape_cast %569 : vector<1x64x64xf32> to vector<64x64xf32>
    %571 = vector.broadcast %568 : f32 to vector<64x64xf32>
    %572 = arith.mulf %571, %570 : vector<64x64xf32>
    %573 = arith.addf %567, %572 : vector<64x64xf32>
    %c131 = arith.constant 131 : index
    %574 = memref.load %arg2[%c131] : memref<144xf32, #tpu.memory_space<smem>>
    %c14_283 = arith.constant 14 : index
    %c0_284 = arith.constant 0 : index
    %c0_285 = arith.constant 0 : index
    %575 = vector.load %arg1[%c14_283, %c0_284, %c0_285] : memref<16x64x64xf32, #tpu.memory_space<vmem>>, vector<1x64x64xf32>
    %576 = vector.shape_cast %575 : vector<1x64x64xf32> to vector<64x64xf32>
    %577 = vector.broadcast %574 : f32 to vector<64x64xf32>
    %578 = arith.mulf %577, %576 : vector<64x64xf32>
    %579 = arith.addf %573, %578 : vector<64x64xf32>
    %c140 = arith.constant 140 : index
    %580 = memref.load %arg2[%c140] : memref<144xf32, #tpu.memory_space<smem>>
    %c15_286 = arith.constant 15 : index
    %c0_287 = arith.constant 0 : index
    %c0_288 = arith.constant 0 : index
    %581 = vector.load %arg1[%c15_286, %c0_287, %c0_288] : memref<16x64x64xf32, #tpu.memory_space<vmem>>, vector<1x64x64xf32>
    %582 = vector.shape_cast %581 : vector<1x64x64xf32> to vector<64x64xf32>
    %583 = vector.broadcast %580 : f32 to vector<64x64xf32>
    %584 = arith.mulf %583, %582 : vector<64x64xf32>
    %585 = arith.addf %579, %584 : vector<64x64xf32>
    %586 = vector.extract_strided_slice %585 {offsets = [1, 2], sizes = [62, 62], strides = [1, 1]} : vector<64x64xf32> to vector<62x62xf32>
    %587 = arith.addf %490, %586 : vector<62x62xf32>
    %c6_289 = arith.constant 6 : index
    %588 = memref.load %arg2[%c6_289] : memref<144xf32, #tpu.memory_space<smem>>
    %c0_290 = arith.constant 0 : index
    %c0_291 = arith.constant 0 : index
    %c0_292 = arith.constant 0 : index
    %589 = vector.load %arg1[%c0_290, %c0_291, %c0_292] : memref<16x64x64xf32, #tpu.memory_space<vmem>>, vector<1x64x64xf32>
    %590 = vector.shape_cast %589 : vector<1x64x64xf32> to vector<64x64xf32>
    %591 = vector.broadcast %588 : f32 to vector<64x64xf32>
    %592 = arith.mulf %591, %590 : vector<64x64xf32>
    %c15_293 = arith.constant 15 : index
    %593 = memref.load %arg2[%c15_293] : memref<144xf32, #tpu.memory_space<smem>>
    %c1_294 = arith.constant 1 : index
    %c0_295 = arith.constant 0 : index
    %c0_296 = arith.constant 0 : index
    %594 = vector.load %arg1[%c1_294, %c0_295, %c0_296] : memref<16x64x64xf32, #tpu.memory_space<vmem>>, vector<1x64x64xf32>
    %595 = vector.shape_cast %594 : vector<1x64x64xf32> to vector<64x64xf32>
    %596 = vector.broadcast %593 : f32 to vector<64x64xf32>
    %597 = arith.mulf %596, %595 : vector<64x64xf32>
    %598 = arith.addf %592, %597 : vector<64x64xf32>
    %c24 = arith.constant 24 : index
    %599 = memref.load %arg2[%c24] : memref<144xf32, #tpu.memory_space<smem>>
    %c2_297 = arith.constant 2 : index
    %c0_298 = arith.constant 0 : index
    %c0_299 = arith.constant 0 : index
    %600 = vector.load %arg1[%c2_297, %c0_298, %c0_299] : memref<16x64x64xf32, #tpu.memory_space<vmem>>, vector<1x64x64xf32>
    %601 = vector.shape_cast %600 : vector<1x64x64xf32> to vector<64x64xf32>
    %602 = vector.broadcast %599 : f32 to vector<64x64xf32>
    %603 = arith.mulf %602, %601 : vector<64x64xf32>
    %604 = arith.addf %598, %603 : vector<64x64xf32>
    %c33 = arith.constant 33 : index
    %605 = memref.load %arg2[%c33] : memref<144xf32, #tpu.memory_space<smem>>
    %c3_300 = arith.constant 3 : index
    %c0_301 = arith.constant 0 : index
    %c0_302 = arith.constant 0 : index
    %606 = vector.load %arg1[%c3_300, %c0_301, %c0_302] : memref<16x64x64xf32, #tpu.memory_space<vmem>>, vector<1x64x64xf32>
    %607 = vector.shape_cast %606 : vector<1x64x64xf32> to vector<64x64xf32>
    %608 = vector.broadcast %605 : f32 to vector<64x64xf32>
    %609 = arith.mulf %608, %607 : vector<64x64xf32>
    %610 = arith.addf %604, %609 : vector<64x64xf32>
    %c42 = arith.constant 42 : index
    %611 = memref.load %arg2[%c42] : memref<144xf32, #tpu.memory_space<smem>>
    %c4_303 = arith.constant 4 : index
    %c0_304 = arith.constant 0 : index
    %c0_305 = arith.constant 0 : index
    %612 = vector.load %arg1[%c4_303, %c0_304, %c0_305] : memref<16x64x64xf32, #tpu.memory_space<vmem>>, vector<1x64x64xf32>
    %613 = vector.shape_cast %612 : vector<1x64x64xf32> to vector<64x64xf32>
    %614 = vector.broadcast %611 : f32 to vector<64x64xf32>
    %615 = arith.mulf %614, %613 : vector<64x64xf32>
    %616 = arith.addf %610, %615 : vector<64x64xf32>
    %c51 = arith.constant 51 : index
    %617 = memref.load %arg2[%c51] : memref<144xf32, #tpu.memory_space<smem>>
    %c5_306 = arith.constant 5 : index
    %c0_307 = arith.constant 0 : index
    %c0_308 = arith.constant 0 : index
    %618 = vector.load %arg1[%c5_306, %c0_307, %c0_308] : memref<16x64x64xf32, #tpu.memory_space<vmem>>, vector<1x64x64xf32>
    %619 = vector.shape_cast %618 : vector<1x64x64xf32> to vector<64x64xf32>
    %620 = vector.broadcast %617 : f32 to vector<64x64xf32>
    %621 = arith.mulf %620, %619 : vector<64x64xf32>
    %622 = arith.addf %616, %621 : vector<64x64xf32>
    %c60 = arith.constant 60 : index
    %623 = memref.load %arg2[%c60] : memref<144xf32, #tpu.memory_space<smem>>
    %c6_309 = arith.constant 6 : index
    %c0_310 = arith.constant 0 : index
    %c0_311 = arith.constant 0 : index
    %624 = vector.load %arg1[%c6_309, %c0_310, %c0_311] : memref<16x64x64xf32, #tpu.memory_space<vmem>>, vector<1x64x64xf32>
    %625 = vector.shape_cast %624 : vector<1x64x64xf32> to vector<64x64xf32>
    %626 = vector.broadcast %623 : f32 to vector<64x64xf32>
    %627 = arith.mulf %626, %625 : vector<64x64xf32>
    %628 = arith.addf %622, %627 : vector<64x64xf32>
    %c69 = arith.constant 69 : index
    %629 = memref.load %arg2[%c69] : memref<144xf32, #tpu.memory_space<smem>>
    %c7_312 = arith.constant 7 : index
    %c0_313 = arith.constant 0 : index
    %c0_314 = arith.constant 0 : index
    %630 = vector.load %arg1[%c7_312, %c0_313, %c0_314] : memref<16x64x64xf32, #tpu.memory_space<vmem>>, vector<1x64x64xf32>
    %631 = vector.shape_cast %630 : vector<1x64x64xf32> to vector<64x64xf32>
    %632 = vector.broadcast %629 : f32 to vector<64x64xf32>
    %633 = arith.mulf %632, %631 : vector<64x64xf32>
    %634 = arith.addf %628, %633 : vector<64x64xf32>
    %c78 = arith.constant 78 : index
    %635 = memref.load %arg2[%c78] : memref<144xf32, #tpu.memory_space<smem>>
    %c8_315 = arith.constant 8 : index
    %c0_316 = arith.constant 0 : index
    %c0_317 = arith.constant 0 : index
    %636 = vector.load %arg1[%c8_315, %c0_316, %c0_317] : memref<16x64x64xf32, #tpu.memory_space<vmem>>, vector<1x64x64xf32>
    %637 = vector.shape_cast %636 : vector<1x64x64xf32> to vector<64x64xf32>
    %638 = vector.broadcast %635 : f32 to vector<64x64xf32>
    %639 = arith.mulf %638, %637 : vector<64x64xf32>
    %640 = arith.addf %634, %639 : vector<64x64xf32>
    %c87 = arith.constant 87 : index
    %641 = memref.load %arg2[%c87] : memref<144xf32, #tpu.memory_space<smem>>
    %c9_318 = arith.constant 9 : index
    %c0_319 = arith.constant 0 : index
    %c0_320 = arith.constant 0 : index
    %642 = vector.load %arg1[%c9_318, %c0_319, %c0_320] : memref<16x64x64xf32, #tpu.memory_space<vmem>>, vector<1x64x64xf32>
    %643 = vector.shape_cast %642 : vector<1x64x64xf32> to vector<64x64xf32>
    %644 = vector.broadcast %641 : f32 to vector<64x64xf32>
    %645 = arith.mulf %644, %643 : vector<64x64xf32>
    %646 = arith.addf %640, %645 : vector<64x64xf32>
    %c96 = arith.constant 96 : index
    %647 = memref.load %arg2[%c96] : memref<144xf32, #tpu.memory_space<smem>>
    %c10_321 = arith.constant 10 : index
    %c0_322 = arith.constant 0 : index
    %c0_323 = arith.constant 0 : index
    %648 = vector.load %arg1[%c10_321, %c0_322, %c0_323] : memref<16x64x64xf32, #tpu.memory_space<vmem>>, vector<1x64x64xf32>
    %649 = vector.shape_cast %648 : vector<1x64x64xf32> to vector<64x64xf32>
    %650 = vector.broadcast %647 : f32 to vector<64x64xf32>
    %651 = arith.mulf %650, %649 : vector<64x64xf32>
    %652 = arith.addf %646, %651 : vector<64x64xf32>
    %c105 = arith.constant 105 : index
    %653 = memref.load %arg2[%c105] : memref<144xf32, #tpu.memory_space<smem>>
    %c11_324 = arith.constant 11 : index
    %c0_325 = arith.constant 0 : index
    %c0_326 = arith.constant 0 : index
    %654 = vector.load %arg1[%c11_324, %c0_325, %c0_326] : memref<16x64x64xf32, #tpu.memory_space<vmem>>, vector<1x64x64xf32>
    %655 = vector.shape_cast %654 : vector<1x64x64xf32> to vector<64x64xf32>
    %656 = vector.broadcast %653 : f32 to vector<64x64xf32>
    %657 = arith.mulf %656, %655 : vector<64x64xf32>
    %658 = arith.addf %652, %657 : vector<64x64xf32>
    %c114 = arith.constant 114 : index
    %659 = memref.load %arg2[%c114] : memref<144xf32, #tpu.memory_space<smem>>
    %c12_327 = arith.constant 12 : index
    %c0_328 = arith.constant 0 : index
    %c0_329 = arith.constant 0 : index
    %660 = vector.load %arg1[%c12_327, %c0_328, %c0_329] : memref<16x64x64xf32, #tpu.memory_space<vmem>>, vector<1x64x64xf32>
    %661 = vector.shape_cast %660 : vector<1x64x64xf32> to vector<64x64xf32>
    %662 = vector.broadcast %659 : f32 to vector<64x64xf32>
    %663 = arith.mulf %662, %661 : vector<64x64xf32>
    %664 = arith.addf %658, %663 : vector<64x64xf32>
    %c123 = arith.constant 123 : index
    %665 = memref.load %arg2[%c123] : memref<144xf32, #tpu.memory_space<smem>>
    %c13_330 = arith.constant 13 : index
    %c0_331 = arith.constant 0 : index
    %c0_332 = arith.constant 0 : index
    %666 = vector.load %arg1[%c13_330, %c0_331, %c0_332] : memref<16x64x64xf32, #tpu.memory_space<vmem>>, vector<1x64x64xf32>
    %667 = vector.shape_cast %666 : vector<1x64x64xf32> to vector<64x64xf32>
    %668 = vector.broadcast %665 : f32 to vector<64x64xf32>
    %669 = arith.mulf %668, %667 : vector<64x64xf32>
    %670 = arith.addf %664, %669 : vector<64x64xf32>
    %c132 = arith.constant 132 : index
    %671 = memref.load %arg2[%c132] : memref<144xf32, #tpu.memory_space<smem>>
    %c14_333 = arith.constant 14 : index
    %c0_334 = arith.constant 0 : index
    %c0_335 = arith.constant 0 : index
    %672 = vector.load %arg1[%c14_333, %c0_334, %c0_335] : memref<16x64x64xf32, #tpu.memory_space<vmem>>, vector<1x64x64xf32>
    %673 = vector.shape_cast %672 : vector<1x64x64xf32> to vector<64x64xf32>
    %674 = vector.broadcast %671 : f32 to vector<64x64xf32>
    %675 = arith.mulf %674, %673 : vector<64x64xf32>
    %676 = arith.addf %670, %675 : vector<64x64xf32>
    %c141 = arith.constant 141 : index
    %677 = memref.load %arg2[%c141] : memref<144xf32, #tpu.memory_space<smem>>
    %c15_336 = arith.constant 15 : index
    %c0_337 = arith.constant 0 : index
    %c0_338 = arith.constant 0 : index
    %678 = vector.load %arg1[%c15_336, %c0_337, %c0_338] : memref<16x64x64xf32, #tpu.memory_space<vmem>>, vector<1x64x64xf32>
    %679 = vector.shape_cast %678 : vector<1x64x64xf32> to vector<64x64xf32>
    %680 = vector.broadcast %677 : f32 to vector<64x64xf32>
    %681 = arith.mulf %680, %679 : vector<64x64xf32>
    %682 = arith.addf %676, %681 : vector<64x64xf32>
    %683 = vector.extract_strided_slice %682 {offsets = [2, 0], sizes = [62, 62], strides = [1, 1]} : vector<64x64xf32> to vector<62x62xf32>
    %684 = arith.addf %587, %683 : vector<62x62xf32>
    %c7_339 = arith.constant 7 : index
    %685 = memref.load %arg2[%c7_339] : memref<144xf32, #tpu.memory_space<smem>>
    %c0_340 = arith.constant 0 : index
    %c0_341 = arith.constant 0 : index
    %c0_342 = arith.constant 0 : index
    %686 = vector.load %arg1[%c0_340, %c0_341, %c0_342] : memref<16x64x64xf32, #tpu.memory_space<vmem>>, vector<1x64x64xf32>
    %687 = vector.shape_cast %686 : vector<1x64x64xf32> to vector<64x64xf32>
    %688 = vector.broadcast %685 : f32 to vector<64x64xf32>
    %689 = arith.mulf %688, %687 : vector<64x64xf32>
    %c16 = arith.constant 16 : index
    %690 = memref.load %arg2[%c16] : memref<144xf32, #tpu.memory_space<smem>>
    %c1_343 = arith.constant 1 : index
    %c0_344 = arith.constant 0 : index
    %c0_345 = arith.constant 0 : index
    %691 = vector.load %arg1[%c1_343, %c0_344, %c0_345] : memref<16x64x64xf32, #tpu.memory_space<vmem>>, vector<1x64x64xf32>
    %692 = vector.shape_cast %691 : vector<1x64x64xf32> to vector<64x64xf32>
    %693 = vector.broadcast %690 : f32 to vector<64x64xf32>
    %694 = arith.mulf %693, %692 : vector<64x64xf32>
    %695 = arith.addf %689, %694 : vector<64x64xf32>
    %c25 = arith.constant 25 : index
    %696 = memref.load %arg2[%c25] : memref<144xf32, #tpu.memory_space<smem>>
    %c2_346 = arith.constant 2 : index
    %c0_347 = arith.constant 0 : index
    %c0_348 = arith.constant 0 : index
    %697 = vector.load %arg1[%c2_346, %c0_347, %c0_348] : memref<16x64x64xf32, #tpu.memory_space<vmem>>, vector<1x64x64xf32>
    %698 = vector.shape_cast %697 : vector<1x64x64xf32> to vector<64x64xf32>
    %699 = vector.broadcast %696 : f32 to vector<64x64xf32>
    %700 = arith.mulf %699, %698 : vector<64x64xf32>
    %701 = arith.addf %695, %700 : vector<64x64xf32>
    %c34 = arith.constant 34 : index
    %702 = memref.load %arg2[%c34] : memref<144xf32, #tpu.memory_space<smem>>
    %c3_349 = arith.constant 3 : index
    %c0_350 = arith.constant 0 : index
    %c0_351 = arith.constant 0 : index
    %703 = vector.load %arg1[%c3_349, %c0_350, %c0_351] : memref<16x64x64xf32, #tpu.memory_space<vmem>>, vector<1x64x64xf32>
    %704 = vector.shape_cast %703 : vector<1x64x64xf32> to vector<64x64xf32>
    %705 = vector.broadcast %702 : f32 to vector<64x64xf32>
    %706 = arith.mulf %705, %704 : vector<64x64xf32>
    %707 = arith.addf %701, %706 : vector<64x64xf32>
    %c43 = arith.constant 43 : index
    %708 = memref.load %arg2[%c43] : memref<144xf32, #tpu.memory_space<smem>>
    %c4_352 = arith.constant 4 : index
    %c0_353 = arith.constant 0 : index
    %c0_354 = arith.constant 0 : index
    %709 = vector.load %arg1[%c4_352, %c0_353, %c0_354] : memref<16x64x64xf32, #tpu.memory_space<vmem>>, vector<1x64x64xf32>
    %710 = vector.shape_cast %709 : vector<1x64x64xf32> to vector<64x64xf32>
    %711 = vector.broadcast %708 : f32 to vector<64x64xf32>
    %712 = arith.mulf %711, %710 : vector<64x64xf32>
    %713 = arith.addf %707, %712 : vector<64x64xf32>
    %c52 = arith.constant 52 : index
    %714 = memref.load %arg2[%c52] : memref<144xf32, #tpu.memory_space<smem>>
    %c5_355 = arith.constant 5 : index
    %c0_356 = arith.constant 0 : index
    %c0_357 = arith.constant 0 : index
    %715 = vector.load %arg1[%c5_355, %c0_356, %c0_357] : memref<16x64x64xf32, #tpu.memory_space<vmem>>, vector<1x64x64xf32>
    %716 = vector.shape_cast %715 : vector<1x64x64xf32> to vector<64x64xf32>
    %717 = vector.broadcast %714 : f32 to vector<64x64xf32>
    %718 = arith.mulf %717, %716 : vector<64x64xf32>
    %719 = arith.addf %713, %718 : vector<64x64xf32>
    %c61 = arith.constant 61 : index
    %720 = memref.load %arg2[%c61] : memref<144xf32, #tpu.memory_space<smem>>
    %c6_358 = arith.constant 6 : index
    %c0_359 = arith.constant 0 : index
    %c0_360 = arith.constant 0 : index
    %721 = vector.load %arg1[%c6_358, %c0_359, %c0_360] : memref<16x64x64xf32, #tpu.memory_space<vmem>>, vector<1x64x64xf32>
    %722 = vector.shape_cast %721 : vector<1x64x64xf32> to vector<64x64xf32>
    %723 = vector.broadcast %720 : f32 to vector<64x64xf32>
    %724 = arith.mulf %723, %722 : vector<64x64xf32>
    %725 = arith.addf %719, %724 : vector<64x64xf32>
    %c70 = arith.constant 70 : index
    %726 = memref.load %arg2[%c70] : memref<144xf32, #tpu.memory_space<smem>>
    %c7_361 = arith.constant 7 : index
    %c0_362 = arith.constant 0 : index
    %c0_363 = arith.constant 0 : index
    %727 = vector.load %arg1[%c7_361, %c0_362, %c0_363] : memref<16x64x64xf32, #tpu.memory_space<vmem>>, vector<1x64x64xf32>
    %728 = vector.shape_cast %727 : vector<1x64x64xf32> to vector<64x64xf32>
    %729 = vector.broadcast %726 : f32 to vector<64x64xf32>
    %730 = arith.mulf %729, %728 : vector<64x64xf32>
    %731 = arith.addf %725, %730 : vector<64x64xf32>
    %c79 = arith.constant 79 : index
    %732 = memref.load %arg2[%c79] : memref<144xf32, #tpu.memory_space<smem>>
    %c8_364 = arith.constant 8 : index
    %c0_365 = arith.constant 0 : index
    %c0_366 = arith.constant 0 : index
    %733 = vector.load %arg1[%c8_364, %c0_365, %c0_366] : memref<16x64x64xf32, #tpu.memory_space<vmem>>, vector<1x64x64xf32>
    %734 = vector.shape_cast %733 : vector<1x64x64xf32> to vector<64x64xf32>
    %735 = vector.broadcast %732 : f32 to vector<64x64xf32>
    %736 = arith.mulf %735, %734 : vector<64x64xf32>
    %737 = arith.addf %731, %736 : vector<64x64xf32>
    %c88 = arith.constant 88 : index
    %738 = memref.load %arg2[%c88] : memref<144xf32, #tpu.memory_space<smem>>
    %c9_367 = arith.constant 9 : index
    %c0_368 = arith.constant 0 : index
    %c0_369 = arith.constant 0 : index
    %739 = vector.load %arg1[%c9_367, %c0_368, %c0_369] : memref<16x64x64xf32, #tpu.memory_space<vmem>>, vector<1x64x64xf32>
    %740 = vector.shape_cast %739 : vector<1x64x64xf32> to vector<64x64xf32>
    %741 = vector.broadcast %738 : f32 to vector<64x64xf32>
    %742 = arith.mulf %741, %740 : vector<64x64xf32>
    %743 = arith.addf %737, %742 : vector<64x64xf32>
    %c97 = arith.constant 97 : index
    %744 = memref.load %arg2[%c97] : memref<144xf32, #tpu.memory_space<smem>>
    %c10_370 = arith.constant 10 : index
    %c0_371 = arith.constant 0 : index
    %c0_372 = arith.constant 0 : index
    %745 = vector.load %arg1[%c10_370, %c0_371, %c0_372] : memref<16x64x64xf32, #tpu.memory_space<vmem>>, vector<1x64x64xf32>
    %746 = vector.shape_cast %745 : vector<1x64x64xf32> to vector<64x64xf32>
    %747 = vector.broadcast %744 : f32 to vector<64x64xf32>
    %748 = arith.mulf %747, %746 : vector<64x64xf32>
    %749 = arith.addf %743, %748 : vector<64x64xf32>
    %c106 = arith.constant 106 : index
    %750 = memref.load %arg2[%c106] : memref<144xf32, #tpu.memory_space<smem>>
    %c11_373 = arith.constant 11 : index
    %c0_374 = arith.constant 0 : index
    %c0_375 = arith.constant 0 : index
    %751 = vector.load %arg1[%c11_373, %c0_374, %c0_375] : memref<16x64x64xf32, #tpu.memory_space<vmem>>, vector<1x64x64xf32>
    %752 = vector.shape_cast %751 : vector<1x64x64xf32> to vector<64x64xf32>
    %753 = vector.broadcast %750 : f32 to vector<64x64xf32>
    %754 = arith.mulf %753, %752 : vector<64x64xf32>
    %755 = arith.addf %749, %754 : vector<64x64xf32>
    %c115 = arith.constant 115 : index
    %756 = memref.load %arg2[%c115] : memref<144xf32, #tpu.memory_space<smem>>
    %c12_376 = arith.constant 12 : index
    %c0_377 = arith.constant 0 : index
    %c0_378 = arith.constant 0 : index
    %757 = vector.load %arg1[%c12_376, %c0_377, %c0_378] : memref<16x64x64xf32, #tpu.memory_space<vmem>>, vector<1x64x64xf32>
    %758 = vector.shape_cast %757 : vector<1x64x64xf32> to vector<64x64xf32>
    %759 = vector.broadcast %756 : f32 to vector<64x64xf32>
    %760 = arith.mulf %759, %758 : vector<64x64xf32>
    %761 = arith.addf %755, %760 : vector<64x64xf32>
    %c124 = arith.constant 124 : index
    %762 = memref.load %arg2[%c124] : memref<144xf32, #tpu.memory_space<smem>>
    %c13_379 = arith.constant 13 : index
    %c0_380 = arith.constant 0 : index
    %c0_381 = arith.constant 0 : index
    %763 = vector.load %arg1[%c13_379, %c0_380, %c0_381] : memref<16x64x64xf32, #tpu.memory_space<vmem>>, vector<1x64x64xf32>
    %764 = vector.shape_cast %763 : vector<1x64x64xf32> to vector<64x64xf32>
    %765 = vector.broadcast %762 : f32 to vector<64x64xf32>
    %766 = arith.mulf %765, %764 : vector<64x64xf32>
    %767 = arith.addf %761, %766 : vector<64x64xf32>
    %c133 = arith.constant 133 : index
    %768 = memref.load %arg2[%c133] : memref<144xf32, #tpu.memory_space<smem>>
    %c14_382 = arith.constant 14 : index
    %c0_383 = arith.constant 0 : index
    %c0_384 = arith.constant 0 : index
    %769 = vector.load %arg1[%c14_382, %c0_383, %c0_384] : memref<16x64x64xf32, #tpu.memory_space<vmem>>, vector<1x64x64xf32>
    %770 = vector.shape_cast %769 : vector<1x64x64xf32> to vector<64x64xf32>
    %771 = vector.broadcast %768 : f32 to vector<64x64xf32>
    %772 = arith.mulf %771, %770 : vector<64x64xf32>
    %773 = arith.addf %767, %772 : vector<64x64xf32>
    %c142 = arith.constant 142 : index
    %774 = memref.load %arg2[%c142] : memref<144xf32, #tpu.memory_space<smem>>
    %c15_385 = arith.constant 15 : index
    %c0_386 = arith.constant 0 : index
    %c0_387 = arith.constant 0 : index
    %775 = vector.load %arg1[%c15_385, %c0_386, %c0_387] : memref<16x64x64xf32, #tpu.memory_space<vmem>>, vector<1x64x64xf32>
    %776 = vector.shape_cast %775 : vector<1x64x64xf32> to vector<64x64xf32>
    %777 = vector.broadcast %774 : f32 to vector<64x64xf32>
    %778 = arith.mulf %777, %776 : vector<64x64xf32>
    %779 = arith.addf %773, %778 : vector<64x64xf32>
    %780 = vector.extract_strided_slice %779 {offsets = [2, 1], sizes = [62, 62], strides = [1, 1]} : vector<64x64xf32> to vector<62x62xf32>
    %781 = arith.addf %684, %780 : vector<62x62xf32>
    %c8_388 = arith.constant 8 : index
    %782 = memref.load %arg2[%c8_388] : memref<144xf32, #tpu.memory_space<smem>>
    %c0_389 = arith.constant 0 : index
    %c0_390 = arith.constant 0 : index
    %c0_391 = arith.constant 0 : index
    %783 = vector.load %arg1[%c0_389, %c0_390, %c0_391] : memref<16x64x64xf32, #tpu.memory_space<vmem>>, vector<1x64x64xf32>
    %784 = vector.shape_cast %783 : vector<1x64x64xf32> to vector<64x64xf32>
    %785 = vector.broadcast %782 : f32 to vector<64x64xf32>
    %786 = arith.mulf %785, %784 : vector<64x64xf32>
    %c17 = arith.constant 17 : index
    %787 = memref.load %arg2[%c17] : memref<144xf32, #tpu.memory_space<smem>>
    %c1_392 = arith.constant 1 : index
    %c0_393 = arith.constant 0 : index
    %c0_394 = arith.constant 0 : index
    %788 = vector.load %arg1[%c1_392, %c0_393, %c0_394] : memref<16x64x64xf32, #tpu.memory_space<vmem>>, vector<1x64x64xf32>
    %789 = vector.shape_cast %788 : vector<1x64x64xf32> to vector<64x64xf32>
    %790 = vector.broadcast %787 : f32 to vector<64x64xf32>
    %791 = arith.mulf %790, %789 : vector<64x64xf32>
    %792 = arith.addf %786, %791 : vector<64x64xf32>
    %c26 = arith.constant 26 : index
    %793 = memref.load %arg2[%c26] : memref<144xf32, #tpu.memory_space<smem>>
    %c2_395 = arith.constant 2 : index
    %c0_396 = arith.constant 0 : index
    %c0_397 = arith.constant 0 : index
    %794 = vector.load %arg1[%c2_395, %c0_396, %c0_397] : memref<16x64x64xf32, #tpu.memory_space<vmem>>, vector<1x64x64xf32>
    %795 = vector.shape_cast %794 : vector<1x64x64xf32> to vector<64x64xf32>
    %796 = vector.broadcast %793 : f32 to vector<64x64xf32>
    %797 = arith.mulf %796, %795 : vector<64x64xf32>
    %798 = arith.addf %792, %797 : vector<64x64xf32>
    %c35 = arith.constant 35 : index
    %799 = memref.load %arg2[%c35] : memref<144xf32, #tpu.memory_space<smem>>
    %c3_398 = arith.constant 3 : index
    %c0_399 = arith.constant 0 : index
    %c0_400 = arith.constant 0 : index
    %800 = vector.load %arg1[%c3_398, %c0_399, %c0_400] : memref<16x64x64xf32, #tpu.memory_space<vmem>>, vector<1x64x64xf32>
    %801 = vector.shape_cast %800 : vector<1x64x64xf32> to vector<64x64xf32>
    %802 = vector.broadcast %799 : f32 to vector<64x64xf32>
    %803 = arith.mulf %802, %801 : vector<64x64xf32>
    %804 = arith.addf %798, %803 : vector<64x64xf32>
    %c44 = arith.constant 44 : index
    %805 = memref.load %arg2[%c44] : memref<144xf32, #tpu.memory_space<smem>>
    %c4_401 = arith.constant 4 : index
    %c0_402 = arith.constant 0 : index
    %c0_403 = arith.constant 0 : index
    %806 = vector.load %arg1[%c4_401, %c0_402, %c0_403] : memref<16x64x64xf32, #tpu.memory_space<vmem>>, vector<1x64x64xf32>
    %807 = vector.shape_cast %806 : vector<1x64x64xf32> to vector<64x64xf32>
    %808 = vector.broadcast %805 : f32 to vector<64x64xf32>
    %809 = arith.mulf %808, %807 : vector<64x64xf32>
    %810 = arith.addf %804, %809 : vector<64x64xf32>
    %c53 = arith.constant 53 : index
    %811 = memref.load %arg2[%c53] : memref<144xf32, #tpu.memory_space<smem>>
    %c5_404 = arith.constant 5 : index
    %c0_405 = arith.constant 0 : index
    %c0_406 = arith.constant 0 : index
    %812 = vector.load %arg1[%c5_404, %c0_405, %c0_406] : memref<16x64x64xf32, #tpu.memory_space<vmem>>, vector<1x64x64xf32>
    %813 = vector.shape_cast %812 : vector<1x64x64xf32> to vector<64x64xf32>
    %814 = vector.broadcast %811 : f32 to vector<64x64xf32>
    %815 = arith.mulf %814, %813 : vector<64x64xf32>
    %816 = arith.addf %810, %815 : vector<64x64xf32>
    %c62 = arith.constant 62 : index
    %817 = memref.load %arg2[%c62] : memref<144xf32, #tpu.memory_space<smem>>
    %c6_407 = arith.constant 6 : index
    %c0_408 = arith.constant 0 : index
    %c0_409 = arith.constant 0 : index
    %818 = vector.load %arg1[%c6_407, %c0_408, %c0_409] : memref<16x64x64xf32, #tpu.memory_space<vmem>>, vector<1x64x64xf32>
    %819 = vector.shape_cast %818 : vector<1x64x64xf32> to vector<64x64xf32>
    %820 = vector.broadcast %817 : f32 to vector<64x64xf32>
    %821 = arith.mulf %820, %819 : vector<64x64xf32>
    %822 = arith.addf %816, %821 : vector<64x64xf32>
    %c71 = arith.constant 71 : index
    %823 = memref.load %arg2[%c71] : memref<144xf32, #tpu.memory_space<smem>>
    %c7_410 = arith.constant 7 : index
    %c0_411 = arith.constant 0 : index
    %c0_412 = arith.constant 0 : index
    %824 = vector.load %arg1[%c7_410, %c0_411, %c0_412] : memref<16x64x64xf32, #tpu.memory_space<vmem>>, vector<1x64x64xf32>
    %825 = vector.shape_cast %824 : vector<1x64x64xf32> to vector<64x64xf32>
    %826 = vector.broadcast %823 : f32 to vector<64x64xf32>
    %827 = arith.mulf %826, %825 : vector<64x64xf32>
    %828 = arith.addf %822, %827 : vector<64x64xf32>
    %c80 = arith.constant 80 : index
    %829 = memref.load %arg2[%c80] : memref<144xf32, #tpu.memory_space<smem>>
    %c8_413 = arith.constant 8 : index
    %c0_414 = arith.constant 0 : index
    %c0_415 = arith.constant 0 : index
    %830 = vector.load %arg1[%c8_413, %c0_414, %c0_415] : memref<16x64x64xf32, #tpu.memory_space<vmem>>, vector<1x64x64xf32>
    %831 = vector.shape_cast %830 : vector<1x64x64xf32> to vector<64x64xf32>
    %832 = vector.broadcast %829 : f32 to vector<64x64xf32>
    %833 = arith.mulf %832, %831 : vector<64x64xf32>
    %834 = arith.addf %828, %833 : vector<64x64xf32>
    %c89 = arith.constant 89 : index
    %835 = memref.load %arg2[%c89] : memref<144xf32, #tpu.memory_space<smem>>
    %c9_416 = arith.constant 9 : index
    %c0_417 = arith.constant 0 : index
    %c0_418 = arith.constant 0 : index
    %836 = vector.load %arg1[%c9_416, %c0_417, %c0_418] : memref<16x64x64xf32, #tpu.memory_space<vmem>>, vector<1x64x64xf32>
    %837 = vector.shape_cast %836 : vector<1x64x64xf32> to vector<64x64xf32>
    %838 = vector.broadcast %835 : f32 to vector<64x64xf32>
    %839 = arith.mulf %838, %837 : vector<64x64xf32>
    %840 = arith.addf %834, %839 : vector<64x64xf32>
    %c98 = arith.constant 98 : index
    %841 = memref.load %arg2[%c98] : memref<144xf32, #tpu.memory_space<smem>>
    %c10_419 = arith.constant 10 : index
    %c0_420 = arith.constant 0 : index
    %c0_421 = arith.constant 0 : index
    %842 = vector.load %arg1[%c10_419, %c0_420, %c0_421] : memref<16x64x64xf32, #tpu.memory_space<vmem>>, vector<1x64x64xf32>
    %843 = vector.shape_cast %842 : vector<1x64x64xf32> to vector<64x64xf32>
    %844 = vector.broadcast %841 : f32 to vector<64x64xf32>
    %845 = arith.mulf %844, %843 : vector<64x64xf32>
    %846 = arith.addf %840, %845 : vector<64x64xf32>
    %c107 = arith.constant 107 : index
    %847 = memref.load %arg2[%c107] : memref<144xf32, #tpu.memory_space<smem>>
    %c11_422 = arith.constant 11 : index
    %c0_423 = arith.constant 0 : index
    %c0_424 = arith.constant 0 : index
    %848 = vector.load %arg1[%c11_422, %c0_423, %c0_424] : memref<16x64x64xf32, #tpu.memory_space<vmem>>, vector<1x64x64xf32>
    %849 = vector.shape_cast %848 : vector<1x64x64xf32> to vector<64x64xf32>
    %850 = vector.broadcast %847 : f32 to vector<64x64xf32>
    %851 = arith.mulf %850, %849 : vector<64x64xf32>
    %852 = arith.addf %846, %851 : vector<64x64xf32>
    %c116 = arith.constant 116 : index
    %853 = memref.load %arg2[%c116] : memref<144xf32, #tpu.memory_space<smem>>
    %c12_425 = arith.constant 12 : index
    %c0_426 = arith.constant 0 : index
    %c0_427 = arith.constant 0 : index
    %854 = vector.load %arg1[%c12_425, %c0_426, %c0_427] : memref<16x64x64xf32, #tpu.memory_space<vmem>>, vector<1x64x64xf32>
    %855 = vector.shape_cast %854 : vector<1x64x64xf32> to vector<64x64xf32>
    %856 = vector.broadcast %853 : f32 to vector<64x64xf32>
    %857 = arith.mulf %856, %855 : vector<64x64xf32>
    %858 = arith.addf %852, %857 : vector<64x64xf32>
    %c125 = arith.constant 125 : index
    %859 = memref.load %arg2[%c125] : memref<144xf32, #tpu.memory_space<smem>>
    %c13_428 = arith.constant 13 : index
    %c0_429 = arith.constant 0 : index
    %c0_430 = arith.constant 0 : index
    %860 = vector.load %arg1[%c13_428, %c0_429, %c0_430] : memref<16x64x64xf32, #tpu.memory_space<vmem>>, vector<1x64x64xf32>
    %861 = vector.shape_cast %860 : vector<1x64x64xf32> to vector<64x64xf32>
    %862 = vector.broadcast %859 : f32 to vector<64x64xf32>
    %863 = arith.mulf %862, %861 : vector<64x64xf32>
    %864 = arith.addf %858, %863 : vector<64x64xf32>
    %c134 = arith.constant 134 : index
    %865 = memref.load %arg2[%c134] : memref<144xf32, #tpu.memory_space<smem>>
    %c14_431 = arith.constant 14 : index
    %c0_432 = arith.constant 0 : index
    %c0_433 = arith.constant 0 : index
    %866 = vector.load %arg1[%c14_431, %c0_432, %c0_433] : memref<16x64x64xf32, #tpu.memory_space<vmem>>, vector<1x64x64xf32>
    %867 = vector.shape_cast %866 : vector<1x64x64xf32> to vector<64x64xf32>
    %868 = vector.broadcast %865 : f32 to vector<64x64xf32>
    %869 = arith.mulf %868, %867 : vector<64x64xf32>
    %870 = arith.addf %864, %869 : vector<64x64xf32>
    %c143 = arith.constant 143 : index
    %871 = memref.load %arg2[%c143] : memref<144xf32, #tpu.memory_space<smem>>
    %c15_434 = arith.constant 15 : index
    %c0_435 = arith.constant 0 : index
    %c0_436 = arith.constant 0 : index
    %872 = vector.load %arg1[%c15_434, %c0_435, %c0_436] : memref<16x64x64xf32, #tpu.memory_space<vmem>>, vector<1x64x64xf32>
    %873 = vector.shape_cast %872 : vector<1x64x64xf32> to vector<64x64xf32>
    %874 = vector.broadcast %871 : f32 to vector<64x64xf32>
    %875 = arith.mulf %874, %873 : vector<64x64xf32>
    %876 = arith.addf %870, %875 : vector<64x64xf32>
    %877 = vector.extract_strided_slice %876 {offsets = [2, 2], sizes = [62, 62], strides = [1, 1]} : vector<64x64xf32> to vector<62x62xf32>
    %878 = arith.addf %781, %877 : vector<62x62xf32>
    %cst_437 = arith.constant 0.000000e+00 : f32
    %879 = vector.broadcast %cst_437 : f32 to vector<62x62xf32>
    %880 = arith.cmpf ogt, %878, %879 : vector<62x62xf32>
    %cst_438 = arith.constant 0.000000e+00 : f32
    %881 = vector.broadcast %cst_438 : f32 to vector<62x62xf32>
    %882 = arith.minimumf %878, %881 : vector<62x62xf32>
    %883 = math.exp %882 : vector<62x62xf32>
    %cst_439 = arith.constant 1.000000e+00 : f32
    %884 = vector.broadcast %cst_439 : f32 to vector<62x62xf32>
    %885 = arith.subf %883, %884 : vector<62x62xf32>
    %886 = arith.select %880, %878, %885 : vector<62x62xi1>, vector<62x62xf32>
    %c0_440 = arith.constant 0 : index
    %887 = memref.load %arg5[%c0_440] : memref<1xf32, #tpu.memory_space<smem>>
    %888 = vector.broadcast %887 : f32 to vector<60x60xf32>
    %c0_441 = arith.constant 0 : index
    %889 = memref.load %arg4[%c0_441] : memref<9xf32, #tpu.memory_space<smem>>
    %890 = vector.extract_strided_slice %886 {offsets = [0, 0], sizes = [60, 60], strides = [1, 1]} : vector<62x62xf32> to vector<60x60xf32>
    %891 = vector.broadcast %889 : f32 to vector<60x60xf32>
    %892 = arith.mulf %891, %890 : vector<60x60xf32>
    %893 = arith.addf %888, %892 : vector<60x60xf32>
    %c1_442 = arith.constant 1 : index
    %894 = memref.load %arg4[%c1_442] : memref<9xf32, #tpu.memory_space<smem>>
    %895 = vector.extract_strided_slice %886 {offsets = [0, 1], sizes = [60, 60], strides = [1, 1]} : vector<62x62xf32> to vector<60x60xf32>
    %896 = vector.broadcast %894 : f32 to vector<60x60xf32>
    %897 = arith.mulf %896, %895 : vector<60x60xf32>
    %898 = arith.addf %893, %897 : vector<60x60xf32>
    %c2_443 = arith.constant 2 : index
    %899 = memref.load %arg4[%c2_443] : memref<9xf32, #tpu.memory_space<smem>>
    %900 = vector.extract_strided_slice %886 {offsets = [0, 2], sizes = [60, 60], strides = [1, 1]} : vector<62x62xf32> to vector<60x60xf32>
    %901 = vector.broadcast %899 : f32 to vector<60x60xf32>
    %902 = arith.mulf %901, %900 : vector<60x60xf32>
    %903 = arith.addf %898, %902 : vector<60x60xf32>
    %c3_444 = arith.constant 3 : index
    %904 = memref.load %arg4[%c3_444] : memref<9xf32, #tpu.memory_space<smem>>
    %905 = vector.extract_strided_slice %886 {offsets = [1, 0], sizes = [60, 60], strides = [1, 1]} : vector<62x62xf32> to vector<60x60xf32>
    %906 = vector.broadcast %904 : f32 to vector<60x60xf32>
    %907 = arith.mulf %906, %905 : vector<60x60xf32>
    %908 = arith.addf %903, %907 : vector<60x60xf32>
    %c4_445 = arith.constant 4 : index
    %909 = memref.load %arg4[%c4_445] : memref<9xf32, #tpu.memory_space<smem>>
    %910 = vector.extract_strided_slice %886 {offsets = [1, 1], sizes = [60, 60], strides = [1, 1]} : vector<62x62xf32> to vector<60x60xf32>
    %911 = vector.broadcast %909 : f32 to vector<60x60xf32>
    %912 = arith.mulf %911, %910 : vector<60x60xf32>
    %913 = arith.addf %908, %912 : vector<60x60xf32>
    %c5_446 = arith.constant 5 : index
    %914 = memref.load %arg4[%c5_446] : memref<9xf32, #tpu.memory_space<smem>>
    %915 = vector.extract_strided_slice %886 {offsets = [1, 2], sizes = [60, 60], strides = [1, 1]} : vector<62x62xf32> to vector<60x60xf32>
    %916 = vector.broadcast %914 : f32 to vector<60x60xf32>
    %917 = arith.mulf %916, %915 : vector<60x60xf32>
    %918 = arith.addf %913, %917 : vector<60x60xf32>
    %c6_447 = arith.constant 6 : index
    %919 = memref.load %arg4[%c6_447] : memref<9xf32, #tpu.memory_space<smem>>
    %920 = vector.extract_strided_slice %886 {offsets = [2, 0], sizes = [60, 60], strides = [1, 1]} : vector<62x62xf32> to vector<60x60xf32>
    %921 = vector.broadcast %919 : f32 to vector<60x60xf32>
    %922 = arith.mulf %921, %920 : vector<60x60xf32>
    %923 = arith.addf %918, %922 : vector<60x60xf32>
    %c7_448 = arith.constant 7 : index
    %924 = memref.load %arg4[%c7_448] : memref<9xf32, #tpu.memory_space<smem>>
    %925 = vector.extract_strided_slice %886 {offsets = [2, 1], sizes = [60, 60], strides = [1, 1]} : vector<62x62xf32> to vector<60x60xf32>
    %926 = vector.broadcast %924 : f32 to vector<60x60xf32>
    %927 = arith.mulf %926, %925 : vector<60x60xf32>
    %928 = arith.addf %923, %927 : vector<60x60xf32>
    %c8_449 = arith.constant 8 : index
    %929 = memref.load %arg4[%c8_449] : memref<9xf32, #tpu.memory_space<smem>>
    %930 = vector.extract_strided_slice %886 {offsets = [2, 2], sizes = [60, 60], strides = [1, 1]} : vector<62x62xf32> to vector<60x60xf32>
    %931 = vector.broadcast %929 : f32 to vector<60x60xf32>
    %932 = arith.mulf %931, %930 : vector<60x60xf32>
    %933 = arith.addf %928, %932 : vector<60x60xf32>
    %cst_450 = arith.constant 0.000000e+00 : f32
    %934 = vector.broadcast %cst_450 : f32 to vector<60x60xf32>
    %935 = arith.cmpf ogt, %933, %934 : vector<60x60xf32>
    %cst_451 = arith.constant 0.000000e+00 : f32
    %936 = vector.broadcast %cst_451 : f32 to vector<60x60xf32>
    %937 = arith.minimumf %933, %936 : vector<60x60xf32>
    %938 = math.exp %937 : vector<60x60xf32>
    %cst_452 = arith.constant 1.000000e+00 : f32
    %939 = vector.broadcast %cst_452 : f32 to vector<60x60xf32>
    %940 = arith.subf %938, %939 : vector<60x60xf32>
    %941 = arith.select %935, %933, %940 : vector<60x60xi1>, vector<60x60xf32>
    %c0_453 = arith.constant 0 : index
    %942 = memref.load %arg7[%c0_453] : memref<1xf32, #tpu.memory_space<smem>>
    %943 = vector.broadcast %942 : f32 to vector<58x58xf32>
    %c0_454 = arith.constant 0 : index
    %944 = memref.load %arg6[%c0_454] : memref<9xf32, #tpu.memory_space<smem>>
    %945 = vector.extract_strided_slice %941 {offsets = [0, 0], sizes = [58, 58], strides = [1, 1]} : vector<60x60xf32> to vector<58x58xf32>
    %946 = vector.broadcast %944 : f32 to vector<58x58xf32>
    %947 = arith.mulf %946, %945 : vector<58x58xf32>
    %948 = arith.addf %943, %947 : vector<58x58xf32>
    %c1_455 = arith.constant 1 : index
    %949 = memref.load %arg6[%c1_455] : memref<9xf32, #tpu.memory_space<smem>>
    %950 = vector.extract_strided_slice %941 {offsets = [0, 1], sizes = [58, 58], strides = [1, 1]} : vector<60x60xf32> to vector<58x58xf32>
    %951 = vector.broadcast %949 : f32 to vector<58x58xf32>
    %952 = arith.mulf %951, %950 : vector<58x58xf32>
    %953 = arith.addf %948, %952 : vector<58x58xf32>
    %c2_456 = arith.constant 2 : index
    %954 = memref.load %arg6[%c2_456] : memref<9xf32, #tpu.memory_space<smem>>
    %955 = vector.extract_strided_slice %941 {offsets = [0, 2], sizes = [58, 58], strides = [1, 1]} : vector<60x60xf32> to vector<58x58xf32>
    %956 = vector.broadcast %954 : f32 to vector<58x58xf32>
    %957 = arith.mulf %956, %955 : vector<58x58xf32>
    %958 = arith.addf %953, %957 : vector<58x58xf32>
    %c3_457 = arith.constant 3 : index
    %959 = memref.load %arg6[%c3_457] : memref<9xf32, #tpu.memory_space<smem>>
    %960 = vector.extract_strided_slice %941 {offsets = [1, 0], sizes = [58, 58], strides = [1, 1]} : vector<60x60xf32> to vector<58x58xf32>
    %961 = vector.broadcast %959 : f32 to vector<58x58xf32>
    %962 = arith.mulf %961, %960 : vector<58x58xf32>
    %963 = arith.addf %958, %962 : vector<58x58xf32>
    %c4_458 = arith.constant 4 : index
    %964 = memref.load %arg6[%c4_458] : memref<9xf32, #tpu.memory_space<smem>>
    %965 = vector.extract_strided_slice %941 {offsets = [1, 1], sizes = [58, 58], strides = [1, 1]} : vector<60x60xf32> to vector<58x58xf32>
    %966 = vector.broadcast %964 : f32 to vector<58x58xf32>
    %967 = arith.mulf %966, %965 : vector<58x58xf32>
    %968 = arith.addf %963, %967 : vector<58x58xf32>
    %c5_459 = arith.constant 5 : index
    %969 = memref.load %arg6[%c5_459] : memref<9xf32, #tpu.memory_space<smem>>
    %970 = vector.extract_strided_slice %941 {offsets = [1, 2], sizes = [58, 58], strides = [1, 1]} : vector<60x60xf32> to vector<58x58xf32>
    %971 = vector.broadcast %969 : f32 to vector<58x58xf32>
    %972 = arith.mulf %971, %970 : vector<58x58xf32>
    %973 = arith.addf %968, %972 : vector<58x58xf32>
    %c6_460 = arith.constant 6 : index
    %974 = memref.load %arg6[%c6_460] : memref<9xf32, #tpu.memory_space<smem>>
    %975 = vector.extract_strided_slice %941 {offsets = [2, 0], sizes = [58, 58], strides = [1, 1]} : vector<60x60xf32> to vector<58x58xf32>
    %976 = vector.broadcast %974 : f32 to vector<58x58xf32>
    %977 = arith.mulf %976, %975 : vector<58x58xf32>
    %978 = arith.addf %973, %977 : vector<58x58xf32>
    %c7_461 = arith.constant 7 : index
    %979 = memref.load %arg6[%c7_461] : memref<9xf32, #tpu.memory_space<smem>>
    %980 = vector.extract_strided_slice %941 {offsets = [2, 1], sizes = [58, 58], strides = [1, 1]} : vector<60x60xf32> to vector<58x58xf32>
    %981 = vector.broadcast %979 : f32 to vector<58x58xf32>
    %982 = arith.mulf %981, %980 : vector<58x58xf32>
    %983 = arith.addf %978, %982 : vector<58x58xf32>
    %c8_462 = arith.constant 8 : index
    %984 = memref.load %arg6[%c8_462] : memref<9xf32, #tpu.memory_space<smem>>
    %985 = vector.extract_strided_slice %941 {offsets = [2, 2], sizes = [58, 58], strides = [1, 1]} : vector<60x60xf32> to vector<58x58xf32>
    %986 = vector.broadcast %984 : f32 to vector<58x58xf32>
    %987 = arith.mulf %986, %985 : vector<58x58xf32>
    %988 = arith.addf %983, %987 : vector<58x58xf32>
    %cst_463 = arith.constant 0.000000e+00 : f32
    %989 = vector.broadcast %cst_463 : f32 to vector<58x58xf32>
    %990 = arith.cmpf ogt, %988, %989 : vector<58x58xf32>
    %cst_464 = arith.constant 0.000000e+00 : f32
    %991 = vector.broadcast %cst_464 : f32 to vector<58x58xf32>
    %992 = arith.minimumf %988, %991 : vector<58x58xf32>
    %993 = math.exp %992 : vector<58x58xf32>
    %cst_465 = arith.constant 1.000000e+00 : f32
    %994 = vector.broadcast %cst_465 : f32 to vector<58x58xf32>
    %995 = arith.subf %993, %994 : vector<58x58xf32>
    %996 = arith.select %990, %988, %995 : vector<58x58xi1>, vector<58x58xf32>
    %cst_466 = arith.constant 0.000000e+00 : f32
    %997 = vector.broadcast %cst_466 : f32 to vector<64x64xf32>
    %c0_467 = arith.constant 0 : index
    %c0_468 = arith.constant 0 : index
    %998 = vector.load %arg16[%c0_467, %c0_468] : memref<64x64xf32, #tpu.memory_space<vmem>>, vector<64x64xf32>
    tpu.vector_store %arg16[%c0_467, %c0_468], %997 {strides = array<i32>} : memref<64x64xf32, #tpu.memory_space<vmem>>, vector<64x64xf32>,
    %c0_469 = arith.constant 0 : index
    %c0_470 = arith.constant 0 : index
    %999 = vector.load %arg16[%c0_469, %c0_470] : memref<64x64xf32, #tpu.memory_space<vmem>>, vector<58x58xf32>
    tpu.vector_store %arg16[%c0_469, %c0_470], %996 {strides = array<i32>} : memref<64x64xf32, #tpu.memory_space<vmem>>, vector<58x58xf32>,
    %c0_471 = arith.constant 0 : index
    %c0_472 = arith.constant 0 : index
    %1000 = vector.load %arg16[%c0_471, %c0_472] : memref<64x64xf32, #tpu.memory_space<vmem>>, vector<1x64xf32>
    %c1_473 = arith.constant 1 : index
    %c0_474 = arith.constant 0 : index
    %1001 = vector.load %arg16[%c1_473, %c0_474] : memref<64x64xf32, #tpu.memory_space<vmem>>, vector<1x64xf32>
    %1002 = tpu.concatenate %1000, %1001 in 1 : vector<1x64xf32>, vector<1x64xf32> -> vector<1x128xf32>
    %c0_475 = arith.constant 0 : index
    %c0_476 = arith.constant 0 : index
    %1003 = vector.load %arg17[%c0_475, %c0_476] : memref<1x4096xf32, #tpu.memory_space<vmem>>, vector<1x128xf32>
    tpu.vector_store %arg17[%c0_475, %c0_476], %1002 {strides = array<i32>} : memref<1x4096xf32, #tpu.memory_space<vmem>>, vector<1x128xf32>,
    %c2_477 = arith.constant 2 : index
    %c0_478 = arith.constant 0 : index
    %1004 = vector.load %arg16[%c2_477, %c0_478] : memref<64x64xf32, #tpu.memory_space<vmem>>, vector<1x64xf32>
    %c3_479 = arith.constant 3 : index
    %c0_480 = arith.constant 0 : index
    %1005 = vector.load %arg16[%c3_479, %c0_480] : memref<64x64xf32, #tpu.memory_space<vmem>>, vector<1x64xf32>
    %1006 = tpu.concatenate %1004, %1005 in 1 : vector<1x64xf32>, vector<1x64xf32> -> vector<1x128xf32>
    %c0_481 = arith.constant 0 : index
    %c128_482 = arith.constant 128 : index
    %1007 = vector.load %arg17[%c0_481, %c128_482] : memref<1x4096xf32, #tpu.memory_space<vmem>>, vector<1x128xf32>
    tpu.vector_store %arg17[%c0_481, %c128_482], %1006 {strides = array<i32>} : memref<1x4096xf32, #tpu.memory_space<vmem>>, vector<1x128xf32>,
    %c4_483 = arith.constant 4 : index
    %c0_484 = arith.constant 0 : index
    %1008 = vector.load %arg16[%c4_483, %c0_484] : memref<64x64xf32, #tpu.memory_space<vmem>>, vector<1x64xf32>
    %c5_485 = arith.constant 5 : index
    %c0_486 = arith.constant 0 : index
    %1009 = vector.load %arg16[%c5_485, %c0_486] : memref<64x64xf32, #tpu.memory_space<vmem>>, vector<1x64xf32>
    %1010 = tpu.concatenate %1008, %1009 in 1 : vector<1x64xf32>, vector<1x64xf32> -> vector<1x128xf32>
    %c0_487 = arith.constant 0 : index
    %c256 = arith.constant 256 : index
    %1011 = vector.load %arg17[%c0_487, %c256] : memref<1x4096xf32, #tpu.memory_space<vmem>>, vector<1x128xf32>
    tpu.vector_store %arg17[%c0_487, %c256], %1010 {strides = array<i32>} : memref<1x4096xf32, #tpu.memory_space<vmem>>, vector<1x128xf32>,
    %c6_488 = arith.constant 6 : index
    %c0_489 = arith.constant 0 : index
    %1012 = vector.load %arg16[%c6_488, %c0_489] : memref<64x64xf32, #tpu.memory_space<vmem>>, vector<1x64xf32>
    %c7_490 = arith.constant 7 : index
    %c0_491 = arith.constant 0 : index
    %1013 = vector.load %arg16[%c7_490, %c0_491] : memref<64x64xf32, #tpu.memory_space<vmem>>, vector<1x64xf32>
    %1014 = tpu.concatenate %1012, %1013 in 1 : vector<1x64xf32>, vector<1x64xf32> -> vector<1x128xf32>
    %c0_492 = arith.constant 0 : index
    %c384 = arith.constant 384 : index
    %1015 = vector.load %arg17[%c0_492, %c384] : memref<1x4096xf32, #tpu.memory_space<vmem>>, vector<1x128xf32>
    tpu.vector_store %arg17[%c0_492, %c384], %1014 {strides = array<i32>} : memref<1x4096xf32, #tpu.memory_space<vmem>>, vector<1x128xf32>,
    %c8_493 = arith.constant 8 : index
    %c0_494 = arith.constant 0 : index
    %1016 = vector.load %arg16[%c8_493, %c0_494] : memref<64x64xf32, #tpu.memory_space<vmem>>, vector<1x64xf32>
    %c9_495 = arith.constant 9 : index
    %c0_496 = arith.constant 0 : index
    %1017 = vector.load %arg16[%c9_495, %c0_496] : memref<64x64xf32, #tpu.memory_space<vmem>>, vector<1x64xf32>
    %1018 = tpu.concatenate %1016, %1017 in 1 : vector<1x64xf32>, vector<1x64xf32> -> vector<1x128xf32>
    %c0_497 = arith.constant 0 : index
    %c512 = arith.constant 512 : index
    %1019 = vector.load %arg17[%c0_497, %c512] : memref<1x4096xf32, #tpu.memory_space<vmem>>, vector<1x128xf32>
    tpu.vector_store %arg17[%c0_497, %c512], %1018 {strides = array<i32>} : memref<1x4096xf32, #tpu.memory_space<vmem>>, vector<1x128xf32>,
    %c10_498 = arith.constant 10 : index
    %c0_499 = arith.constant 0 : index
    %1020 = vector.load %arg16[%c10_498, %c0_499] : memref<64x64xf32, #tpu.memory_space<vmem>>, vector<1x64xf32>
    %c11_500 = arith.constant 11 : index
    %c0_501 = arith.constant 0 : index
    %1021 = vector.load %arg16[%c11_500, %c0_501] : memref<64x64xf32, #tpu.memory_space<vmem>>, vector<1x64xf32>
    %1022 = tpu.concatenate %1020, %1021 in 1 : vector<1x64xf32>, vector<1x64xf32> -> vector<1x128xf32>
    %c0_502 = arith.constant 0 : index
    %c640 = arith.constant 640 : index
    %1023 = vector.load %arg17[%c0_502, %c640] : memref<1x4096xf32, #tpu.memory_space<vmem>>, vector<1x128xf32>
    tpu.vector_store %arg17[%c0_502, %c640], %1022 {strides = array<i32>} : memref<1x4096xf32, #tpu.memory_space<vmem>>, vector<1x128xf32>,
    %c12_503 = arith.constant 12 : index
    %c0_504 = arith.constant 0 : index
    %1024 = vector.load %arg16[%c12_503, %c0_504] : memref<64x64xf32, #tpu.memory_space<vmem>>, vector<1x64xf32>
    %c13_505 = arith.constant 13 : index
    %c0_506 = arith.constant 0 : index
    %1025 = vector.load %arg16[%c13_505, %c0_506] : memref<64x64xf32, #tpu.memory_space<vmem>>, vector<1x64xf32>
    %1026 = tpu.concatenate %1024, %1025 in 1 : vector<1x64xf32>, vector<1x64xf32> -> vector<1x128xf32>
    %c0_507 = arith.constant 0 : index
    %c768 = arith.constant 768 : index
    %1027 = vector.load %arg17[%c0_507, %c768] : memref<1x4096xf32, #tpu.memory_space<vmem>>, vector<1x128xf32>
    tpu.vector_store %arg17[%c0_507, %c768], %1026 {strides = array<i32>} : memref<1x4096xf32, #tpu.memory_space<vmem>>, vector<1x128xf32>,
    %c14_508 = arith.constant 14 : index
    %c0_509 = arith.constant 0 : index
    %1028 = vector.load %arg16[%c14_508, %c0_509] : memref<64x64xf32, #tpu.memory_space<vmem>>, vector<1x64xf32>
    %c15_510 = arith.constant 15 : index
    %c0_511 = arith.constant 0 : index
    %1029 = vector.load %arg16[%c15_510, %c0_511] : memref<64x64xf32, #tpu.memory_space<vmem>>, vector<1x64xf32>
    %1030 = tpu.concatenate %1028, %1029 in 1 : vector<1x64xf32>, vector<1x64xf32> -> vector<1x128xf32>
    %c0_512 = arith.constant 0 : index
    %c896 = arith.constant 896 : index
    %1031 = vector.load %arg17[%c0_512, %c896] : memref<1x4096xf32, #tpu.memory_space<vmem>>, vector<1x128xf32>
    tpu.vector_store %arg17[%c0_512, %c896], %1030 {strides = array<i32>} : memref<1x4096xf32, #tpu.memory_space<vmem>>, vector<1x128xf32>,
    %c16_513 = arith.constant 16 : index
    %c0_514 = arith.constant 0 : index
    %1032 = vector.load %arg16[%c16_513, %c0_514] : memref<64x64xf32, #tpu.memory_space<vmem>>, vector<1x64xf32>
    %c17_515 = arith.constant 17 : index
    %c0_516 = arith.constant 0 : index
    %1033 = vector.load %arg16[%c17_515, %c0_516] : memref<64x64xf32, #tpu.memory_space<vmem>>, vector<1x64xf32>
    %1034 = tpu.concatenate %1032, %1033 in 1 : vector<1x64xf32>, vector<1x64xf32> -> vector<1x128xf32>
    %c0_517 = arith.constant 0 : index
    %c1024 = arith.constant 1024 : index
    %1035 = vector.load %arg17[%c0_517, %c1024] : memref<1x4096xf32, #tpu.memory_space<vmem>>, vector<1x128xf32>
    tpu.vector_store %arg17[%c0_517, %c1024], %1034 {strides = array<i32>} : memref<1x4096xf32, #tpu.memory_space<vmem>>, vector<1x128xf32>,
    %c18_518 = arith.constant 18 : index
    %c0_519 = arith.constant 0 : index
    %1036 = vector.load %arg16[%c18_518, %c0_519] : memref<64x64xf32, #tpu.memory_space<vmem>>, vector<1x64xf32>
    %c19_520 = arith.constant 19 : index
    %c0_521 = arith.constant 0 : index
    %1037 = vector.load %arg16[%c19_520, %c0_521] : memref<64x64xf32, #tpu.memory_space<vmem>>, vector<1x64xf32>
    %1038 = tpu.concatenate %1036, %1037 in 1 : vector<1x64xf32>, vector<1x64xf32> -> vector<1x128xf32>
    %c0_522 = arith.constant 0 : index
    %c1152 = arith.constant 1152 : index
    %1039 = vector.load %arg17[%c0_522, %c1152] : memref<1x4096xf32, #tpu.memory_space<vmem>>, vector<1x128xf32>
    tpu.vector_store %arg17[%c0_522, %c1152], %1038 {strides = array<i32>} : memref<1x4096xf32, #tpu.memory_space<vmem>>, vector<1x128xf32>,
    %c20_523 = arith.constant 20 : index
    %c0_524 = arith.constant 0 : index
    %1040 = vector.load %arg16[%c20_523, %c0_524] : memref<64x64xf32, #tpu.memory_space<vmem>>, vector<1x64xf32>
    %c21_525 = arith.constant 21 : index
    %c0_526 = arith.constant 0 : index
    %1041 = vector.load %arg16[%c21_525, %c0_526] : memref<64x64xf32, #tpu.memory_space<vmem>>, vector<1x64xf32>
    %1042 = tpu.concatenate %1040, %1041 in 1 : vector<1x64xf32>, vector<1x64xf32> -> vector<1x128xf32>
    %c0_527 = arith.constant 0 : index
    %c1280 = arith.constant 1280 : index
    %1043 = vector.load %arg17[%c0_527, %c1280] : memref<1x4096xf32, #tpu.memory_space<vmem>>, vector<1x128xf32>
    tpu.vector_store %arg17[%c0_527, %c1280], %1042 {strides = array<i32>} : memref<1x4096xf32, #tpu.memory_space<vmem>>, vector<1x128xf32>,
    %c22_528 = arith.constant 22 : index
    %c0_529 = arith.constant 0 : index
    %1044 = vector.load %arg16[%c22_528, %c0_529] : memref<64x64xf32, #tpu.memory_space<vmem>>, vector<1x64xf32>
    %c23_530 = arith.constant 23 : index
    %c0_531 = arith.constant 0 : index
    %1045 = vector.load %arg16[%c23_530, %c0_531] : memref<64x64xf32, #tpu.memory_space<vmem>>, vector<1x64xf32>
    %1046 = tpu.concatenate %1044, %1045 in 1 : vector<1x64xf32>, vector<1x64xf32> -> vector<1x128xf32>
    %c0_532 = arith.constant 0 : index
    %c1408 = arith.constant 1408 : index
    %1047 = vector.load %arg17[%c0_532, %c1408] : memref<1x4096xf32, #tpu.memory_space<vmem>>, vector<1x128xf32>
    tpu.vector_store %arg17[%c0_532, %c1408], %1046 {strides = array<i32>} : memref<1x4096xf32, #tpu.memory_space<vmem>>, vector<1x128xf32>,
    %c24_533 = arith.constant 24 : index
    %c0_534 = arith.constant 0 : index
    %1048 = vector.load %arg16[%c24_533, %c0_534] : memref<64x64xf32, #tpu.memory_space<vmem>>, vector<1x64xf32>
    %c25_535 = arith.constant 25 : index
    %c0_536 = arith.constant 0 : index
    %1049 = vector.load %arg16[%c25_535, %c0_536] : memref<64x64xf32, #tpu.memory_space<vmem>>, vector<1x64xf32>
    %1050 = tpu.concatenate %1048, %1049 in 1 : vector<1x64xf32>, vector<1x64xf32> -> vector<1x128xf32>
    %c0_537 = arith.constant 0 : index
    %c1536 = arith.constant 1536 : index
    %1051 = vector.load %arg17[%c0_537, %c1536] : memref<1x4096xf32, #tpu.memory_space<vmem>>, vector<1x128xf32>
    tpu.vector_store %arg17[%c0_537, %c1536], %1050 {strides = array<i32>} : memref<1x4096xf32, #tpu.memory_space<vmem>>, vector<1x128xf32>,
    %c26_538 = arith.constant 26 : index
    %c0_539 = arith.constant 0 : index
    %1052 = vector.load %arg16[%c26_538, %c0_539] : memref<64x64xf32, #tpu.memory_space<vmem>>, vector<1x64xf32>
    %c27_540 = arith.constant 27 : index
    %c0_541 = arith.constant 0 : index
    %1053 = vector.load %arg16[%c27_540, %c0_541] : memref<64x64xf32, #tpu.memory_space<vmem>>, vector<1x64xf32>
    %1054 = tpu.concatenate %1052, %1053 in 1 : vector<1x64xf32>, vector<1x64xf32> -> vector<1x128xf32>
    %c0_542 = arith.constant 0 : index
    %c1664 = arith.constant 1664 : index
    %1055 = vector.load %arg17[%c0_542, %c1664] : memref<1x4096xf32, #tpu.memory_space<vmem>>, vector<1x128xf32>
    tpu.vector_store %arg17[%c0_542, %c1664], %1054 {strides = array<i32>} : memref<1x4096xf32, #tpu.memory_space<vmem>>, vector<1x128xf32>,
    %c28_543 = arith.constant 28 : index
    %c0_544 = arith.constant 0 : index
    %1056 = vector.load %arg16[%c28_543, %c0_544] : memref<64x64xf32, #tpu.memory_space<vmem>>, vector<1x64xf32>
    %c29_545 = arith.constant 29 : index
    %c0_546 = arith.constant 0 : index
    %1057 = vector.load %arg16[%c29_545, %c0_546] : memref<64x64xf32, #tpu.memory_space<vmem>>, vector<1x64xf32>
    %1058 = tpu.concatenate %1056, %1057 in 1 : vector<1x64xf32>, vector<1x64xf32> -> vector<1x128xf32>
    %c0_547 = arith.constant 0 : index
    %c1792 = arith.constant 1792 : index
    %1059 = vector.load %arg17[%c0_547, %c1792] : memref<1x4096xf32, #tpu.memory_space<vmem>>, vector<1x128xf32>
    tpu.vector_store %arg17[%c0_547, %c1792], %1058 {strides = array<i32>} : memref<1x4096xf32, #tpu.memory_space<vmem>>, vector<1x128xf32>,
    %c30_548 = arith.constant 30 : index
    %c0_549 = arith.constant 0 : index
    %1060 = vector.load %arg16[%c30_548, %c0_549] : memref<64x64xf32, #tpu.memory_space<vmem>>, vector<1x64xf32>
    %c31_550 = arith.constant 31 : index
    %c0_551 = arith.constant 0 : index
    %1061 = vector.load %arg16[%c31_550, %c0_551] : memref<64x64xf32, #tpu.memory_space<vmem>>, vector<1x64xf32>
    %1062 = tpu.concatenate %1060, %1061 in 1 : vector<1x64xf32>, vector<1x64xf32> -> vector<1x128xf32>
    %c0_552 = arith.constant 0 : index
    %c1920 = arith.constant 1920 : index
    %1063 = vector.load %arg17[%c0_552, %c1920] : memref<1x4096xf32, #tpu.memory_space<vmem>>, vector<1x128xf32>
    tpu.vector_store %arg17[%c0_552, %c1920], %1062 {strides = array<i32>} : memref<1x4096xf32, #tpu.memory_space<vmem>>, vector<1x128xf32>,
    %c32_553 = arith.constant 32 : index
    %c0_554 = arith.constant 0 : index
    %1064 = vector.load %arg16[%c32_553, %c0_554] : memref<64x64xf32, #tpu.memory_space<vmem>>, vector<1x64xf32>
    %c33_555 = arith.constant 33 : index
    %c0_556 = arith.constant 0 : index
    %1065 = vector.load %arg16[%c33_555, %c0_556] : memref<64x64xf32, #tpu.memory_space<vmem>>, vector<1x64xf32>
    %1066 = tpu.concatenate %1064, %1065 in 1 : vector<1x64xf32>, vector<1x64xf32> -> vector<1x128xf32>
    %c0_557 = arith.constant 0 : index
    %c2048 = arith.constant 2048 : index
    %1067 = vector.load %arg17[%c0_557, %c2048] : memref<1x4096xf32, #tpu.memory_space<vmem>>, vector<1x128xf32>
    tpu.vector_store %arg17[%c0_557, %c2048], %1066 {strides = array<i32>} : memref<1x4096xf32, #tpu.memory_space<vmem>>, vector<1x128xf32>,
    %c34_558 = arith.constant 34 : index
    %c0_559 = arith.constant 0 : index
    %1068 = vector.load %arg16[%c34_558, %c0_559] : memref<64x64xf32, #tpu.memory_space<vmem>>, vector<1x64xf32>
    %c35_560 = arith.constant 35 : index
    %c0_561 = arith.constant 0 : index
    %1069 = vector.load %arg16[%c35_560, %c0_561] : memref<64x64xf32, #tpu.memory_space<vmem>>, vector<1x64xf32>
    %1070 = tpu.concatenate %1068, %1069 in 1 : vector<1x64xf32>, vector<1x64xf32> -> vector<1x128xf32>
    %c0_562 = arith.constant 0 : index
    %c2176 = arith.constant 2176 : index
    %1071 = vector.load %arg17[%c0_562, %c2176] : memref<1x4096xf32, #tpu.memory_space<vmem>>, vector<1x128xf32>
    tpu.vector_store %arg17[%c0_562, %c2176], %1070 {strides = array<i32>} : memref<1x4096xf32, #tpu.memory_space<vmem>>, vector<1x128xf32>,
    %c36_563 = arith.constant 36 : index
    %c0_564 = arith.constant 0 : index
    %1072 = vector.load %arg16[%c36_563, %c0_564] : memref<64x64xf32, #tpu.memory_space<vmem>>, vector<1x64xf32>
    %c37_565 = arith.constant 37 : index
    %c0_566 = arith.constant 0 : index
    %1073 = vector.load %arg16[%c37_565, %c0_566] : memref<64x64xf32, #tpu.memory_space<vmem>>, vector<1x64xf32>
    %1074 = tpu.concatenate %1072, %1073 in 1 : vector<1x64xf32>, vector<1x64xf32> -> vector<1x128xf32>
    %c0_567 = arith.constant 0 : index
    %c2304 = arith.constant 2304 : index
    %1075 = vector.load %arg17[%c0_567, %c2304] : memref<1x4096xf32, #tpu.memory_space<vmem>>, vector<1x128xf32>
    tpu.vector_store %arg17[%c0_567, %c2304], %1074 {strides = array<i32>} : memref<1x4096xf32, #tpu.memory_space<vmem>>, vector<1x128xf32>,
    %c38_568 = arith.constant 38 : index
    %c0_569 = arith.constant 0 : index
    %1076 = vector.load %arg16[%c38_568, %c0_569] : memref<64x64xf32, #tpu.memory_space<vmem>>, vector<1x64xf32>
    %c39_570 = arith.constant 39 : index
    %c0_571 = arith.constant 0 : index
    %1077 = vector.load %arg16[%c39_570, %c0_571] : memref<64x64xf32, #tpu.memory_space<vmem>>, vector<1x64xf32>
    %1078 = tpu.concatenate %1076, %1077 in 1 : vector<1x64xf32>, vector<1x64xf32> -> vector<1x128xf32>
    %c0_572 = arith.constant 0 : index
    %c2432 = arith.constant 2432 : index
    %1079 = vector.load %arg17[%c0_572, %c2432] : memref<1x4096xf32, #tpu.memory_space<vmem>>, vector<1x128xf32>
    tpu.vector_store %arg17[%c0_572, %c2432], %1078 {strides = array<i32>} : memref<1x4096xf32, #tpu.memory_space<vmem>>, vector<1x128xf32>,
    %c40_573 = arith.constant 40 : index
    %c0_574 = arith.constant 0 : index
    %1080 = vector.load %arg16[%c40_573, %c0_574] : memref<64x64xf32, #tpu.memory_space<vmem>>, vector<1x64xf32>
    %c41_575 = arith.constant 41 : index
    %c0_576 = arith.constant 0 : index
    %1081 = vector.load %arg16[%c41_575, %c0_576] : memref<64x64xf32, #tpu.memory_space<vmem>>, vector<1x64xf32>
    %1082 = tpu.concatenate %1080, %1081 in 1 : vector<1x64xf32>, vector<1x64xf32> -> vector<1x128xf32>
    %c0_577 = arith.constant 0 : index
    %c2560 = arith.constant 2560 : index
    %1083 = vector.load %arg17[%c0_577, %c2560] : memref<1x4096xf32, #tpu.memory_space<vmem>>, vector<1x128xf32>
    tpu.vector_store %arg17[%c0_577, %c2560], %1082 {strides = array<i32>} : memref<1x4096xf32, #tpu.memory_space<vmem>>, vector<1x128xf32>,
    %c42_578 = arith.constant 42 : index
    %c0_579 = arith.constant 0 : index
    %1084 = vector.load %arg16[%c42_578, %c0_579] : memref<64x64xf32, #tpu.memory_space<vmem>>, vector<1x64xf32>
    %c43_580 = arith.constant 43 : index
    %c0_581 = arith.constant 0 : index
    %1085 = vector.load %arg16[%c43_580, %c0_581] : memref<64x64xf32, #tpu.memory_space<vmem>>, vector<1x64xf32>
    %1086 = tpu.concatenate %1084, %1085 in 1 : vector<1x64xf32>, vector<1x64xf32> -> vector<1x128xf32>
    %c0_582 = arith.constant 0 : index
    %c2688 = arith.constant 2688 : index
    %1087 = vector.load %arg17[%c0_582, %c2688] : memref<1x4096xf32, #tpu.memory_space<vmem>>, vector<1x128xf32>
    tpu.vector_store %arg17[%c0_582, %c2688], %1086 {strides = array<i32>} : memref<1x4096xf32, #tpu.memory_space<vmem>>, vector<1x128xf32>,
    %c44_583 = arith.constant 44 : index
    %c0_584 = arith.constant 0 : index
    %1088 = vector.load %arg16[%c44_583, %c0_584] : memref<64x64xf32, #tpu.memory_space<vmem>>, vector<1x64xf32>
    %c45_585 = arith.constant 45 : index
    %c0_586 = arith.constant 0 : index
    %1089 = vector.load %arg16[%c45_585, %c0_586] : memref<64x64xf32, #tpu.memory_space<vmem>>, vector<1x64xf32>
    %1090 = tpu.concatenate %1088, %1089 in 1 : vector<1x64xf32>, vector<1x64xf32> -> vector<1x128xf32>
    %c0_587 = arith.constant 0 : index
    %c2816 = arith.constant 2816 : index
    %1091 = vector.load %arg17[%c0_587, %c2816] : memref<1x4096xf32, #tpu.memory_space<vmem>>, vector<1x128xf32>
    tpu.vector_store %arg17[%c0_587, %c2816], %1090 {strides = array<i32>} : memref<1x4096xf32, #tpu.memory_space<vmem>>, vector<1x128xf32>,
    %c46_588 = arith.constant 46 : index
    %c0_589 = arith.constant 0 : index
    %1092 = vector.load %arg16[%c46_588, %c0_589] : memref<64x64xf32, #tpu.memory_space<vmem>>, vector<1x64xf32>
    %c47_590 = arith.constant 47 : index
    %c0_591 = arith.constant 0 : index
    %1093 = vector.load %arg16[%c47_590, %c0_591] : memref<64x64xf32, #tpu.memory_space<vmem>>, vector<1x64xf32>
    %1094 = tpu.concatenate %1092, %1093 in 1 : vector<1x64xf32>, vector<1x64xf32> -> vector<1x128xf32>
    %c0_592 = arith.constant 0 : index
    %c2944 = arith.constant 2944 : index
    %1095 = vector.load %arg17[%c0_592, %c2944] : memref<1x4096xf32, #tpu.memory_space<vmem>>, vector<1x128xf32>
    tpu.vector_store %arg17[%c0_592, %c2944], %1094 {strides = array<i32>} : memref<1x4096xf32, #tpu.memory_space<vmem>>, vector<1x128xf32>,
    %c48_593 = arith.constant 48 : index
    %c0_594 = arith.constant 0 : index
    %1096 = vector.load %arg16[%c48_593, %c0_594] : memref<64x64xf32, #tpu.memory_space<vmem>>, vector<1x64xf32>
    %c49_595 = arith.constant 49 : index
    %c0_596 = arith.constant 0 : index
    %1097 = vector.load %arg16[%c49_595, %c0_596] : memref<64x64xf32, #tpu.memory_space<vmem>>, vector<1x64xf32>
    %1098 = tpu.concatenate %1096, %1097 in 1 : vector<1x64xf32>, vector<1x64xf32> -> vector<1x128xf32>
    %c0_597 = arith.constant 0 : index
    %c3072 = arith.constant 3072 : index
    %1099 = vector.load %arg17[%c0_597, %c3072] : memref<1x4096xf32, #tpu.memory_space<vmem>>, vector<1x128xf32>
    tpu.vector_store %arg17[%c0_597, %c3072], %1098 {strides = array<i32>} : memref<1x4096xf32, #tpu.memory_space<vmem>>, vector<1x128xf32>,
    %c50_598 = arith.constant 50 : index
    %c0_599 = arith.constant 0 : index
    %1100 = vector.load %arg16[%c50_598, %c0_599] : memref<64x64xf32, #tpu.memory_space<vmem>>, vector<1x64xf32>
    %c51_600 = arith.constant 51 : index
    %c0_601 = arith.constant 0 : index
    %1101 = vector.load %arg16[%c51_600, %c0_601] : memref<64x64xf32, #tpu.memory_space<vmem>>, vector<1x64xf32>
    %1102 = tpu.concatenate %1100, %1101 in 1 : vector<1x64xf32>, vector<1x64xf32> -> vector<1x128xf32>
    %c0_602 = arith.constant 0 : index
    %c3200 = arith.constant 3200 : index
    %1103 = vector.load %arg17[%c0_602, %c3200] : memref<1x4096xf32, #tpu.memory_space<vmem>>, vector<1x128xf32>
    tpu.vector_store %arg17[%c0_602, %c3200], %1102 {strides = array<i32>} : memref<1x4096xf32, #tpu.memory_space<vmem>>, vector<1x128xf32>,
    %c52_603 = arith.constant 52 : index
    %c0_604 = arith.constant 0 : index
    %1104 = vector.load %arg16[%c52_603, %c0_604] : memref<64x64xf32, #tpu.memory_space<vmem>>, vector<1x64xf32>
    %c53_605 = arith.constant 53 : index
    %c0_606 = arith.constant 0 : index
    %1105 = vector.load %arg16[%c53_605, %c0_606] : memref<64x64xf32, #tpu.memory_space<vmem>>, vector<1x64xf32>
    %1106 = tpu.concatenate %1104, %1105 in 1 : vector<1x64xf32>, vector<1x64xf32> -> vector<1x128xf32>
    %c0_607 = arith.constant 0 : index
    %c3328 = arith.constant 3328 : index
    %1107 = vector.load %arg17[%c0_607, %c3328] : memref<1x4096xf32, #tpu.memory_space<vmem>>, vector<1x128xf32>
    tpu.vector_store %arg17[%c0_607, %c3328], %1106 {strides = array<i32>} : memref<1x4096xf32, #tpu.memory_space<vmem>>, vector<1x128xf32>,
    %c54_608 = arith.constant 54 : index
    %c0_609 = arith.constant 0 : index
    %1108 = vector.load %arg16[%c54_608, %c0_609] : memref<64x64xf32, #tpu.memory_space<vmem>>, vector<1x64xf32>
    %c55_610 = arith.constant 55 : index
    %c0_611 = arith.constant 0 : index
    %1109 = vector.load %arg16[%c55_610, %c0_611] : memref<64x64xf32, #tpu.memory_space<vmem>>, vector<1x64xf32>
    %1110 = tpu.concatenate %1108, %1109 in 1 : vector<1x64xf32>, vector<1x64xf32> -> vector<1x128xf32>
    %c0_612 = arith.constant 0 : index
    %c3456 = arith.constant 3456 : index
    %1111 = vector.load %arg17[%c0_612, %c3456] : memref<1x4096xf32, #tpu.memory_space<vmem>>, vector<1x128xf32>
    tpu.vector_store %arg17[%c0_612, %c3456], %1110 {strides = array<i32>} : memref<1x4096xf32, #tpu.memory_space<vmem>>, vector<1x128xf32>,
    %c56_613 = arith.constant 56 : index
    %c0_614 = arith.constant 0 : index
    %1112 = vector.load %arg16[%c56_613, %c0_614] : memref<64x64xf32, #tpu.memory_space<vmem>>, vector<1x64xf32>
    %c57_615 = arith.constant 57 : index
    %c0_616 = arith.constant 0 : index
    %1113 = vector.load %arg16[%c57_615, %c0_616] : memref<64x64xf32, #tpu.memory_space<vmem>>, vector<1x64xf32>
    %1114 = tpu.concatenate %1112, %1113 in 1 : vector<1x64xf32>, vector<1x64xf32> -> vector<1x128xf32>
    %c0_617 = arith.constant 0 : index
    %c3584 = arith.constant 3584 : index
    %1115 = vector.load %arg17[%c0_617, %c3584] : memref<1x4096xf32, #tpu.memory_space<vmem>>, vector<1x128xf32>
    tpu.vector_store %arg17[%c0_617, %c3584], %1114 {strides = array<i32>} : memref<1x4096xf32, #tpu.memory_space<vmem>>, vector<1x128xf32>,
    %c58_618 = arith.constant 58 : index
    %c0_619 = arith.constant 0 : index
    %1116 = vector.load %arg16[%c58_618, %c0_619] : memref<64x64xf32, #tpu.memory_space<vmem>>, vector<1x64xf32>
    %c59_620 = arith.constant 59 : index
    %c0_621 = arith.constant 0 : index
    %1117 = vector.load %arg16[%c59_620, %c0_621] : memref<64x64xf32, #tpu.memory_space<vmem>>, vector<1x64xf32>
    %1118 = tpu.concatenate %1116, %1117 in 1 : vector<1x64xf32>, vector<1x64xf32> -> vector<1x128xf32>
    %c0_622 = arith.constant 0 : index
    %c3712 = arith.constant 3712 : index
    %1119 = vector.load %arg17[%c0_622, %c3712] : memref<1x4096xf32, #tpu.memory_space<vmem>>, vector<1x128xf32>
    tpu.vector_store %arg17[%c0_622, %c3712], %1118 {strides = array<i32>} : memref<1x4096xf32, #tpu.memory_space<vmem>>, vector<1x128xf32>,
    %c60_623 = arith.constant 60 : index
    %c0_624 = arith.constant 0 : index
    %1120 = vector.load %arg16[%c60_623, %c0_624] : memref<64x64xf32, #tpu.memory_space<vmem>>, vector<1x64xf32>
    %c61_625 = arith.constant 61 : index
    %c0_626 = arith.constant 0 : index
    %1121 = vector.load %arg16[%c61_625, %c0_626] : memref<64x64xf32, #tpu.memory_space<vmem>>, vector<1x64xf32>
    %1122 = tpu.concatenate %1120, %1121 in 1 : vector<1x64xf32>, vector<1x64xf32> -> vector<1x128xf32>
    %c0_627 = arith.constant 0 : index
    %c3840 = arith.constant 3840 : index
    %1123 = vector.load %arg17[%c0_627, %c3840] : memref<1x4096xf32, #tpu.memory_space<vmem>>, vector<1x128xf32>
    tpu.vector_store %arg17[%c0_627, %c3840], %1122 {strides = array<i32>} : memref<1x4096xf32, #tpu.memory_space<vmem>>, vector<1x128xf32>,
    %c62_628 = arith.constant 62 : index
    %c0_629 = arith.constant 0 : index
    %1124 = vector.load %arg16[%c62_628, %c0_629] : memref<64x64xf32, #tpu.memory_space<vmem>>, vector<1x64xf32>
    %c63_630 = arith.constant 63 : index
    %c0_631 = arith.constant 0 : index
    %1125 = vector.load %arg16[%c63_630, %c0_631] : memref<64x64xf32, #tpu.memory_space<vmem>>, vector<1x64xf32>
    %1126 = tpu.concatenate %1124, %1125 in 1 : vector<1x64xf32>, vector<1x64xf32> -> vector<1x128xf32>
    %c0_632 = arith.constant 0 : index
    %c3968 = arith.constant 3968 : index
    %1127 = vector.load %arg17[%c0_632, %c3968] : memref<1x4096xf32, #tpu.memory_space<vmem>>, vector<1x128xf32>
    tpu.vector_store %arg17[%c0_632, %c3968], %1126 {strides = array<i32>} : memref<1x4096xf32, #tpu.memory_space<vmem>>, vector<1x128xf32>,
    tpu.wait_dma2 semaphore(%arg15 : memref<!tpu.dma_semaphore, #tpu.memory_space<semaphore_mem>>) src(%arg8 : memref<4096x128xbf16, #tpu.memory_space<any>>) dst(%arg14 : memref<4096x128xbf16, #tpu.memory_space<vmem>>)
    %c0_633 = arith.constant 0 : index
    %c0_634 = arith.constant 0 : index
    %1128 = vector.load %arg17[%c0_633, %c0_634] : memref<1x4096xf32, #tpu.memory_space<vmem>>, vector<1x4096xf32>
    %1129 = arith.truncf %1128 : vector<1x4096xf32> to vector<1x4096xbf16>
    %c0_635 = arith.constant 0 : index
    %c0_636 = arith.constant 0 : index
    %1130 = vector.load %arg14[%c0_635, %c0_636] : memref<4096x128xbf16, #tpu.memory_space<vmem>>, vector<4096x128xbf16>
    %cst_637 = arith.constant dense<0.000000e+00> : vector<1x128xf32>
    %1131 = tpu.matmul %1129, %1130, %cst_637 {dimension_numbers = #tpu.dot_dimension_numbers<[1], [0], [0], [1], [0, 0, 1, 1], [], []>} : vector<1x4096xbf16>, vector<4096x128xbf16>, vector<1x128xf32> -> vector<1x128xf32>
    %c0_638 = arith.constant 0 : index
    %c0_639 = arith.constant 0 : index
    %1132 = vector.load %arg9[%c0_638, %c0_639] : memref<1x128xf32, #tpu.memory_space<vmem>>, vector<1x128xf32>
    %1133 = arith.addf %1131, %1132 : vector<1x128xf32>
    %1134 = arith.truncf %1133 : vector<1x128xf32> to vector<1x128xbf16>
    %c0_640 = arith.constant 0 : index
    %c0_641 = arith.constant 0 : index
    %1135 = vector.load %arg11[%c0_640, %c0_641] : memref<128x128xbf16, #tpu.memory_space<vmem>>, vector<128x128xbf16>
    %cst_642 = arith.constant dense<0.000000e+00> : vector<1x128xf32>
    %1136 = tpu.matmul %1134, %1135, %cst_642 {dimension_numbers = #tpu.dot_dimension_numbers<[1], [0], [0], [1], [0, 0, 1, 1], [], []>} : vector<1x128xbf16>, vector<128x128xbf16>, vector<1x128xf32> -> vector<1x128xf32>
    %1137 = arith.addf %3, %1136 : vector<1x128xf32>
    %c0_643 = arith.constant 0 : index
    %c0_644 = arith.constant 0 : index
    %1138 = vector.load %arg12[%c0_643, %c0_644] : memref<1x128xf32, #tpu.memory_space<vmem>>, vector<1x128xf32>
    %1139 = arith.addf %1137, %1138 : vector<1x128xf32>
    %cst_645 = arith.constant 0.000000e+00 : f32
    %1140 = vector.broadcast %cst_645 : f32 to vector<1x128xf32>
    %1141 = arith.cmpf ogt, %1139, %1140 : vector<1x128xf32>
    %cst_646 = arith.constant 0.000000e+00 : f32
    %1142 = vector.broadcast %cst_646 : f32 to vector<1x128xf32>
    %1143 = arith.minimumf %1139, %1142 : vector<1x128xf32>
    %1144 = math.exp %1143 : vector<1x128xf32>
    %cst_647 = arith.constant 1.000000e+00 : f32
    %1145 = vector.broadcast %cst_647 : f32 to vector<1x128xf32>
    %1146 = arith.subf %1144, %1145 : vector<1x128xf32>
    %1147 = arith.select %1141, %1139, %1146 : vector<1x128xi1>, vector<1x128xf32>
    %c0_648 = arith.constant 0 : index
    %c0_649 = arith.constant 0 : index
    %1148 = vector.load %arg13[%c0_648, %c0_649] : memref<1x128xf32, #tpu.memory_space<vmem>>, vector<1x128xf32>
    tpu.vector_store %arg13[%c0_648, %c0_649], %1147 {strides = array<i32>} : memref<1x128xf32, #tpu.memory_space<vmem>>, vector<1x128xf32>,
    return
  }
}

</mosaic_0001>

<llo_original>
// kernel: fine_tuner_hyper_forward.1
$region0: #{fine_tuner_hyper_forward.1}
  #allocation0 [shape = 'u32[]', space=smem, size = 0x4, offset = 0x4, fixed_abs, tag = 'smem constant byte address 0x4 - core index']
  #allocation1 [shape = 'u32[144,128]{1,0:T(1,128)}', space=vmem, size = 0x12000, scoped, tag = 'internal scratch']
  #allocation2 [shape = 'bf16[4096,128]{1,0:T(16,128)(2,1)}', space=vmem, size = 0x100000, scoped, tag = 'scratch operand']
  #allocation3 [shape = 's32[1]{0}', space=sflag, size = 0x4, scoped, tag = 'scratch operand']
  #allocation4 [shape = 'f32[64,64]{1,0:T(8,128)}', space=vmem, size = 0x8000, scoped, tag = 'scratch operand']
  #allocation5 [shape = 'f32[1,4096]{1,0:T(1,128)}', space=vmem, size = 0x4000, scoped, tag = 'scratch operand']
  #allocation6 [shape = 'f32[1]{0:T(128)S(6)}', space=smem, size = 0x200, scoped, tag = 'scoped memory for fine_tuner_hyper_forward.1']
  #allocation7 [shape = 'f32[1]{0:T(128)S(6)}', space=smem, size = 0x200, scoped, tag = 'scoped memory for fine_tuner_hyper_forward.1']
  #allocation8 [shape = 'f32[1]{0:T(128)S(6)}', space=smem, size = 0x200, scoped, tag = 'scoped memory for fine_tuner_hyper_forward.1']
  #allocation21 [shape = 's32[]', space=sflag, size = 0x4, offset = 0, fixed_abs, tag = 'sflag constant byte address 0x0 - dummy sync flag']
  #allocation22 [shape = 's32[]', space=sflag, size = 0x4, offset = 0, fixed_abs, tag = 'sflag constant byte address 0x0 - dummy sync flag']
  #allocation23 [shape = 'u32[]', space=smem, size = 0x4, offset = 0x44, fixed_abs, tag = 'smem constant byte address 0x44 - assertion arg 0']
  #allocation24 [shape = 'u32[]', space=smem, size = 0x4, offset = 0x48, fixed_abs, tag = 'smem constant byte address 0x48 - assertion arg 1']
  %s0 = inlined_call_operand.vmem [shape: f32[1,128], index: 0, kind: input, shape index: {}]
  %s1 = inlined_call_operand.hbm [shape: f32[16,64,64], index: 1, kind: input, shape index: {}]
  %s2 = inlined_call_operand.vmem [shape: f32[144], index: 2, kind: input, shape index: {}]
  %s3 = inlined_call_operand.<no memory space> [shape: f32[1], index: 3, kind: input, shape index: {}]
  %s4 = inlined_call_operand.vmem [shape: f32[9], index: 4, kind: input, shape index: {}]
  %s5 = inlined_call_operand.<no memory space> [shape: f32[1], index: 5, kind: input, shape index: {}]
  %s6 = inlined_call_operand.vmem [shape: f32[9], index: 6, kind: input, shape index: {}]
  %s7 = inlined_call_operand.<no memory space> [shape: f32[1], index: 7, kind: input, shape index: {}]
  %s8 = inlined_call_operand.hbm [shape: bf16[4096,128], index: 8, kind: input, shape index: {}]
  %s9 = inlined_call_operand.vmem [shape: f32[1,128], index: 9, kind: input, shape index: {}]
  %s10 = inlined_call_operand.hbm [shape: bf16[128,128], index: 10, kind: input, shape index: {}]
  %s11 = inlined_call_operand.hbm [shape: bf16[128,128], index: 11, kind: input, shape index: {}]
  %s12 = inlined_call_operand.vmem [shape: f32[1,128], index: 12, kind: input, shape index: {}]
  %s13 = inlined_call_operand.hbm [shape: f32[1,128], index: 13, kind: output, shape index: {}]
  %s14 = sld [smem:[#allocation0]]
  $region86: #{fine_tuner_hyper_forward.1} parent=0
    _
  %s16 = ssub.s32 1, %s14
  %s17 = scalar_select 0, %s16, %s14
  %18 = sst [smem:[#allocation6]] %s3
  %19 = sst [smem:[#allocation7]] %s5
  %20 = sst [smem:[#allocation8]] %s7
  $region1: #{fine_tuner_hyper_forward.1} parent=0
    #allocation9 [shape = 'u8[524288]{0}', space=vmem, size = 0x80000, scoped, tag = 'input window, operand 1, single buffered']
    #allocation10 [shape = 's32[1]{0}', space=sflag, size = 0x4, scoped, tag = 'scoped memory for fine_tuner_hyper_forward.1']
    #allocation11 [shape = 's32[1]{0}', space=sflag, size = 0x4, scoped, tag = 'scoped memory for fine_tuner_hyper_forward.1']
    #allocation12 [shape = 's32[1]{0}', space=sflag, size = 0x4, scoped, tag = 'scoped memory for fine_tuner_hyper_forward.1']
    #allocation13 [shape = 'u8[1024]{0}', space=smem, size = 0x400, scoped, tag = 'input window, operand 2, single buffered']
    #allocation14 [shape = 'u8[512]{0}', space=smem, size = 0x200, scoped, tag = 'input window, operand 4, single buffered']
    #allocation15 [shape = 's32[1]{0}', space=sflag, size = 0x4, scoped, tag = 'scoped memory for fine_tuner_hyper_forward.1']
    #allocation16 [shape = 'u8[512]{0}', space=smem, size = 0x200, scoped, tag = 'input window, operand 6, single buffered']
    #allocation17 [shape = 'u8[32768]{0}', space=vmem, size = 0x8000, scoped, tag = 'input window, operand 10, single buffered']
    #allocation18 [shape = 's32[1]{0}', space=sflag, size = 0x4, scoped, tag = 'scoped memory for fine_tuner_hyper_forward.1']
    #allocation19 [shape = 'u8[32768]{0}', space=vmem, size = 0x8000, scoped, tag = 'input window, operand 11, single buffered']
    #allocation20 [shape = 'u8[512]{0}', space=vmem, size = 0x400, scoped, tag = 'output window, operand 0, single buffered']
    %21 = vsyncpa [#allocation10], 0
    %22 = vsyncpa [#allocation12], 0
    %23 = vsyncpa [#allocation15], 0
    %24 = vsyncpa [#allocation18], 0
    %25 = vsyncpa [#allocation11], 0
    // Predicated region
    $region2: #{fine_tuner_hyper_forward.1} parent=1 // pred_check
      _
    $region3: #{fine_tuner_hyper_forward.1} parent=1 // pred_check_branch
      %27 = sbr.rel (0) target = $region5
    $region4: #{fine_tuner_hyper_forward.1} parent=1 // pred_region
      _
    $region5: #{fine_tuner_hyper_forward.1} parent=1 // pred_fallthru
      _
    // Predicated region
    $region6: #{fine_tuner_hyper_forward.1} parent=1 // pred_check
      _
    $region7: #{fine_tuner_hyper_forward.1} parent=1 // pred_check_branch
      %29 = sbr.rel (0) target = $region9
    $region8: #{fine_tuner_hyper_forward.1} parent=1 // pred_region
      %s31 = ssub.s32 16384, 16384
      %32 = vsyncadd [#allocation10], %s31
      %s33 = sshll.u32 [#allocation9], 4
      %s34 = int_to_ptr.vmem [resolvable:$true] %s33
      %39 = dma.hbm_to_vmem [thread:$0]  %s1, 16384, %s34, [#allocation10], 128, 128, 8
    $region9: #{fine_tuner_hyper_forward.1} parent=1 // pred_fallthru
      _
    // Predicated region
    $region10: #{fine_tuner_hyper_forward.1} parent=1 // pred_check
      _
    $region11: #{fine_tuner_hyper_forward.1} parent=1 // pred_check_branch
      %41 = sbr.rel (0) target = $region13
    $region12: #{fine_tuner_hyper_forward.1} parent=1 // pred_region
      %s43 = ssub.s32 32, 32
      %44 = vsyncadd [#allocation12], %s43
      %s46 = sshll.u32 %s2, 4
      %s47 = int_to_ptr.vmem [resolvable:$true] %s46
      %49 = dma.vmem_to_smem %s47, 32, [#allocation13], [#allocation12]
    $region13: #{fine_tuner_hyper_forward.1} parent=1 // pred_fallthru
      _
    // Predicated region
    $region14: #{fine_tuner_hyper_forward.1} parent=1 // pred_check
      _
    $region15: #{fine_tuner_hyper_forward.1} parent=1 // pred_check_branch
      %51 = sbr.rel (0) target = $region17
    $region16: #{fine_tuner_hyper_forward.1} parent=1 // pred_region
      _
    $region17: #{fine_tuner_hyper_forward.1} parent=1 // pred_fallthru
      _
    // Predicated region
    $region18: #{fine_tuner_hyper_forward.1} parent=1 // pred_check
      _
    $region19: #{fine_tuner_hyper_forward.1} parent=1 // pred_check_branch
      %53 = sbr.rel (0) target = $region21
    $region20: #{fine_tuner_hyper_forward.1} parent=1 // pred_region
      %s55 = ssub.s32 16, 16
      %56 = vsyncadd [#allocation15], %s55
      %s58 = sshll.u32 %s4, 4
      %s59 = int_to_ptr.vmem [resolvable:$true] %s58
      %61 = dma.vmem_to_smem %s59, 16, [#allocation14], [#allocation15]
    $region21: #{fine_tuner_hyper_forward.1} parent=1 // pred_fallthru
      _
    // Predicated region
    $region22: #{fine_tuner_hyper_forward.1} parent=1 // pred_check
      _
    $region23: #{fine_tuner_hyper_forward.1} parent=1 // pred_check_branch
      %63 = sbr.rel (0) target = $region25
    $region24: #{fine_tuner_hyper_forward.1} parent=1 // pred_region
      _
    $region25: #{fine_tuner_hyper_forward.1} parent=1 // pred_fallthru
      _
    // Predicated region
    $region26: #{fine_tuner_hyper_forward.1} parent=1 // pred_check
      _
    $region27: #{fine_tuner_hyper_forward.1} parent=1 // pred_check_branch
      %65 = sbr.rel (0) target = $region29
    $region28: #{fine_tuner_hyper_forward.1} parent=1 // pred_region
      %s67 = ssub.s32 16, 16
      %68 = vsyncadd [#allocation15], %s67
      %s70 = sshll.u32 %s6, 4
      %s71 = int_to_ptr.vmem [resolvable:$true] %s70
      %73 = dma.vmem_to_smem %s71, 16, [#allocation16], [#allocation15]
    $region29: #{fine_tuner_hyper_forward.1} parent=1 // pred_fallthru
      _
    // Predicated region
    $region30: #{fine_tuner_hyper_forward.1} parent=1 // pred_check
      _
    $region31: #{fine_tuner_hyper_forward.1} parent=1 // pred_check_branch
      %75 = sbr.rel (0) target = $region33
    $region32: #{fine_tuner_hyper_forward.1} parent=1 // pred_region
      _
    $region33: #{fine_tuner_hyper_forward.1} parent=1 // pred_fallthru
      _
    // Predicated region
    $region34: #{fine_tuner_hyper_forward.1} parent=1 // pred_check
      _
    $region35: #{fine_tuner_hyper_forward.1} parent=1 // pred_check_branch
      %77 = sbr.rel (0) target = $region37
    $region36: #{fine_tuner_hyper_forward.1} parent=1 // pred_region
      _
    $region37: #{fine_tuner_hyper_forward.1} parent=1 // pred_fallthru
      _
    // Predicated region
    $region38: #{fine_tuner_hyper_forward.1} parent=1 // pred_check
      _
    $region39: #{fine_tuner_hyper_forward.1} parent=1 // pred_check_branch
      %79 = sbr.rel (0) target = $region41
    $region40: #{fine_tuner_hyper_forward.1} parent=1 // pred_region
      %s81 = ssub.s32 1024, 1024
      %82 = vsyncadd [#allocation18], %s81
      %s83 = sshll.u32 [#allocation17], 4
      %s84 = int_to_ptr.vmem [resolvable:$true] %s83
      %89 = dma.hbm_to_vmem [thread:$0]  %s10, 1024, %s84, [#allocation18], 64, 64, 4
    $region41: #{fine_tuner_hyper_forward.1} parent=1 // pred_fallthru
      _
    // Predicated region
    $region42: #{fine_tuner_hyper_forward.1} parent=1 // pred_check
      _
    $region43: #{fine_tuner_hyper_forward.1} parent=1 // pred_check_branch
      %91 = sbr.rel (0) target = $region45
    $region44: #{fine_tuner_hyper_forward.1} parent=1 // pred_region
      %s93 = ssub.s32 1024, 1024
      %94 = vsyncadd [#allocation18], %s93
      %s95 = sshll.u32 [#allocation19], 4
      %s96 = int_to_ptr.vmem [resolvable:$true] %s95
      %101 = dma.hbm_to_vmem [thread:$0]  %s11, 1024, %s96, [#allocation18], 64, 64, 4
    $region45: #{fine_tuner_hyper_forward.1} parent=1 // pred_fallthru
      _
    // Predicated region
    $region46: #{fine_tuner_hyper_forward.1} parent=1 // pred_check
      _
    $region47: #{fine_tuner_hyper_forward.1} parent=1 // pred_check_branch
      %103 = sbr.rel (0) target = $region49
    $region48: #{fine_tuner_hyper_forward.1} parent=1 // pred_region
      _
    $region49: #{fine_tuner_hyper_forward.1} parent=1 // pred_fallthru
      _
    // Predicated region
    $region50: #{fine_tuner_hyper_forward.1} parent=1 // pred_check
      _
    $region51: #{fine_tuner_hyper_forward.1} parent=1 // pred_check_branch
      %105 = sbr.rel (0) target = $region53
    $region52: #{fine_tuner_hyper_forward.1} parent=1 // pred_region
      %106 = dma.done [#allocation10], 16384
    $region53: #{fine_tuner_hyper_forward.1} parent=1 // pred_fallthru
      _
    // Predicated region
    $region54: #{fine_tuner_hyper_forward.1} parent=1 // pred_check
      _
    $region55: #{fine_tuner_hyper_forward.1} parent=1 // pred_check_branch
      %108 = sbr.rel (0) target = $region57
    $region56: #{fine_tuner_hyper_forward.1} parent=1 // pred_region
      %109 = dma.done [#allocation12], 32
    $region57: #{fine_tuner_hyper_forward.1} parent=1 // pred_fallthru
      _
    // Predicated region
    $region58: #{fine_tuner_hyper_forward.1} parent=1 // pred_check
      _
    $region59: #{fine_tuner_hyper_forward.1} parent=1 // pred_check_branch
      %111 = sbr.rel (0) target = $region61
    $region60: #{fine_tuner_hyper_forward.1} parent=1 // pred_region
      %112 = dma.done [#allocation15], 16
    $region61: #{fine_tuner_hyper_forward.1} parent=1 // pred_fallthru
      _
    // Predicated region
    $region62: #{fine_tuner_hyper_forward.1} parent=1 // pred_check
      _
    $region63: #{fine_tuner_hyper_forward.1} parent=1 // pred_check_branch
      %114 = sbr.rel (0) target = $region65
    $region64: #{fine_tuner_hyper_forward.1} parent=1 // pred_region
      %115 = dma.done [#allocation15], 16
    $region65: #{fine_tuner_hyper_forward.1} parent=1 // pred_fallthru
      _
    // Predicated region
    $region66: #{fine_tuner_hyper_forward.1} parent=1 // pred_check
      _
    $region67: #{fine_tuner_hyper_forward.1} parent=1 // pred_check_branch
      %117 = sbr.rel (0) target = $region69
    $region68: #{fine_tuner_hyper_forward.1} parent=1 // pred_region
      %118 = dma.done [#allocation18], 1024
    $region69: #{fine_tuner_hyper_forward.1} parent=1 // pred_fallthru
      _
    // Predicated region
    $region70: #{fine_tuner_hyper_forward.1} parent=1 // pred_check
      _
    $region71: #{fine_tuner_hyper_forward.1} parent=1 // pred_check_branch
      %120 = sbr.rel (0) target = $region73
    $region72: #{fine_tuner_hyper_forward.1} parent=1 // pred_region
      %121 = dma.done [#allocation18], 1024
    $region73: #{fine_tuner_hyper_forward.1} parent=1 // pred_fallthru
      _
    %122 = sfence
    // Predicated region
    $region74: #{fine_tuner_hyper_forward.1} parent=1 // pred_check
      _
    $region75: #{fine_tuner_hyper_forward.1} parent=1 // pred_check_branch
      %125 = sbr.rel target = $region77
    $region76: #{fine_tuner_hyper_forward.1} parent=1 // pred_region
      %126 = sst [smem:[#allocation23]] [#allocation22]
      %127 = sst [smem:[#allocation24]] [#allocation21]
    $region77: #{fine_tuner_hyper_forward.1} parent=1 // pred_fallthru
      _
    %129 = shalt.err (0)
    %s131 = sshll.u32 [#allocation2], 4
    %s132 = int_to_ptr.vmem [resolvable:$true] %s131
    %134 = dma.hbm_to_vmem [thread:$0]  %s8, 32768, %s132, [#allocation3]
    %v135 = vld [vmem:[%s0] sm:$0x1]
    %v136 = vpack.c.bf16 %v135, %v135
    %v137 = vld [vmem:[#allocation17] sm:$0xf]
    %v138 = vld [vmem:[#allocation17 + $0x4] sm:$0xf]
    %v139 = vld [vmem:[#allocation17 + $0x8] sm:$0xf]
    %v140 = vld [vmem:[#allocation17 + $0xc] sm:$0xf]
    %v141 = vld [vmem:[#allocation17 + $0x10] sm:$0xf]
    %v142 = vld [vmem:[#allocation17 + $0x14] sm:$0xf]
    %v143 = vld [vmem:[#allocation17 + $0x18] sm:$0xf]
    %v144 = vld [vmem:[#allocation17 + $0x1c] sm:$0xf]
    %v145 = vld [vmem:[#allocation17 + $0x20] sm:$0xf]
    %v146 = vld [vmem:[#allocation17 + $0x24] sm:$0xf]
    %v147 = vld [vmem:[#allocation17 + $0x28] sm:$0xf]
    %v148 = vld [vmem:[#allocation17 + $0x2c] sm:$0xf]
    %v149 = vld [vmem:[#allocation17 + $0x30] sm:$0xf]
    %v150 = vld [vmem:[#allocation17 + $0x34] sm:$0xf]
    %v151 = vld [vmem:[#allocation17 + $0x38] sm:$0xf]
    %v152 = vld [vmem:[#allocation17 + $0x3c] sm:$0xf]
    %s153 = sld [smem:[#allocation6]]
    %v154 = vstv %s153
    %s155 = sld [smem:[#allocation13]]
    %v156 = vld [vmem:[#allocation9] sm:$0xff]
    %v157 = vld [vmem:[#allocation9 + $0x8] sm:$0xff]
    %v158 = vld [vmem:[#allocation9 + $0x10] sm:$0xff]
    %v159 = vld [vmem:[#allocation9 + $0x18] sm:$0xff]
    %v160 = vld [vmem:[#allocation9 + $0x20] sm:$0xff]
    %v161 = vld [vmem:[#allocation9 + $0x28] sm:$0xff]
    %v162 = vld [vmem:[#allocation9 + $0x30] sm:$0xff]
    %v163 = vld [vmem:[#allocation9 + $0x38] sm:$0xff]
    %v164 = vstv %s155
    %v165 = vmul.f32 %v164, %v156
    %v166 = vmul.f32 %v164, %v157
    %v167 = vmul.f32 %v164, %v158
    %v168 = vmul.f32 %v164, %v159
    %v169 = vmul.f32 %v164, %v160
    %v170 = vmul.f32 %v164, %v161
    %v171 = vmul.f32 %v164, %v162
    %v172 = vmul.f32 %v164, %v163
    %s173 = sld [smem:[#allocation13 + $0x9]]
    %s174 = scalar_lea.vmem [#allocation9], 64
    %v175 = vld [vmem:[%s174] sm:$0xff]
    %v176 = vld [vmem:[%s174 + $0x8] sm:$0xff]
    %v177 = vld [vmem:[%s174 + $0x10] sm:$0xff]
    %v178 = vld [vmem:[%s174 + $0x18] sm:$0xff]
    %v179 = vld [vmem:[%s174 + $0x20] sm:$0xff]
    %v180 = vld [vmem:[%s174 + $0x28] sm:$0xff]
    %v181 = vld [vmem:[%s174 + $0x30] sm:$0xff]
    %v182 = vld [vmem:[%s174 + $0x38] sm:$0xff]
    %v183 = vstv %s173
    %v184 = vmul.f32 %v183, %v175
    %v185 = vmul.f32 %v183, %v176
    %v186 = vmul.f32 %v183, %v177
    %v187 = vmul.f32 %v183, %v178
    %v188 = vmul.f32 %v183, %v179
    %v189 = vmul.f32 %v183, %v180
    %v190 = vmul.f32 %v183, %v181
    %v191 = vmul.f32 %v183, %v182
    %v192 = vadd.f32 %v165, %v184
    %v193 = vadd.f32 %v166, %v185
    %v194 = vadd.f32 %v167, %v186
    %v195 = vadd.f32 %v168, %v187
    %v196 = vadd.f32 %v169, %v188
    %v197 = vadd.f32 %v170, %v189
    %v198 = vadd.f32 %v171, %v190
    %v199 = vadd.f32 %v172, %v191
    %s200 = sld [smem:[#allocation13 + $0x12]]
    %s201 = scalar_lea.vmem [#allocation9], 128
    %v202 = vld [vmem:[%s201] sm:$0xff]
    %v203 = vld [vmem:[%s201 + $0x8] sm:$0xff]
    %v204 = vld [vmem:[%s201 + $0x10] sm:$0xff]
    %v205 = vld [vmem:[%s201 + $0x18] sm:$0xff]
    %v206 = vld [vmem:[%s201 + $0x20] sm:$0xff]
    %v207 = vld [vmem:[%s201 + $0x28] sm:$0xff]
    %v208 = vld [vmem:[%s201 + $0x30] sm:$0xff]
    %v209 = vld [vmem:[%s201 + $0x38] sm:$0xff]
    %v210 = vstv %s200
    %v211 = vmul.f32 %v210, %v202
    %v212 = vmul.f32 %v210, %v203
    %v213 = vmul.f32 %v210, %v204
    %v214 = vmul.f32 %v210, %v205
    %v215 = vmul.f32 %v210, %v206
    %v216 = vmul.f32 %v210, %v207
    %v217 = vmul.f32 %v210, %v208
    %v218 = vmul.f32 %v210, %v209
    %v219 = vadd.f32 %v192, %v211
    %v220 = vadd.f32 %v193, %v212
    %v221 = vadd.f32 %v194, %v213
    %v222 = vadd.f32 %v195, %v214
    %v223 = vadd.f32 %v196, %v215
    %v224 = vadd.f32 %v197, %v216
    %v225 = vadd.f32 %v198, %v217
    %v226 = vadd.f32 %v199, %v218
    %s227 = sld [smem:[#allocation13 + $0x1b]]
    %s228 = scalar_lea.vmem [#allocation9], 192
    %v229 = vld [vmem:[%s228] sm:$0xff]
    %v230 = vld [vmem:[%s228 + $0x8] sm:$0xff]
    %v231 = vld [vmem:[%s228 + $0x10] sm:$0xff]
    %v232 = vld [vmem:[%s228 + $0x18] sm:$0xff]
    %v233 = vld [vmem:[%s228 + $0x20] sm:$0xff]
    %v234 = vld [vmem:[%s228 + $0x28] sm:$0xff]
    %v235 = vld [vmem:[%s228 + $0x30] sm:$0xff]
    %v236 = vld [vmem:[%s228 + $0x38] sm:$0xff]
    %v237 = vstv %s227
    %v238 = vmul.f32 %v237, %v229
    %v239 = vmul.f32 %v237, %v230
    %v240 = vmul.f32 %v237, %v231
    %v241 = vmul.f32 %v237, %v232
    %v242 = vmul.f32 %v237, %v233
    %v243 = vmul.f32 %v237, %v234
    %v244 = vmul.f32 %v237, %v235
    %v245 = vmul.f32 %v237, %v236
    %v246 = vadd.f32 %v219, %v238
    %v247 = vadd.f32 %v220, %v239
    %v248 = vadd.f32 %v221, %v240
    %v249 = vadd.f32 %v222, %v241
    %v250 = vadd.f32 %v223, %v242
    %v251 = vadd.f32 %v224, %v243
    %v252 = vadd.f32 %v225, %v244
    %v253 = vadd.f32 %v226, %v245
    %s254 = sld [smem:[#allocation13 + $0x24]]
    %s255 = scalar_lea.vmem [#allocation9], 256
    %v256 = vld [vmem:[%s255] sm:$0xff]
    %v257 = vld [vmem:[%s255 + $0x8] sm:$0xff]
    %v258 = vld [vmem:[%s255 + $0x10] sm:$0xff]
    %v259 = vld [vmem:[%s255 + $0x18] sm:$0xff]
    %v260 = vld [vmem:[%s255 + $0x20] sm:$0xff]
    %v261 = vld [vmem:[%s255 + $0x28] sm:$0xff]
    %v262 = vld [vmem:[%s255 + $0x30] sm:$0xff]
    %v263 = vld [vmem:[%s255 + $0x38] sm:$0xff]
    %v264 = vstv %s254
    %v265 = vmul.f32 %v264, %v256
    %v266 = vmul.f32 %v264, %v257
    %v267 = vmul.f32 %v264, %v258
    %v268 = vmul.f32 %v264, %v259
    %v269 = vmul.f32 %v264, %v260
    %v270 = vmul.f32 %v264, %v261
    %v271 = vmul.f32 %v264, %v262
    %v272 = vmul.f32 %v264, %v263
    %v273 = vadd.f32 %v246, %v265
    %v274 = vadd.f32 %v247, %v266
    %v275 = vadd.f32 %v248, %v267
    %v276 = vadd.f32 %v249, %v268
    %v277 = vadd.f32 %v250, %v269
    %v278 = vadd.f32 %v251, %v270
    %v279 = vadd.f32 %v252, %v271
    %v280 = vadd.f32 %v253, %v272
    %s281 = sld [smem:[#allocation13 + $0x2d]]
    %s282 = scalar_lea.vmem [#allocation9], 320
    %v283 = vld [vmem:[%s282] sm:$0xff]
    %v284 = vld [vmem:[%s282 + $0x8] sm:$0xff]
    %v285 = vld [vmem:[%s282 + $0x10] sm:$0xff]
    %v286 = vld [vmem:[%s282 + $0x18] sm:$0xff]
    %v287 = vld [vmem:[%s282 + $0x20] sm:$0xff]
    %v288 = vld [vmem:[%s282 + $0x28] sm:$0xff]
    %v289 = vld [vmem:[%s282 + $0x30] sm:$0xff]
    %v290 = vld [vmem:[%s282 + $0x38] sm:$0xff]
    %v291 = vstv %s281
    %v292 = vmul.f32 %v291, %v283
    %v293 = vmul.f32 %v291, %v284
    %v294 = vmul.f32 %v291, %v285
    %v295 = vmul.f32 %v291, %v286
    %v296 = vmul.f32 %v291, %v287
    %v297 = vmul.f32 %v291, %v288
    %v298 = vmul.f32 %v291, %v289
    %v299 = vmul.f32 %v291, %v290
    %v300 = vadd.f32 %v273, %v292
    %v301 = vadd.f32 %v274, %v293
    %v302 = vadd.f32 %v275, %v294
    %v303 = vadd.f32 %v276, %v295
    %v304 = vadd.f32 %v277, %v296
    %v305 = vadd.f32 %v278, %v297
    %v306 = vadd.f32 %v279, %v298
    %v307 = vadd.f32 %v280, %v299
    %s308 = sld [smem:[#allocation13 + $0x36]]
    %s309 = scalar_lea.vmem [#allocation9], 384
    %v310 = vld [vmem:[%s309] sm:$0xff]
    %v311 = vld [vmem:[%s309 + $0x8] sm:$0xff]
    %v312 = vld [vmem:[%s309 + $0x10] sm:$0xff]
    %v313 = vld [vmem:[%s309 + $0x18] sm:$0xff]
    %v314 = vld [vmem:[%s309 + $0x20] sm:$0xff]
    %v315 = vld [vmem:[%s309 + $0x28] sm:$0xff]
    %v316 = vld [vmem:[%s309 + $0x30] sm:$0xff]
    %v317 = vld [vmem:[%s309 + $0x38] sm:$0xff]
    %v318 = vstv %s308
    %v319 = vmul.f32 %v318, %v310
    %v320 = vmul.f32 %v318, %v311
    %v321 = vmul.f32 %v318, %v312
    %v322 = vmul.f32 %v318, %v313
    %v323 = vmul.f32 %v318, %v314
    %v324 = vmul.f32 %v318, %v315
    %v325 = vmul.f32 %v318, %v316
    %v326 = vmul.f32 %v318, %v317
    %v327 = vadd.f32 %v300, %v319
    %v328 = vadd.f32 %v301, %v320
    %v329 = vadd.f32 %v302, %v321
    %v330 = vadd.f32 %v303, %v322
    %v331 = vadd.f32 %v304, %v323
    %v332 = vadd.f32 %v305, %v324
    %v333 = vadd.f32 %v306, %v325
    %v334 = vadd.f32 %v307, %v326
    %s335 = sld [smem:[#allocation13 + $0x3f]]
    %s336 = scalar_lea.vmem [#allocation9], 448
    %v337 = vld [vmem:[%s336] sm:$0xff]
    %v338 = vld [vmem:[%s336 + $0x8] sm:$0xff]
    %v339 = vld [vmem:[%s336 + $0x10] sm:$0xff]
    %v340 = vld [vmem:[%s336 + $0x18] sm:$0xff]
    %v341 = vld [vmem:[%s336 + $0x20] sm:$0xff]
    %v342 = vld [vmem:[%s336 + $0x28] sm:$0xff]
    %v343 = vld [vmem:[%s336 + $0x30] sm:$0xff]
    %v344 = vld [vmem:[%s336 + $0x38] sm:$0xff]
    %v345 = vstv %s335
    %v346 = vmul.f32 %v345, %v337
    %v347 = vmul.f32 %v345, %v338
    %v348 = vmul.f32 %v345, %v339
    %v349 = vmul.f32 %v345, %v340
    %v350 = vmul.f32 %v345, %v341
    %v351 = vmul.f32 %v345, %v342
    %v352 = vmul.f32 %v345, %v343
    %v353 = vmul.f32 %v345, %v344
    %v354 = vadd.f32 %v327, %v346
    %v355 = vadd.f32 %v328, %v347
    %v356 = vadd.f32 %v329, %v348
    %v357 = vadd.f32 %v330, %v349
    %v358 = vadd.f32 %v331, %v350
    %v359 = vadd.f32 %v332, %v351
    %v360 = vadd.f32 %v333, %v352
    %v361 = vadd.f32 %v334, %v353
    %s362 = sld [smem:[#allocation13 + $0x48]]
    %s363 = scalar_lea.vmem [#allocation9], 512
    %v364 = vld [vmem:[%s363] sm:$0xff]
    %v365 = vld [vmem:[%s363 + $0x8] sm:$0xff]
    %v366 = vld [vmem:[%s363 + $0x10] sm:$0xff]
    %v367 = vld [vmem:[%s363 + $0x18] sm:$0xff]
    %v368 = vld [vmem:[%s363 + $0x20] sm:$0xff]
    %v369 = vld [vmem:[%s363 + $0x28] sm:$0xff]
    %v370 = vld [vmem:[%s363 + $0x30] sm:$0xff]
    %v371 = vld [vmem:[%s363 + $0x38] sm:$0xff]
    %v372 = vstv %s362
    %v373 = vmul.f32 %v372, %v364
    %v374 = vmul.f32 %v372, %v365
    %v375 = vmul.f32 %v372, %v366
    %v376 = vmul.f32 %v372, %v367
    %v377 = vmul.f32 %v372, %v368
    %v378 = vmul.f32 %v372, %v369
    %v379 = vmul.f32 %v372, %v370
    %v380 = vmul.f32 %v372, %v371
    %v381 = vadd.f32 %v354, %v373
    %v382 = vadd.f32 %v355, %v374
    %v383 = vadd.f32 %v356, %v375
    %v384 = vadd.f32 %v357, %v376
    %v385 = vadd.f32 %v358, %v377
    %v386 = vadd.f32 %v359, %v378
    %v387 = vadd.f32 %v360, %v379
    %v388 = vadd.f32 %v361, %v380
    %s389 = sld [smem:[#allocation13 + $0x51]]
    %s390 = scalar_lea.vmem [#allocation9], 576
    %v391 = vld [vmem:[%s390] sm:$0xff]
    %v392 = vld [vmem:[%s390 + $0x8] sm:$0xff]
    %v393 = vld [vmem:[%s390 + $0x10] sm:$0xff]
    %v394 = vld [vmem:[%s390 + $0x18] sm:$0xff]
    %v395 = vld [vmem:[%s390 + $0x20] sm:$0xff]
    %v396 = vld [vmem:[%s390 + $0x28] sm:$0xff]
    %v397 = vld [vmem:[%s390 + $0x30] sm:$0xff]
    %v398 = vld [vmem:[%s390 + $0x38] sm:$0xff]
    %v399 = vstv %s389
    %v400 = vmul.f32 %v399, %v391
    %v401 = vmul.f32 %v399, %v392
    %v402 = vmul.f32 %v399, %v393
    %v403 = vmul.f32 %v399, %v394
    %v404 = vmul.f32 %v399, %v395
    %v405 = vmul.f32 %v399, %v396
    %v406 = vmul.f32 %v399, %v397
    %v407 = vmul.f32 %v399, %v398
    %v408 = vadd.f32 %v381, %v400
    %v409 = vadd.f32 %v382, %v401
    %v410 = vadd.f32 %v383, %v402
    %v411 = vadd.f32 %v384, %v403
    %v412 = vadd.f32 %v385, %v404
    %v413 = vadd.f32 %v386, %v405
    %v414 = vadd.f32 %v387, %v406
    %v415 = vadd.f32 %v388, %v407
    %s416 = sld [smem:[#allocation13 + $0x5a]]
    %s417 = scalar_lea.vmem [#allocation9], 640
    %v418 = vld [vmem:[%s417] sm:$0xff]
    %v419 = vld [vmem:[%s417 + $0x8] sm:$0xff]
    %v420 = vld [vmem:[%s417 + $0x10] sm:$0xff]
    %v421 = vld [vmem:[%s417 + $0x18] sm:$0xff]
    %v422 = vld [vmem:[%s417 + $0x20] sm:$0xff]
    %v423 = vld [vmem:[%s417 + $0x28] sm:$0xff]
    %v424 = vld [vmem:[%s417 + $0x30] sm:$0xff]
    %v425 = vld [vmem:[%s417 + $0x38] sm:$0xff]
    %v426 = vstv %s416
    %v427 = vmul.f32 %v426, %v418
    %v428 = vmul.f32 %v426, %v419
    %v429 = vmul.f32 %v426, %v420
    %v430 = vmul.f32 %v426, %v421
    %v431 = vmul.f32 %v426, %v422
    %v432 = vmul.f32 %v426, %v423
    %v433 = vmul.f32 %v426, %v424
    %v434 = vmul.f32 %v426, %v425
    %v435 = vadd.f32 %v408, %v427
    %v436 = vadd.f32 %v409, %v428
    %v437 = vadd.f32 %v410, %v429
    %v438 = vadd.f32 %v411, %v430
    %v439 = vadd.f32 %v412, %v431
    %v440 = vadd.f32 %v413, %v432
    %v441 = vadd.f32 %v414, %v433
    %v442 = vadd.f32 %v415, %v434
    %s443 = sld [smem:[#allocation13 + $0x63]]
    %s444 = scalar_lea.vmem [#allocation9], 704
    %v445 = vld [vmem:[%s444] sm:$0xff]
    %v446 = vld [vmem:[%s444 + $0x8] sm:$0xff]
    %v447 = vld [vmem:[%s444 + $0x10] sm:$0xff]
    %v448 = vld [vmem:[%s444 + $0x18] sm:$0xff]
    %v449 = vld [vmem:[%s444 + $0x20] sm:$0xff]
    %v450 = vld [vmem:[%s444 + $0x28] sm:$0xff]
    %v451 = vld [vmem:[%s444 + $0x30] sm:$0xff]
    %v452 = vld [vmem:[%s444 + $0x38] sm:$0xff]
    %v453 = vstv %s443
    %v454 = vmul.f32 %v453, %v445
    %v455 = vmul.f32 %v453, %v446
    %v456 = vmul.f32 %v453, %v447
    %v457 = vmul.f32 %v453, %v448
    %v458 = vmul.f32 %v453, %v449
    %v459 = vmul.f32 %v453, %v450
    %v460 = vmul.f32 %v453, %v451
    %v461 = vmul.f32 %v453, %v452
    %v462 = vadd.f32 %v435, %v454
    %v463 = vadd.f32 %v436, %v455
    %v464 = vadd.f32 %v437, %v456
    %v465 = vadd.f32 %v438, %v457
    %v466 = vadd.f32 %v439, %v458
    %v467 = vadd.f32 %v440, %v459
    %v468 = vadd.f32 %v441, %v460
    %v469 = vadd.f32 %v442, %v461
    %s470 = sld [smem:[#allocation13 + $0x6c]]
    %s471 = scalar_lea.vmem [#allocation9], 768
    %v472 = vld [vmem:[%s471] sm:$0xff]
    %v473 = vld [vmem:[%s471 + $0x8] sm:$0xff]
    %v474 = vld [vmem:[%s471 + $0x10] sm:$0xff]
    %v475 = vld [vmem:[%s471 + $0x18] sm:$0xff]
    %v476 = vld [vmem:[%s471 + $0x20] sm:$0xff]
    %v477 = vld [vmem:[%s471 + $0x28] sm:$0xff]
    %v478 = vld [vmem:[%s471 + $0x30] sm:$0xff]
    %v479 = vld [vmem:[%s471 + $0x38] sm:$0xff]
    %v480 = vstv %s470
    %v481 = vmul.f32 %v480, %v472
    %v482 = vmul.f32 %v480, %v473
    %v483 = vmul.f32 %v480, %v474
    %v484 = vmul.f32 %v480, %v475
    %v485 = vmul.f32 %v480, %v476
    %v486 = vmul.f32 %v480, %v477
    %v487 = vmul.f32 %v480, %v478
    %v488 = vmul.f32 %v480, %v479
    %v489 = vadd.f32 %v462, %v481
    %v490 = vadd.f32 %v463, %v482
    %v491 = vadd.f32 %v464, %v483
    %v492 = vadd.f32 %v465, %v484
    %v493 = vadd.f32 %v466, %v485
    %v494 = vadd.f32 %v467, %v486
    %v495 = vadd.f32 %v468, %v487
    %v496 = vadd.f32 %v469, %v488
    %s497 = sld [smem:[#allocation13 + $0x75]]
    %s498 = scalar_lea.vmem [#allocation9], 832
    %v499 = vld [vmem:[%s498] sm:$0xff]
    %v500 = vld [vmem:[%s498 + $0x8] sm:$0xff]
    %v501 = vld [vmem:[%s498 + $0x10] sm:$0xff]
    %v502 = vld [vmem:[%s498 + $0x18] sm:$0xff]
    %v503 = vld [vmem:[%s498 + $0x20] sm:$0xff]
    %v504 = vld [vmem:[%s498 + $0x28] sm:$0xff]
    %v505 = vld [vmem:[%s498 + $0x30] sm:$0xff]
    %v506 = vld [vmem:[%s498 + $0x38] sm:$0xff]
    %v507 = vstv %s497
    %v508 = vmul.f32 %v507, %v499
    %v509 = vmul.f32 %v507, %v500
    %v510 = vmul.f32 %v507, %v501
    %v511 = vmul.f32 %v507, %v502
    %v512 = vmul.f32 %v507, %v503
    %v513 = vmul.f32 %v507, %v504
    %v514 = vmul.f32 %v507, %v505
    %v515 = vmul.f32 %v507, %v506
    %v516 = vadd.f32 %v489, %v508
    %v517 = vadd.f32 %v490, %v509
    %v518 = vadd.f32 %v491, %v510
    %v519 = vadd.f32 %v492, %v511
    %v520 = vadd.f32 %v493, %v512
    %v521 = vadd.f32 %v494, %v513
    %v522 = vadd.f32 %v495, %v514
    %v523 = vadd.f32 %v496, %v515
    %s524 = sld [smem:[#allocation13 + $0x7e]]
    %s525 = scalar_lea.vmem [#allocation9], 896
    %v526 = vld [vmem:[%s525] sm:$0xff]
    %v527 = vld [vmem:[%s525 + $0x8] sm:$0xff]
    %v528 = vld [vmem:[%s525 + $0x10] sm:$0xff]
    %v529 = vld [vmem:[%s525 + $0x18] sm:$0xff]
    %v530 = vld [vmem:[%s525 + $0x20] sm:$0xff]
    %v531 = vld [vmem:[%s525 + $0x28] sm:$0xff]
    %v532 = vld [vmem:[%s525 + $0x30] sm:$0xff]
    %v533 = vld [vmem:[%s525 + $0x38] sm:$0xff]
    %v534 = vstv %s524
    %v535 = vmul.f32 %v534, %v526
    %v536 = vmul.f32 %v534, %v527
    %v537 = vmul.f32 %v534, %v528
    %v538 = vmul.f32 %v534, %v529
    %v539 = vmul.f32 %v534, %v530
    %v540 = vmul.f32 %v534, %v531
    %v541 = vmul.f32 %v534, %v532
    %v542 = vmul.f32 %v534, %v533
    %v543 = vadd.f32 %v516, %v535
    %v544 = vadd.f32 %v517, %v536
    %v545 = vadd.f32 %v518, %v537
    %v546 = vadd.f32 %v519, %v538
    %v547 = vadd.f32 %v520, %v539
    %v548 = vadd.f32 %v521, %v540
    %v549 = vadd.f32 %v522, %v541
    %v550 = vadd.f32 %v523, %v542
    %s551 = sld [smem:[#allocation13 + $0x87]]
    %s552 = scalar_lea.vmem [#allocation9], 960
    %v553 = vld [vmem:[%s552] sm:$0xff]
    %v554 = vld [vmem:[%s552 + $0x8] sm:$0xff]
    %v555 = vld [vmem:[%s552 + $0x10] sm:$0xff]
    %v556 = vld [vmem:[%s552 + $0x18] sm:$0xff]
    %v557 = vld [vmem:[%s552 + $0x20] sm:$0xff]
    %v558 = vld [vmem:[%s552 + $0x28] sm:$0xff]
    %v559 = vld [vmem:[%s552 + $0x30] sm:$0xff]
    %v560 = vld [vmem:[%s552 + $0x38] sm:$0xff]
    %v561 = vstv %s551
    %v562 = vmul.f32 %v561, %v553
    %v563 = vmul.f32 %v561, %v554
    %v564 = vmul.f32 %v561, %v555
    %v565 = vmul.f32 %v561, %v556
    %v566 = vmul.f32 %v561, %v557
    %v567 = vmul.f32 %v561, %v558
    %v568 = vmul.f32 %v561, %v559
    %v569 = vmul.f32 %v561, %v560
    %v570 = vadd.f32 %v543, %v562
    %v571 = vadd.f32 %v544, %v563
    %v572 = vadd.f32 %v545, %v564
    %v573 = vadd.f32 %v546, %v565
    %v574 = vadd.f32 %v547, %v566
    %v575 = vadd.f32 %v548, %v567
    %v576 = vadd.f32 %v549, %v568
    %v577 = vadd.f32 %v550, %v569
    %v578 = vadd.f32 %v154, %v570
    %v579 = vadd.f32 %v154, %v571
    %v580 = vadd.f32 %v154, %v572
    %v581 = vadd.f32 %v154, %v573
    %v582 = vadd.f32 %v154, %v574
    %v583 = vadd.f32 %v154, %v575
    %v584 = vadd.f32 %v154, %v576
    %v585 = vadd.f32 %v154, %v577
    %s586 = sld [smem:[#allocation13 + $0x1]]
    %v587 = vstv %s586
    %v588 = vmul.f32 %v587, %v156
    %v589 = vmul.f32 %v587, %v157
    %v590 = vmul.f32 %v587, %v158
    %v591 = vmul.f32 %v587, %v159
    %v592 = vmul.f32 %v587, %v160
    %v593 = vmul.f32 %v587, %v161
    %v594 = vmul.f32 %v587, %v162
    %v595 = vmul.f32 %v587, %v163
    %s596 = sld [smem:[#allocation13 + $0xa]]
    %v597 = vstv %s596
    %v598 = vmul.f32 %v597, %v175
    %v599 = vmul.f32 %v597, %v176
    %v600 = vmul.f32 %v597, %v177
    %v601 = vmul.f32 %v597, %v178
    %v602 = vmul.f32 %v597, %v179
    %v603 = vmul.f32 %v597, %v180
    %v604 = vmul.f32 %v597, %v181
    %v605 = vmul.f32 %v597, %v182
    %v606 = vadd.f32 %v588, %v598
    %v607 = vadd.f32 %v589, %v599
    %v608 = vadd.f32 %v590, %v600
    %v609 = vadd.f32 %v591, %v601
    %v610 = vadd.f32 %v592, %v602
    %v611 = vadd.f32 %v593, %v603
    %v612 = vadd.f32 %v594, %v604
    %v613 = vadd.f32 %v595, %v605
    %s614 = sld [smem:[#allocation13 + $0x13]]
    %v615 = vstv %s614
    %v616 = vmul.f32 %v615, %v202
    %v617 = vmul.f32 %v615, %v203
    %v618 = vmul.f32 %v615, %v204
    %v619 = vmul.f32 %v615, %v205
    %v620 = vmul.f32 %v615, %v206
    %v621 = vmul.f32 %v615, %v207
    %v622 = vmul.f32 %v615, %v208
    %v623 = vmul.f32 %v615, %v209
    %v624 = vadd.f32 %v606, %v616
    %v625 = vadd.f32 %v607, %v617
    %v626 = vadd.f32 %v608, %v618
    %v627 = vadd.f32 %v609, %v619
    %v628 = vadd.f32 %v610, %v620
    %v629 = vadd.f32 %v611, %v621
    %v630 = vadd.f32 %v612, %v622
    %v631 = vadd.f32 %v613, %v623
    %s632 = sld [smem:[#allocation13 + $0x1c]]
    %v633 = vstv %s632
    %v634 = vmul.f32 %v633, %v229
    %v635 = vmul.f32 %v633, %v230
    %v636 = vmul.f32 %v633, %v231
    %v637 = vmul.f32 %v633, %v232
    %v638 = vmul.f32 %v633, %v233
    %v639 = vmul.f32 %v633, %v234
    %v640 = vmul.f32 %v633, %v235
    %v641 = vmul.f32 %v633, %v236
    %v642 = vadd.f32 %v624, %v634
    %v643 = vadd.f32 %v625, %v635
    %v644 = vadd.f32 %v626, %v636
    %v645 = vadd.f32 %v627, %v637
    %v646 = vadd.f32 %v628, %v638
    %v647 = vadd.f32 %v629, %v639
    %v648 = vadd.f32 %v630, %v640
    %v649 = vadd.f32 %v631, %v641
    %s650 = sld [smem:[#allocation13 + $0x25]]
    %v651 = vstv %s650
    %v652 = vmul.f32 %v651, %v256
    %v653 = vmul.f32 %v651, %v257
    %v654 = vmul.f32 %v651, %v258
    %v655 = vmul.f32 %v651, %v259
    %v656 = vmul.f32 %v651, %v260
    %v657 = vmul.f32 %v651, %v261
    %v658 = vmul.f32 %v651, %v262
    %v659 = vmul.f32 %v651, %v263
    %v660 = vadd.f32 %v642, %v652
    %v661 = vadd.f32 %v643, %v653
    %v662 = vadd.f32 %v644, %v654
    %v663 = vadd.f32 %v645, %v655
    %v664 = vadd.f32 %v646, %v656
    %v665 = vadd.f32 %v647, %v657
    %v666 = vadd.f32 %v648, %v658
    %v667 = vadd.f32 %v649, %v659
    %s668 = sld [smem:[#allocation13 + $0x2e]]
    %v669 = vstv %s668
    %v670 = vmul.f32 %v669, %v283
    %v671 = vmul.f32 %v669, %v284
    %v672 = vmul.f32 %v669, %v285
    %v673 = vmul.f32 %v669, %v286
    %v674 = vmul.f32 %v669, %v287
    %v675 = vmul.f32 %v669, %v288
    %v676 = vmul.f32 %v669, %v289
    %v677 = vmul.f32 %v669, %v290
    %v678 = vadd.f32 %v660, %v670
    %v679 = vadd.f32 %v661, %v671
    %v680 = vadd.f32 %v662, %v672
    %v681 = vadd.f32 %v663, %v673
    %v682 = vadd.f32 %v664, %v674
    %v683 = vadd.f32 %v665, %v675
    %v684 = vadd.f32 %v666, %v676
    %v685 = vadd.f32 %v667, %v677
    %s686 = sld [smem:[#allocation13 + $0x37]]
    %v687 = vstv %s686
    %v688 = vmul.f32 %v687, %v310
    %v689 = vmul.f32 %v687, %v311
    %v690 = vmul.f32 %v687, %v312
    %v691 = vmul.f32 %v687, %v313
    %v692 = vmul.f32 %v687, %v314
    %v693 = vmul.f32 %v687, %v315
    %v694 = vmul.f32 %v687, %v316
    %v695 = vmul.f32 %v687, %v317
    %v696 = vadd.f32 %v678, %v688
    %v697 = vadd.f32 %v679, %v689
    %v698 = vadd.f32 %v680, %v690
    %v699 = vadd.f32 %v681, %v691
    %v700 = vadd.f32 %v682, %v692
    %v701 = vadd.f32 %v683, %v693
    %v702 = vadd.f32 %v684, %v694
    %v703 = vadd.f32 %v685, %v695
    %s704 = sld [smem:[#allocation13 + $0x40]]
    %v705 = vstv %s704
    %v706 = vmul.f32 %v705, %v337
    %v707 = vmul.f32 %v705, %v338
    %v708 = vmul.f32 %v705, %v339
    %v709 = vmul.f32 %v705, %v340
    %v710 = vmul.f32 %v705, %v341
    %v711 = vmul.f32 %v705, %v342
    %v712 = vmul.f32 %v705, %v343
    %v713 = vmul.f32 %v705, %v344
    %v714 = vadd.f32 %v696, %v706
    %v715 = vadd.f32 %v697, %v707
    %v716 = vadd.f32 %v698, %v708
    %v717 = vadd.f32 %v699, %v709
    %v718 = vadd.f32 %v700, %v710
    %v719 = vadd.f32 %v701, %v711
    %v720 = vadd.f32 %v702, %v712
    %v721 = vadd.f32 %v703, %v713
    %s722 = sld [smem:[#allocation13 + $0x49]]
    %v723 = vstv %s722
    %v724 = vmul.f32 %v723, %v364
    %v725 = vmul.f32 %v723, %v365
    %v726 = vmul.f32 %v723, %v366
    %v727 = vmul.f32 %v723, %v367
    %v728 = vmul.f32 %v723, %v368
    %v729 = vmul.f32 %v723, %v369
    %v730 = vmul.f32 %v723, %v370
    %v731 = vmul.f32 %v723, %v371
    %v732 = vadd.f32 %v714, %v724
    %v733 = vadd.f32 %v715, %v725
    %v734 = vadd.f32 %v716, %v726
    %v735 = vadd.f32 %v717, %v727
    %v736 = vadd.f32 %v718, %v728
    %v737 = vadd.f32 %v719, %v729
    %v738 = vadd.f32 %v720, %v730
    %v739 = vadd.f32 %v721, %v731
    %s740 = sld [smem:[#allocation13 + $0x52]]
    %v741 = vstv %s740
    %v742 = vmul.f32 %v741, %v391
    %v743 = vmul.f32 %v741, %v392
    %v744 = vmul.f32 %v741, %v393
    %v745 = vmul.f32 %v741, %v394
    %v746 = vmul.f32 %v741, %v395
    %v747 = vmul.f32 %v741, %v396
    %v748 = vmul.f32 %v741, %v397
    %v749 = vmul.f32 %v741, %v398
    %v750 = vadd.f32 %v732, %v742
    %v751 = vadd.f32 %v733, %v743
    %v752 = vadd.f32 %v734, %v744
    %v753 = vadd.f32 %v735, %v745
    %v754 = vadd.f32 %v736, %v746
    %v755 = vadd.f32 %v737, %v747
    %v756 = vadd.f32 %v738, %v748
    %v757 = vadd.f32 %v739, %v749
    %s758 = sld [smem:[#allocation13 + $0x5b]]
    %v759 = vstv %s758
    %v760 = vmul.f32 %v759, %v418
    %v761 = vmul.f32 %v759, %v419
    %v762 = vmul.f32 %v759, %v420
    %v763 = vmul.f32 %v759, %v421
    %v764 = vmul.f32 %v759, %v422
    %v765 = vmul.f32 %v759, %v423
    %v766 = vmul.f32 %v759, %v424
    %v767 = vmul.f32 %v759, %v425
    %v768 = vadd.f32 %v750, %v760
    %v769 = vadd.f32 %v751, %v761
    %v770 = vadd.f32 %v752, %v762
    %v771 = vadd.f32 %v753, %v763
    %v772 = vadd.f32 %v754, %v764
    %v773 = vadd.f32 %v755, %v765
    %v774 = vadd.f32 %v756, %v766
    %v775 = vadd.f32 %v757, %v767
    %s776 = sld [smem:[#allocation13 + $0x64]]
    %v777 = vstv %s776
    %v778 = vmul.f32 %v777, %v445
    %v779 = vmul.f32 %v777, %v446
    %v780 = vmul.f32 %v777, %v447
    %v781 = vmul.f32 %v777, %v448
    %v782 = vmul.f32 %v777, %v449
    %v783 = vmul.f32 %v777, %v450
    %v784 = vmul.f32 %v777, %v451
    %v785 = vmul.f32 %v777, %v452
    %v786 = vadd.f32 %v768, %v778
    %v787 = vadd.f32 %v769, %v779
    %v788 = vadd.f32 %v770, %v780
    %v789 = vadd.f32 %v771, %v781
    %v790 = vadd.f32 %v772, %v782
    %v791 = vadd.f32 %v773, %v783
    %v792 = vadd.f32 %v774, %v784
    %v793 = vadd.f32 %v775, %v785
    %s794 = sld [smem:[#allocation13 + $0x6d]]
    %v795 = vstv %s794
    %v796 = vmul.f32 %v795, %v472
    %v797 = vmul.f32 %v795, %v473
    %v798 = vmul.f32 %v795, %v474
    %v799 = vmul.f32 %v795, %v475
    %v800 = vmul.f32 %v795, %v476
    %v801 = vmul.f32 %v795, %v477
    %v802 = vmul.f32 %v795, %v478
    %v803 = vmul.f32 %v795, %v479
    %v804 = vadd.f32 %v786, %v796
    %v805 = vadd.f32 %v787, %v797
    %v806 = vadd.f32 %v788, %v798
    %v807 = vadd.f32 %v789, %v799
    %v808 = vadd.f32 %v790, %v800
    %v809 = vadd.f32 %v791, %v801
    %v810 = vadd.f32 %v792, %v802
    %v811 = vadd.f32 %v793, %v803
    %s812 = sld [smem:[#allocation13 + $0x76]]
    %v813 = vstv %s812
    %v814 = vmul.f32 %v813, %v499
    %v815 = vmul.f32 %v813, %v500
    %v816 = vmul.f32 %v813, %v501
    %v817 = vmul.f32 %v813, %v502
    %v818 = vmul.f32 %v813, %v503
    %v819 = vmul.f32 %v813, %v504
    %v820 = vmul.f32 %v813, %v505
    %v821 = vmul.f32 %v813, %v506
    %v822 = vadd.f32 %v804, %v814
    %v823 = vadd.f32 %v805, %v815
    %v824 = vadd.f32 %v806, %v816
    %v825 = vadd.f32 %v807, %v817
    %v826 = vadd.f32 %v808, %v818
    %v827 = vadd.f32 %v809, %v819
    %v828 = vadd.f32 %v810, %v820
    %v829 = vadd.f32 %v811, %v821
    %s830 = sld [smem:[#allocation13 + $0x7f]]
    %v831 = vstv %s830
    %v832 = vmul.f32 %v831, %v526
    %v833 = vmul.f32 %v831, %v527
    %v834 = vmul.f32 %v831, %v528
    %v835 = vmul.f32 %v831, %v529
    %v836 = vmul.f32 %v831, %v530
    %v837 = vmul.f32 %v831, %v531
    %v838 = vmul.f32 %v831, %v532
    %v839 = vmul.f32 %v831, %v533
    %v840 = vadd.f32 %v822, %v832
    %v841 = vadd.f32 %v823, %v833
    %v842 = vadd.f32 %v824, %v834
    %v843 = vadd.f32 %v825, %v835
    %v844 = vadd.f32 %v826, %v836
    %v845 = vadd.f32 %v827, %v837
    %v846 = vadd.f32 %v828, %v838
    %v847 = vadd.f32 %v829, %v839
    %s848 = sld [smem:[#allocation13 + $0x88]]
    %v849 = vstv %s848
    %v850 = vmul.f32 %v849, %v553
    %v851 = vmul.f32 %v849, %v554
    %v852 = vmul.f32 %v849, %v555
    %v853 = vmul.f32 %v849, %v556
    %v854 = vmul.f32 %v849, %v557
    %v855 = vmul.f32 %v849, %v558
    %v856 = vmul.f32 %v849, %v559
    %v857 = vmul.f32 %v849, %v560
    %v858 = vadd.f32 %v840, %v850
    %v859 = vadd.f32 %v841, %v851
    %v860 = vadd.f32 %v842, %v852
    %v861 = vadd.f32 %v843, %v853
    %v862 = vadd.f32 %v844, %v854
    %v863 = vadd.f32 %v845, %v855
    %v864 = vadd.f32 %v846, %v856
    %v865 = vadd.f32 %v847, %v857
    %874 = vrot.lane.b32.xlu0 %v858, 127
    %v875 = vpop.permute.xlu0 %874
    %876 = vrot.lane.b32.xlu0 %v859, 127
    %v877 = vpop.permute.xlu0 %876
    %878 = vrot.lane.b32.xlu0 %v860, 127
    %v879 = vpop.permute.xlu0 %878
    %880 = vrot.lane.b32.xlu0 %v861, 127
    %v881 = vpop.permute.xlu0 %880
    %882 = vrot.lane.b32.xlu0 %v862, 127
    %v883 = vpop.permute.xlu0 %882
    %884 = vrot.lane.b32.xlu0 %v863, 127
    %v885 = vpop.permute.xlu0 %884
    %886 = vrot.lane.b32.xlu0 %v864, 127
    %v887 = vpop.permute.xlu0 %886
    %888 = vrot.lane.b32.xlu0 %v865, 127
    %v889 = vpop.permute.xlu0 %888
    %v898 = vadd.f32 %v578, %v875
    %v899 = vadd.f32 %v579, %v877
    %v900 = vadd.f32 %v580, %v879
    %v901 = vadd.f32 %v581, %v881
    %v902 = vadd.f32 %v582, %v883
    %v903 = vadd.f32 %v583, %v885
    %v904 = vadd.f32 %v584, %v887
    %v905 = vadd.f32 %v585, %v889
    %s906 = sld [smem:[#allocation13 + $0x2]]
    %v907 = vstv %s906
    %v908 = vmul.f32 %v907, %v156
    %v909 = vmul.f32 %v907, %v157
    %v910 = vmul.f32 %v907, %v158
    %v911 = vmul.f32 %v907, %v159
    %v912 = vmul.f32 %v907, %v160
    %v913 = vmul.f32 %v907, %v161
    %v914 = vmul.f32 %v907, %v162
    %v915 = vmul.f32 %v907, %v163
    %s916 = sld [smem:[#allocation13 + $0xb]]
    %v917 = vstv %s916
    %v918 = vmul.f32 %v917, %v175
    %v919 = vmul.f32 %v917, %v176
    %v920 = vmul.f32 %v917, %v177
    %v921 = vmul.f32 %v917, %v178
    %v922 = vmul.f32 %v917, %v179
    %v923 = vmul.f32 %v917, %v180
    %v924 = vmul.f32 %v917, %v181
    %v925 = vmul.f32 %v917, %v182
    %v926 = vadd.f32 %v908, %v918
    %v927 = vadd.f32 %v909, %v919
    %v928 = vadd.f32 %v910, %v920
    %v929 = vadd.f32 %v911, %v921
    %v930 = vadd.f32 %v912, %v922
    %v931 = vadd.f32 %v913, %v923
    %v932 = vadd.f32 %v914, %v924
    %v933 = vadd.f32 %v915, %v925
    %s934 = sld [smem:[#allocation13 + $0x14]]
    %v935 = vstv %s934
    %v936 = vmul.f32 %v935, %v202
    %v937 = vmul.f32 %v935, %v203
    %v938 = vmul.f32 %v935, %v204
    %v939 = vmul.f32 %v935, %v205
    %v940 = vmul.f32 %v935, %v206
    %v941 = vmul.f32 %v935, %v207
    %v942 = vmul.f32 %v935, %v208
    %v943 = vmul.f32 %v935, %v209
    %v944 = vadd.f32 %v926, %v936
    %v945 = vadd.f32 %v927, %v937
    %v946 = vadd.f32 %v928, %v938
    %v947 = vadd.f32 %v929, %v939
    %v948 = vadd.f32 %v930, %v940
    %v949 = vadd.f32 %v931, %v941
    %v950 = vadd.f32 %v932, %v942
    %v951 = vadd.f32 %v933, %v943
    %s952 = sld [smem:[#allocation13 + $0x1d]]
    %v953 = vstv %s952
    %v954 = vmul.f32 %v953, %v229
    %v955 = vmul.f32 %v953, %v230
    %v956 = vmul.f32 %v953, %v231
    %v957 = vmul.f32 %v953, %v232
    %v958 = vmul.f32 %v953, %v233
    %v959 = vmul.f32 %v953, %v234
    %v960 = vmul.f32 %v953, %v235
    %v961 = vmul.f32 %v953, %v236
    %v962 = vadd.f32 %v944, %v954
    %v963 = vadd.f32 %v945, %v955
    %v964 = vadd.f32 %v946, %v956
    %v965 = vadd.f32 %v947, %v957
    %v966 = vadd.f32 %v948, %v958
    %v967 = vadd.f32 %v949, %v959
    %v968 = vadd.f32 %v950, %v960
    %v969 = vadd.f32 %v951, %v961
    %s970 = sld [smem:[#allocation13 + $0x26]]
    %v971 = vstv %s970
    %v972 = vmul.f32 %v971, %v256
    %v973 = vmul.f32 %v971, %v257
    %v974 = vmul.f32 %v971, %v258
    %v975 = vmul.f32 %v971, %v259
    %v976 = vmul.f32 %v971, %v260
    %v977 = vmul.f32 %v971, %v261
    %v978 = vmul.f32 %v971, %v262
    %v979 = vmul.f32 %v971, %v263
    %v980 = vadd.f32 %v962, %v972
    %v981 = vadd.f32 %v963, %v973
    %v982 = vadd.f32 %v964, %v974
    %v983 = vadd.f32 %v965, %v975
    %v984 = vadd.f32 %v966, %v976
    %v985 = vadd.f32 %v967, %v977
    %v986 = vadd.f32 %v968, %v978
    %v987 = vadd.f32 %v969, %v979
    %s988 = sld [smem:[#allocation13 + $0x2f]]
    %v989 = vstv %s988
    %v990 = vmul.f32 %v989, %v283
    %v991 = vmul.f32 %v989, %v284
    %v992 = vmul.f32 %v989, %v285
    %v993 = vmul.f32 %v989, %v286
    %v994 = vmul.f32 %v989, %v287
    %v995 = vmul.f32 %v989, %v288
    %v996 = vmul.f32 %v989, %v289
    %v997 = vmul.f32 %v989, %v290
    %v998 = vadd.f32 %v980, %v990
    %v999 = vadd.f32 %v981, %v991
    %v1000 = vadd.f32 %v982, %v992
    %v1001 = vadd.f32 %v983, %v993
    %v1002 = vadd.f32 %v984, %v994
    %v1003 = vadd.f32 %v985, %v995
    %v1004 = vadd.f32 %v986, %v996
    %v1005 = vadd.f32 %v987, %v997
    %s1006 = sld [smem:[#allocation13 + $0x38]]
    %v1007 = vstv %s1006
    %v1008 = vmul.f32 %v1007, %v310
    %v1009 = vmul.f32 %v1007, %v311
    %v1010 = vmul.f32 %v1007, %v312
    %v1011 = vmul.f32 %v1007, %v313
    %v1012 = vmul.f32 %v1007, %v314
    %v1013 = vmul.f32 %v1007, %v315
    %v1014 = vmul.f32 %v1007, %v316
    %v1015 = vmul.f32 %v1007, %v317
    %v1016 = vadd.f32 %v998, %v1008
    %v1017 = vadd.f32 %v999, %v1009
    %v1018 = vadd.f32 %v1000, %v1010
    %v1019 = vadd.f32 %v1001, %v1011
    %v1020 = vadd.f32 %v1002, %v1012
    %v1021 = vadd.f32 %v1003, %v1013
    %v1022 = vadd.f32 %v1004, %v1014
    %v1023 = vadd.f32 %v1005, %v1015
    %s1024 = sld [smem:[#allocation13 + $0x41]]
    %v1025 = vstv %s1024
    %v1026 = vmul.f32 %v1025, %v337
    %v1027 = vmul.f32 %v1025, %v338
    %v1028 = vmul.f32 %v1025, %v339
    %v1029 = vmul.f32 %v1025, %v340
    %v1030 = vmul.f32 %v1025, %v341
    %v1031 = vmul.f32 %v1025, %v342
    %v1032 = vmul.f32 %v1025, %v343
    %v1033 = vmul.f32 %v1025, %v344
    %v1034 = vadd.f32 %v1016, %v1026
    %v1035 = vadd.f32 %v1017, %v1027
    %v1036 = vadd.f32 %v1018, %v1028
    %v1037 = vadd.f32 %v1019, %v1029
    %v1038 = vadd.f32 %v1020, %v1030
    %v1039 = vadd.f32 %v1021, %v1031
    %v1040 = vadd.f32 %v1022, %v1032
    %v1041 = vadd.f32 %v1023, %v1033
    %s1042 = sld [smem:[#allocation13 + $0x4a]]
    %v1043 = vstv %s1042
    %v1044 = vmul.f32 %v1043, %v364
    %v1045 = vmul.f32 %v1043, %v365
    %v1046 = vmul.f32 %v1043, %v366
    %v1047 = vmul.f32 %v1043, %v367
    %v1048 = vmul.f32 %v1043, %v368
    %v1049 = vmul.f32 %v1043, %v369
    %v1050 = vmul.f32 %v1043, %v370
    %v1051 = vmul.f32 %v1043, %v371
    %v1052 = vadd.f32 %v1034, %v1044
    %v1053 = vadd.f32 %v1035, %v1045
    %v1054 = vadd.f32 %v1036, %v1046
    %v1055 = vadd.f32 %v1037, %v1047
    %v1056 = vadd.f32 %v1038, %v1048
    %v1057 = vadd.f32 %v1039, %v1049
    %v1058 = vadd.f32 %v1040, %v1050
    %v1059 = vadd.f32 %v1041, %v1051
    %s1060 = sld [smem:[#allocation13 + $0x53]]
    %v1061 = vstv %s1060
    %v1062 = vmul.f32 %v1061, %v391
    %v1063 = vmul.f32 %v1061, %v392
    %v1064 = vmul.f32 %v1061, %v393
    %v1065 = vmul.f32 %v1061, %v394
    %v1066 = vmul.f32 %v1061, %v395
    %v1067 = vmul.f32 %v1061, %v396
    %v1068 = vmul.f32 %v1061, %v397
    %v1069 = vmul.f32 %v1061, %v398
    %v1070 = vadd.f32 %v1052, %v1062
    %v1071 = vadd.f32 %v1053, %v1063
    %v1072 = vadd.f32 %v1054, %v1064
    %v1073 = vadd.f32 %v1055, %v1065
    %v1074 = vadd.f32 %v1056, %v1066
    %v1075 = vadd.f32 %v1057, %v1067
    %v1076 = vadd.f32 %v1058, %v1068
    %v1077 = vadd.f32 %v1059, %v1069
    %s1078 = sld [smem:[#allocation13 + $0x5c]]
    %v1079 = vstv %s1078
    %v1080 = vmul.f32 %v1079, %v418
    %v1081 = vmul.f32 %v1079, %v419
    %v1082 = vmul.f32 %v1079, %v420
    %v1083 = vmul.f32 %v1079, %v421
    %v1084 = vmul.f32 %v1079, %v422
    %v1085 = vmul.f32 %v1079, %v423
    %v1086 = vmul.f32 %v1079, %v424
    %v1087 = vmul.f32 %v1079, %v425
    %v1088 = vadd.f32 %v1070, %v1080
    %v1089 = vadd.f32 %v1071, %v1081
    %v1090 = vadd.f32 %v1072, %v1082
    %v1091 = vadd.f32 %v1073, %v1083
    %v1092 = vadd.f32 %v1074, %v1084
    %v1093 = vadd.f32 %v1075, %v1085
    %v1094 = vadd.f32 %v1076, %v1086
    %v1095 = vadd.f32 %v1077, %v1087
    %s1096 = sld [smem:[#allocation13 + $0x65]]
    %v1097 = vstv %s1096
    %v1098 = vmul.f32 %v1097, %v445
    %v1099 = vmul.f32 %v1097, %v446
    %v1100 = vmul.f32 %v1097, %v447
    %v1101 = vmul.f32 %v1097, %v448
    %v1102 = vmul.f32 %v1097, %v449
    %v1103 = vmul.f32 %v1097, %v450
    %v1104 = vmul.f32 %v1097, %v451
    %v1105 = vmul.f32 %v1097, %v452
    %v1106 = vadd.f32 %v1088, %v1098
    %v1107 = vadd.f32 %v1089, %v1099
    %v1108 = vadd.f32 %v1090, %v1100
    %v1109 = vadd.f32 %v1091, %v1101
    %v1110 = vadd.f32 %v1092, %v1102
    %v1111 = vadd.f32 %v1093, %v1103
    %v1112 = vadd.f32 %v1094, %v1104
    %v1113 = vadd.f32 %v1095, %v1105
    %s1114 = sld [smem:[#allocation13 + $0x6e]]
    %v1115 = vstv %s1114
    %v1116 = vmul.f32 %v1115, %v472
    %v1117 = vmul.f32 %v1115, %v473
    %v1118 = vmul.f32 %v1115, %v474
    %v1119 = vmul.f32 %v1115, %v475
    %v1120 = vmul.f32 %v1115, %v476
    %v1121 = vmul.f32 %v1115, %v477
    %v1122 = vmul.f32 %v1115, %v478
    %v1123 = vmul.f32 %v1115, %v479
    %v1124 = vadd.f32 %v1106, %v1116
    %v1125 = vadd.f32 %v1107, %v1117
    %v1126 = vadd.f32 %v1108, %v1118
    %v1127 = vadd.f32 %v1109, %v1119
    %v1128 = vadd.f32 %v1110, %v1120
    %v1129 = vadd.f32 %v1111, %v1121
    %v1130 = vadd.f32 %v1112, %v1122
    %v1131 = vadd.f32 %v1113, %v1123
    %s1132 = sld [smem:[#allocation13 + $0x77]]
    %v1133 = vstv %s1132
    %v1134 = vmul.f32 %v1133, %v499
    %v1135 = vmul.f32 %v1133, %v500
    %v1136 = vmul.f32 %v1133, %v501
    %v1137 = vmul.f32 %v1133, %v502
    %v1138 = vmul.f32 %v1133, %v503
    %v1139 = vmul.f32 %v1133, %v504
    %v1140 = vmul.f32 %v1133, %v505
    %v1141 = vmul.f32 %v1133, %v506
    %v1142 = vadd.f32 %v1124, %v1134
    %v1143 = vadd.f32 %v1125, %v1135
    %v1144 = vadd.f32 %v1126, %v1136
    %v1145 = vadd.f32 %v1127, %v1137
    %v1146 = vadd.f32 %v1128, %v1138
    %v1147 = vadd.f32 %v1129, %v1139
    %v1148 = vadd.f32 %v1130, %v1140
    %v1149 = vadd.f32 %v1131, %v1141
    %s1150 = sld [smem:[#allocation13 + $0x80]]
    %v1151 = vstv %s1150
    %v1152 = vmul.f32 %v1151, %v526
    %v1153 = vmul.f32 %v1151, %v527
    %v1154 = vmul.f32 %v1151, %v528
    %v1155 = vmul.f32 %v1151, %v529
    %v1156 = vmul.f32 %v1151, %v530
    %v1157 = vmul.f32 %v1151, %v531
    %v1158 = vmul.f32 %v1151, %v532
    %v1159 = vmul.f32 %v1151, %v533
    %v1160 = vadd.f32 %v1142, %v1152
    %v1161 = vadd.f32 %v1143, %v1153
    %v1162 = vadd.f32 %v1144, %v1154
    %v1163 = vadd.f32 %v1145, %v1155
    %v1164 = vadd.f32 %v1146, %v1156
    %v1165 = vadd.f32 %v1147, %v1157
    %v1166 = vadd.f32 %v1148, %v1158
    %v1167 = vadd.f32 %v1149, %v1159
    %s1168 = sld [smem:[#allocation13 + $0x89]]
    %v1169 = vstv %s1168
    %v1170 = vmul.f32 %v1169, %v553
    %v1171 = vmul.f32 %v1169, %v554
    %v1172 = vmul.f32 %v1169, %v555
    %v1173 = vmul.f32 %v1169, %v556
    %v1174 = vmul.f32 %v1169, %v557
    %v1175 = vmul.f32 %v1169, %v558
    %v1176 = vmul.f32 %v1169, %v559
    %v1177 = vmul.f32 %v1169, %v560
    %v1178 = vadd.f32 %v1160, %v1170
    %v1179 = vadd.f32 %v1161, %v1171
    %v1180 = vadd.f32 %v1162, %v1172
    %v1181 = vadd.f32 %v1163, %v1173
    %v1182 = vadd.f32 %v1164, %v1174
    %v1183 = vadd.f32 %v1165, %v1175
    %v1184 = vadd.f32 %v1166, %v1176
    %v1185 = vadd.f32 %v1167, %v1177
    %1194 = vrot.lane.b32.xlu0 %v1178, 126
    %v1195 = vpop.permute.xlu0 %1194
    %1196 = vrot.lane.b32.xlu0 %v1179, 126
    %v1197 = vpop.permute.xlu0 %1196
    %1198 = vrot.lane.b32.xlu0 %v1180, 126
    %v1199 = vpop.permute.xlu0 %1198
    %1200 = vrot.lane.b32.xlu0 %v1181, 126
    %v1201 = vpop.permute.xlu0 %1200
    %1202 = vrot.lane.b32.xlu0 %v1182, 126
    %v1203 = vpop.permute.xlu0 %1202
    %1204 = vrot.lane.b32.xlu0 %v1183, 126
    %v1205 = vpop.permute.xlu0 %1204
    %1206 = vrot.lane.b32.xlu0 %v1184, 126
    %v1207 = vpop.permute.xlu0 %1206
    %1208 = vrot.lane.b32.xlu0 %v1185, 126
    %v1209 = vpop.permute.xlu0 %1208
    %v1218 = vadd.f32 %v898, %v1195
    %v1219 = vadd.f32 %v899, %v1197
    %v1220 = vadd.f32 %v900, %v1199
    %v1221 = vadd.f32 %v901, %v1201
    %v1222 = vadd.f32 %v902, %v1203
    %v1223 = vadd.f32 %v903, %v1205
    %v1224 = vadd.f32 %v904, %v1207
    %v1225 = vadd.f32 %v905, %v1209
    %s1226 = sld [smem:[#allocation13 + $0x3]]
    %v1227 = vstv %s1226
    %v1228 = vmul.f32 %v1227, %v156
    %v1229 = vmul.f32 %v1227, %v157
    %v1230 = vmul.f32 %v1227, %v158
    %v1231 = vmul.f32 %v1227, %v159
    %v1232 = vmul.f32 %v1227, %v160
    %v1233 = vmul.f32 %v1227, %v161
    %v1234 = vmul.f32 %v1227, %v162
    %v1235 = vmul.f32 %v1227, %v163
    %s1236 = sld [smem:[#allocation13 + $0xc]]
    %v1237 = vstv %s1236
    %v1238 = vmul.f32 %v1237, %v175
    %v1239 = vmul.f32 %v1237, %v176
    %v1240 = vmul.f32 %v1237, %v177
    %v1241 = vmul.f32 %v1237, %v178
    %v1242 = vmul.f32 %v1237, %v179
    %v1243 = vmul.f32 %v1237, %v180
    %v1244 = vmul.f32 %v1237, %v181
    %v1245 = vmul.f32 %v1237, %v182
    %v1246 = vadd.f32 %v1228, %v1238
    %v1247 = vadd.f32 %v1229, %v1239
    %v1248 = vadd.f32 %v1230, %v1240
    %v1249 = vadd.f32 %v1231, %v1241
    %v1250 = vadd.f32 %v1232, %v1242
    %v1251 = vadd.f32 %v1233, %v1243
    %v1252 = vadd.f32 %v1234, %v1244
    %v1253 = vadd.f32 %v1235, %v1245
    %s1254 = sld [smem:[#allocation13 + $0x15]]
    %v1255 = vstv %s1254
    %v1256 = vmul.f32 %v1255, %v202
    %v1257 = vmul.f32 %v1255, %v203
    %v1258 = vmul.f32 %v1255, %v204
    %v1259 = vmul.f32 %v1255, %v205
    %v1260 = vmul.f32 %v1255, %v206
    %v1261 = vmul.f32 %v1255, %v207
    %v1262 = vmul.f32 %v1255, %v208
    %v1263 = vmul.f32 %v1255, %v209
    %v1264 = vadd.f32 %v1246, %v1256
    %v1265 = vadd.f32 %v1247, %v1257
    %v1266 = vadd.f32 %v1248, %v1258
    %v1267 = vadd.f32 %v1249, %v1259
    %v1268 = vadd.f32 %v1250, %v1260
    %v1269 = vadd.f32 %v1251, %v1261
    %v1270 = vadd.f32 %v1252, %v1262
    %v1271 = vadd.f32 %v1253, %v1263
    %s1272 = sld [smem:[#allocation13 + $0x1e]]
    %v1273 = vstv %s1272
    %v1274 = vmul.f32 %v1273, %v229
    %v1275 = vmul.f32 %v1273, %v230
    %v1276 = vmul.f32 %v1273, %v231
    %v1277 = vmul.f32 %v1273, %v232
    %v1278 = vmul.f32 %v1273, %v233
    %v1279 = vmul.f32 %v1273, %v234
    %v1280 = vmul.f32 %v1273, %v235
    %v1281 = vmul.f32 %v1273, %v236
    %v1282 = vadd.f32 %v1264, %v1274
    %v1283 = vadd.f32 %v1265, %v1275
    %v1284 = vadd.f32 %v1266, %v1276
    %v1285 = vadd.f32 %v1267, %v1277
    %v1286 = vadd.f32 %v1268, %v1278
    %v1287 = vadd.f32 %v1269, %v1279
    %v1288 = vadd.f32 %v1270, %v1280
    %v1289 = vadd.f32 %v1271, %v1281
    %s1290 = sld [smem:[#allocation13 + $0x27]]
    %v1291 = vstv %s1290
    %v1292 = vmul.f32 %v1291, %v256
    %v1293 = vmul.f32 %v1291, %v257
    %v1294 = vmul.f32 %v1291, %v258
    %v1295 = vmul.f32 %v1291, %v259
    %v1296 = vmul.f32 %v1291, %v260
    %v1297 = vmul.f32 %v1291, %v261
    %v1298 = vmul.f32 %v1291, %v262
    %v1299 = vmul.f32 %v1291, %v263
    %v1300 = vadd.f32 %v1282, %v1292
    %v1301 = vadd.f32 %v1283, %v1293
    %v1302 = vadd.f32 %v1284, %v1294
    %v1303 = vadd.f32 %v1285, %v1295
    %v1304 = vadd.f32 %v1286, %v1296
    %v1305 = vadd.f32 %v1287, %v1297
    %v1306 = vadd.f32 %v1288, %v1298
    %v1307 = vadd.f32 %v1289, %v1299
    %s1308 = sld [smem:[#allocation13 + $0x30]]
    %v1309 = vstv %s1308
    %v1310 = vmul.f32 %v1309, %v283
    %v1311 = vmul.f32 %v1309, %v284
    %v1312 = vmul.f32 %v1309, %v285
    %v1313 = vmul.f32 %v1309, %v286
    %v1314 = vmul.f32 %v1309, %v287
    %v1315 = vmul.f32 %v1309, %v288
    %v1316 = vmul.f32 %v1309, %v289
    %v1317 = vmul.f32 %v1309, %v290
    %v1318 = vadd.f32 %v1300, %v1310
    %v1319 = vadd.f32 %v1301, %v1311
    %v1320 = vadd.f32 %v1302, %v1312
    %v1321 = vadd.f32 %v1303, %v1313
    %v1322 = vadd.f32 %v1304, %v1314
    %v1323 = vadd.f32 %v1305, %v1315
    %v1324 = vadd.f32 %v1306, %v1316
    %v1325 = vadd.f32 %v1307, %v1317
    %s1326 = sld [smem:[#allocation13 + $0x39]]
    %v1327 = vstv %s1326
    %v1328 = vmul.f32 %v1327, %v310
    %v1329 = vmul.f32 %v1327, %v311
    %v1330 = vmul.f32 %v1327, %v312
    %v1331 = vmul.f32 %v1327, %v313
    %v1332 = vmul.f32 %v1327, %v314
    %v1333 = vmul.f32 %v1327, %v315
    %v1334 = vmul.f32 %v1327, %v316
    %v1335 = vmul.f32 %v1327, %v317
    %v1336 = vadd.f32 %v1318, %v1328
    %v1337 = vadd.f32 %v1319, %v1329
    %v1338 = vadd.f32 %v1320, %v1330
    %v1339 = vadd.f32 %v1321, %v1331
    %v1340 = vadd.f32 %v1322, %v1332
    %v1341 = vadd.f32 %v1323, %v1333
    %v1342 = vadd.f32 %v1324, %v1334
    %v1343 = vadd.f32 %v1325, %v1335
    %s1344 = sld [smem:[#allocation13 + $0x42]]
    %v1345 = vstv %s1344
    %v1346 = vmul.f32 %v1345, %v337
    %v1347 = vmul.f32 %v1345, %v338
    %v1348 = vmul.f32 %v1345, %v339
    %v1349 = vmul.f32 %v1345, %v340
    %v1350 = vmul.f32 %v1345, %v341
    %v1351 = vmul.f32 %v1345, %v342
    %v1352 = vmul.f32 %v1345, %v343
    %v1353 = vmul.f32 %v1345, %v344
    %v1354 = vadd.f32 %v1336, %v1346
    %v1355 = vadd.f32 %v1337, %v1347
    %v1356 = vadd.f32 %v1338, %v1348
    %v1357 = vadd.f32 %v1339, %v1349
    %v1358 = vadd.f32 %v1340, %v1350
    %v1359 = vadd.f32 %v1341, %v1351
    %v1360 = vadd.f32 %v1342, %v1352
    %v1361 = vadd.f32 %v1343, %v1353
    %s1362 = sld [smem:[#allocation13 + $0x4b]]
    %v1363 = vstv %s1362
    %v1364 = vmul.f32 %v1363, %v364
    %v1365 = vmul.f32 %v1363, %v365
    %v1366 = vmul.f32 %v1363, %v366
    %v1367 = vmul.f32 %v1363, %v367
    %v1368 = vmul.f32 %v1363, %v368
    %v1369 = vmul.f32 %v1363, %v369
    %v1370 = vmul.f32 %v1363, %v370
    %v1371 = vmul.f32 %v1363, %v371
    %v1372 = vadd.f32 %v1354, %v1364
    %v1373 = vadd.f32 %v1355, %v1365
    %v1374 = vadd.f32 %v1356, %v1366
    %v1375 = vadd.f32 %v1357, %v1367
    %v1376 = vadd.f32 %v1358, %v1368
    %v1377 = vadd.f32 %v1359, %v1369
    %v1378 = vadd.f32 %v1360, %v1370
    %v1379 = vadd.f32 %v1361, %v1371
    %s1380 = sld [smem:[#allocation13 + $0x54]]
    %v1381 = vstv %s1380
    %v1382 = vmul.f32 %v1381, %v391
    %v1383 = vmul.f32 %v1381, %v392
    %v1384 = vmul.f32 %v1381, %v393
    %v1385 = vmul.f32 %v1381, %v394
    %v1386 = vmul.f32 %v1381, %v395
    %v1387 = vmul.f32 %v1381, %v396
    %v1388 = vmul.f32 %v1381, %v397
    %v1389 = vmul.f32 %v1381, %v398
    %v1390 = vadd.f32 %v1372, %v1382
    %v1391 = vadd.f32 %v1373, %v1383
    %v1392 = vadd.f32 %v1374, %v1384
    %v1393 = vadd.f32 %v1375, %v1385
    %v1394 = vadd.f32 %v1376, %v1386
    %v1395 = vadd.f32 %v1377, %v1387
    %v1396 = vadd.f32 %v1378, %v1388
    %v1397 = vadd.f32 %v1379, %v1389
    %s1398 = sld [smem:[#allocation13 + $0x5d]]
    %v1399 = vstv %s1398
    %v1400 = vmul.f32 %v1399, %v418
    %v1401 = vmul.f32 %v1399, %v419
    %v1402 = vmul.f32 %v1399, %v420
    %v1403 = vmul.f32 %v1399, %v421
    %v1404 = vmul.f32 %v1399, %v422
    %v1405 = vmul.f32 %v1399, %v423
    %v1406 = vmul.f32 %v1399, %v424
    %v1407 = vmul.f32 %v1399, %v425
    %v1408 = vadd.f32 %v1390, %v1400
    %v1409 = vadd.f32 %v1391, %v1401
    %v1410 = vadd.f32 %v1392, %v1402
    %v1411 = vadd.f32 %v1393, %v1403
    %v1412 = vadd.f32 %v1394, %v1404
    %v1413 = vadd.f32 %v1395, %v1405
    %v1414 = vadd.f32 %v1396, %v1406
    %v1415 = vadd.f32 %v1397, %v1407
    %s1416 = sld [smem:[#allocation13 + $0x66]]
    %v1417 = vstv %s1416
    %v1418 = vmul.f32 %v1417, %v445
    %v1419 = vmul.f32 %v1417, %v446
    %v1420 = vmul.f32 %v1417, %v447
    %v1421 = vmul.f32 %v1417, %v448
    %v1422 = vmul.f32 %v1417, %v449
    %v1423 = vmul.f32 %v1417, %v450
    %v1424 = vmul.f32 %v1417, %v451
    %v1425 = vmul.f32 %v1417, %v452
    %v1426 = vadd.f32 %v1408, %v1418
    %v1427 = vadd.f32 %v1409, %v1419
    %v1428 = vadd.f32 %v1410, %v1420
    %v1429 = vadd.f32 %v1411, %v1421
    %v1430 = vadd.f32 %v1412, %v1422
    %v1431 = vadd.f32 %v1413, %v1423
    %v1432 = vadd.f32 %v1414, %v1424
    %v1433 = vadd.f32 %v1415, %v1425
    %s1434 = sld [smem:[#allocation13 + $0x6f]]
    %v1435 = vstv %s1434
    %v1436 = vmul.f32 %v1435, %v472
    %v1437 = vmul.f32 %v1435, %v473
    %v1438 = vmul.f32 %v1435, %v474
    %v1439 = vmul.f32 %v1435, %v475
    %v1440 = vmul.f32 %v1435, %v476
    %v1441 = vmul.f32 %v1435, %v477
    %v1442 = vmul.f32 %v1435, %v478
    %v1443 = vmul.f32 %v1435, %v479
    %v1444 = vadd.f32 %v1426, %v1436
    %v1445 = vadd.f32 %v1427, %v1437
    %v1446 = vadd.f32 %v1428, %v1438
    %v1447 = vadd.f32 %v1429, %v1439
    %v1448 = vadd.f32 %v1430, %v1440
    %v1449 = vadd.f32 %v1431, %v1441
    %v1450 = vadd.f32 %v1432, %v1442
    %v1451 = vadd.f32 %v1433, %v1443
    %s1452 = sld [smem:[#allocation13 + $0x78]]
    %v1453 = vstv %s1452
    %v1454 = vmul.f32 %v1453, %v499
    %v1455 = vmul.f32 %v1453, %v500
    %v1456 = vmul.f32 %v1453, %v501
    %v1457 = vmul.f32 %v1453, %v502
    %v1458 = vmul.f32 %v1453, %v503
    %v1459 = vmul.f32 %v1453, %v504
    %v1460 = vmul.f32 %v1453, %v505
    %v1461 = vmul.f32 %v1453, %v506
    %v1462 = vadd.f32 %v1444, %v1454
    %v1463 = vadd.f32 %v1445, %v1455
    %v1464 = vadd.f32 %v1446, %v1456
    %v1465 = vadd.f32 %v1447, %v1457
    %v1466 = vadd.f32 %v1448, %v1458
    %v1467 = vadd.f32 %v1449, %v1459
    %v1468 = vadd.f32 %v1450, %v1460
    %v1469 = vadd.f32 %v1451, %v1461
    %s1470 = sld [smem:[#allocation13 + $0x81]]
    %v1471 = vstv %s1470
    %v1472 = vmul.f32 %v1471, %v526
    %v1473 = vmul.f32 %v1471, %v527
    %v1474 = vmul.f32 %v1471, %v528
    %v1475 = vmul.f32 %v1471, %v529
    %v1476 = vmul.f32 %v1471, %v530
    %v1477 = vmul.f32 %v1471, %v531
    %v1478 = vmul.f32 %v1471, %v532
    %v1479 = vmul.f32 %v1471, %v533
    %v1480 = vadd.f32 %v1462, %v1472
    %v1481 = vadd.f32 %v1463, %v1473
    %v1482 = vadd.f32 %v1464, %v1474
    %v1483 = vadd.f32 %v1465, %v1475
    %v1484 = vadd.f32 %v1466, %v1476
    %v1485 = vadd.f32 %v1467, %v1477
    %v1486 = vadd.f32 %v1468, %v1478
    %v1487 = vadd.f32 %v1469, %v1479
    %s1488 = sld [smem:[#allocation13 + $0x8a]]
    %v1489 = vstv %s1488
    %v1490 = vmul.f32 %v1489, %v553
    %v1491 = vmul.f32 %v1489, %v554
    %v1492 = vmul.f32 %v1489, %v555
    %v1493 = vmul.f32 %v1489, %v556
    %v1494 = vmul.f32 %v1489, %v557
    %v1495 = vmul.f32 %v1489, %v558
    %v1496 = vmul.f32 %v1489, %v559
    %v1497 = vmul.f32 %v1489, %v560
    %v1498 = vadd.f32 %v1480, %v1490
    %v1499 = vadd.f32 %v1481, %v1491
    %v1500 = vadd.f32 %v1482, %v1492
    %v1501 = vadd.f32 %v1483, %v1493
    %v1502 = vadd.f32 %v1484, %v1494
    %v1503 = vadd.f32 %v1485, %v1495
    %v1504 = vadd.f32 %v1486, %v1496
    %v1505 = vadd.f32 %v1487, %v1497
    %vm1514 = vcmask 1046528
    %v1515 = vrot.slane %v1498, 1
    %v1516 = vrot.slane %v1499, 1
    %v1517 = vsel %vm1514, %v1515, %v1516
    %v1518 = vrot.slane %v1500, 1
    %v1519 = vsel %vm1514, %v1516, %v1518
    %v1520 = vrot.slane %v1501, 1
    %v1521 = vsel %vm1514, %v1518, %v1520
    %v1522 = vrot.slane %v1502, 1
    %v1523 = vsel %vm1514, %v1520, %v1522
    %v1524 = vrot.slane %v1503, 1
    %v1525 = vsel %vm1514, %v1522, %v1524
    %v1526 = vrot.slane %v1504, 1
    %v1527 = vsel %vm1514, %v1524, %v1526
    %v1528 = vrot.slane %v1505, 1
    %v1529 = vsel %vm1514, %v1526, %v1528
    %v1538 = vadd.f32 %v1218, %v1517
    %v1539 = vadd.f32 %v1219, %v1519
    %v1540 = vadd.f32 %v1220, %v1521
    %v1541 = vadd.f32 %v1221, %v1523
    %v1542 = vadd.f32 %v1222, %v1525
    %v1543 = vadd.f32 %v1223, %v1527
    %v1544 = vadd.f32 %v1224, %v1529
    %v1545 = vadd.f32 %v1225, %v1528
    %s1546 = sld [smem:[#allocation13 + $0x4]]
    %v1547 = vstv %s1546
    %v1548 = vmul.f32 %v1547, %v156
    %v1549 = vmul.f32 %v1547, %v157
    %v1550 = vmul.f32 %v1547, %v158
    %v1551 = vmul.f32 %v1547, %v159
    %v1552 = vmul.f32 %v1547, %v160
    %v1553 = vmul.f32 %v1547, %v161
    %v1554 = vmul.f32 %v1547, %v162
    %v1555 = vmul.f32 %v1547, %v163
    %s1556 = sld [smem:[#allocation13 + $0xd]]
    %v1557 = vstv %s1556
    %v1558 = vmul.f32 %v1557, %v175
    %v1559 = vmul.f32 %v1557, %v176
    %v1560 = vmul.f32 %v1557, %v177
    %v1561 = vmul.f32 %v1557, %v178
    %v1562 = vmul.f32 %v1557, %v179
    %v1563 = vmul.f32 %v1557, %v180
    %v1564 = vmul.f32 %v1557, %v181
    %v1565 = vmul.f32 %v1557, %v182
    %v1566 = vadd.f32 %v1548, %v1558
    %v1567 = vadd.f32 %v1549, %v1559
    %v1568 = vadd.f32 %v1550, %v1560
    %v1569 = vadd.f32 %v1551, %v1561
    %v1570 = vadd.f32 %v1552, %v1562
    %v1571 = vadd.f32 %v1553, %v1563
    %v1572 = vadd.f32 %v1554, %v1564
    %v1573 = vadd.f32 %v1555, %v1565
    %s1574 = sld [smem:[#allocation13 + $0x16]]
    %v1575 = vstv %s1574
    %v1576 = vmul.f32 %v1575, %v202
    %v1577 = vmul.f32 %v1575, %v203
    %v1578 = vmul.f32 %v1575, %v204
    %v1579 = vmul.f32 %v1575, %v205
    %v1580 = vmul.f32 %v1575, %v206
    %v1581 = vmul.f32 %v1575, %v207
    %v1582 = vmul.f32 %v1575, %v208
    %v1583 = vmul.f32 %v1575, %v209
    %v1584 = vadd.f32 %v1566, %v1576
    %v1585 = vadd.f32 %v1567, %v1577
    %v1586 = vadd.f32 %v1568, %v1578
    %v1587 = vadd.f32 %v1569, %v1579
    %v1588 = vadd.f32 %v1570, %v1580
    %v1589 = vadd.f32 %v1571, %v1581
    %v1590 = vadd.f32 %v1572, %v1582
    %v1591 = vadd.f32 %v1573, %v1583
    %s1592 = sld [smem:[#allocation13 + $0x1f]]
    %v1593 = vstv %s1592
    %v1594 = vmul.f32 %v1593, %v229
    %v1595 = vmul.f32 %v1593, %v230
    %v1596 = vmul.f32 %v1593, %v231
    %v1597 = vmul.f32 %v1593, %v232
    %v1598 = vmul.f32 %v1593, %v233
    %v1599 = vmul.f32 %v1593, %v234
    %v1600 = vmul.f32 %v1593, %v235
    %v1601 = vmul.f32 %v1593, %v236
    %v1602 = vadd.f32 %v1584, %v1594
    %v1603 = vadd.f32 %v1585, %v1595
    %v1604 = vadd.f32 %v1586, %v1596
    %v1605 = vadd.f32 %v1587, %v1597
    %v1606 = vadd.f32 %v1588, %v1598
    %v1607 = vadd.f32 %v1589, %v1599
    %v1608 = vadd.f32 %v1590, %v1600
    %v1609 = vadd.f32 %v1591, %v1601
    %s1610 = sld [smem:[#allocation13 + $0x28]]
    %v1611 = vstv %s1610
    %v1612 = vmul.f32 %v1611, %v256
    %v1613 = vmul.f32 %v1611, %v257
    %v1614 = vmul.f32 %v1611, %v258
    %v1615 = vmul.f32 %v1611, %v259
    %v1616 = vmul.f32 %v1611, %v260
    %v1617 = vmul.f32 %v1611, %v261
    %v1618 = vmul.f32 %v1611, %v262
    %v1619 = vmul.f32 %v1611, %v263
    %v1620 = vadd.f32 %v1602, %v1612
    %v1621 = vadd.f32 %v1603, %v1613
    %v1622 = vadd.f32 %v1604, %v1614
    %v1623 = vadd.f32 %v1605, %v1615
    %v1624 = vadd.f32 %v1606, %v1616
    %v1625 = vadd.f32 %v1607, %v1617
    %v1626 = vadd.f32 %v1608, %v1618
    %v1627 = vadd.f32 %v1609, %v1619
    %s1628 = sld [smem:[#allocation13 + $0x31]]
    %v1629 = vstv %s1628
    %v1630 = vmul.f32 %v1629, %v283
    %v1631 = vmul.f32 %v1629, %v284
    %v1632 = vmul.f32 %v1629, %v285
    %v1633 = vmul.f32 %v1629, %v286
    %v1634 = vmul.f32 %v1629, %v287
    %v1635 = vmul.f32 %v1629, %v288
    %v1636 = vmul.f32 %v1629, %v289
    %v1637 = vmul.f32 %v1629, %v290
    %v1638 = vadd.f32 %v1620, %v1630
    %v1639 = vadd.f32 %v1621, %v1631
    %v1640 = vadd.f32 %v1622, %v1632
    %v1641 = vadd.f32 %v1623, %v1633
    %v1642 = vadd.f32 %v1624, %v1634
    %v1643 = vadd.f32 %v1625, %v1635
    %v1644 = vadd.f32 %v1626, %v1636
    %v1645 = vadd.f32 %v1627, %v1637
    %s1646 = sld [smem:[#allocation13 + $0x3a]]
    %v1647 = vstv %s1646
    %v1648 = vmul.f32 %v1647, %v310
    %v1649 = vmul.f32 %v1647, %v311
    %v1650 = vmul.f32 %v1647, %v312
    %v1651 = vmul.f32 %v1647, %v313
    %v1652 = vmul.f32 %v1647, %v314
    %v1653 = vmul.f32 %v1647, %v315
    %v1654 = vmul.f32 %v1647, %v316
    %v1655 = vmul.f32 %v1647, %v317
    %v1656 = vadd.f32 %v1638, %v1648
    %v1657 = vadd.f32 %v1639, %v1649
    %v1658 = vadd.f32 %v1640, %v1650
    %v1659 = vadd.f32 %v1641, %v1651
    %v1660 = vadd.f32 %v1642, %v1652
    %v1661 = vadd.f32 %v1643, %v1653
    %v1662 = vadd.f32 %v1644, %v1654
    %v1663 = vadd.f32 %v1645, %v1655
    %s1664 = sld [smem:[#allocation13 + $0x43]]
    %v1665 = vstv %s1664
    %v1666 = vmul.f32 %v1665, %v337
    %v1667 = vmul.f32 %v1665, %v338
    %v1668 = vmul.f32 %v1665, %v339
    %v1669 = vmul.f32 %v1665, %v340
    %v1670 = vmul.f32 %v1665, %v341
    %v1671 = vmul.f32 %v1665, %v342
    %v1672 = vmul.f32 %v1665, %v343
    %v1673 = vmul.f32 %v1665, %v344
    %v1674 = vadd.f32 %v1656, %v1666
    %v1675 = vadd.f32 %v1657, %v1667
    %v1676 = vadd.f32 %v1658, %v1668
    %v1677 = vadd.f32 %v1659, %v1669
    %v1678 = vadd.f32 %v1660, %v1670
    %v1679 = vadd.f32 %v1661, %v1671
    %v1680 = vadd.f32 %v1662, %v1672
    %v1681 = vadd.f32 %v1663, %v1673
    %s1682 = sld [smem:[#allocation13 + $0x4c]]
    %v1683 = vstv %s1682
    %v1684 = vmul.f32 %v1683, %v364
    %v1685 = vmul.f32 %v1683, %v365
    %v1686 = vmul.f32 %v1683, %v366
    %v1687 = vmul.f32 %v1683, %v367
    %v1688 = vmul.f32 %v1683, %v368
    %v1689 = vmul.f32 %v1683, %v369
    %v1690 = vmul.f32 %v1683, %v370
    %v1691 = vmul.f32 %v1683, %v371
    %v1692 = vadd.f32 %v1674, %v1684
    %v1693 = vadd.f32 %v1675, %v1685
    %v1694 = vadd.f32 %v1676, %v1686
    %v1695 = vadd.f32 %v1677, %v1687
    %v1696 = vadd.f32 %v1678, %v1688
    %v1697 = vadd.f32 %v1679, %v1689
    %v1698 = vadd.f32 %v1680, %v1690
    %v1699 = vadd.f32 %v1681, %v1691
    %s1700 = sld [smem:[#allocation13 + $0x55]]
    %v1701 = vstv %s1700
    %v1702 = vmul.f32 %v1701, %v391
    %v1703 = vmul.f32 %v1701, %v392
    %v1704 = vmul.f32 %v1701, %v393
    %v1705 = vmul.f32 %v1701, %v394
    %v1706 = vmul.f32 %v1701, %v395
    %v1707 = vmul.f32 %v1701, %v396
    %v1708 = vmul.f32 %v1701, %v397
    %v1709 = vmul.f32 %v1701, %v398
    %v1710 = vadd.f32 %v1692, %v1702
    %v1711 = vadd.f32 %v1693, %v1703
    %v1712 = vadd.f32 %v1694, %v1704
    %v1713 = vadd.f32 %v1695, %v1705
    %v1714 = vadd.f32 %v1696, %v1706
    %v1715 = vadd.f32 %v1697, %v1707
    %v1716 = vadd.f32 %v1698, %v1708
    %v1717 = vadd.f32 %v1699, %v1709
    %s1718 = sld [smem:[#allocation13 + $0x5e]]
    %v1719 = vstv %s1718
    %v1720 = vmul.f32 %v1719, %v418
    %v1721 = vmul.f32 %v1719, %v419
    %v1722 = vmul.f32 %v1719, %v420
    %v1723 = vmul.f32 %v1719, %v421
    %v1724 = vmul.f32 %v1719, %v422
    %v1725 = vmul.f32 %v1719, %v423
    %v1726 = vmul.f32 %v1719, %v424
    %v1727 = vmul.f32 %v1719, %v425
    %v1728 = vadd.f32 %v1710, %v1720
    %v1729 = vadd.f32 %v1711, %v1721
    %v1730 = vadd.f32 %v1712, %v1722
    %v1731 = vadd.f32 %v1713, %v1723
    %v1732 = vadd.f32 %v1714, %v1724
    %v1733 = vadd.f32 %v1715, %v1725
    %v1734 = vadd.f32 %v1716, %v1726
    %v1735 = vadd.f32 %v1717, %v1727
    %s1736 = sld [smem:[#allocation13 + $0x67]]
    %v1737 = vstv %s1736
    %v1738 = vmul.f32 %v1737, %v445
    %v1739 = vmul.f32 %v1737, %v446
    %v1740 = vmul.f32 %v1737, %v447
    %v1741 = vmul.f32 %v1737, %v448
    %v1742 = vmul.f32 %v1737, %v449
    %v1743 = vmul.f32 %v1737, %v450
    %v1744 = vmul.f32 %v1737, %v451
    %v1745 = vmul.f32 %v1737, %v452
    %v1746 = vadd.f32 %v1728, %v1738
    %v1747 = vadd.f32 %v1729, %v1739
    %v1748 = vadd.f32 %v1730, %v1740
    %v1749 = vadd.f32 %v1731, %v1741
    %v1750 = vadd.f32 %v1732, %v1742
    %v1751 = vadd.f32 %v1733, %v1743
    %v1752 = vadd.f32 %v1734, %v1744
    %v1753 = vadd.f32 %v1735, %v1745
    %s1754 = sld [smem:[#allocation13 + $0x70]]
    %v1755 = vstv %s1754
    %v1756 = vmul.f32 %v1755, %v472
    %v1757 = vmul.f32 %v1755, %v473
    %v1758 = vmul.f32 %v1755, %v474
    %v1759 = vmul.f32 %v1755, %v475
    %v1760 = vmul.f32 %v1755, %v476
    %v1761 = vmul.f32 %v1755, %v477
    %v1762 = vmul.f32 %v1755, %v478
    %v1763 = vmul.f32 %v1755, %v479
    %v1764 = vadd.f32 %v1746, %v1756
    %v1765 = vadd.f32 %v1747, %v1757
    %v1766 = vadd.f32 %v1748, %v1758
    %v1767 = vadd.f32 %v1749, %v1759
    %v1768 = vadd.f32 %v1750, %v1760
    %v1769 = vadd.f32 %v1751, %v1761
    %v1770 = vadd.f32 %v1752, %v1762
    %v1771 = vadd.f32 %v1753, %v1763
    %s1772 = sld [smem:[#allocation13 + $0x79]]
    %v1773 = vstv %s1772
    %v1774 = vmul.f32 %v1773, %v499
    %v1775 = vmul.f32 %v1773, %v500
    %v1776 = vmul.f32 %v1773, %v501
    %v1777 = vmul.f32 %v1773, %v502
    %v1778 = vmul.f32 %v1773, %v503
    %v1779 = vmul.f32 %v1773, %v504
    %v1780 = vmul.f32 %v1773, %v505
    %v1781 = vmul.f32 %v1773, %v506
    %v1782 = vadd.f32 %v1764, %v1774
    %v1783 = vadd.f32 %v1765, %v1775
    %v1784 = vadd.f32 %v1766, %v1776
    %v1785 = vadd.f32 %v1767, %v1777
    %v1786 = vadd.f32 %v1768, %v1778
    %v1787 = vadd.f32 %v1769, %v1779
    %v1788 = vadd.f32 %v1770, %v1780
    %v1789 = vadd.f32 %v1771, %v1781
    %s1790 = sld [smem:[#allocation13 + $0x82]]
    %v1791 = vstv %s1790
    %v1792 = vmul.f32 %v1791, %v526
    %v1793 = vmul.f32 %v1791, %v527
    %v1794 = vmul.f32 %v1791, %v528
    %v1795 = vmul.f32 %v1791, %v529
    %v1796 = vmul.f32 %v1791, %v530
    %v1797 = vmul.f32 %v1791, %v531
    %v1798 = vmul.f32 %v1791, %v532
    %v1799 = vmul.f32 %v1791, %v533
    %v1800 = vadd.f32 %v1782, %v1792
    %v1801 = vadd.f32 %v1783, %v1793
    %v1802 = vadd.f32 %v1784, %v1794
    %v1803 = vadd.f32 %v1785, %v1795
    %v1804 = vadd.f32 %v1786, %v1796
    %v1805 = vadd.f32 %v1787, %v1797
    %v1806 = vadd.f32 %v1788, %v1798
    %v1807 = vadd.f32 %v1789, %v1799
    %s1808 = sld [smem:[#allocation13 + $0x8b]]
    %v1809 = vstv %s1808
    %v1810 = vmul.f32 %v1809, %v553
    %v1811 = vmul.f32 %v1809, %v554
    %v1812 = vmul.f32 %v1809, %v555
    %v1813 = vmul.f32 %v1809, %v556
    %v1814 = vmul.f32 %v1809, %v557
    %v1815 = vmul.f32 %v1809, %v558
    %v1816 = vmul.f32 %v1809, %v559
    %v1817 = vmul.f32 %v1809, %v560
    %v1818 = vadd.f32 %v1800, %v1810
    %v1819 = vadd.f32 %v1801, %v1811
    %v1820 = vadd.f32 %v1802, %v1812
    %v1821 = vadd.f32 %v1803, %v1813
    %v1822 = vadd.f32 %v1804, %v1814
    %v1823 = vadd.f32 %v1805, %v1815
    %v1824 = vadd.f32 %v1806, %v1816
    %v1825 = vadd.f32 %v1807, %v1817
    %v1834 = vrot.slane %v1818, 1
    %v1835 = vrot.slane %v1819, 1
    %v1836 = vsel %vm1514, %v1834, %v1835
    %v1837 = vrot.slane %v1820, 1
    %v1838 = vsel %vm1514, %v1835, %v1837
    %v1839 = vrot.slane %v1821, 1
    %v1840 = vsel %vm1514, %v1837, %v1839
    %v1841 = vrot.slane %v1822, 1
    %v1842 = vsel %vm1514, %v1839, %v1841
    %v1843 = vrot.slane %v1823, 1
    %v1844 = vsel %vm1514, %v1841, %v1843
    %v1845 = vrot.slane %v1824, 1
    %v1846 = vsel %vm1514, %v1843, %v1845
    %v1847 = vrot.slane %v1825, 1
    %v1848 = vsel %vm1514, %v1845, %v1847
    %1849 = vrot.lane.b32.xlu0 %v1836, 127
    %v1850 = vpop.permute.xlu0 %1849
    %1851 = vrot.lane.b32.xlu0 %v1838, 127
    %v1852 = vpop.permute.xlu0 %1851
    %1853 = vrot.lane.b32.xlu0 %v1840, 127
    %v1854 = vpop.permute.xlu0 %1853
    %1855 = vrot.lane.b32.xlu0 %v1842, 127
    %v1856 = vpop.permute.xlu0 %1855
    %1857 = vrot.lane.b32.xlu0 %v1844, 127
    %v1858 = vpop.permute.xlu0 %1857
    %1859 = vrot.lane.b32.xlu0 %v1846, 127
    %v1860 = vpop.permute.xlu0 %1859
    %1861 = vrot.lane.b32.xlu0 %v1848, 127
    %v1862 = vpop.permute.xlu0 %1861
    %1863 = vrot.lane.b32.xlu0 %v1847, 127
    %v1864 = vpop.permute.xlu0 %1863
    %v1873 = vadd.f32 %v1538, %v1850
    %v1874 = vadd.f32 %v1539, %v1852
    %v1875 = vadd.f32 %v1540, %v1854
    %v1876 = vadd.f32 %v1541, %v1856
    %v1877 = vadd.f32 %v1542, %v1858
    %v1878 = vadd.f32 %v1543, %v1860
    %v1879 = vadd.f32 %v1544, %v1862
    %v1880 = vadd.f32 %v1545, %v1864
    %s1881 = sld [smem:[#allocation13 + $0x5]]
    %v1882 = vstv %s1881
    %v1883 = vmul.f32 %v1882, %v156
    %v1884 = vmul.f32 %v1882, %v157
    %v1885 = vmul.f32 %v1882, %v158
    %v1886 = vmul.f32 %v1882, %v159
    %v1887 = vmul.f32 %v1882, %v160
    %v1888 = vmul.f32 %v1882, %v161
    %v1889 = vmul.f32 %v1882, %v162
    %v1890 = vmul.f32 %v1882, %v163
    %s1891 = sld [smem:[#allocation13 + $0xe]]
    %v1892 = vstv %s1891
    %v1893 = vmul.f32 %v1892, %v175
    %v1894 = vmul.f32 %v1892, %v176
    %v1895 = vmul.f32 %v1892, %v177
    %v1896 = vmul.f32 %v1892, %v178
    %v1897 = vmul.f32 %v1892, %v179
    %v1898 = vmul.f32 %v1892, %v180
    %v1899 = vmul.f32 %v1892, %v181
    %v1900 = vmul.f32 %v1892, %v182
    %v1901 = vadd.f32 %v1883, %v1893
    %v1902 = vadd.f32 %v1884, %v1894
    %v1903 = vadd.f32 %v1885, %v1895
    %v1904 = vadd.f32 %v1886, %v1896
    %v1905 = vadd.f32 %v1887, %v1897
    %v1906 = vadd.f32 %v1888, %v1898
    %v1907 = vadd.f32 %v1889, %v1899
    %v1908 = vadd.f32 %v1890, %v1900
    %s1909 = sld [smem:[#allocation13 + $0x17]]
    %v1910 = vstv %s1909
    %v1911 = vmul.f32 %v1910, %v202
    %v1912 = vmul.f32 %v1910, %v203
    %v1913 = vmul.f32 %v1910, %v204
    %v1914 = vmul.f32 %v1910, %v205
    %v1915 = vmul.f32 %v1910, %v206
    %v1916 = vmul.f32 %v1910, %v207
    %v1917 = vmul.f32 %v1910, %v208
    %v1918 = vmul.f32 %v1910, %v209
    %v1919 = vadd.f32 %v1901, %v1911
    %v1920 = vadd.f32 %v1902, %v1912
    %v1921 = vadd.f32 %v1903, %v1913
    %v1922 = vadd.f32 %v1904, %v1914
    %v1923 = vadd.f32 %v1905, %v1915
    %v1924 = vadd.f32 %v1906, %v1916
    %v1925 = vadd.f32 %v1907, %v1917
    %v1926 = vadd.f32 %v1908, %v1918
    %s1927 = sld [smem:[#allocation13 + $0x20]]
    %v1928 = vstv %s1927
    %v1929 = vmul.f32 %v1928, %v229
    %v1930 = vmul.f32 %v1928, %v230
    %v1931 = vmul.f32 %v1928, %v231
    %v1932 = vmul.f32 %v1928, %v232
    %v1933 = vmul.f32 %v1928, %v233
    %v1934 = vmul.f32 %v1928, %v234
    %v1935 = vmul.f32 %v1928, %v235
    %v1936 = vmul.f32 %v1928, %v236
    %v1937 = vadd.f32 %v1919, %v1929
    %v1938 = vadd.f32 %v1920, %v1930
    %v1939 = vadd.f32 %v1921, %v1931
    %v1940 = vadd.f32 %v1922, %v1932
    %v1941 = vadd.f32 %v1923, %v1933
    %v1942 = vadd.f32 %v1924, %v1934
    %v1943 = vadd.f32 %v1925, %v1935
    %v1944 = vadd.f32 %v1926, %v1936
    %s1945 = sld [smem:[#allocation13 + $0x29]]
    %v1946 = vstv %s1945
    %v1947 = vmul.f32 %v1946, %v256
    %v1948 = vmul.f32 %v1946, %v257
    %v1949 = vmul.f32 %v1946, %v258
    %v1950 = vmul.f32 %v1946, %v259
    %v1951 = vmul.f32 %v1946, %v260
    %v1952 = vmul.f32 %v1946, %v261
    %v1953 = vmul.f32 %v1946, %v262
    %v1954 = vmul.f32 %v1946, %v263
    %v1955 = vadd.f32 %v1937, %v1947
    %v1956 = vadd.f32 %v1938, %v1948
    %v1957 = vadd.f32 %v1939, %v1949
    %v1958 = vadd.f32 %v1940, %v1950
    %v1959 = vadd.f32 %v1941, %v1951
    %v1960 = vadd.f32 %v1942, %v1952
    %v1961 = vadd.f32 %v1943, %v1953
    %v1962 = vadd.f32 %v1944, %v1954
    %s1963 = sld [smem:[#allocation13 + $0x32]]
    %v1964 = vstv %s1963
    %v1965 = vmul.f32 %v1964, %v283
    %v1966 = vmul.f32 %v1964, %v284
    %v1967 = vmul.f32 %v1964, %v285
    %v1968 = vmul.f32 %v1964, %v286
    %v1969 = vmul.f32 %v1964, %v287
    %v1970 = vmul.f32 %v1964, %v288
    %v1971 = vmul.f32 %v1964, %v289
    %v1972 = vmul.f32 %v1964, %v290
    %v1973 = vadd.f32 %v1955, %v1965
    %v1974 = vadd.f32 %v1956, %v1966
    %v1975 = vadd.f32 %v1957, %v1967
    %v1976 = vadd.f32 %v1958, %v1968
    %v1977 = vadd.f32 %v1959, %v1969
    %v1978 = vadd.f32 %v1960, %v1970
    %v1979 = vadd.f32 %v1961, %v1971
    %v1980 = vadd.f32 %v1962, %v1972
    %s1981 = sld [smem:[#allocation13 + $0x3b]]
    %v1982 = vstv %s1981
    %v1983 = vmul.f32 %v1982, %v310
    %v1984 = vmul.f32 %v1982, %v311
    %v1985 = vmul.f32 %v1982, %v312
    %v1986 = vmul.f32 %v1982, %v313
    %v1987 = vmul.f32 %v1982, %v314
    %v1988 = vmul.f32 %v1982, %v315
    %v1989 = vmul.f32 %v1982, %v316
    %v1990 = vmul.f32 %v1982, %v317
    %v1991 = vadd.f32 %v1973, %v1983
    %v1992 = vadd.f32 %v1974, %v1984
    %v1993 = vadd.f32 %v1975, %v1985
    %v1994 = vadd.f32 %v1976, %v1986
    %v1995 = vadd.f32 %v1977, %v1987
    %v1996 = vadd.f32 %v1978, %v1988
    %v1997 = vadd.f32 %v1979, %v1989
    %v1998 = vadd.f32 %v1980, %v1990
    %s1999 = sld [smem:[#allocation13 + $0x44]]
    %v2000 = vstv %s1999
    %v2001 = vmul.f32 %v2000, %v337
    %v2002 = vmul.f32 %v2000, %v338
    %v2003 = vmul.f32 %v2000, %v339
    %v2004 = vmul.f32 %v2000, %v340
    %v2005 = vmul.f32 %v2000, %v341
    %v2006 = vmul.f32 %v2000, %v342
    %v2007 = vmul.f32 %v2000, %v343
    %v2008 = vmul.f32 %v2000, %v344
    %v2009 = vadd.f32 %v1991, %v2001
    %v2010 = vadd.f32 %v1992, %v2002
    %v2011 = vadd.f32 %v1993, %v2003
    %v2012 = vadd.f32 %v1994, %v2004
    %v2013 = vadd.f32 %v1995, %v2005
    %v2014 = vadd.f32 %v1996, %v2006
    %v2015 = vadd.f32 %v1997, %v2007
    %v2016 = vadd.f32 %v1998, %v2008
    %s2017 = sld [smem:[#allocation13 + $0x4d]]
    %v2018 = vstv %s2017
    %v2019 = vmul.f32 %v2018, %v364
    %v2020 = vmul.f32 %v2018, %v365
    %v2021 = vmul.f32 %v2018, %v366
    %v2022 = vmul.f32 %v2018, %v367
    %v2023 = vmul.f32 %v2018, %v368
    %v2024 = vmul.f32 %v2018, %v369
    %v2025 = vmul.f32 %v2018, %v370
    %v2026 = vmul.f32 %v2018, %v371
    %v2027 = vadd.f32 %v2009, %v2019
    %v2028 = vadd.f32 %v2010, %v2020
    %v2029 = vadd.f32 %v2011, %v2021
    %v2030 = vadd.f32 %v2012, %v2022
    %v2031 = vadd.f32 %v2013, %v2023
    %v2032 = vadd.f32 %v2014, %v2024
    %v2033 = vadd.f32 %v2015, %v2025
    %v2034 = vadd.f32 %v2016, %v2026
    %s2035 = sld [smem:[#allocation13 + $0x56]]
    %v2036 = vstv %s2035
    %v2037 = vmul.f32 %v2036, %v391
    %v2038 = vmul.f32 %v2036, %v392
    %v2039 = vmul.f32 %v2036, %v393
    %v2040 = vmul.f32 %v2036, %v394
    %v2041 = vmul.f32 %v2036, %v395
    %v2042 = vmul.f32 %v2036, %v396
    %v2043 = vmul.f32 %v2036, %v397
    %v2044 = vmul.f32 %v2036, %v398
    %v2045 = vadd.f32 %v2027, %v2037
    %v2046 = vadd.f32 %v2028, %v2038
    %v2047 = vadd.f32 %v2029, %v2039
    %v2048 = vadd.f32 %v2030, %v2040
    %v2049 = vadd.f32 %v2031, %v2041
    %v2050 = vadd.f32 %v2032, %v2042
    %v2051 = vadd.f32 %v2033, %v2043
    %v2052 = vadd.f32 %v2034, %v2044
    %s2053 = sld [smem:[#allocation13 + $0x5f]]
    %v2054 = vstv %s2053
    %v2055 = vmul.f32 %v2054, %v418
    %v2056 = vmul.f32 %v2054, %v419
    %v2057 = vmul.f32 %v2054, %v420
    %v2058 = vmul.f32 %v2054, %v421
    %v2059 = vmul.f32 %v2054, %v422
    %v2060 = vmul.f32 %v2054, %v423
    %v2061 = vmul.f32 %v2054, %v424
    %v2062 = vmul.f32 %v2054, %v425
    %v2063 = vadd.f32 %v2045, %v2055
    %v2064 = vadd.f32 %v2046, %v2056
    %v2065 = vadd.f32 %v2047, %v2057
    %v2066 = vadd.f32 %v2048, %v2058
    %v2067 = vadd.f32 %v2049, %v2059
    %v2068 = vadd.f32 %v2050, %v2060
    %v2069 = vadd.f32 %v2051, %v2061
    %v2070 = vadd.f32 %v2052, %v2062
    %s2071 = sld [smem:[#allocation13 + $0x68]]
    %v2072 = vstv %s2071
    %v2073 = vmul.f32 %v2072, %v445
    %v2074 = vmul.f32 %v2072, %v446
    %v2075 = vmul.f32 %v2072, %v447
    %v2076 = vmul.f32 %v2072, %v448
    %v2077 = vmul.f32 %v2072, %v449
    %v2078 = vmul.f32 %v2072, %v450
    %v2079 = vmul.f32 %v2072, %v451
    %v2080 = vmul.f32 %v2072, %v452
    %v2081 = vadd.f32 %v2063, %v2073
    %v2082 = vadd.f32 %v2064, %v2074
    %v2083 = vadd.f32 %v2065, %v2075
    %v2084 = vadd.f32 %v2066, %v2076
    %v2085 = vadd.f32 %v2067, %v2077
    %v2086 = vadd.f32 %v2068, %v2078
    %v2087 = vadd.f32 %v2069, %v2079
    %v2088 = vadd.f32 %v2070, %v2080
    %s2089 = sld [smem:[#allocation13 + $0x71]]
    %v2090 = vstv %s2089
    %v2091 = vmul.f32 %v2090, %v472
    %v2092 = vmul.f32 %v2090, %v473
    %v2093 = vmul.f32 %v2090, %v474
    %v2094 = vmul.f32 %v2090, %v475
    %v2095 = vmul.f32 %v2090, %v476
    %v2096 = vmul.f32 %v2090, %v477
    %v2097 = vmul.f32 %v2090, %v478
    %v2098 = vmul.f32 %v2090, %v479
    %v2099 = vadd.f32 %v2081, %v2091
    %v2100 = vadd.f32 %v2082, %v2092
    %v2101 = vadd.f32 %v2083, %v2093
    %v2102 = vadd.f32 %v2084, %v2094
    %v2103 = vadd.f32 %v2085, %v2095
    %v2104 = vadd.f32 %v2086, %v2096
    %v2105 = vadd.f32 %v2087, %v2097
    %v2106 = vadd.f32 %v2088, %v2098
    %s2107 = sld [smem:[#allocation13 + $0x7a]]
    %v2108 = vstv %s2107
    %v2109 = vmul.f32 %v2108, %v499
    %v2110 = vmul.f32 %v2108, %v500
    %v2111 = vmul.f32 %v2108, %v501
    %v2112 = vmul.f32 %v2108, %v502
    %v2113 = vmul.f32 %v2108, %v503
    %v2114 = vmul.f32 %v2108, %v504
    %v2115 = vmul.f32 %v2108, %v505
    %v2116 = vmul.f32 %v2108, %v506
    %v2117 = vadd.f32 %v2099, %v2109
    %v2118 = vadd.f32 %v2100, %v2110
    %v2119 = vadd.f32 %v2101, %v2111
    %v2120 = vadd.f32 %v2102, %v2112
    %v2121 = vadd.f32 %v2103, %v2113
    %v2122 = vadd.f32 %v2104, %v2114
    %v2123 = vadd.f32 %v2105, %v2115
    %v2124 = vadd.f32 %v2106, %v2116
    %s2125 = sld [smem:[#allocation13 + $0x83]]
    %v2126 = vstv %s2125
    %v2127 = vmul.f32 %v2126, %v526
    %v2128 = vmul.f32 %v2126, %v527
    %v2129 = vmul.f32 %v2126, %v528
    %v2130 = vmul.f32 %v2126, %v529
    %v2131 = vmul.f32 %v2126, %v530
    %v2132 = vmul.f32 %v2126, %v531
    %v2133 = vmul.f32 %v2126, %v532
    %v2134 = vmul.f32 %v2126, %v533
    %v2135 = vadd.f32 %v2117, %v2127
    %v2136 = vadd.f32 %v2118, %v2128
    %v2137 = vadd.f32 %v2119, %v2129
    %v2138 = vadd.f32 %v2120, %v2130
    %v2139 = vadd.f32 %v2121, %v2131
    %v2140 = vadd.f32 %v2122, %v2132
    %v2141 = vadd.f32 %v2123, %v2133
    %v2142 = vadd.f32 %v2124, %v2134
    %s2143 = sld [smem:[#allocation13 + $0x8c]]
    %v2144 = vstv %s2143
    %v2145 = vmul.f32 %v2144, %v553
    %v2146 = vmul.f32 %v2144, %v554
    %v2147 = vmul.f32 %v2144, %v555
    %v2148 = vmul.f32 %v2144, %v556
    %v2149 = vmul.f32 %v2144, %v557
    %v2150 = vmul.f32 %v2144, %v558
    %v2151 = vmul.f32 %v2144, %v559
    %v2152 = vmul.f32 %v2144, %v560
    %v2153 = vadd.f32 %v2135, %v2145
    %v2154 = vadd.f32 %v2136, %v2146
    %v2155 = vadd.f32 %v2137, %v2147
    %v2156 = vadd.f32 %v2138, %v2148
    %v2157 = vadd.f32 %v2139, %v2149
    %v2158 = vadd.f32 %v2140, %v2150
    %v2159 = vadd.f32 %v2141, %v2151
    %v2160 = vadd.f32 %v2142, %v2152
    %v2169 = vrot.slane %v2153, 1
    %v2170 = vrot.slane %v2154, 1
    %v2171 = vsel %vm1514, %v2169, %v2170
    %v2172 = vrot.slane %v2155, 1
    %v2173 = vsel %vm1514, %v2170, %v2172
    %v2174 = vrot.slane %v2156, 1
    %v2175 = vsel %vm1514, %v2172, %v2174
    %v2176 = vrot.slane %v2157, 1
    %v2177 = vsel %vm1514, %v2174, %v2176
    %v2178 = vrot.slane %v2158, 1
    %v2179 = vsel %vm1514, %v2176, %v2178
    %v2180 = vrot.slane %v2159, 1
    %v2181 = vsel %vm1514, %v2178, %v2180
    %v2182 = vrot.slane %v2160, 1
    %v2183 = vsel %vm1514, %v2180, %v2182
    %2184 = vrot.lane.b32.xlu0 %v2171, 126
    %v2185 = vpop.permute.xlu0 %2184
    %2186 = vrot.lane.b32.xlu0 %v2173, 126
    %v2187 = vpop.permute.xlu0 %2186
    %2188 = vrot.lane.b32.xlu0 %v2175, 126
    %v2189 = vpop.permute.xlu0 %2188
    %2190 = vrot.lane.b32.xlu0 %v2177, 126
    %v2191 = vpop.permute.xlu0 %2190
    %2192 = vrot.lane.b32.xlu0 %v2179, 126
    %v2193 = vpop.permute.xlu0 %2192
    %2194 = vrot.lane.b32.xlu0 %v2181, 126
    %v2195 = vpop.permute.xlu0 %2194
    %2196 = vrot.lane.b32.xlu0 %v2183, 126
    %v2197 = vpop.permute.xlu0 %2196
    %2198 = vrot.lane.b32.xlu0 %v2182, 126
    %v2199 = vpop.permute.xlu0 %2198
    %v2208 = vadd.f32 %v1873, %v2185
    %v2209 = vadd.f32 %v1874, %v2187
    %v2210 = vadd.f32 %v1875, %v2189
    %v2211 = vadd.f32 %v1876, %v2191
    %v2212 = vadd.f32 %v1877, %v2193
    %v2213 = vadd.f32 %v1878, %v2195
    %v2214 = vadd.f32 %v1879, %v2197
    %v2215 = vadd.f32 %v1880, %v2199
    %s2216 = sld [smem:[#allocation13 + $0x6]]
    %v2217 = vstv %s2216
    %v2218 = vmul.f32 %v2217, %v156
    %v2219 = vmul.f32 %v2217, %v157
    %v2220 = vmul.f32 %v2217, %v158
    %v2221 = vmul.f32 %v2217, %v159
    %v2222 = vmul.f32 %v2217, %v160
    %v2223 = vmul.f32 %v2217, %v161
    %v2224 = vmul.f32 %v2217, %v162
    %v2225 = vmul.f32 %v2217, %v163
    %s2226 = sld [smem:[#allocation13 + $0xf]]
    %v2227 = vstv %s2226
    %v2228 = vmul.f32 %v2227, %v175
    %v2229 = vmul.f32 %v2227, %v176
    %v2230 = vmul.f32 %v2227, %v177
    %v2231 = vmul.f32 %v2227, %v178
    %v2232 = vmul.f32 %v2227, %v179
    %v2233 = vmul.f32 %v2227, %v180
    %v2234 = vmul.f32 %v2227, %v181
    %v2235 = vmul.f32 %v2227, %v182
    %v2236 = vadd.f32 %v2218, %v2228
    %v2237 = vadd.f32 %v2219, %v2229
    %v2238 = vadd.f32 %v2220, %v2230
    %v2239 = vadd.f32 %v2221, %v2231
    %v2240 = vadd.f32 %v2222, %v2232
    %v2241 = vadd.f32 %v2223, %v2233
    %v2242 = vadd.f32 %v2224, %v2234
    %v2243 = vadd.f32 %v2225, %v2235
    %s2244 = sld [smem:[#allocation13 + $0x18]]
    %v2245 = vstv %s2244
    %v2246 = vmul.f32 %v2245, %v202
    %v2247 = vmul.f32 %v2245, %v203
    %v2248 = vmul.f32 %v2245, %v204
    %v2249 = vmul.f32 %v2245, %v205
    %v2250 = vmul.f32 %v2245, %v206
    %v2251 = vmul.f32 %v2245, %v207
    %v2252 = vmul.f32 %v2245, %v208
    %v2253 = vmul.f32 %v2245, %v209
    %v2254 = vadd.f32 %v2236, %v2246
    %v2255 = vadd.f32 %v2237, %v2247
    %v2256 = vadd.f32 %v2238, %v2248
    %v2257 = vadd.f32 %v2239, %v2249
    %v2258 = vadd.f32 %v2240, %v2250
    %v2259 = vadd.f32 %v2241, %v2251
    %v2260 = vadd.f32 %v2242, %v2252
    %v2261 = vadd.f32 %v2243, %v2253
    %s2262 = sld [smem:[#allocation13 + $0x21]]
    %v2263 = vstv %s2262
    %v2264 = vmul.f32 %v2263, %v229
    %v2265 = vmul.f32 %v2263, %v230
    %v2266 = vmul.f32 %v2263, %v231
    %v2267 = vmul.f32 %v2263, %v232
    %v2268 = vmul.f32 %v2263, %v233
    %v2269 = vmul.f32 %v2263, %v234
    %v2270 = vmul.f32 %v2263, %v235
    %v2271 = vmul.f32 %v2263, %v236
    %v2272 = vadd.f32 %v2254, %v2264
    %v2273 = vadd.f32 %v2255, %v2265
    %v2274 = vadd.f32 %v2256, %v2266
    %v2275 = vadd.f32 %v2257, %v2267
    %v2276 = vadd.f32 %v2258, %v2268
    %v2277 = vadd.f32 %v2259, %v2269
    %v2278 = vadd.f32 %v2260, %v2270
    %v2279 = vadd.f32 %v2261, %v2271
    %s2280 = sld [smem:[#allocation13 + $0x2a]]
    %v2281 = vstv %s2280
    %v2282 = vmul.f32 %v2281, %v256
    %v2283 = vmul.f32 %v2281, %v257
    %v2284 = vmul.f32 %v2281, %v258
    %v2285 = vmul.f32 %v2281, %v259
    %v2286 = vmul.f32 %v2281, %v260
    %v2287 = vmul.f32 %v2281, %v261
    %v2288 = vmul.f32 %v2281, %v262
    %v2289 = vmul.f32 %v2281, %v263
    %v2290 = vadd.f32 %v2272, %v2282
    %v2291 = vadd.f32 %v2273, %v2283
    %v2292 = vadd.f32 %v2274, %v2284
    %v2293 = vadd.f32 %v2275, %v2285
    %v2294 = vadd.f32 %v2276, %v2286
    %v2295 = vadd.f32 %v2277, %v2287
    %v2296 = vadd.f32 %v2278, %v2288
    %v2297 = vadd.f32 %v2279, %v2289
    %s2298 = sld [smem:[#allocation13 + $0x33]]
    %v2299 = vstv %s2298
    %v2300 = vmul.f32 %v2299, %v283
    %v2301 = vmul.f32 %v2299, %v284
    %v2302 = vmul.f32 %v2299, %v285
    %v2303 = vmul.f32 %v2299, %v286
    %v2304 = vmul.f32 %v2299, %v287
    %v2305 = vmul.f32 %v2299, %v288
    %v2306 = vmul.f32 %v2299, %v289
    %v2307 = vmul.f32 %v2299, %v290
    %v2308 = vadd.f32 %v2290, %v2300
    %v2309 = vadd.f32 %v2291, %v2301
    %v2310 = vadd.f32 %v2292, %v2302
    %v2311 = vadd.f32 %v2293, %v2303
    %v2312 = vadd.f32 %v2294, %v2304
    %v2313 = vadd.f32 %v2295, %v2305
    %v2314 = vadd.f32 %v2296, %v2306
    %v2315 = vadd.f32 %v2297, %v2307
    %s2316 = sld [smem:[#allocation13 + $0x3c]]
    %v2317 = vstv %s2316
    %v2318 = vmul.f32 %v2317, %v310
    %v2319 = vmul.f32 %v2317, %v311
    %v2320 = vmul.f32 %v2317, %v312
    %v2321 = vmul.f32 %v2317, %v313
    %v2322 = vmul.f32 %v2317, %v314
    %v2323 = vmul.f32 %v2317, %v315
    %v2324 = vmul.f32 %v2317, %v316
    %v2325 = vmul.f32 %v2317, %v317
    %v2326 = vadd.f32 %v2308, %v2318
    %v2327 = vadd.f32 %v2309, %v2319
    %v2328 = vadd.f32 %v2310, %v2320
    %v2329 = vadd.f32 %v2311, %v2321
    %v2330 = vadd.f32 %v2312, %v2322
    %v2331 = vadd.f32 %v2313, %v2323
    %v2332 = vadd.f32 %v2314, %v2324
    %v2333 = vadd.f32 %v2315, %v2325
    %s2334 = sld [smem:[#allocation13 + $0x45]]
    %v2335 = vstv %s2334
    %v2336 = vmul.f32 %v2335, %v337
    %v2337 = vmul.f32 %v2335, %v338
    %v2338 = vmul.f32 %v2335, %v339
    %v2339 = vmul.f32 %v2335, %v340
    %v2340 = vmul.f32 %v2335, %v341
    %v2341 = vmul.f32 %v2335, %v342
    %v2342 = vmul.f32 %v2335, %v343
    %v2343 = vmul.f32 %v2335, %v344
    %v2344 = vadd.f32 %v2326, %v2336
    %v2345 = vadd.f32 %v2327, %v2337
    %v2346 = vadd.f32 %v2328, %v2338
    %v2347 = vadd.f32 %v2329, %v2339
    %v2348 = vadd.f32 %v2330, %v2340
    %v2349 = vadd.f32 %v2331, %v2341
    %v2350 = vadd.f32 %v2332, %v2342
    %v2351 = vadd.f32 %v2333, %v2343
    %s2352 = sld [smem:[#allocation13 + $0x4e]]
    %v2353 = vstv %s2352
    %v2354 = vmul.f32 %v2353, %v364
    %v2355 = vmul.f32 %v2353, %v365
    %v2356 = vmul.f32 %v2353, %v366
    %v2357 = vmul.f32 %v2353, %v367
    %v2358 = vmul.f32 %v2353, %v368
    %v2359 = vmul.f32 %v2353, %v369
    %v2360 = vmul.f32 %v2353, %v370
    %v2361 = vmul.f32 %v2353, %v371
    %v2362 = vadd.f32 %v2344, %v2354
    %v2363 = vadd.f32 %v2345, %v2355
    %v2364 = vadd.f32 %v2346, %v2356
    %v2365 = vadd.f32 %v2347, %v2357
    %v2366 = vadd.f32 %v2348, %v2358
    %v2367 = vadd.f32 %v2349, %v2359
    %v2368 = vadd.f32 %v2350, %v2360
    %v2369 = vadd.f32 %v2351, %v2361
    %s2370 = sld [smem:[#allocation13 + $0x57]]
    %v2371 = vstv %s2370
    %v2372 = vmul.f32 %v2371, %v391
    %v2373 = vmul.f32 %v2371, %v392
    %v2374 = vmul.f32 %v2371, %v393
    %v2375 = vmul.f32 %v2371, %v394
    %v2376 = vmul.f32 %v2371, %v395
    %v2377 = vmul.f32 %v2371, %v396
    %v2378 = vmul.f32 %v2371, %v397
    %v2379 = vmul.f32 %v2371, %v398
    %v2380 = vadd.f32 %v2362, %v2372
    %v2381 = vadd.f32 %v2363, %v2373
    %v2382 = vadd.f32 %v2364, %v2374
    %v2383 = vadd.f32 %v2365, %v2375
    %v2384 = vadd.f32 %v2366, %v2376
    %v2385 = vadd.f32 %v2367, %v2377
    %v2386 = vadd.f32 %v2368, %v2378
    %v2387 = vadd.f32 %v2369, %v2379
    %s2388 = sld [smem:[#allocation13 + $0x60]]
    %v2389 = vstv %s2388
    %v2390 = vmul.f32 %v2389, %v418
    %v2391 = vmul.f32 %v2389, %v419
    %v2392 = vmul.f32 %v2389, %v420
    %v2393 = vmul.f32 %v2389, %v421
    %v2394 = vmul.f32 %v2389, %v422
    %v2395 = vmul.f32 %v2389, %v423
    %v2396 = vmul.f32 %v2389, %v424
    %v2397 = vmul.f32 %v2389, %v425
    %v2398 = vadd.f32 %v2380, %v2390
    %v2399 = vadd.f32 %v2381, %v2391
    %v2400 = vadd.f32 %v2382, %v2392
    %v2401 = vadd.f32 %v2383, %v2393
    %v2402 = vadd.f32 %v2384, %v2394
    %v2403 = vadd.f32 %v2385, %v2395
    %v2404 = vadd.f32 %v2386, %v2396
    %v2405 = vadd.f32 %v2387, %v2397
    %s2406 = sld [smem:[#allocation13 + $0x69]]
    %v2407 = vstv %s2406
    %v2408 = vmul.f32 %v2407, %v445
    %v2409 = vmul.f32 %v2407, %v446
    %v2410 = vmul.f32 %v2407, %v447
    %v2411 = vmul.f32 %v2407, %v448
    %v2412 = vmul.f32 %v2407, %v449
    %v2413 = vmul.f32 %v2407, %v450
    %v2414 = vmul.f32 %v2407, %v451
    %v2415 = vmul.f32 %v2407, %v452
    %v2416 = vadd.f32 %v2398, %v2408
    %v2417 = vadd.f32 %v2399, %v2409
    %v2418 = vadd.f32 %v2400, %v2410
    %v2419 = vadd.f32 %v2401, %v2411
    %v2420 = vadd.f32 %v2402, %v2412
    %v2421 = vadd.f32 %v2403, %v2413
    %v2422 = vadd.f32 %v2404, %v2414
    %v2423 = vadd.f32 %v2405, %v2415
    %s2424 = sld [smem:[#allocation13 + $0x72]]
    %v2425 = vstv %s2424
    %v2426 = vmul.f32 %v2425, %v472
    %v2427 = vmul.f32 %v2425, %v473
    %v2428 = vmul.f32 %v2425, %v474
    %v2429 = vmul.f32 %v2425, %v475
    %v2430 = vmul.f32 %v2425, %v476
    %v2431 = vmul.f32 %v2425, %v477
    %v2432 = vmul.f32 %v2425, %v478
    %v2433 = vmul.f32 %v2425, %v479
    %v2434 = vadd.f32 %v2416, %v2426
    %v2435 = vadd.f32 %v2417, %v2427
    %v2436 = vadd.f32 %v2418, %v2428
    %v2437 = vadd.f32 %v2419, %v2429
    %v2438 = vadd.f32 %v2420, %v2430
    %v2439 = vadd.f32 %v2421, %v2431
    %v2440 = vadd.f32 %v2422, %v2432
    %v2441 = vadd.f32 %v2423, %v2433
    %s2442 = sld [smem:[#allocation13 + $0x7b]]
    %v2443 = vstv %s2442
    %v2444 = vmul.f32 %v2443, %v499
    %v2445 = vmul.f32 %v2443, %v500
    %v2446 = vmul.f32 %v2443, %v501
    %v2447 = vmul.f32 %v2443, %v502
    %v2448 = vmul.f32 %v2443, %v503
    %v2449 = vmul.f32 %v2443, %v504
    %v2450 = vmul.f32 %v2443, %v505
    %v2451 = vmul.f32 %v2443, %v506
    %v2452 = vadd.f32 %v2434, %v2444
    %v2453 = vadd.f32 %v2435, %v2445
    %v2454 = vadd.f32 %v2436, %v2446
    %v2455 = vadd.f32 %v2437, %v2447
    %v2456 = vadd.f32 %v2438, %v2448
    %v2457 = vadd.f32 %v2439, %v2449
    %v2458 = vadd.f32 %v2440, %v2450
    %v2459 = vadd.f32 %v2441, %v2451
    %s2460 = sld [smem:[#allocation13 + $0x84]]
    %v2461 = vstv %s2460
    %v2462 = vmul.f32 %v2461, %v526
    %v2463 = vmul.f32 %v2461, %v527
    %v2464 = vmul.f32 %v2461, %v528
    %v2465 = vmul.f32 %v2461, %v529
    %v2466 = vmul.f32 %v2461, %v530
    %v2467 = vmul.f32 %v2461, %v531
    %v2468 = vmul.f32 %v2461, %v532
    %v2469 = vmul.f32 %v2461, %v533
    %v2470 = vadd.f32 %v2452, %v2462
    %v2471 = vadd.f32 %v2453, %v2463
    %v2472 = vadd.f32 %v2454, %v2464
    %v2473 = vadd.f32 %v2455, %v2465
    %v2474 = vadd.f32 %v2456, %v2466
    %v2475 = vadd.f32 %v2457, %v2467
    %v2476 = vadd.f32 %v2458, %v2468
    %v2477 = vadd.f32 %v2459, %v2469
    %s2478 = sld [smem:[#allocation13 + $0x8d]]
    %v2479 = vstv %s2478
    %v2480 = vmul.f32 %v2479, %v553
    %v2481 = vmul.f32 %v2479, %v554
    %v2482 = vmul.f32 %v2479, %v555
    %v2483 = vmul.f32 %v2479, %v556
    %v2484 = vmul.f32 %v2479, %v557
    %v2485 = vmul.f32 %v2479, %v558
    %v2486 = vmul.f32 %v2479, %v559
    %v2487 = vmul.f32 %v2479, %v560
    %v2488 = vadd.f32 %v2470, %v2480
    %v2489 = vadd.f32 %v2471, %v2481
    %v2490 = vadd.f32 %v2472, %v2482
    %v2491 = vadd.f32 %v2473, %v2483
    %v2492 = vadd.f32 %v2474, %v2484
    %v2493 = vadd.f32 %v2475, %v2485
    %v2494 = vadd.f32 %v2476, %v2486
    %v2495 = vadd.f32 %v2477, %v2487
    %vm2504 = vcmask 1045504
    %v2505 = vrot.slane %v2488, 2
    %v2506 = vrot.slane %v2489, 2
    %v2507 = vsel %vm2504, %v2505, %v2506
    %v2508 = vrot.slane %v2490, 2
    %v2509 = vsel %vm2504, %v2506, %v2508
    %v2510 = vrot.slane %v2491, 2
    %v2511 = vsel %vm2504, %v2508, %v2510
    %v2512 = vrot.slane %v2492, 2
    %v2513 = vsel %vm2504, %v2510, %v2512
    %v2514 = vrot.slane %v2493, 2
    %v2515 = vsel %vm2504, %v2512, %v2514
    %v2516 = vrot.slane %v2494, 2
    %v2517 = vsel %vm2504, %v2514, %v2516
    %v2518 = vrot.slane %v2495, 2
    %v2519 = vsel %vm2504, %v2516, %v2518
    %v2528 = vadd.f32 %v2208, %v2507
    %v2529 = vadd.f32 %v2209, %v2509
    %v2530 = vadd.f32 %v2210, %v2511
    %v2531 = vadd.f32 %v2211, %v2513
    %v2532 = vadd.f32 %v2212, %v2515
    %v2533 = vadd.f32 %v2213, %v2517
    %v2534 = vadd.f32 %v2214, %v2519
    %v2535 = vadd.f32 %v2215, %v2518
    %s2536 = sld [smem:[#allocation13 + $0x7]]
    %v2537 = vstv %s2536
    %v2538 = vmul.f32 %v2537, %v156
    %v2539 = vmul.f32 %v2537, %v157
    %v2540 = vmul.f32 %v2537, %v158
    %v2541 = vmul.f32 %v2537, %v159
    %v2542 = vmul.f32 %v2537, %v160
    %v2543 = vmul.f32 %v2537, %v161
    %v2544 = vmul.f32 %v2537, %v162
    %v2545 = vmul.f32 %v2537, %v163
    %s2546 = sld [smem:[#allocation13 + $0x10]]
    %v2547 = vstv %s2546
    %v2548 = vmul.f32 %v2547, %v175
    %v2549 = vmul.f32 %v2547, %v176
    %v2550 = vmul.f32 %v2547, %v177
    %v2551 = vmul.f32 %v2547, %v178
    %v2552 = vmul.f32 %v2547, %v179
    %v2553 = vmul.f32 %v2547, %v180
    %v2554 = vmul.f32 %v2547, %v181
    %v2555 = vmul.f32 %v2547, %v182
    %v2556 = vadd.f32 %v2538, %v2548
    %v2557 = vadd.f32 %v2539, %v2549
    %v2558 = vadd.f32 %v2540, %v2550
    %v2559 = vadd.f32 %v2541, %v2551
    %v2560 = vadd.f32 %v2542, %v2552
    %v2561 = vadd.f32 %v2543, %v2553
    %v2562 = vadd.f32 %v2544, %v2554
    %v2563 = vadd.f32 %v2545, %v2555
    %s2564 = sld [smem:[#allocation13 + $0x19]]
    %v2565 = vstv %s2564
    %v2566 = vmul.f32 %v2565, %v202
    %v2567 = vmul.f32 %v2565, %v203
    %v2568 = vmul.f32 %v2565, %v204
    %v2569 = vmul.f32 %v2565, %v205
    %v2570 = vmul.f32 %v2565, %v206
    %v2571 = vmul.f32 %v2565, %v207
    %v2572 = vmul.f32 %v2565, %v208
    %v2573 = vmul.f32 %v2565, %v209
    %v2574 = vadd.f32 %v2556, %v2566
    %v2575 = vadd.f32 %v2557, %v2567
    %v2576 = vadd.f32 %v2558, %v2568
    %v2577 = vadd.f32 %v2559, %v2569
    %v2578 = vadd.f32 %v2560, %v2570
    %v2579 = vadd.f32 %v2561, %v2571
    %v2580 = vadd.f32 %v2562, %v2572
    %v2581 = vadd.f32 %v2563, %v2573
    %s2582 = sld [smem:[#allocation13 + $0x22]]
    %v2583 = vstv %s2582
    %v2584 = vmul.f32 %v2583, %v229
    %v2585 = vmul.f32 %v2583, %v230
    %v2586 = vmul.f32 %v2583, %v231
    %v2587 = vmul.f32 %v2583, %v232
    %v2588 = vmul.f32 %v2583, %v233
    %v2589 = vmul.f32 %v2583, %v234
    %v2590 = vmul.f32 %v2583, %v235
    %v2591 = vmul.f32 %v2583, %v236
    %v2592 = vadd.f32 %v2574, %v2584
    %v2593 = vadd.f32 %v2575, %v2585
    %v2594 = vadd.f32 %v2576, %v2586
    %v2595 = vadd.f32 %v2577, %v2587
    %v2596 = vadd.f32 %v2578, %v2588
    %v2597 = vadd.f32 %v2579, %v2589
    %v2598 = vadd.f32 %v2580, %v2590
    %v2599 = vadd.f32 %v2581, %v2591
    %s2600 = sld [smem:[#allocation13 + $0x2b]]
    %v2601 = vstv %s2600
    %v2602 = vmul.f32 %v2601, %v256
    %v2603 = vmul.f32 %v2601, %v257
    %v2604 = vmul.f32 %v2601, %v258
    %v2605 = vmul.f32 %v2601, %v259
    %v2606 = vmul.f32 %v2601, %v260
    %v2607 = vmul.f32 %v2601, %v261
    %v2608 = vmul.f32 %v2601, %v262
    %v2609 = vmul.f32 %v2601, %v263
    %v2610 = vadd.f32 %v2592, %v2602
    %v2611 = vadd.f32 %v2593, %v2603
    %v2612 = vadd.f32 %v2594, %v2604
    %v2613 = vadd.f32 %v2595, %v2605
    %v2614 = vadd.f32 %v2596, %v2606
    %v2615 = vadd.f32 %v2597, %v2607
    %v2616 = vadd.f32 %v2598, %v2608
    %v2617 = vadd.f32 %v2599, %v2609
    %s2618 = sld [smem:[#allocation13 + $0x34]]
    %v2619 = vstv %s2618
    %v2620 = vmul.f32 %v2619, %v283
    %v2621 = vmul.f32 %v2619, %v284
    %v2622 = vmul.f32 %v2619, %v285
    %v2623 = vmul.f32 %v2619, %v286
    %v2624 = vmul.f32 %v2619, %v287
    %v2625 = vmul.f32 %v2619, %v288
    %v2626 = vmul.f32 %v2619, %v289
    %v2627 = vmul.f32 %v2619, %v290
    %v2628 = vadd.f32 %v2610, %v2620
    %v2629 = vadd.f32 %v2611, %v2621
    %v2630 = vadd.f32 %v2612, %v2622
    %v2631 = vadd.f32 %v2613, %v2623
    %v2632 = vadd.f32 %v2614, %v2624
    %v2633 = vadd.f32 %v2615, %v2625
    %v2634 = vadd.f32 %v2616, %v2626
    %v2635 = vadd.f32 %v2617, %v2627
    %s2636 = sld [smem:[#allocation13 + $0x3d]]
    %v2637 = vstv %s2636
    %v2638 = vmul.f32 %v2637, %v310
    %v2639 = vmul.f32 %v2637, %v311
    %v2640 = vmul.f32 %v2637, %v312
    %v2641 = vmul.f32 %v2637, %v313
    %v2642 = vmul.f32 %v2637, %v314
    %v2643 = vmul.f32 %v2637, %v315
    %v2644 = vmul.f32 %v2637, %v316
    %v2645 = vmul.f32 %v2637, %v317
    %v2646 = vadd.f32 %v2628, %v2638
    %v2647 = vadd.f32 %v2629, %v2639
    %v2648 = vadd.f32 %v2630, %v2640
    %v2649 = vadd.f32 %v2631, %v2641
    %v2650 = vadd.f32 %v2632, %v2642
    %v2651 = vadd.f32 %v2633, %v2643
    %v2652 = vadd.f32 %v2634, %v2644
    %v2653 = vadd.f32 %v2635, %v2645
    %s2654 = sld [smem:[#allocation13 + $0x46]]
    %v2655 = vstv %s2654
    %v2656 = vmul.f32 %v2655, %v337
    %v2657 = vmul.f32 %v2655, %v338
    %v2658 = vmul.f32 %v2655, %v339
    %v2659 = vmul.f32 %v2655, %v340
    %v2660 = vmul.f32 %v2655, %v341
    %v2661 = vmul.f32 %v2655, %v342
    %v2662 = vmul.f32 %v2655, %v343
    %v2663 = vmul.f32 %v2655, %v344
    %v2664 = vadd.f32 %v2646, %v2656
    %v2665 = vadd.f32 %v2647, %v2657
    %v2666 = vadd.f32 %v2648, %v2658
    %v2667 = vadd.f32 %v2649, %v2659
    %v2668 = vadd.f32 %v2650, %v2660
    %v2669 = vadd.f32 %v2651, %v2661
    %v2670 = vadd.f32 %v2652, %v2662
    %v2671 = vadd.f32 %v2653, %v2663
    %s2672 = sld [smem:[#allocation13 + $0x4f]]
    %v2673 = vstv %s2672
    %v2674 = vmul.f32 %v2673, %v364
    %v2675 = vmul.f32 %v2673, %v365
    %v2676 = vmul.f32 %v2673, %v366
    %v2677 = vmul.f32 %v2673, %v367
    %v2678 = vmul.f32 %v2673, %v368
    %v2679 = vmul.f32 %v2673, %v369
    %v2680 = vmul.f32 %v2673, %v370
    %v2681 = vmul.f32 %v2673, %v371
    %v2682 = vadd.f32 %v2664, %v2674
    %v2683 = vadd.f32 %v2665, %v2675
    %v2684 = vadd.f32 %v2666, %v2676
    %v2685 = vadd.f32 %v2667, %v2677
    %v2686 = vadd.f32 %v2668, %v2678
    %v2687 = vadd.f32 %v2669, %v2679
    %v2688 = vadd.f32 %v2670, %v2680
    %v2689 = vadd.f32 %v2671, %v2681
    %s2690 = sld [smem:[#allocation13 + $0x58]]
    %v2691 = vstv %s2690
    %v2692 = vmul.f32 %v2691, %v391
    %v2693 = vmul.f32 %v2691, %v392
    %v2694 = vmul.f32 %v2691, %v393
    %v2695 = vmul.f32 %v2691, %v394
    %v2696 = vmul.f32 %v2691, %v395
    %v2697 = vmul.f32 %v2691, %v396
    %v2698 = vmul.f32 %v2691, %v397
    %v2699 = vmul.f32 %v2691, %v398
    %v2700 = vadd.f32 %v2682, %v2692
    %v2701 = vadd.f32 %v2683, %v2693
    %v2702 = vadd.f32 %v2684, %v2694
    %v2703 = vadd.f32 %v2685, %v2695
    %v2704 = vadd.f32 %v2686, %v2696
    %v2705 = vadd.f32 %v2687, %v2697
    %v2706 = vadd.f32 %v2688, %v2698
    %v2707 = vadd.f32 %v2689, %v2699
    %s2708 = sld [smem:[#allocation13 + $0x61]]
    %v2709 = vstv %s2708
    %v2710 = vmul.f32 %v2709, %v418
    %v2711 = vmul.f32 %v2709, %v419
    %v2712 = vmul.f32 %v2709, %v420
    %v2713 = vmul.f32 %v2709, %v421
    %v2714 = vmul.f32 %v2709, %v422
    %v2715 = vmul.f32 %v2709, %v423
    %v2716 = vmul.f32 %v2709, %v424
    %v2717 = vmul.f32 %v2709, %v425
    %v2718 = vadd.f32 %v2700, %v2710
    %v2719 = vadd.f32 %v2701, %v2711
    %v2720 = vadd.f32 %v2702, %v2712
    %v2721 = vadd.f32 %v2703, %v2713
    %v2722 = vadd.f32 %v2704, %v2714
    %v2723 = vadd.f32 %v2705, %v2715
    %v2724 = vadd.f32 %v2706, %v2716
    %v2725 = vadd.f32 %v2707, %v2717
    %s2726 = sld [smem:[#allocation13 + $0x6a]]
    %v2727 = vstv %s2726
    %v2728 = vmul.f32 %v2727, %v445
    %v2729 = vmul.f32 %v2727, %v446
    %v2730 = vmul.f32 %v2727, %v447
    %v2731 = vmul.f32 %v2727, %v448
    %v2732 = vmul.f32 %v2727, %v449
    %v2733 = vmul.f32 %v2727, %v450
    %v2734 = vmul.f32 %v2727, %v451
    %v2735 = vmul.f32 %v2727, %v452
    %v2736 = vadd.f32 %v2718, %v2728
    %v2737 = vadd.f32 %v2719, %v2729
    %v2738 = vadd.f32 %v2720, %v2730
    %v2739 = vadd.f32 %v2721, %v2731
    %v2740 = vadd.f32 %v2722, %v2732
    %v2741 = vadd.f32 %v2723, %v2733
    %v2742 = vadd.f32 %v2724, %v2734
    %v2743 = vadd.f32 %v2725, %v2735
    %s2744 = sld [smem:[#allocation13 + $0x73]]
    %v2745 = vstv %s2744
    %v2746 = vmul.f32 %v2745, %v472
    %v2747 = vmul.f32 %v2745, %v473
    %v2748 = vmul.f32 %v2745, %v474
    %v2749 = vmul.f32 %v2745, %v475
    %v2750 = vmul.f32 %v2745, %v476
    %v2751 = vmul.f32 %v2745, %v477
    %v2752 = vmul.f32 %v2745, %v478
    %v2753 = vmul.f32 %v2745, %v479
    %v2754 = vadd.f32 %v2736, %v2746
    %v2755 = vadd.f32 %v2737, %v2747
    %v2756 = vadd.f32 %v2738, %v2748
    %v2757 = vadd.f32 %v2739, %v2749
    %v2758 = vadd.f32 %v2740, %v2750
    %v2759 = vadd.f32 %v2741, %v2751
    %v2760 = vadd.f32 %v2742, %v2752
    %v2761 = vadd.f32 %v2743, %v2753
    %s2762 = sld [smem:[#allocation13 + $0x7c]]
    %v2763 = vstv %s2762
    %v2764 = vmul.f32 %v2763, %v499
    %v2765 = vmul.f32 %v2763, %v500
    %v2766 = vmul.f32 %v2763, %v501
    %v2767 = vmul.f32 %v2763, %v502
    %v2768 = vmul.f32 %v2763, %v503
    %v2769 = vmul.f32 %v2763, %v504
    %v2770 = vmul.f32 %v2763, %v505
    %v2771 = vmul.f32 %v2763, %v506
    %v2772 = vadd.f32 %v2754, %v2764
    %v2773 = vadd.f32 %v2755, %v2765
    %v2774 = vadd.f32 %v2756, %v2766
    %v2775 = vadd.f32 %v2757, %v2767
    %v2776 = vadd.f32 %v2758, %v2768
    %v2777 = vadd.f32 %v2759, %v2769
    %v2778 = vadd.f32 %v2760, %v2770
    %v2779 = vadd.f32 %v2761, %v2771
    %s2780 = sld [smem:[#allocation13 + $0x85]]
    %v2781 = vstv %s2780
    %v2782 = vmul.f32 %v2781, %v526
    %v2783 = vmul.f32 %v2781, %v527
    %v2784 = vmul.f32 %v2781, %v528
    %v2785 = vmul.f32 %v2781, %v529
    %v2786 = vmul.f32 %v2781, %v530
    %v2787 = vmul.f32 %v2781, %v531
    %v2788 = vmul.f32 %v2781, %v532
    %v2789 = vmul.f32 %v2781, %v533
    %v2790 = vadd.f32 %v2772, %v2782
    %v2791 = vadd.f32 %v2773, %v2783
    %v2792 = vadd.f32 %v2774, %v2784
    %v2793 = vadd.f32 %v2775, %v2785
    %v2794 = vadd.f32 %v2776, %v2786
    %v2795 = vadd.f32 %v2777, %v2787
    %v2796 = vadd.f32 %v2778, %v2788
    %v2797 = vadd.f32 %v2779, %v2789
    %s2798 = sld [smem:[#allocation13 + $0x8e]]
    %v2799 = vstv %s2798
    %v2800 = vmul.f32 %v2799, %v553
    %v2801 = vmul.f32 %v2799, %v554
    %v2802 = vmul.f32 %v2799, %v555
    %v2803 = vmul.f32 %v2799, %v556
    %v2804 = vmul.f32 %v2799, %v557
    %v2805 = vmul.f32 %v2799, %v558
    %v2806 = vmul.f32 %v2799, %v559
    %v2807 = vmul.f32 %v2799, %v560
    %v2808 = vadd.f32 %v2790, %v2800
    %v2809 = vadd.f32 %v2791, %v2801
    %v2810 = vadd.f32 %v2792, %v2802
    %v2811 = vadd.f32 %v2793, %v2803
    %v2812 = vadd.f32 %v2794, %v2804
    %v2813 = vadd.f32 %v2795, %v2805
    %v2814 = vadd.f32 %v2796, %v2806
    %v2815 = vadd.f32 %v2797, %v2807
    %v2824 = vrot.slane %v2808, 2
    %v2825 = vrot.slane %v2809, 2
    %v2826 = vsel %vm2504, %v2824, %v2825
    %v2827 = vrot.slane %v2810, 2
    %v2828 = vsel %vm2504, %v2825, %v2827
    %v2829 = vrot.slane %v2811, 2
    %v2830 = vsel %vm2504, %v2827, %v2829
    %v2831 = vrot.slane %v2812, 2
    %v2832 = vsel %vm2504, %v2829, %v2831
    %v2833 = vrot.slane %v2813, 2
    %v2834 = vsel %vm2504, %v2831, %v2833
    %v2835 = vrot.slane %v2814, 2
    %v2836 = vsel %vm2504, %v2833, %v2835
    %v2837 = vrot.slane %v2815, 2
    %v2838 = vsel %vm2504, %v2835, %v2837
    %2839 = vrot.lane.b32.xlu0 %v2826, 127
    %v2840 = vpop.permute.xlu0 %2839
    %2841 = vrot.lane.b32.xlu0 %v2828, 127
    %v2842 = vpop.permute.xlu0 %2841
    %2843 = vrot.lane.b32.xlu0 %v2830, 127
    %v2844 = vpop.permute.xlu0 %2843
    %2845 = vrot.lane.b32.xlu0 %v2832, 127
    %v2846 = vpop.permute.xlu0 %2845
    %2847 = vrot.lane.b32.xlu0 %v2834, 127
    %v2848 = vpop.permute.xlu0 %2847
    %2849 = vrot.lane.b32.xlu0 %v2836, 127
    %v2850 = vpop.permute.xlu0 %2849
    %2851 = vrot.lane.b32.xlu0 %v2838, 127
    %v2852 = vpop.permute.xlu0 %2851
    %2853 = vrot.lane.b32.xlu0 %v2837, 127
    %v2854 = vpop.permute.xlu0 %2853
    %v2863 = vadd.f32 %v2528, %v2840
    %v2864 = vadd.f32 %v2529, %v2842
    %v2865 = vadd.f32 %v2530, %v2844
    %v2866 = vadd.f32 %v2531, %v2846
    %v2867 = vadd.f32 %v2532, %v2848
    %v2868 = vadd.f32 %v2533, %v2850
    %v2869 = vadd.f32 %v2534, %v2852
    %v2870 = vadd.f32 %v2535, %v2854
    %s2871 = sld [smem:[#allocation13 + $0x8]]
    %v2872 = vstv %s2871
    %v2873 = vmul.f32 %v2872, %v156
    %v2874 = vmul.f32 %v2872, %v157
    %v2875 = vmul.f32 %v2872, %v158
    %v2876 = vmul.f32 %v2872, %v159
    %v2877 = vmul.f32 %v2872, %v160
    %v2878 = vmul.f32 %v2872, %v161
    %v2879 = vmul.f32 %v2872, %v162
    %v2880 = vmul.f32 %v2872, %v163
    %s2881 = sld [smem:[#allocation13 + $0x11]]
    %v2882 = vstv %s2881
    %v2883 = vmul.f32 %v2882, %v175
    %v2884 = vmul.f32 %v2882, %v176
    %v2885 = vmul.f32 %v2882, %v177
    %v2886 = vmul.f32 %v2882, %v178
    %v2887 = vmul.f32 %v2882, %v179
    %v2888 = vmul.f32 %v2882, %v180
    %v2889 = vmul.f32 %v2882, %v181
    %v2890 = vmul.f32 %v2882, %v182
    %v2891 = vadd.f32 %v2873, %v2883
    %v2892 = vadd.f32 %v2874, %v2884
    %v2893 = vadd.f32 %v2875, %v2885
    %v2894 = vadd.f32 %v2876, %v2886
    %v2895 = vadd.f32 %v2877, %v2887
    %v2896 = vadd.f32 %v2878, %v2888
    %v2897 = vadd.f32 %v2879, %v2889
    %v2898 = vadd.f32 %v2880, %v2890
    %s2899 = sld [smem:[#allocation13 + $0x1a]]
    %v2900 = vstv %s2899
    %v2901 = vmul.f32 %v2900, %v202
    %v2902 = vmul.f32 %v2900, %v203
    %v2903 = vmul.f32 %v2900, %v204
    %v2904 = vmul.f32 %v2900, %v205
    %v2905 = vmul.f32 %v2900, %v206
    %v2906 = vmul.f32 %v2900, %v207
    %v2907 = vmul.f32 %v2900, %v208
    %v2908 = vmul.f32 %v2900, %v209
    %v2909 = vadd.f32 %v2891, %v2901
    %v2910 = vadd.f32 %v2892, %v2902
    %v2911 = vadd.f32 %v2893, %v2903
    %v2912 = vadd.f32 %v2894, %v2904
    %v2913 = vadd.f32 %v2895, %v2905
    %v2914 = vadd.f32 %v2896, %v2906
    %v2915 = vadd.f32 %v2897, %v2907
    %v2916 = vadd.f32 %v2898, %v2908
    %s2917 = sld [smem:[#allocation13 + $0x23]]
    %v2918 = vstv %s2917
    %v2919 = vmul.f32 %v2918, %v229
    %v2920 = vmul.f32 %v2918, %v230
    %v2921 = vmul.f32 %v2918, %v231
    %v2922 = vmul.f32 %v2918, %v232
    %v2923 = vmul.f32 %v2918, %v233
    %v2924 = vmul.f32 %v2918, %v234
    %v2925 = vmul.f32 %v2918, %v235
    %v2926 = vmul.f32 %v2918, %v236
    %v2927 = vadd.f32 %v2909, %v2919
    %v2928 = vadd.f32 %v2910, %v2920
    %v2929 = vadd.f32 %v2911, %v2921
    %v2930 = vadd.f32 %v2912, %v2922
    %v2931 = vadd.f32 %v2913, %v2923
    %v2932 = vadd.f32 %v2914, %v2924
    %v2933 = vadd.f32 %v2915, %v2925
    %v2934 = vadd.f32 %v2916, %v2926
    %s2935 = sld [smem:[#allocation13 + $0x2c]]
    %v2936 = vstv %s2935
    %v2937 = vmul.f32 %v2936, %v256
    %v2938 = vmul.f32 %v2936, %v257
    %v2939 = vmul.f32 %v2936, %v258
    %v2940 = vmul.f32 %v2936, %v259
    %v2941 = vmul.f32 %v2936, %v260
    %v2942 = vmul.f32 %v2936, %v261
    %v2943 = vmul.f32 %v2936, %v262
    %v2944 = vmul.f32 %v2936, %v263
    %v2945 = vadd.f32 %v2927, %v2937
    %v2946 = vadd.f32 %v2928, %v2938
    %v2947 = vadd.f32 %v2929, %v2939
    %v2948 = vadd.f32 %v2930, %v2940
    %v2949 = vadd.f32 %v2931, %v2941
    %v2950 = vadd.f32 %v2932, %v2942
    %v2951 = vadd.f32 %v2933, %v2943
    %v2952 = vadd.f32 %v2934, %v2944
    %s2953 = sld [smem:[#allocation13 + $0x35]]
    %v2954 = vstv %s2953
    %v2955 = vmul.f32 %v2954, %v283
    %v2956 = vmul.f32 %v2954, %v284
    %v2957 = vmul.f32 %v2954, %v285
    %v2958 = vmul.f32 %v2954, %v286
    %v2959 = vmul.f32 %v2954, %v287
    %v2960 = vmul.f32 %v2954, %v288
    %v2961 = vmul.f32 %v2954, %v289
    %v2962 = vmul.f32 %v2954, %v290
    %v2963 = vadd.f32 %v2945, %v2955
    %v2964 = vadd.f32 %v2946, %v2956
    %v2965 = vadd.f32 %v2947, %v2957
    %v2966 = vadd.f32 %v2948, %v2958
    %v2967 = vadd.f32 %v2949, %v2959
    %v2968 = vadd.f32 %v2950, %v2960
    %v2969 = vadd.f32 %v2951, %v2961
    %v2970 = vadd.f32 %v2952, %v2962
    %s2971 = sld [smem:[#allocation13 + $0x3e]]
    %v2972 = vstv %s2971
    %v2973 = vmul.f32 %v2972, %v310
    %v2974 = vmul.f32 %v2972, %v311
    %v2975 = vmul.f32 %v2972, %v312
    %v2976 = vmul.f32 %v2972, %v313
    %v2977 = vmul.f32 %v2972, %v314
    %v2978 = vmul.f32 %v2972, %v315
    %v2979 = vmul.f32 %v2972, %v316
    %v2980 = vmul.f32 %v2972, %v317
    %v2981 = vadd.f32 %v2963, %v2973
    %v2982 = vadd.f32 %v2964, %v2974
    %v2983 = vadd.f32 %v2965, %v2975
    %v2984 = vadd.f32 %v2966, %v2976
    %v2985 = vadd.f32 %v2967, %v2977
    %v2986 = vadd.f32 %v2968, %v2978
    %v2987 = vadd.f32 %v2969, %v2979
    %v2988 = vadd.f32 %v2970, %v2980
    %s2989 = sld [smem:[#allocation13 + $0x47]]
    %v2990 = vstv %s2989
    %v2991 = vmul.f32 %v2990, %v337
    %v2992 = vmul.f32 %v2990, %v338
    %v2993 = vmul.f32 %v2990, %v339
    %v2994 = vmul.f32 %v2990, %v340
    %v2995 = vmul.f32 %v2990, %v341
    %v2996 = vmul.f32 %v2990, %v342
    %v2997 = vmul.f32 %v2990, %v343
    %v2998 = vmul.f32 %v2990, %v344
    %v2999 = vadd.f32 %v2981, %v2991
    %v3000 = vadd.f32 %v2982, %v2992
    %v3001 = vadd.f32 %v2983, %v2993
    %v3002 = vadd.f32 %v2984, %v2994
    %v3003 = vadd.f32 %v2985, %v2995
    %v3004 = vadd.f32 %v2986, %v2996
    %v3005 = vadd.f32 %v2987, %v2997
    %v3006 = vadd.f32 %v2988, %v2998
    %s3007 = sld [smem:[#allocation13 + $0x50]]
    %v3008 = vstv %s3007
    %v3009 = vmul.f32 %v3008, %v364
    %v3010 = vmul.f32 %v3008, %v365
    %v3011 = vmul.f32 %v3008, %v366
    %v3012 = vmul.f32 %v3008, %v367
    %v3013 = vmul.f32 %v3008, %v368
    %v3014 = vmul.f32 %v3008, %v369
    %v3015 = vmul.f32 %v3008, %v370
    %v3016 = vmul.f32 %v3008, %v371
    %v3017 = vadd.f32 %v2999, %v3009
    %v3018 = vadd.f32 %v3000, %v3010
    %v3019 = vadd.f32 %v3001, %v3011
    %v3020 = vadd.f32 %v3002, %v3012
    %v3021 = vadd.f32 %v3003, %v3013
    %v3022 = vadd.f32 %v3004, %v3014
    %v3023 = vadd.f32 %v3005, %v3015
    %v3024 = vadd.f32 %v3006, %v3016
    %s3025 = sld [smem:[#allocation13 + $0x59]]
    %v3026 = vstv %s3025
    %v3027 = vmul.f32 %v3026, %v391
    %v3028 = vmul.f32 %v3026, %v392
    %v3029 = vmul.f32 %v3026, %v393
    %v3030 = vmul.f32 %v3026, %v394
    %v3031 = vmul.f32 %v3026, %v395
    %v3032 = vmul.f32 %v3026, %v396
    %v3033 = vmul.f32 %v3026, %v397
    %v3034 = vmul.f32 %v3026, %v398
    %v3035 = vadd.f32 %v3017, %v3027
    %v3036 = vadd.f32 %v3018, %v3028
    %v3037 = vadd.f32 %v3019, %v3029
    %v3038 = vadd.f32 %v3020, %v3030
    %v3039 = vadd.f32 %v3021, %v3031
    %v3040 = vadd.f32 %v3022, %v3032
    %v3041 = vadd.f32 %v3023, %v3033
    %v3042 = vadd.f32 %v3024, %v3034
    %s3043 = sld [smem:[#allocation13 + $0x62]]
    %v3044 = vstv %s3043
    %v3045 = vmul.f32 %v3044, %v418
    %v3046 = vmul.f32 %v3044, %v419
    %v3047 = vmul.f32 %v3044, %v420
    %v3048 = vmul.f32 %v3044, %v421
    %v3049 = vmul.f32 %v3044, %v422
    %v3050 = vmul.f32 %v3044, %v423
    %v3051 = vmul.f32 %v3044, %v424
    %v3052 = vmul.f32 %v3044, %v425
    %v3053 = vadd.f32 %v3035, %v3045
    %v3054 = vadd.f32 %v3036, %v3046
    %v3055 = vadd.f32 %v3037, %v3047
    %v3056 = vadd.f32 %v3038, %v3048
    %v3057 = vadd.f32 %v3039, %v3049
    %v3058 = vadd.f32 %v3040, %v3050
    %v3059 = vadd.f32 %v3041, %v3051
    %v3060 = vadd.f32 %v3042, %v3052
    %s3061 = sld [smem:[#allocation13 + $0x6b]]
    %v3062 = vstv %s3061
    %v3063 = vmul.f32 %v3062, %v445
    %v3064 = vmul.f32 %v3062, %v446
    %v3065 = vmul.f32 %v3062, %v447
    %v3066 = vmul.f32 %v3062, %v448
    %v3067 = vmul.f32 %v3062, %v449
    %v3068 = vmul.f32 %v3062, %v450
    %v3069 = vmul.f32 %v3062, %v451
    %v3070 = vmul.f32 %v3062, %v452
    %v3071 = vadd.f32 %v3053, %v3063
    %v3072 = vadd.f32 %v3054, %v3064
    %v3073 = vadd.f32 %v3055, %v3065
    %v3074 = vadd.f32 %v3056, %v3066
    %v3075 = vadd.f32 %v3057, %v3067
    %v3076 = vadd.f32 %v3058, %v3068
    %v3077 = vadd.f32 %v3059, %v3069
    %v3078 = vadd.f32 %v3060, %v3070
    %s3079 = sld [smem:[#allocation13 + $0x74]]
    %v3080 = vstv %s3079
    %v3081 = vmul.f32 %v3080, %v472
    %v3082 = vmul.f32 %v3080, %v473
    %v3083 = vmul.f32 %v3080, %v474
    %v3084 = vmul.f32 %v3080, %v475
    %v3085 = vmul.f32 %v3080, %v476
    %v3086 = vmul.f32 %v3080, %v477
    %v3087 = vmul.f32 %v3080, %v478
    %v3088 = vmul.f32 %v3080, %v479
    %v3089 = vadd.f32 %v3071, %v3081
    %v3090 = vadd.f32 %v3072, %v3082
    %v3091 = vadd.f32 %v3073, %v3083
    %v3092 = vadd.f32 %v3074, %v3084
    %v3093 = vadd.f32 %v3075, %v3085
    %v3094 = vadd.f32 %v3076, %v3086
    %v3095 = vadd.f32 %v3077, %v3087
    %v3096 = vadd.f32 %v3078, %v3088
    %s3097 = sld [smem:[#allocation13 + $0x7d]]
    %v3098 = vstv %s3097
    %v3099 = vmul.f32 %v3098, %v499
    %v3100 = vmul.f32 %v3098, %v500
    %v3101 = vmul.f32 %v3098, %v501
    %v3102 = vmul.f32 %v3098, %v502
    %v3103 = vmul.f32 %v3098, %v503
    %v3104 = vmul.f32 %v3098, %v504
    %v3105 = vmul.f32 %v3098, %v505
    %v3106 = vmul.f32 %v3098, %v506
    %v3107 = vadd.f32 %v3089, %v3099
    %v3108 = vadd.f32 %v3090, %v3100
    %v3109 = vadd.f32 %v3091, %v3101
    %v3110 = vadd.f32 %v3092, %v3102
    %v3111 = vadd.f32 %v3093, %v3103
    %v3112 = vadd.f32 %v3094, %v3104
    %v3113 = vadd.f32 %v3095, %v3105
    %v3114 = vadd.f32 %v3096, %v3106
    %s3115 = sld [smem:[#allocation13 + $0x86]]
    %v3116 = vstv %s3115
    %v3117 = vmul.f32 %v3116, %v526
    %v3118 = vmul.f32 %v3116, %v527
    %v3119 = vmul.f32 %v3116, %v528
    %v3120 = vmul.f32 %v3116, %v529
    %v3121 = vmul.f32 %v3116, %v530
    %v3122 = vmul.f32 %v3116, %v531
    %v3123 = vmul.f32 %v3116, %v532
    %v3124 = vmul.f32 %v3116, %v533
    %v3125 = vadd.f32 %v3107, %v3117
    %v3126 = vadd.f32 %v3108, %v3118
    %v3127 = vadd.f32 %v3109, %v3119
    %v3128 = vadd.f32 %v3110, %v3120
    %v3129 = vadd.f32 %v3111, %v3121
    %v3130 = vadd.f32 %v3112, %v3122
    %v3131 = vadd.f32 %v3113, %v3123
    %v3132 = vadd.f32 %v3114, %v3124
    %s3133 = sld [smem:[#allocation13 + $0x8f]]
    %v3134 = vstv %s3133
    %v3135 = vmul.f32 %v3134, %v553
    %v3136 = vmul.f32 %v3134, %v554
    %v3137 = vmul.f32 %v3134, %v555
    %v3138 = vmul.f32 %v3134, %v556
    %v3139 = vmul.f32 %v3134, %v557
    %v3140 = vmul.f32 %v3134, %v558
    %v3141 = vmul.f32 %v3134, %v559
    %v3142 = vmul.f32 %v3134, %v560
    %v3143 = vadd.f32 %v3125, %v3135
    %v3144 = vadd.f32 %v3126, %v3136
    %v3145 = vadd.f32 %v3127, %v3137
    %v3146 = vadd.f32 %v3128, %v3138
    %v3147 = vadd.f32 %v3129, %v3139
    %v3148 = vadd.f32 %v3130, %v3140
    %v3149 = vadd.f32 %v3131, %v3141
    %v3150 = vadd.f32 %v3132, %v3142
    %v3159 = vrot.slane %v3143, 2
    %v3160 = vrot.slane %v3144, 2
    %v3161 = vsel %vm2504, %v3159, %v3160
    %v3162 = vrot.slane %v3145, 2
    %v3163 = vsel %vm2504, %v3160, %v3162
    %v3164 = vrot.slane %v3146, 2
    %v3165 = vsel %vm2504, %v3162, %v3164
    %v3166 = vrot.slane %v3147, 2
    %v3167 = vsel %vm2504, %v3164, %v3166
    %v3168 = vrot.slane %v3148, 2
    %v3169 = vsel %vm2504, %v3166, %v3168
    %v3170 = vrot.slane %v3149, 2
    %v3171 = vsel %vm2504, %v3168, %v3170
    %v3172 = vrot.slane %v3150, 2
    %v3173 = vsel %vm2504, %v3170, %v3172
    %3174 = vrot.lane.b32.xlu0 %v3161, 126
    %v3175 = vpop.permute.xlu0 %3174
    %3176 = vrot.lane.b32.xlu0 %v3163, 126
    %v3177 = vpop.permute.xlu0 %3176
    %3178 = vrot.lane.b32.xlu0 %v3165, 126
    %v3179 = vpop.permute.xlu0 %3178
    %3180 = vrot.lane.b32.xlu0 %v3167, 126
    %v3181 = vpop.permute.xlu0 %3180
    %3182 = vrot.lane.b32.xlu0 %v3169, 126
    %v3183 = vpop.permute.xlu0 %3182
    %3184 = vrot.lane.b32.xlu0 %v3171, 126
    %v3185 = vpop.permute.xlu0 %3184
    %3186 = vrot.lane.b32.xlu0 %v3173, 126
    %v3187 = vpop.permute.xlu0 %3186
    %3188 = vrot.lane.b32.xlu0 %v3172, 126
    %v3189 = vpop.permute.xlu0 %3188
    %v3198 = vadd.f32 %v2863, %v3175
    %v3199 = vadd.f32 %v2864, %v3177
    %v3200 = vadd.f32 %v2865, %v3179
    %v3201 = vadd.f32 %v2866, %v3181
    %v3202 = vadd.f32 %v2867, %v3183
    %v3203 = vadd.f32 %v2868, %v3185
    %v3204 = vadd.f32 %v2869, %v3187
    %v3205 = vadd.f32 %v2870, %v3189
    %vm3206 = vcmp.gt.f32.partialorder %v3198, 0.0
    %vm3207 = vcmp.gt.f32.partialorder %v3199, 0.0
    %vm3208 = vcmp.gt.f32.partialorder %v3200, 0.0
    %vm3209 = vcmp.gt.f32.partialorder %v3201, 0.0
    %vm3210 = vcmp.gt.f32.partialorder %v3202, 0.0
    %vm3211 = vcmp.gt.f32.partialorder %v3203, 0.0
    %vm3212 = vcmp.gt.f32.partialorder %v3204, 0.0
    %vm3213 = vcmp.gt.f32.partialorder %v3205, 0.0
    %v3214 = vmin.f32 %v3198, 0.0
    %v3215 = vmin.f32 %v3199, 0.0
    %v3216 = vmin.f32 %v3200, 0.0
    %v3217 = vmin.f32 %v3201, 0.0
    %v3218 = vmin.f32 %v3202, 0.0
    %v3219 = vmin.f32 %v3203, 0.0
    %v3220 = vmin.f32 %v3204, 0.0
    %v3221 = vmin.f32 %v3205, 0.0
    %v3222 = vmul.f32 %v3214, 1.442695
    %v3223 = vpow.pop %v3222
    %v3224 = vmul.f32 %v3215, 1.442695
    %v3225 = vpow.pop %v3224
    %v3226 = vmul.f32 %v3216, 1.442695
    %v3227 = vpow.pop %v3226
    %v3228 = vmul.f32 %v3217, 1.442695
    %v3229 = vpow.pop %v3228
    %v3230 = vmul.f32 %v3218, 1.442695
    %v3231 = vpow.pop %v3230
    %v3232 = vmul.f32 %v3219, 1.442695
    %v3233 = vpow.pop %v3232
    %v3234 = vmul.f32 %v3220, 1.442695
    %v3235 = vpow.pop %v3234
    %v3236 = vmul.f32 %v3221, 1.442695
    %v3237 = vpow.pop %v3236
    %v3238 = vsub.f32 %v3223, 1.0
    %v3239 = vsub.f32 %v3225, 1.0
    %v3240 = vsub.f32 %v3227, 1.0
    %v3241 = vsub.f32 %v3229, 1.0
    %v3242 = vsub.f32 %v3231, 1.0
    %v3243 = vsub.f32 %v3233, 1.0
    %v3244 = vsub.f32 %v3235, 1.0
    %v3245 = vsub.f32 %v3237, 1.0
    %v3246 = vsel %vm3206, %v3198, %v3238
    %v3247 = vsel %vm3207, %v3199, %v3239
    %v3248 = vsel %vm3208, %v3200, %v3240
    %v3249 = vsel %vm3209, %v3201, %v3241
    %v3250 = vsel %vm3210, %v3202, %v3242
    %v3251 = vsel %vm3211, %v3203, %v3243
    %v3252 = vsel %vm3212, %v3204, %v3244
    %v3253 = vsel %vm3213, %v3205, %v3245
    %s3254 = sld [smem:[#allocation7]]
    %v3255 = vstv %s3254
    %s3256 = sld [smem:[#allocation14]]
    %v3257 = vstv %s3256
    %v3258 = vmul.f32 %v3257, %v3246
    %v3259 = vmul.f32 %v3257, %v3247
    %v3260 = vmul.f32 %v3257, %v3248
    %v3261 = vmul.f32 %v3257, %v3249
    %v3262 = vmul.f32 %v3257, %v3250
    %v3263 = vmul.f32 %v3257, %v3251
    %v3264 = vmul.f32 %v3257, %v3252
    %v3265 = vmul.f32 %v3257, %v3253
    %v3266 = vadd.f32 %v3255, %v3258
    %v3267 = vadd.f32 %v3255, %v3259
    %v3268 = vadd.f32 %v3255, %v3260
    %v3269 = vadd.f32 %v3255, %v3261
    %v3270 = vadd.f32 %v3255, %v3262
    %v3271 = vadd.f32 %v3255, %v3263
    %v3272 = vadd.f32 %v3255, %v3264
    %v3273 = vadd.f32 %v3255, %v3265
    %s3274 = sld [smem:[#allocation14 + $0x1]]
    %v3275 = vstv %s3274
    %v3276 = vmul.f32 %v3275, %v3246
    %v3277 = vmul.f32 %v3275, %v3247
    %v3278 = vmul.f32 %v3275, %v3248
    %v3279 = vmul.f32 %v3275, %v3249
    %v3280 = vmul.f32 %v3275, %v3250
    %v3281 = vmul.f32 %v3275, %v3251
    %v3282 = vmul.f32 %v3275, %v3252
    %v3283 = vmul.f32 %v3275, %v3253
    %3292 = vrot.lane.b32.xlu0 %v3276, 127
    %v3293 = vpop.permute.xlu0 %3292
    %3294 = vrot.lane.b32.xlu0 %v3277, 127
    %v3295 = vpop.permute.xlu0 %3294
    %3296 = vrot.lane.b32.xlu0 %v3278, 127
    %v3297 = vpop.permute.xlu0 %3296
    %3298 = vrot.lane.b32.xlu0 %v3279, 127
    %v3299 = vpop.permute.xlu0 %3298
    %3300 = vrot.lane.b32.xlu0 %v3280, 127
    %v3301 = vpop.permute.xlu0 %3300
    %3302 = vrot.lane.b32.xlu0 %v3281, 127
    %v3303 = vpop.permute.xlu0 %3302
    %3304 = vrot.lane.b32.xlu0 %v3282, 127
    %v3305 = vpop.permute.xlu0 %3304
    %3306 = vrot.lane.b32.xlu0 %v3283, 127
    %v3307 = vpop.permute.xlu0 %3306
    %v3316 = vadd.f32 %v3266, %v3293
    %v3317 = vadd.f32 %v3267, %v3295
    %v3318 = vadd.f32 %v3268, %v3297
    %v3319 = vadd.f32 %v3269, %v3299
    %v3320 = vadd.f32 %v3270, %v3301
    %v3321 = vadd.f32 %v3271, %v3303
    %v3322 = vadd.f32 %v3272, %v3305
    %v3323 = vadd.f32 %v3273, %v3307
    %s3324 = sld [smem:[#allocation14 + $0x2]]
    %v3325 = vstv %s3324
    %v3326 = vmul.f32 %v3325, %v3246
    %v3327 = vmul.f32 %v3325, %v3247
    %v3328 = vmul.f32 %v3325, %v3248
    %v3329 = vmul.f32 %v3325, %v3249
    %v3330 = vmul.f32 %v3325, %v3250
    %v3331 = vmul.f32 %v3325, %v3251
    %v3332 = vmul.f32 %v3325, %v3252
    %v3333 = vmul.f32 %v3325, %v3253
    %3342 = vrot.lane.b32.xlu0 %v3326, 126
    %v3343 = vpop.permute.xlu0 %3342
    %3344 = vrot.lane.b32.xlu0 %v3327, 126
    %v3345 = vpop.permute.xlu0 %3344
    %3346 = vrot.lane.b32.xlu0 %v3328, 126
    %v3347 = vpop.permute.xlu0 %3346
    %3348 = vrot.lane.b32.xlu0 %v3329, 126
    %v3349 = vpop.permute.xlu0 %3348
    %3350 = vrot.lane.b32.xlu0 %v3330, 126
    %v3351 = vpop.permute.xlu0 %3350
    %3352 = vrot.lane.b32.xlu0 %v3331, 126
    %v3353 = vpop.permute.xlu0 %3352
    %3354 = vrot.lane.b32.xlu0 %v3332, 126
    %v3355 = vpop.permute.xlu0 %3354
    %3356 = vrot.lane.b32.xlu0 %v3333, 126
    %v3357 = vpop.permute.xlu0 %3356
    %v3366 = vadd.f32 %v3316, %v3343
    %v3367 = vadd.f32 %v3317, %v3345
    %v3368 = vadd.f32 %v3318, %v3347
    %v3369 = vadd.f32 %v3319, %v3349
    %v3370 = vadd.f32 %v3320, %v3351
    %v3371 = vadd.f32 %v3321, %v3353
    %v3372 = vadd.f32 %v3322, %v3355
    %v3373 = vadd.f32 %v3323, %v3357
    %s3374 = sld [smem:[#allocation14 + $0x3]]
    %v3375 = vstv %s3374
    %v3376 = vmul.f32 %v3375, %v3246
    %v3377 = vmul.f32 %v3375, %v3247
    %v3378 = vmul.f32 %v3375, %v3248
    %v3379 = vmul.f32 %v3375, %v3249
    %v3380 = vmul.f32 %v3375, %v3250
    %v3381 = vmul.f32 %v3375, %v3251
    %v3382 = vmul.f32 %v3375, %v3252
    %v3383 = vmul.f32 %v3375, %v3253
    %v3392 = vrot.slane %v3376, 1
    %v3393 = vrot.slane %v3377, 1
    %v3394 = vsel %vm1514, %v3392, %v3393
    %v3395 = vrot.slane %v3378, 1
    %v3396 = vsel %vm1514, %v3393, %v3395
    %v3397 = vrot.slane %v3379, 1
    %v3398 = vsel %vm1514, %v3395, %v3397
    %v3399 = vrot.slane %v3380, 1
    %v3400 = vsel %vm1514, %v3397, %v3399
    %v3401 = vrot.slane %v3381, 1
    %v3402 = vsel %vm1514, %v3399, %v3401
    %v3403 = vrot.slane %v3382, 1
    %v3404 = vsel %vm1514, %v3401, %v3403
    %v3405 = vrot.slane %v3383, 1
    %v3406 = vsel %vm1514, %v3403, %v3405
    %v3415 = vadd.f32 %v3366, %v3394
    %v3416 = vadd.f32 %v3367, %v3396
    %v3417 = vadd.f32 %v3368, %v3398
    %v3418 = vadd.f32 %v3369, %v3400
    %v3419 = vadd.f32 %v3370, %v3402
    %v3420 = vadd.f32 %v3371, %v3404
    %v3421 = vadd.f32 %v3372, %v3406
    %v3422 = vadd.f32 %v3373, %v3405
    %s3423 = sld [smem:[#allocation14 + $0x4]]
    %v3424 = vstv %s3423
    %v3425 = vmul.f32 %v3424, %v3246
    %v3426 = vmul.f32 %v3424, %v3247
    %v3427 = vmul.f32 %v3424, %v3248
    %v3428 = vmul.f32 %v3424, %v3249
    %v3429 = vmul.f32 %v3424, %v3250
    %v3430 = vmul.f32 %v3424, %v3251
    %v3431 = vmul.f32 %v3424, %v3252
    %v3432 = vmul.f32 %v3424, %v3253
    %v3441 = vrot.slane %v3425, 1
    %v3442 = vrot.slane %v3426, 1
    %v3443 = vsel %vm1514, %v3441, %v3442
    %v3444 = vrot.slane %v3427, 1
    %v3445 = vsel %vm1514, %v3442, %v3444
    %v3446 = vrot.slane %v3428, 1
    %v3447 = vsel %vm1514, %v3444, %v3446
    %v3448 = vrot.slane %v3429, 1
    %v3449 = vsel %vm1514, %v3446, %v3448
    %v3450 = vrot.slane %v3430, 1
    %v3451 = vsel %vm1514, %v3448, %v3450
    %v3452 = vrot.slane %v3431, 1
    %v3453 = vsel %vm1514, %v3450, %v3452
    %v3454 = vrot.slane %v3432, 1
    %v3455 = vsel %vm1514, %v3452, %v3454
    %3456 = vrot.lane.b32.xlu0 %v3443, 127
    %v3457 = vpop.permute.xlu0 %3456
    %3458 = vrot.lane.b32.xlu0 %v3445, 127
    %v3459 = vpop.permute.xlu0 %3458
    %3460 = vrot.lane.b32.xlu0 %v3447, 127
    %v3461 = vpop.permute.xlu0 %3460
    %3462 = vrot.lane.b32.xlu0 %v3449, 127
    %v3463 = vpop.permute.xlu0 %3462
    %3464 = vrot.lane.b32.xlu0 %v3451, 127
    %v3465 = vpop.permute.xlu0 %3464
    %3466 = vrot.lane.b32.xlu0 %v3453, 127
    %v3467 = vpop.permute.xlu0 %3466
    %3468 = vrot.lane.b32.xlu0 %v3455, 127
    %v3469 = vpop.permute.xlu0 %3468
    %3470 = vrot.lane.b32.xlu0 %v3454, 127
    %v3471 = vpop.permute.xlu0 %3470
    %v3480 = vadd.f32 %v3415, %v3457
    %v3481 = vadd.f32 %v3416, %v3459
    %v3482 = vadd.f32 %v3417, %v3461
    %v3483 = vadd.f32 %v3418, %v3463
    %v3484 = vadd.f32 %v3419, %v3465
    %v3485 = vadd.f32 %v3420, %v3467
    %v3486 = vadd.f32 %v3421, %v3469
    %v3487 = vadd.f32 %v3422, %v3471
    %s3488 = sld [smem:[#allocation14 + $0x5]]
    %v3489 = vstv %s3488
    %v3490 = vmul.f32 %v3489, %v3246
    %v3491 = vmul.f32 %v3489, %v3247
    %v3492 = vmul.f32 %v3489, %v3248
    %v3493 = vmul.f32 %v3489, %v3249
    %v3494 = vmul.f32 %v3489, %v3250
    %v3495 = vmul.f32 %v3489, %v3251
    %v3496 = vmul.f32 %v3489, %v3252
    %v3497 = vmul.f32 %v3489, %v3253
    %v3506 = vrot.slane %v3490, 1
    %v3507 = vrot.slane %v3491, 1
    %v3508 = vsel %vm1514, %v3506, %v3507
    %v3509 = vrot.slane %v3492, 1
    %v3510 = vsel %vm1514, %v3507, %v3509
    %v3511 = vrot.slane %v3493, 1
    %v3512 = vsel %vm1514, %v3509, %v3511
    %v3513 = vrot.slane %v3494, 1
    %v3514 = vsel %vm1514, %v3511, %v3513
    %v3515 = vrot.slane %v3495, 1
    %v3516 = vsel %vm1514, %v3513, %v3515
    %v3517 = vrot.slane %v3496, 1
    %v3518 = vsel %vm1514, %v3515, %v3517
    %v3519 = vrot.slane %v3497, 1
    %v3520 = vsel %vm1514, %v3517, %v3519
    %3521 = vrot.lane.b32.xlu0 %v3508, 126
    %v3522 = vpop.permute.xlu0 %3521
    %3523 = vrot.lane.b32.xlu0 %v3510, 126
    %v3524 = vpop.permute.xlu0 %3523
    %3525 = vrot.lane.b32.xlu0 %v3512, 126
    %v3526 = vpop.permute.xlu0 %3525
    %3527 = vrot.lane.b32.xlu0 %v3514, 126
    %v3528 = vpop.permute.xlu0 %3527
    %3529 = vrot.lane.b32.xlu0 %v3516, 126
    %v3530 = vpop.permute.xlu0 %3529
    %3531 = vrot.lane.b32.xlu0 %v3518, 126
    %v3532 = vpop.permute.xlu0 %3531
    %3533 = vrot.lane.b32.xlu0 %v3520, 126
    %v3534 = vpop.permute.xlu0 %3533
    %3535 = vrot.lane.b32.xlu0 %v3519, 126
    %v3536 = vpop.permute.xlu0 %3535
    %v3545 = vadd.f32 %v3480, %v3522
    %v3546 = vadd.f32 %v3481, %v3524
    %v3547 = vadd.f32 %v3482, %v3526
    %v3548 = vadd.f32 %v3483, %v3528
    %v3549 = vadd.f32 %v3484, %v3530
    %v3550 = vadd.f32 %v3485, %v3532
    %v3551 = vadd.f32 %v3486, %v3534
    %v3552 = vadd.f32 %v3487, %v3536
    %s3553 = sld [smem:[#allocation14 + $0x6]]
    %v3554 = vstv %s3553
    %v3555 = vmul.f32 %v3554, %v3246
    %v3556 = vmul.f32 %v3554, %v3247
    %v3557 = vmul.f32 %v3554, %v3248
    %v3558 = vmul.f32 %v3554, %v3249
    %v3559 = vmul.f32 %v3554, %v3250
    %v3560 = vmul.f32 %v3554, %v3251
    %v3561 = vmul.f32 %v3554, %v3252
    %v3562 = vmul.f32 %v3554, %v3253
    %v3571 = vrot.slane %v3555, 2
    %v3572 = vrot.slane %v3556, 2
    %v3573 = vsel %vm2504, %v3571, %v3572
    %v3574 = vrot.slane %v3557, 2
    %v3575 = vsel %vm2504, %v3572, %v3574
    %v3576 = vrot.slane %v3558, 2
    %v3577 = vsel %vm2504, %v3574, %v3576
    %v3578 = vrot.slane %v3559, 2
    %v3579 = vsel %vm2504, %v3576, %v3578
    %v3580 = vrot.slane %v3560, 2
    %v3581 = vsel %vm2504, %v3578, %v3580
    %v3582 = vrot.slane %v3561, 2
    %v3583 = vsel %vm2504, %v3580, %v3582
    %v3584 = vrot.slane %v3562, 2
    %v3585 = vsel %vm2504, %v3582, %v3584
    %v3594 = vadd.f32 %v3545, %v3573
    %v3595 = vadd.f32 %v3546, %v3575
    %v3596 = vadd.f32 %v3547, %v3577
    %v3597 = vadd.f32 %v3548, %v3579
    %v3598 = vadd.f32 %v3549, %v3581
    %v3599 = vadd.f32 %v3550, %v3583
    %v3600 = vadd.f32 %v3551, %v3585
    %v3601 = vadd.f32 %v3552, %v3584
    %s3602 = sld [smem:[#allocation14 + $0x7]]
    %v3603 = vstv %s3602
    %v3604 = vmul.f32 %v3603, %v3246
    %v3605 = vmul.f32 %v3603, %v3247
    %v3606 = vmul.f32 %v3603, %v3248
    %v3607 = vmul.f32 %v3603, %v3249
    %v3608 = vmul.f32 %v3603, %v3250
    %v3609 = vmul.f32 %v3603, %v3251
    %v3610 = vmul.f32 %v3603, %v3252
    %v3611 = vmul.f32 %v3603, %v3253
    %v3620 = vrot.slane %v3604, 2
    %v3621 = vrot.slane %v3605, 2
    %v3622 = vsel %vm2504, %v3620, %v3621
    %v3623 = vrot.slane %v3606, 2
    %v3624 = vsel %vm2504, %v3621, %v3623
    %v3625 = vrot.slane %v3607, 2
    %v3626 = vsel %vm2504, %v3623, %v3625
    %v3627 = vrot.slane %v3608, 2
    %v3628 = vsel %vm2504, %v3625, %v3627
    %v3629 = vrot.slane %v3609, 2
    %v3630 = vsel %vm2504, %v3627, %v3629
    %v3631 = vrot.slane %v3610, 2
    %v3632 = vsel %vm2504, %v3629, %v3631
    %v3633 = vrot.slane %v3611, 2
    %v3634 = vsel %vm2504, %v3631, %v3633
    %3635 = vrot.lane.b32.xlu0 %v3622, 127
    %v3636 = vpop.permute.xlu0 %3635
    %3637 = vrot.lane.b32.xlu0 %v3624, 127
    %v3638 = vpop.permute.xlu0 %3637
    %3639 = vrot.lane.b32.xlu0 %v3626, 127
    %v3640 = vpop.permute.xlu0 %3639
    %3641 = vrot.lane.b32.xlu0 %v3628, 127
    %v3642 = vpop.permute.xlu0 %3641
    %3643 = vrot.lane.b32.xlu0 %v3630, 127
    %v3644 = vpop.permute.xlu0 %3643
    %3645 = vrot.lane.b32.xlu0 %v3632, 127
    %v3646 = vpop.permute.xlu0 %3645
    %3647 = vrot.lane.b32.xlu0 %v3634, 127
    %v3648 = vpop.permute.xlu0 %3647
    %3649 = vrot.lane.b32.xlu0 %v3633, 127
    %v3650 = vpop.permute.xlu0 %3649
    %v3659 = vadd.f32 %v3594, %v3636
    %v3660 = vadd.f32 %v3595, %v3638
    %v3661 = vadd.f32 %v3596, %v3640
    %v3662 = vadd.f32 %v3597, %v3642
    %v3663 = vadd.f32 %v3598, %v3644
    %v3664 = vadd.f32 %v3599, %v3646
    %v3665 = vadd.f32 %v3600, %v3648
    %v3666 = vadd.f32 %v3601, %v3650
    %s3667 = sld [smem:[#allocation14 + $0x8]]
    %v3668 = vstv %s3667
    %v3669 = vmul.f32 %v3668, %v3246
    %v3670 = vmul.f32 %v3668, %v3247
    %v3671 = vmul.f32 %v3668, %v3248
    %v3672 = vmul.f32 %v3668, %v3249
    %v3673 = vmul.f32 %v3668, %v3250
    %v3674 = vmul.f32 %v3668, %v3251
    %v3675 = vmul.f32 %v3668, %v3252
    %v3676 = vmul.f32 %v3668, %v3253
    %v3685 = vrot.slane %v3669, 2
    %v3686 = vrot.slane %v3670, 2
    %v3687 = vsel %vm2504, %v3685, %v3686
    %v3688 = vrot.slane %v3671, 2
    %v3689 = vsel %vm2504, %v3686, %v3688
    %v3690 = vrot.slane %v3672, 2
    %v3691 = vsel %vm2504, %v3688, %v3690
    %v3692 = vrot.slane %v3673, 2
    %v3693 = vsel %vm2504, %v3690, %v3692
    %v3694 = vrot.slane %v3674, 2
    %v3695 = vsel %vm2504, %v3692, %v3694
    %v3696 = vrot.slane %v3675, 2
    %v3697 = vsel %vm2504, %v3694, %v3696
    %v3698 = vrot.slane %v3676, 2
    %v3699 = vsel %vm2504, %v3696, %v3698
    %3700 = vrot.lane.b32.xlu0 %v3687, 126
    %v3701 = vpop.permute.xlu0 %3700
    %3702 = vrot.lane.b32.xlu0 %v3689, 126
    %v3703 = vpop.permute.xlu0 %3702
    %3704 = vrot.lane.b32.xlu0 %v3691, 126
    %v3705 = vpop.permute.xlu0 %3704
    %3706 = vrot.lane.b32.xlu0 %v3693, 126
    %v3707 = vpop.permute.xlu0 %3706
    %3708 = vrot.lane.b32.xlu0 %v3695, 126
    %v3709 = vpop.permute.xlu0 %3708
    %3710 = vrot.lane.b32.xlu0 %v3697, 126
    %v3711 = vpop.permute.xlu0 %3710
    %3712 = vrot.lane.b32.xlu0 %v3699, 126
    %v3713 = vpop.permute.xlu0 %3712
    %3714 = vrot.lane.b32.xlu0 %v3698, 126
    %v3715 = vpop.permute.xlu0 %3714
    %v3724 = vadd.f32 %v3659, %v3701
    %v3725 = vadd.f32 %v3660, %v3703
    %v3726 = vadd.f32 %v3661, %v3705
    %v3727 = vadd.f32 %v3662, %v3707
    %v3728 = vadd.f32 %v3663, %v3709
    %v3729 = vadd.f32 %v3664, %v3711
    %v3730 = vadd.f32 %v3665, %v3713
    %v3731 = vadd.f32 %v3666, %v3715
    %vm3732 = vcmp.gt.f32.partialorder %v3724, 0.0
    %vm3733 = vcmp.gt.f32.partialorder %v3725, 0.0
    %vm3734 = vcmp.gt.f32.partialorder %v3726, 0.0
    %vm3735 = vcmp.gt.f32.partialorder %v3727, 0.0
    %vm3736 = vcmp.gt.f32.partialorder %v3728, 0.0
    %vm3737 = vcmp.gt.f32.partialorder %v3729, 0.0
    %vm3738 = vcmp.gt.f32.partialorder %v3730, 0.0
    %vm3739 = vcmp.gt.f32.partialorder %v3731, 0.0
    %v3740 = vmin.f32 %v3724, 0.0
    %v3741 = vmin.f32 %v3725, 0.0
    %v3742 = vmin.f32 %v3726, 0.0
    %v3743 = vmin.f32 %v3727, 0.0
    %v3744 = vmin.f32 %v3728, 0.0
    %v3745 = vmin.f32 %v3729, 0.0
    %v3746 = vmin.f32 %v3730, 0.0
    %v3747 = vmin.f32 %v3731, 0.0
    %v3748 = vmul.f32 %v3740, 1.442695
    %v3749 = vpow.pop %v3748
    %v3750 = vmul.f32 %v3741, 1.442695
    %v3751 = vpow.pop %v3750
    %v3752 = vmul.f32 %v3742, 1.442695
    %v3753 = vpow.pop %v3752
    %v3754 = vmul.f32 %v3743, 1.442695
    %v3755 = vpow.pop %v3754
    %v3756 = vmul.f32 %v3744, 1.442695
    %v3757 = vpow.pop %v3756
    %v3758 = vmul.f32 %v3745, 1.442695
    %v3759 = vpow.pop %v3758
    %v3760 = vmul.f32 %v3746, 1.442695
    %v3761 = vpow.pop %v3760
    %v3762 = vmul.f32 %v3747, 1.442695
    %v3763 = vpow.pop %v3762
    %v3764 = vsub.f32 %v3749, 1.0
    %v3765 = vsub.f32 %v3751, 1.0
    %v3766 = vsub.f32 %v3753, 1.0
    %v3767 = vsub.f32 %v3755, 1.0
    %v3768 = vsub.f32 %v3757, 1.0
    %v3769 = vsub.f32 %v3759, 1.0
    %v3770 = vsub.f32 %v3761, 1.0
    %v3771 = vsub.f32 %v3763, 1.0
    %v3772 = vsel %vm3732, %v3724, %v3764
    %v3773 = vsel %vm3733, %v3725, %v3765
    %v3774 = vsel %vm3734, %v3726, %v3766
    %v3775 = vsel %vm3735, %v3727, %v3767
    %v3776 = vsel %vm3736, %v3728, %v3768
    %v3777 = vsel %vm3737, %v3729, %v3769
    %v3778 = vsel %vm3738, %v3730, %v3770
    %v3779 = vsel %vm3739, %v3731, %v3771
    %s3780 = sld [smem:[#allocation8]]
    %v3781 = vstv %s3780
    %s3782 = sld [smem:[#allocation16]]
    %v3783 = vstv %s3782
    %v3784 = vmul.f32 %v3783, %v3772
    %v3785 = vmul.f32 %v3783, %v3773
    %v3786 = vmul.f32 %v3783, %v3774
    %v3787 = vmul.f32 %v3783, %v3775
    %v3788 = vmul.f32 %v3783, %v3776
    %v3789 = vmul.f32 %v3783, %v3777
    %v3790 = vmul.f32 %v3783, %v3778
    %v3791 = vmul.f32 %v3783, %v3779
    %v3792 = vadd.f32 %v3781, %v3784
    %v3793 = vadd.f32 %v3781, %v3785
    %v3794 = vadd.f32 %v3781, %v3786
    %v3795 = vadd.f32 %v3781, %v3787
    %v3796 = vadd.f32 %v3781, %v3788
    %v3797 = vadd.f32 %v3781, %v3789
    %v3798 = vadd.f32 %v3781, %v3790
    %v3799 = vadd.f32 %v3781, %v3791
    %s3800 = sld [smem:[#allocation16 + $0x1]]
    %v3801 = vstv %s3800
    %v3802 = vmul.f32 %v3801, %v3772
    %v3803 = vmul.f32 %v3801, %v3773
    %v3804 = vmul.f32 %v3801, %v3774
    %v3805 = vmul.f32 %v3801, %v3775
    %v3806 = vmul.f32 %v3801, %v3776
    %v3807 = vmul.f32 %v3801, %v3777
    %v3808 = vmul.f32 %v3801, %v3778
    %v3809 = vmul.f32 %v3801, %v3779
    %3818 = vrot.lane.b32.xlu0 %v3802, 127
    %v3819 = vpop.permute.xlu0 %3818
    %3820 = vrot.lane.b32.xlu0 %v3803, 127
    %v3821 = vpop.permute.xlu0 %3820
    %3822 = vrot.lane.b32.xlu0 %v3804, 127
    %v3823 = vpop.permute.xlu0 %3822
    %3824 = vrot.lane.b32.xlu0 %v3805, 127
    %v3825 = vpop.permute.xlu0 %3824
    %3826 = vrot.lane.b32.xlu0 %v3806, 127
    %v3827 = vpop.permute.xlu0 %3826
    %3828 = vrot.lane.b32.xlu0 %v3807, 127
    %v3829 = vpop.permute.xlu0 %3828
    %3830 = vrot.lane.b32.xlu0 %v3808, 127
    %v3831 = vpop.permute.xlu0 %3830
    %3832 = vrot.lane.b32.xlu0 %v3809, 127
    %v3833 = vpop.permute.xlu0 %3832
    %v3842 = vadd.f32 %v3792, %v3819
    %v3843 = vadd.f32 %v3793, %v3821
    %v3844 = vadd.f32 %v3794, %v3823
    %v3845 = vadd.f32 %v3795, %v3825
    %v3846 = vadd.f32 %v3796, %v3827
    %v3847 = vadd.f32 %v3797, %v3829
    %v3848 = vadd.f32 %v3798, %v3831
    %v3849 = vadd.f32 %v3799, %v3833
    %s3850 = sld [smem:[#allocation16 + $0x2]]
    %v3851 = vstv %s3850
    %v3852 = vmul.f32 %v3851, %v3772
    %v3853 = vmul.f32 %v3851, %v3773
    %v3854 = vmul.f32 %v3851, %v3774
    %v3855 = vmul.f32 %v3851, %v3775
    %v3856 = vmul.f32 %v3851, %v3776
    %v3857 = vmul.f32 %v3851, %v3777
    %v3858 = vmul.f32 %v3851, %v3778
    %v3859 = vmul.f32 %v3851, %v3779
    %3868 = vrot.lane.b32.xlu0 %v3852, 126
    %v3869 = vpop.permute.xlu0 %3868
    %3870 = vrot.lane.b32.xlu0 %v3853, 126
    %v3871 = vpop.permute.xlu0 %3870
    %3872 = vrot.lane.b32.xlu0 %v3854, 126
    %v3873 = vpop.permute.xlu0 %3872
    %3874 = vrot.lane.b32.xlu0 %v3855, 126
    %v3875 = vpop.permute.xlu0 %3874
    %3876 = vrot.lane.b32.xlu0 %v3856, 126
    %v3877 = vpop.permute.xlu0 %3876
    %3878 = vrot.lane.b32.xlu0 %v3857, 126
    %v3879 = vpop.permute.xlu0 %3878
    %3880 = vrot.lane.b32.xlu0 %v3858, 126
    %v3881 = vpop.permute.xlu0 %3880
    %3882 = vrot.lane.b32.xlu0 %v3859, 126
    %v3883 = vpop.permute.xlu0 %3882
    %v3892 = vadd.f32 %v3842, %v3869
    %v3893 = vadd.f32 %v3843, %v3871
    %v3894 = vadd.f32 %v3844, %v3873
    %v3895 = vadd.f32 %v3845, %v3875
    %v3896 = vadd.f32 %v3846, %v3877
    %v3897 = vadd.f32 %v3847, %v3879
    %v3898 = vadd.f32 %v3848, %v3881
    %v3899 = vadd.f32 %v3849, %v3883
    %s3900 = sld [smem:[#allocation16 + $0x3]]
    %v3901 = vstv %s3900
    %v3902 = vmul.f32 %v3901, %v3772
    %v3903 = vmul.f32 %v3901, %v3773
    %v3904 = vmul.f32 %v3901, %v3774
    %v3905 = vmul.f32 %v3901, %v3775
    %v3906 = vmul.f32 %v3901, %v3776
    %v3907 = vmul.f32 %v3901, %v3777
    %v3908 = vmul.f32 %v3901, %v3778
    %v3909 = vmul.f32 %v3901, %v3779
    %v3918 = vrot.slane %v3902, 1
    %v3919 = vrot.slane %v3903, 1
    %v3920 = vsel %vm1514, %v3918, %v3919
    %v3921 = vrot.slane %v3904, 1
    %v3922 = vsel %vm1514, %v3919, %v3921
    %v3923 = vrot.slane %v3905, 1
    %v3924 = vsel %vm1514, %v3921, %v3923
    %v3925 = vrot.slane %v3906, 1
    %v3926 = vsel %vm1514, %v3923, %v3925
    %v3927 = vrot.slane %v3907, 1
    %v3928 = vsel %vm1514, %v3925, %v3927
    %v3929 = vrot.slane %v3908, 1
    %v3930 = vsel %vm1514, %v3927, %v3929
    %v3931 = vrot.slane %v3909, 1
    %v3932 = vsel %vm1514, %v3929, %v3931
    %v3941 = vadd.f32 %v3892, %v3920
    %v3942 = vadd.f32 %v3893, %v3922
    %v3943 = vadd.f32 %v3894, %v3924
    %v3944 = vadd.f32 %v3895, %v3926
    %v3945 = vadd.f32 %v3896, %v3928
    %v3946 = vadd.f32 %v3897, %v3930
    %v3947 = vadd.f32 %v3898, %v3932
    %v3948 = vadd.f32 %v3899, %v3931
    %s3949 = sld [smem:[#allocation16 + $0x4]]
    %v3950 = vstv %s3949
    %v3951 = vmul.f32 %v3950, %v3772
    %v3952 = vmul.f32 %v3950, %v3773
    %v3953 = vmul.f32 %v3950, %v3774
    %v3954 = vmul.f32 %v3950, %v3775
    %v3955 = vmul.f32 %v3950, %v3776
    %v3956 = vmul.f32 %v3950, %v3777
    %v3957 = vmul.f32 %v3950, %v3778
    %v3958 = vmul.f32 %v3950, %v3779
    %v3967 = vrot.slane %v3951, 1
    %v3968 = vrot.slane %v3952, 1
    %v3969 = vsel %vm1514, %v3967, %v3968
    %v3970 = vrot.slane %v3953, 1
    %v3971 = vsel %vm1514, %v3968, %v3970
    %v3972 = vrot.slane %v3954, 1
    %v3973 = vsel %vm1514, %v3970, %v3972
    %v3974 = vrot.slane %v3955, 1
    %v3975 = vsel %vm1514, %v3972, %v3974
    %v3976 = vrot.slane %v3956, 1
    %v3977 = vsel %vm1514, %v3974, %v3976
    %v3978 = vrot.slane %v3957, 1
    %v3979 = vsel %vm1514, %v3976, %v3978
    %v3980 = vrot.slane %v3958, 1
    %v3981 = vsel %vm1514, %v3978, %v3980
    %3982 = vrot.lane.b32.xlu0 %v3969, 127
    %v3983 = vpop.permute.xlu0 %3982
    %3984 = vrot.lane.b32.xlu0 %v3971, 127
    %v3985 = vpop.permute.xlu0 %3984
    %3986 = vrot.lane.b32.xlu0 %v3973, 127
    %v3987 = vpop.permute.xlu0 %3986
    %3988 = vrot.lane.b32.xlu0 %v3975, 127
    %v3989 = vpop.permute.xlu0 %3988
    %3990 = vrot.lane.b32.xlu0 %v3977, 127
    %v3991 = vpop.permute.xlu0 %3990
    %3992 = vrot.lane.b32.xlu0 %v3979, 127
    %v3993 = vpop.permute.xlu0 %3992
    %3994 = vrot.lane.b32.xlu0 %v3981, 127
    %v3995 = vpop.permute.xlu0 %3994
    %3996 = vrot.lane.b32.xlu0 %v3980, 127
    %v3997 = vpop.permute.xlu0 %3996
    %v4006 = vadd.f32 %v3941, %v3983
    %v4007 = vadd.f32 %v3942, %v3985
    %v4008 = vadd.f32 %v3943, %v3987
    %v4009 = vadd.f32 %v3944, %v3989
    %v4010 = vadd.f32 %v3945, %v3991
    %v4011 = vadd.f32 %v3946, %v3993
    %v4012 = vadd.f32 %v3947, %v3995
    %v4013 = vadd.f32 %v3948, %v3997
    %s4014 = sld [smem:[#allocation16 + $0x5]]
    %v4015 = vstv %s4014
    %v4016 = vmul.f32 %v4015, %v3772
    %v4017 = vmul.f32 %v4015, %v3773
    %v4018 = vmul.f32 %v4015, %v3774
    %v4019 = vmul.f32 %v4015, %v3775
    %v4020 = vmul.f32 %v4015, %v3776
    %v4021 = vmul.f32 %v4015, %v3777
    %v4022 = vmul.f32 %v4015, %v3778
    %v4023 = vmul.f32 %v4015, %v3779
    %v4032 = vrot.slane %v4016, 1
    %v4033 = vrot.slane %v4017, 1
    %v4034 = vsel %vm1514, %v4032, %v4033
    %v4035 = vrot.slane %v4018, 1
    %v4036 = vsel %vm1514, %v4033, %v4035
    %v4037 = vrot.slane %v4019, 1
    %v4038 = vsel %vm1514, %v4035, %v4037
    %v4039 = vrot.slane %v4020, 1
    %v4040 = vsel %vm1514, %v4037, %v4039
    %v4041 = vrot.slane %v4021, 1
    %v4042 = vsel %vm1514, %v4039, %v4041
    %v4043 = vrot.slane %v4022, 1
    %v4044 = vsel %vm1514, %v4041, %v4043
    %v4045 = vrot.slane %v4023, 1
    %v4046 = vsel %vm1514, %v4043, %v4045
    %4047 = vrot.lane.b32.xlu0 %v4034, 126
    %v4048 = vpop.permute.xlu0 %4047
    %4049 = vrot.lane.b32.xlu0 %v4036, 126
    %v4050 = vpop.permute.xlu0 %4049
    %4051 = vrot.lane.b32.xlu0 %v4038, 126
    %v4052 = vpop.permute.xlu0 %4051
    %4053 = vrot.lane.b32.xlu0 %v4040, 126
    %v4054 = vpop.permute.xlu0 %4053
    %4055 = vrot.lane.b32.xlu0 %v4042, 126
    %v4056 = vpop.permute.xlu0 %4055
    %4057 = vrot.lane.b32.xlu0 %v4044, 126
    %v4058 = vpop.permute.xlu0 %4057
    %4059 = vrot.lane.b32.xlu0 %v4046, 126
    %v4060 = vpop.permute.xlu0 %4059
    %4061 = vrot.lane.b32.xlu0 %v4045, 126
    %v4062 = vpop.permute.xlu0 %4061
    %v4071 = vadd.f32 %v4006, %v4048
    %v4072 = vadd.f32 %v4007, %v4050
    %v4073 = vadd.f32 %v4008, %v4052
    %v4074 = vadd.f32 %v4009, %v4054
    %v4075 = vadd.f32 %v4010, %v4056
    %v4076 = vadd.f32 %v4011, %v4058
    %v4077 = vadd.f32 %v4012, %v4060
    %v4078 = vadd.f32 %v4013, %v4062
    %s4079 = sld [smem:[#allocation16 + $0x6]]
    %v4080 = vstv %s4079
    %v4081 = vmul.f32 %v4080, %v3772
    %v4082 = vmul.f32 %v4080, %v3773
    %v4083 = vmul.f32 %v4080, %v3774
    %v4084 = vmul.f32 %v4080, %v3775
    %v4085 = vmul.f32 %v4080, %v3776
    %v4086 = vmul.f32 %v4080, %v3777
    %v4087 = vmul.f32 %v4080, %v3778
    %v4088 = vmul.f32 %v4080, %v3779
    %v4097 = vrot.slane %v4081, 2
    %v4098 = vrot.slane %v4082, 2
    %v4099 = vsel %vm2504, %v4097, %v4098
    %v4100 = vrot.slane %v4083, 2
    %v4101 = vsel %vm2504, %v4098, %v4100
    %v4102 = vrot.slane %v4084, 2
    %v4103 = vsel %vm2504, %v4100, %v4102
    %v4104 = vrot.slane %v4085, 2
    %v4105 = vsel %vm2504, %v4102, %v4104
    %v4106 = vrot.slane %v4086, 2
    %v4107 = vsel %vm2504, %v4104, %v4106
    %v4108 = vrot.slane %v4087, 2
    %v4109 = vsel %vm2504, %v4106, %v4108
    %v4110 = vrot.slane %v4088, 2
    %v4111 = vsel %vm2504, %v4108, %v4110
    %v4120 = vadd.f32 %v4071, %v4099
    %v4121 = vadd.f32 %v4072, %v4101
    %v4122 = vadd.f32 %v4073, %v4103
    %v4123 = vadd.f32 %v4074, %v4105
    %v4124 = vadd.f32 %v4075, %v4107
    %v4125 = vadd.f32 %v4076, %v4109
    %v4126 = vadd.f32 %v4077, %v4111
    %v4127 = vadd.f32 %v4078, %v4110
    %s4128 = sld [smem:[#allocation16 + $0x7]]
    %v4129 = vstv %s4128
    %v4130 = vmul.f32 %v4129, %v3772
    %v4131 = vmul.f32 %v4129, %v3773
    %v4132 = vmul.f32 %v4129, %v3774
    %v4133 = vmul.f32 %v4129, %v3775
    %v4134 = vmul.f32 %v4129, %v3776
    %v4135 = vmul.f32 %v4129, %v3777
    %v4136 = vmul.f32 %v4129, %v3778
    %v4137 = vmul.f32 %v4129, %v3779
    %v4146 = vrot.slane %v4130, 2
    %v4147 = vrot.slane %v4131, 2
    %v4148 = vsel %vm2504, %v4146, %v4147
    %v4149 = vrot.slane %v4132, 2
    %v4150 = vsel %vm2504, %v4147, %v4149
    %v4151 = vrot.slane %v4133, 2
    %v4152 = vsel %vm2504, %v4149, %v4151
    %v4153 = vrot.slane %v4134, 2
    %v4154 = vsel %vm2504, %v4151, %v4153
    %v4155 = vrot.slane %v4135, 2
    %v4156 = vsel %vm2504, %v4153, %v4155
    %v4157 = vrot.slane %v4136, 2
    %v4158 = vsel %vm2504, %v4155, %v4157
    %v4159 = vrot.slane %v4137, 2
    %v4160 = vsel %vm2504, %v4157, %v4159
    %4161 = vrot.lane.b32.xlu0 %v4148, 127
    %v4162 = vpop.permute.xlu0 %4161
    %4163 = vrot.lane.b32.xlu0 %v4150, 127
    %v4164 = vpop.permute.xlu0 %4163
    %4165 = vrot.lane.b32.xlu0 %v4152, 127
    %v4166 = vpop.permute.xlu0 %4165
    %4167 = vrot.lane.b32.xlu0 %v4154, 127
    %v4168 = vpop.permute.xlu0 %4167
    %4169 = vrot.lane.b32.xlu0 %v4156, 127
    %v4170 = vpop.permute.xlu0 %4169
    %4171 = vrot.lane.b32.xlu0 %v4158, 127
    %v4172 = vpop.permute.xlu0 %4171
    %4173 = vrot.lane.b32.xlu0 %v4160, 127
    %v4174 = vpop.permute.xlu0 %4173
    %4175 = vrot.lane.b32.xlu0 %v4159, 127
    %v4176 = vpop.permute.xlu0 %4175
    %v4185 = vadd.f32 %v4120, %v4162
    %v4186 = vadd.f32 %v4121, %v4164
    %v4187 = vadd.f32 %v4122, %v4166
    %v4188 = vadd.f32 %v4123, %v4168
    %v4189 = vadd.f32 %v4124, %v4170
    %v4190 = vadd.f32 %v4125, %v4172
    %v4191 = vadd.f32 %v4126, %v4174
    %v4192 = vadd.f32 %v4127, %v4176
    %s4193 = sld [smem:[#allocation16 + $0x8]]
    %v4194 = vstv %s4193
    %v4195 = vmul.f32 %v4194, %v3772
    %v4196 = vmul.f32 %v4194, %v3773
    %v4197 = vmul.f32 %v4194, %v3774
    %v4198 = vmul.f32 %v4194, %v3775
    %v4199 = vmul.f32 %v4194, %v3776
    %v4200 = vmul.f32 %v4194, %v3777
    %v4201 = vmul.f32 %v4194, %v3778
    %v4202 = vmul.f32 %v4194, %v3779
    %v4211 = vrot.slane %v4195, 2
    %v4212 = vrot.slane %v4196, 2
    %v4213 = vsel %vm2504, %v4211, %v4212
    %v4214 = vrot.slane %v4197, 2
    %v4215 = vsel %vm2504, %v4212, %v4214
    %v4216 = vrot.slane %v4198, 2
    %v4217 = vsel %vm2504, %v4214, %v4216
    %v4218 = vrot.slane %v4199, 2
    %v4219 = vsel %vm2504, %v4216, %v4218
    %v4220 = vrot.slane %v4200, 2
    %v4221 = vsel %vm2504, %v4218, %v4220
    %v4222 = vrot.slane %v4201, 2
    %v4223 = vsel %vm2504, %v4220, %v4222
    %v4224 = vrot.slane %v4202, 2
    %v4225 = vsel %vm2504, %v4222, %v4224
    %4226 = vrot.lane.b32.xlu0 %v4213, 126
    %v4227 = vpop.permute.xlu0 %4226
    %4228 = vrot.lane.b32.xlu0 %v4215, 126
    %v4229 = vpop.permute.xlu0 %4228
    %4230 = vrot.lane.b32.xlu0 %v4217, 126
    %v4231 = vpop.permute.xlu0 %4230
    %4232 = vrot.lane.b32.xlu0 %v4219, 126
    %v4233 = vpop.permute.xlu0 %4232
    %4234 = vrot.lane.b32.xlu0 %v4221, 126
    %v4235 = vpop.permute.xlu0 %4234
    %4236 = vrot.lane.b32.xlu0 %v4223, 126
    %v4237 = vpop.permute.xlu0 %4236
    %4238 = vrot.lane.b32.xlu0 %v4225, 126
    %v4239 = vpop.permute.xlu0 %4238
    %4240 = vrot.lane.b32.xlu0 %v4224, 126
    %v4241 = vpop.permute.xlu0 %4240
    %v4250 = vadd.f32 %v4185, %v4227
    %v4251 = vadd.f32 %v4186, %v4229
    %v4252 = vadd.f32 %v4187, %v4231
    %v4253 = vadd.f32 %v4188, %v4233
    %v4254 = vadd.f32 %v4189, %v4235
    %v4255 = vadd.f32 %v4190, %v4237
    %v4256 = vadd.f32 %v4191, %v4239
    %v4257 = vadd.f32 %v4192, %v4241
    %vm4258 = vcmp.gt.f32.partialorder %v4250, 0.0
    %vm4259 = vcmp.gt.f32.partialorder %v4251, 0.0
    %vm4260 = vcmp.gt.f32.partialorder %v4252, 0.0
    %vm4261 = vcmp.gt.f32.partialorder %v4253, 0.0
    %vm4262 = vcmp.gt.f32.partialorder %v4254, 0.0
    %vm4263 = vcmp.gt.f32.partialorder %v4255, 0.0
    %vm4264 = vcmp.gt.f32.partialorder %v4256, 0.0
    %vm4265 = vcmp.gt.f32.partialorder %v4257, 0.0
    %v4266 = vmin.f32 %v4250, 0.0
    %v4267 = vmin.f32 %v4251, 0.0
    %v4268 = vmin.f32 %v4252, 0.0
    %v4269 = vmin.f32 %v4253, 0.0
    %v4270 = vmin.f32 %v4254, 0.0
    %v4271 = vmin.f32 %v4255, 0.0
    %v4272 = vmin.f32 %v4256, 0.0
    %v4273 = vmin.f32 %v4257, 0.0
    %v4274 = vmul.f32 %v4266, 1.442695
    %v4275 = vpow.pop %v4274
    %v4276 = vmul.f32 %v4267, 1.442695
    %v4277 = vpow.pop %v4276
    %v4278 = vmul.f32 %v4268, 1.442695
    %v4279 = vpow.pop %v4278
    %v4280 = vmul.f32 %v4269, 1.442695
    %v4281 = vpow.pop %v4280
    %v4282 = vmul.f32 %v4270, 1.442695
    %v4283 = vpow.pop %v4282
    %v4284 = vmul.f32 %v4271, 1.442695
    %v4285 = vpow.pop %v4284
    %v4286 = vmul.f32 %v4272, 1.442695
    %v4287 = vpow.pop %v4286
    %v4288 = vmul.f32 %v4273, 1.442695
    %v4289 = vpow.pop %v4288
    %v4290 = vsub.f32 %v4275, 1.0
    %v4291 = vsub.f32 %v4277, 1.0
    %v4292 = vsub.f32 %v4279, 1.0
    %v4293 = vsub.f32 %v4281, 1.0
    %v4294 = vsub.f32 %v4283, 1.0
    %v4295 = vsub.f32 %v4285, 1.0
    %v4296 = vsub.f32 %v4287, 1.0
    %v4297 = vsub.f32 %v4289, 1.0
    %v4298 = vsel %vm4258, %v4250, %v4290
    %v4299 = vsel %vm4259, %v4251, %v4291
    %v4300 = vsel %vm4260, %v4252, %v4292
    %v4301 = vsel %vm4261, %v4253, %v4293
    %v4302 = vsel %vm4262, %v4254, %v4294
    %v4303 = vsel %vm4263, %v4255, %v4295
    %v4304 = vsel %vm4264, %v4256, %v4296
    %v4305 = vsel %vm4265, %v4257, %v4297
    %vm4306 = vcmask 523264
    %4307 = vst.msk [vmem:[#allocation4] sm:$0xff] %vm4306, 0.0
    %4308 = vst.msk [vmem:[#allocation4 + $0x8] sm:$0xff] %vm4306, 0.0
    %4309 = vst.msk [vmem:[#allocation4 + $0x10] sm:$0xff] %vm4306, 0.0
    %4310 = vst.msk [vmem:[#allocation4 + $0x18] sm:$0xff] %vm4306, 0.0
    %4311 = vst.msk [vmem:[#allocation4 + $0x20] sm:$0xff] %vm4306, 0.0
    %4312 = vst.msk [vmem:[#allocation4 + $0x28] sm:$0xff] %vm4306, 0.0
    %4313 = vst.msk [vmem:[#allocation4 + $0x30] sm:$0xff] %vm4306, 0.0
    %4314 = vst.msk [vmem:[#allocation4 + $0x38] sm:$0xff] %vm4306, 0.0
    %vm4315 = vcmask 474112
    %4316 = vst.msk [vmem:[#allocation4] sm:$0xff] %vm4315, %v4298
    %4317 = vst.msk [vmem:[#allocation4 + $0x8] sm:$0xff] %vm4315, %v4299
    %4318 = vst.msk [vmem:[#allocation4 + $0x10] sm:$0xff] %vm4315, %v4300
    %4319 = vst.msk [vmem:[#allocation4 + $0x18] sm:$0xff] %vm4315, %v4301
    %4320 = vst.msk [vmem:[#allocation4 + $0x20] sm:$0xff] %vm4315, %v4302
    %4321 = vst.msk [vmem:[#allocation4 + $0x28] sm:$0xff] %vm4315, %v4303
    %4322 = vst.msk [vmem:[#allocation4 + $0x30] sm:$0xff] %vm4315, %v4304
    %vm4323 = vcmask 467968
    %4324 = vst.msk [vmem:[#allocation4 + $0x38] sm:$0x3] %vm4323, %v4305
    %v4325 = vld [vmem:[#allocation4] sm:$0x1]
    %v4326 = vld [vmem:[#allocation4 + $0x1] sm:$0x1]
    %4328 = vrot.lane.b32.xlu0 %v4326, 64
    %v4329 = vpop.permute.xlu0 %4328
    %v4331 = vsel %vm4306, %v4325, %v4329
    %v4332 = vlaneseq
    %vm4333 = vcmp.ge.s32.totalorder %v4332, 0
    %vm4334 = vcmp.lt.s32.totalorder %v4332, 128
    %vm4335 = vmand %vm4333, %vm4334
    %4336 = vst.msk [vmem:[#allocation5] sm:$0x1] %vm4335, %v4331
    %v4337 = vld [vmem:[#allocation4 + $0x2] sm:$0x1]
    %v4338 = vld [vmem:[#allocation4 + $0x3] sm:$0x1]
    %4340 = vrot.lane.b32.xlu0 %v4338, 64
    %v4341 = vpop.permute.xlu0 %4340
    %v4343 = vsel %vm4306, %v4337, %v4341
    %4344 = vst.msk [vmem:[#allocation5 + $0x1] sm:$0x1] %vm4335, %v4343
    %v4345 = vld [vmem:[#allocation4 + $0x4] sm:$0x1]
    %v4346 = vld [vmem:[#allocation4 + $0x5] sm:$0x1]
    %4348 = vrot.lane.b32.xlu0 %v4346, 64
    %v4349 = vpop.permute.xlu0 %4348
    %v4351 = vsel %vm4306, %v4345, %v4349
    %4352 = vst.msk [vmem:[#allocation5 + $0x2] sm:$0x1] %vm4335, %v4351
    %v4353 = vld [vmem:[#allocation4 + $0x6] sm:$0x1]
    %v4354 = vld [vmem:[#allocation4 + $0x7] sm:$0x1]
    %4356 = vrot.lane.b32.xlu0 %v4354, 64
    %v4357 = vpop.permute.xlu0 %4356
    %v4359 = vsel %vm4306, %v4353, %v4357
    %4360 = vst.msk [vmem:[#allocation5 + $0x3] sm:$0x1] %vm4335, %v4359
    %v4361 = vld [vmem:[#allocation4 + $0x8] sm:$0x1]
    %v4362 = vld [vmem:[#allocation4 + $0x9] sm:$0x1]
    %4364 = vrot.lane.b32.xlu0 %v4362, 64
    %v4365 = vpop.permute.xlu0 %4364
    %v4367 = vsel %vm4306, %v4361, %v4365
    %4368 = vst.msk [vmem:[#allocation5 + $0x4] sm:$0x1] %vm4335, %v4367
    %v4369 = vld [vmem:[#allocation4 + $0xa] sm:$0x1]
    %v4370 = vld [vmem:[#allocation4 + $0xb] sm:$0x1]
    %4372 = vrot.lane.b32.xlu0 %v4370, 64
    %v4373 = vpop.permute.xlu0 %4372
    %v4375 = vsel %vm4306, %v4369, %v4373
    %4376 = vst.msk [vmem:[#allocation5 + $0x5] sm:$0x1] %vm4335, %v4375
    %v4377 = vld [vmem:[#allocation4 + $0xc] sm:$0x1]
    %v4378 = vld [vmem:[#allocation4 + $0xd] sm:$0x1]
    %4380 = vrot.lane.b32.xlu0 %v4378, 64
    %v4381 = vpop.permute.xlu0 %4380
    %v4383 = vsel %vm4306, %v4377, %v4381
    %4384 = vst.msk [vmem:[#allocation5 + $0x6] sm:$0x1] %vm4335, %v4383
    %v4385 = vld [vmem:[#allocation4 + $0xe] sm:$0x1]
    %v4386 = vld [vmem:[#allocation4 + $0xf] sm:$0x1]
    %4388 = vrot.lane.b32.xlu0 %v4386, 64
    %v4389 = vpop.permute.xlu0 %4388
    %v4391 = vsel %vm4306, %v4385, %v4389
    %4392 = vst.msk [vmem:[#allocation5 + $0x7] sm:$0x1] %vm4335, %v4391
    %v4393 = vld [vmem:[#allocation4 + $0x10] sm:$0x1]
    %v4394 = vld [vmem:[#allocation4 + $0x11] sm:$0x1]
    %4396 = vrot.lane.b32.xlu0 %v4394, 64
    %v4397 = vpop.permute.xlu0 %4396
    %v4399 = vsel %vm4306, %v4393, %v4397
    %4400 = vst.msk [vmem:[#allocation5 + $0x8] sm:$0x1] %vm4335, %v4399
    %v4401 = vld [vmem:[#allocation4 + $0x12] sm:$0x1]
    %v4402 = vld [vmem:[#allocation4 + $0x13] sm:$0x1]
    %4404 = vrot.lane.b32.xlu0 %v4402, 64
    %v4405 = vpop.permute.xlu0 %4404
    %v4407 = vsel %vm4306, %v4401, %v4405
    %4408 = vst.msk [vmem:[#allocation5 + $0x9] sm:$0x1] %vm4335, %v4407
    %v4409 = vld [vmem:[#allocation4 + $0x14] sm:$0x1]
    %v4410 = vld [vmem:[#allocation4 + $0x15] sm:$0x1]
    %4412 = vrot.lane.b32.xlu0 %v4410, 64
    %v4413 = vpop.permute.xlu0 %4412
    %v4415 = vsel %vm4306, %v4409, %v4413
    %4416 = vst.msk [vmem:[#allocation5 + $0xa] sm:$0x1] %vm4335, %v4415
    %v4417 = vld [vmem:[#allocation4 + $0x16] sm:$0x1]
    %v4418 = vld [vmem:[#allocation4 + $0x17] sm:$0x1]
    %4420 = vrot.lane.b32.xlu0 %v4418, 64
    %v4421 = vpop.permute.xlu0 %4420
    %v4423 = vsel %vm4306, %v4417, %v4421
    %4424 = vst.msk [vmem:[#allocation5 + $0xb] sm:$0x1] %vm4335, %v4423
    %v4425 = vld [vmem:[#allocation4 + $0x18] sm:$0x1]
    %v4426 = vld [vmem:[#allocation4 + $0x19] sm:$0x1]
    %4428 = vrot.lane.b32.xlu0 %v4426, 64
    %v4429 = vpop.permute.xlu0 %4428
    %v4431 = vsel %vm4306, %v4425, %v4429
    %4432 = vst.msk [vmem:[#allocation5 + $0xc] sm:$0x1] %vm4335, %v4431
    %v4433 = vld [vmem:[#allocation4 + $0x1a] sm:$0x1]
    %v4434 = vld [vmem:[#allocation4 + $0x1b] sm:$0x1]
    %4436 = vrot.lane.b32.xlu0 %v4434, 64
    %v4437 = vpop.permute.xlu0 %4436
    %v4439 = vsel %vm4306, %v4433, %v4437
    %4440 = vst.msk [vmem:[#allocation5 + $0xd] sm:$0x1] %vm4335, %v4439
    %v4441 = vld [vmem:[#allocation4 + $0x1c] sm:$0x1]
    %v4442 = vld [vmem:[#allocation4 + $0x1d] sm:$0x1]
    %4444 = vrot.lane.b32.xlu0 %v4442, 64
    %v4445 = vpop.permute.xlu0 %4444
    %v4447 = vsel %vm4306, %v4441, %v4445
    %4448 = vst.msk [vmem:[#allocation5 + $0xe] sm:$0x1] %vm4335, %v4447
    %v4449 = vld [vmem:[#allocation4 + $0x1e] sm:$0x1]
    %v4450 = vld [vmem:[#allocation4 + $0x1f] sm:$0x1]
    %4452 = vrot.lane.b32.xlu0 %v4450, 64
    %v4453 = vpop.permute.xlu0 %4452
    %v4455 = vsel %vm4306, %v4449, %v4453
    %4456 = vst.msk [vmem:[#allocation5 + $0xf] sm:$0x1] %vm4335, %v4455
    %v4457 = vld [vmem:[#allocation4 + $0x20] sm:$0x1]
    %v4458 = vld [vmem:[#allocation4 + $0x21] sm:$0x1]
    %4460 = vrot.lane.b32.xlu0 %v4458, 64
    %v4461 = vpop.permute.xlu0 %4460
    %v4463 = vsel %vm4306, %v4457, %v4461
    %4464 = vst.msk [vmem:[#allocation5 + $0x10] sm:$0x1] %vm4335, %v4463
    %v4465 = vld [vmem:[#allocation4 + $0x22] sm:$0x1]
    %v4466 = vld [vmem:[#allocation4 + $0x23] sm:$0x1]
    %4468 = vrot.lane.b32.xlu0 %v4466, 64
    %v4469 = vpop.permute.xlu0 %4468
    %v4471 = vsel %vm4306, %v4465, %v4469
    %4472 = vst.msk [vmem:[#allocation5 + $0x11] sm:$0x1] %vm4335, %v4471
    %v4473 = vld [vmem:[#allocation4 + $0x24] sm:$0x1]
    %v4474 = vld [vmem:[#allocation4 + $0x25] sm:$0x1]
    %4476 = vrot.lane.b32.xlu0 %v4474, 64
    %v4477 = vpop.permute.xlu0 %4476
    %v4479 = vsel %vm4306, %v4473, %v4477
    %4480 = vst.msk [vmem:[#allocation5 + $0x12] sm:$0x1] %vm4335, %v4479
    %v4481 = vld [vmem:[#allocation4 + $0x26] sm:$0x1]
    %v4482 = vld [vmem:[#allocation4 + $0x27] sm:$0x1]
    %4484 = vrot.lane.b32.xlu0 %v4482, 64
    %v4485 = vpop.permute.xlu0 %4484
    %v4487 = vsel %vm4306, %v4481, %v4485
    %4488 = vst.msk [vmem:[#allocation5 + $0x13] sm:$0x1] %vm4335, %v4487
    %v4489 = vld [vmem:[#allocation4 + $0x28] sm:$0x1]
    %v4490 = vld [vmem:[#allocation4 + $0x29] sm:$0x1]
    %4492 = vrot.lane.b32.xlu0 %v4490, 64
    %v4493 = vpop.permute.xlu0 %4492
    %v4495 = vsel %vm4306, %v4489, %v4493
    %4496 = vst.msk [vmem:[#allocation5 + $0x14] sm:$0x1] %vm4335, %v4495
    %v4497 = vld [vmem:[#allocation4 + $0x2a] sm:$0x1]
    %v4498 = vld [vmem:[#allocation4 + $0x2b] sm:$0x1]
    %4500 = vrot.lane.b32.xlu0 %v4498, 64
    %v4501 = vpop.permute.xlu0 %4500
    %v4503 = vsel %vm4306, %v4497, %v4501
    %4504 = vst.msk [vmem:[#allocation5 + $0x15] sm:$0x1] %vm4335, %v4503
    %v4505 = vld [vmem:[#allocation4 + $0x2c] sm:$0x1]
    %v4506 = vld [vmem:[#allocation4 + $0x2d] sm:$0x1]
    %4508 = vrot.lane.b32.xlu0 %v4506, 64
    %v4509 = vpop.permute.xlu0 %4508
    %v4511 = vsel %vm4306, %v4505, %v4509
    %4512 = vst.msk [vmem:[#allocation5 + $0x16] sm:$0x1] %vm4335, %v4511
    %v4513 = vld [vmem:[#allocation4 + $0x2e] sm:$0x1]
    %v4514 = vld [vmem:[#allocation4 + $0x2f] sm:$0x1]
    %4516 = vrot.lane.b32.xlu0 %v4514, 64
    %v4517 = vpop.permute.xlu0 %4516
    %v4519 = vsel %vm4306, %v4513, %v4517
    %4520 = vst.msk [vmem:[#allocation5 + $0x17] sm:$0x1] %vm4335, %v4519
    %v4521 = vld [vmem:[#allocation4 + $0x30] sm:$0x1]
    %v4522 = vld [vmem:[#allocation4 + $0x31] sm:$0x1]
    %4524 = vrot.lane.b32.xlu0 %v4522, 64
    %v4525 = vpop.permute.xlu0 %4524
    %v4527 = vsel %vm4306, %v4521, %v4525
    %4528 = vst.msk [vmem:[#allocation5 + $0x18] sm:$0x1] %vm4335, %v4527
    %v4529 = vld [vmem:[#allocation4 + $0x32] sm:$0x1]
    %v4530 = vld [vmem:[#allocation4 + $0x33] sm:$0x1]
    %4532 = vrot.lane.b32.xlu0 %v4530, 64
    %v4533 = vpop.permute.xlu0 %4532
    %v4535 = vsel %vm4306, %v4529, %v4533
    %4536 = vst.msk [vmem:[#allocation5 + $0x19] sm:$0x1] %vm4335, %v4535
    %v4537 = vld [vmem:[#allocation4 + $0x34] sm:$0x1]
    %v4538 = vld [vmem:[#allocation4 + $0x35] sm:$0x1]
    %4540 = vrot.lane.b32.xlu0 %v4538, 64
    %v4541 = vpop.permute.xlu0 %4540
    %v4543 = vsel %vm4306, %v4537, %v4541
    %4544 = vst.msk [vmem:[#allocation5 + $0x1a] sm:$0x1] %vm4335, %v4543
    %v4545 = vld [vmem:[#allocation4 + $0x36] sm:$0x1]
    %v4546 = vld [vmem:[#allocation4 + $0x37] sm:$0x1]
    %4548 = vrot.lane.b32.xlu0 %v4546, 64
    %v4549 = vpop.permute.xlu0 %4548
    %v4551 = vsel %vm4306, %v4545, %v4549
    %4552 = vst.msk [vmem:[#allocation5 + $0x1b] sm:$0x1] %vm4335, %v4551
    %v4553 = vld [vmem:[#allocation4 + $0x38] sm:$0x1]
    %v4554 = vld [vmem:[#allocation4 + $0x39] sm:$0x1]
    %4556 = vrot.lane.b32.xlu0 %v4554, 64
    %v4557 = vpop.permute.xlu0 %4556
    %v4559 = vsel %vm4306, %v4553, %v4557
    %4560 = vst.msk [vmem:[#allocation5 + $0x1c] sm:$0x1] %vm4335, %v4559
    %v4561 = vld [vmem:[#allocation4 + $0x3a] sm:$0x1]
    %v4562 = vld [vmem:[#allocation4 + $0x3b] sm:$0x1]
    %4564 = vrot.lane.b32.xlu0 %v4562, 64
    %v4565 = vpop.permute.xlu0 %4564
    %v4567 = vsel %vm4306, %v4561, %v4565
    %4568 = vst.msk [vmem:[#allocation5 + $0x1d] sm:$0x1] %vm4335, %v4567
    %v4569 = vld [vmem:[#allocation4 + $0x3c] sm:$0x1]
    %v4570 = vld [vmem:[#allocation4 + $0x3d] sm:$0x1]
    %4572 = vrot.lane.b32.xlu0 %v4570, 64
    %v4573 = vpop.permute.xlu0 %4572
    %v4575 = vsel %vm4306, %v4569, %v4573
    %4576 = vst.msk [vmem:[#allocation5 + $0x1e] sm:$0x1] %vm4335, %v4575
    %v4577 = vld [vmem:[#allocation4 + $0x3e] sm:$0x1]
    %v4578 = vld [vmem:[#allocation4 + $0x3f] sm:$0x1]
    %4580 = vrot.lane.b32.xlu0 %v4578, 64
    %v4581 = vpop.permute.xlu0 %4580
    %v4583 = vsel %vm4306, %v4577, %v4581
    %4584 = vst.msk [vmem:[#allocation5 + $0x1f] sm:$0x1] %vm4335, %v4583
    %s4585 = smul.u32 4, 512
    %s4586 = smul.u32 %s4585, 1
    %s4587 = sshll.u32 %s4586, 4
    %4588 = dma.done [#allocation3], %s4587
    %v4589 = vld [vmem:[#allocation5] sm:$0xff]
    %v4590 = vld [vmem:[#allocation5 + $0x8] sm:$0xff]
    %v4591 = vld [vmem:[#allocation5 + $0x10] sm:$0xff]
    %v4592 = vld [vmem:[#allocation5 + $0x18] sm:$0xff]
    %v4597 = vlaneseq
    %v4598 = vshrl.u32 %v4597, 7
    %v4599 = vsub.s32 0, %v4598
    %v4600 = vrot.slane %v4589, %v4599
    %v4601 = vlaneseq
    %v4602 = vshrl.u32 %v4601, 7
    %v4603 = vsub.s32 1, %v4602
    %v4604 = vrot.slane %v4589, %v4603
    %v4605 = vlaneseq
    %v4606 = vshrl.u32 %v4605, 7
    %v4607 = vsub.s32 2, %v4606
    %v4608 = vrot.slane %v4589, %v4607
    %v4609 = vlaneseq
    %v4610 = vshrl.u32 %v4609, 7
    %v4611 = vsub.s32 3, %v4610
    %v4612 = vrot.slane %v4589, %v4611
    %v4613 = vlaneseq
    %v4614 = vshrl.u32 %v4613, 7
    %v4615 = vsub.s32 4, %v4614
    %v4616 = vrot.slane %v4589, %v4615
    %v4617 = vlaneseq
    %v4618 = vshrl.u32 %v4617, 7
    %v4619 = vsub.s32 5, %v4618
    %v4620 = vrot.slane %v4589, %v4619
    %v4621 = vlaneseq
    %v4622 = vshrl.u32 %v4621, 7
    %v4623 = vsub.s32 6, %v4622
    %v4624 = vrot.slane %v4589, %v4623
    %v4625 = vlaneseq
    %v4626 = vshrl.u32 %v4625, 7
    %v4627 = vsub.s32 7, %v4626
    %v4628 = vrot.slane %v4589, %v4627
    %v4629 = vlaneseq
    %v4630 = vshrl.u32 %v4629, 7
    %v4631 = vsub.s32 0, %v4630
    %v4632 = vrot.slane %v4590, %v4631
    %v4633 = vlaneseq
    %v4634 = vshrl.u32 %v4633, 7
    %v4635 = vsub.s32 1, %v4634
    %v4636 = vrot.slane %v4590, %v4635
    %v4637 = vlaneseq
    %v4638 = vshrl.u32 %v4637, 7
    %v4639 = vsub.s32 2, %v4638
    %v4640 = vrot.slane %v4590, %v4639
    %v4641 = vlaneseq
    %v4642 = vshrl.u32 %v4641, 7
    %v4643 = vsub.s32 3, %v4642
    %v4644 = vrot.slane %v4590, %v4643
    %v4645 = vlaneseq
    %v4646 = vshrl.u32 %v4645, 7
    %v4647 = vsub.s32 4, %v4646
    %v4648 = vrot.slane %v4590, %v4647
    %v4649 = vlaneseq
    %v4650 = vshrl.u32 %v4649, 7
    %v4651 = vsub.s32 5, %v4650
    %v4652 = vrot.slane %v4590, %v4651
    %v4653 = vlaneseq
    %v4654 = vshrl.u32 %v4653, 7
    %v4655 = vsub.s32 6, %v4654
    %v4656 = vrot.slane %v4590, %v4655
    %v4657 = vlaneseq
    %v4658 = vshrl.u32 %v4657, 7
    %v4659 = vsub.s32 7, %v4658
    %v4660 = vrot.slane %v4590, %v4659
    %v4661 = vlaneseq
    %v4662 = vshrl.u32 %v4661, 7
    %v4663 = vsub.s32 0, %v4662
    %v4664 = vrot.slane %v4591, %v4663
    %v4665 = vlaneseq
    %v4666 = vshrl.u32 %v4665, 7
    %v4667 = vsub.s32 1, %v4666
    %v4668 = vrot.slane %v4591, %v4667
    %v4669 = vlaneseq
    %v4670 = vshrl.u32 %v4669, 7
    %v4671 = vsub.s32 2, %v4670
    %v4672 = vrot.slane %v4591, %v4671
    %v4673 = vlaneseq
    %v4674 = vshrl.u32 %v4673, 7
    %v4675 = vsub.s32 3, %v4674
    %v4676 = vrot.slane %v4591, %v4675
    %v4677 = vlaneseq
    %v4678 = vshrl.u32 %v4677, 7
    %v4679 = vsub.s32 4, %v4678
    %v4680 = vrot.slane %v4591, %v4679
    %v4681 = vlaneseq
    %v4682 = vshrl.u32 %v4681, 7
    %v4683 = vsub.s32 5, %v4682
    %v4684 = vrot.slane %v4591, %v4683
    %v4685 = vlaneseq
    %v4686 = vshrl.u32 %v4685, 7
    %v4687 = vsub.s32 6, %v4686
    %v4688 = vrot.slane %v4591, %v4687
    %v4689 = vlaneseq
    %v4690 = vshrl.u32 %v4689, 7
    %v4691 = vsub.s32 7, %v4690
    %v4692 = vrot.slane %v4591, %v4691
    %v4693 = vlaneseq
    %v4694 = vshrl.u32 %v4693, 7
    %v4695 = vsub.s32 0, %v4694
    %v4696 = vrot.slane %v4592, %v4695
    %v4697 = vlaneseq
    %v4698 = vshrl.u32 %v4697, 7
    %v4699 = vsub.s32 1, %v4698
    %v4700 = vrot.slane %v4592, %v4699
    %v4701 = vlaneseq
    %v4702 = vshrl.u32 %v4701, 7
    %v4703 = vsub.s32 2, %v4702
    %v4704 = vrot.slane %v4592, %v4703
    %v4705 = vlaneseq
    %v4706 = vshrl.u32 %v4705, 7
    %v4707 = vsub.s32 3, %v4706
    %v4708 = vrot.slane %v4592, %v4707
    %v4709 = vlaneseq
    %v4710 = vshrl.u32 %v4709, 7
    %v4711 = vsub.s32 4, %v4710
    %v4712 = vrot.slane %v4592, %v4711
    %v4713 = vlaneseq
    %v4714 = vshrl.u32 %v4713, 7
    %v4715 = vsub.s32 5, %v4714
    %v4716 = vrot.slane %v4592, %v4715
    %v4717 = vlaneseq
    %v4718 = vshrl.u32 %v4717, 7
    %v4719 = vsub.s32 6, %v4718
    %v4720 = vrot.slane %v4592, %v4719
    %v4721 = vlaneseq
    %v4722 = vshrl.u32 %v4721, 7
    %v4723 = vsub.s32 7, %v4722
    %v4724 = vrot.slane %v4592, %v4723
    %v4757 = vpack.c.bf16 %v4600, %v4600
    %v4758 = vpack.c.bf16 %v4604, %v4604
    %v4759 = vpack.c.bf16 %v4608, %v4608
    %v4760 = vpack.c.bf16 %v4612, %v4612
    %v4761 = vpack.c.bf16 %v4616, %v4616
    %v4762 = vpack.c.bf16 %v4620, %v4620
    %v4763 = vpack.c.bf16 %v4624, %v4624
    %v4764 = vpack.c.bf16 %v4628, %v4628
    %v4765 = vpack.c.bf16 %v4632, %v4632
    %v4766 = vpack.c.bf16 %v4636, %v4636
    %v4767 = vpack.c.bf16 %v4640, %v4640
    %v4768 = vpack.c.bf16 %v4644, %v4644
    %v4769 = vpack.c.bf16 %v4648, %v4648
    %v4770 = vpack.c.bf16 %v4652, %v4652
    %v4771 = vpack.c.bf16 %v4656, %v4656
    %v4772 = vpack.c.bf16 %v4660, %v4660
    %v4773 = vpack.c.bf16 %v4664, %v4664
    %v4774 = vpack.c.bf16 %v4668, %v4668
    %v4775 = vpack.c.bf16 %v4672, %v4672
    %v4776 = vpack.c.bf16 %v4676, %v4676
    %v4777 = vpack.c.bf16 %v4680, %v4680
    %v4778 = vpack.c.bf16 %v4684, %v4684
    %v4779 = vpack.c.bf16 %v4688, %v4688
    %v4780 = vpack.c.bf16 %v4692, %v4692
    %v4781 = vpack.c.bf16 %v4696, %v4696
    %v4782 = vpack.c.bf16 %v4700, %v4700
    %v4783 = vpack.c.bf16 %v4704, %v4704
    %v4784 = vpack.c.bf16 %v4708, %v4708
    %v4785 = vpack.c.bf16 %v4712, %v4712
    %v4786 = vpack.c.bf16 %v4716, %v4716
    %v4787 = vpack.c.bf16 %v4720, %v4720
    %v4788 = vpack.c.bf16 %v4724, %v4724
    %v4789 = vld [vmem:[#allocation2] sm:$0xff]
    %v4790 = vld [vmem:[#allocation2 + $0x8] sm:$0xff]
    %v4791 = vld [vmem:[#allocation2 + $0x10] sm:$0xff]
    %v4792 = vld [vmem:[#allocation2 + $0x18] sm:$0xff]
    %v4793 = vld [vmem:[#allocation2 + $0x20] sm:$0xff]
    %v4794 = vld [vmem:[#allocation2 + $0x28] sm:$0xff]
    %v4795 = vld [vmem:[#allocation2 + $0x30] sm:$0xff]
    %v4796 = vld [vmem:[#allocation2 + $0x38] sm:$0xff]
    %v4797 = vld [vmem:[#allocation2 + $0x40] sm:$0xff]
    %v4798 = vld [vmem:[#allocation2 + $0x48] sm:$0xff]
    %v4799 = vld [vmem:[#allocation2 + $0x50] sm:$0xff]
    %v4800 = vld [vmem:[#allocation2 + $0x58] sm:$0xff]
    %v4801 = vld [vmem:[#allocation2 + $0x60] sm:$0xff]
    %v4802 = vld [vmem:[#allocation2 + $0x68] sm:$0xff]
    %v4803 = vld [vmem:[#allocation2 + $0x70] sm:$0xff]
    %v4804 = vld [vmem:[#allocation2 + $0x78] sm:$0xff]
    %v4805 = vld [vmem:[#allocation2 + $0x80] sm:$0xff]
    %v4806 = vld [vmem:[#allocation2 + $0x88] sm:$0xff]
    %v4807 = vld [vmem:[#allocation2 + $0x90] sm:$0xff]
    %v4808 = vld [vmem:[#allocation2 + $0x98] sm:$0xff]
    %v4809 = vld [vmem:[#allocation2 + $0xa0] sm:$0xff]
    %v4810 = vld [vmem:[#allocation2 + $0xa8] sm:$0xff]
    %v4811 = vld [vmem:[#allocation2 + $0xb0] sm:$0xff]
    %v4812 = vld [vmem:[#allocation2 + $0xb8] sm:$0xff]
    %v4813 = vld [vmem:[#allocation2 + $0xc0] sm:$0xff]
    %v4814 = vld [vmem:[#allocation2 + $0xc8] sm:$0xff]
    %v4815 = vld [vmem:[#allocation2 + $0xd0] sm:$0xff]
    %v4816 = vld [vmem:[#allocation2 + $0xd8] sm:$0xff]
    %v4817 = vld [vmem:[#allocation2 + $0xe0] sm:$0xff]
    %v4818 = vld [vmem:[#allocation2 + $0xe8] sm:$0xff]
    %v4819 = vld [vmem:[#allocation2 + $0xf0] sm:$0xff]
    %v4820 = vld [vmem:[#allocation2 + $0xf8] sm:$0xff]
    %v4821 = vld [vmem:[#allocation2 + $0x100] sm:$0xff]
    %v4822 = vld [vmem:[#allocation2 + $0x108] sm:$0xff]
    %v4823 = vld [vmem:[#allocation2 + $0x110] sm:$0xff]
    %v4824 = vld [vmem:[#allocation2 + $0x118] sm:$0xff]
    %v4825 = vld [vmem:[#allocation2 + $0x120] sm:$0xff]
    %v4826 = vld [vmem:[#allocation2 + $0x128] sm:$0xff]
    %v4827 = vld [vmem:[#allocation2 + $0x130] sm:$0xff]
    %v4828 = vld [vmem:[#allocation2 + $0x138] sm:$0xff]
    %v4829 = vld [vmem:[#allocation2 + $0x140] sm:$0xff]
    %v4830 = vld [vmem:[#allocation2 + $0x148] sm:$0xff]
    %v4831 = vld [vmem:[#allocation2 + $0x150] sm:$0xff]
    %v4832 = vld [vmem:[#allocation2 + $0x158] sm:$0xff]
    %v4833 = vld [vmem:[#allocation2 + $0x160] sm:$0xff]
    %v4834 = vld [vmem:[#allocation2 + $0x168] sm:$0xff]
    %v4835 = vld [vmem:[#allocation2 + $0x170] sm:$0xff]
    %v4836 = vld [vmem:[#allocation2 + $0x178] sm:$0xff]
    %v4837 = vld [vmem:[#allocation2 + $0x180] sm:$0xff]
    %v4838 = vld [vmem:[#allocation2 + $0x188] sm:$0xff]
    %v4839 = vld [vmem:[#allocation2 + $0x190] sm:$0xff]
    %v4840 = vld [vmem:[#allocation2 + $0x198] sm:$0xff]
    %v4841 = vld [vmem:[#allocation2 + $0x1a0] sm:$0xff]
    %v4842 = vld [vmem:[#allocation2 + $0x1a8] sm:$0xff]
    %v4843 = vld [vmem:[#allocation2 + $0x1b0] sm:$0xff]
    %v4844 = vld [vmem:[#allocation2 + $0x1b8] sm:$0xff]
    %v4845 = vld [vmem:[#allocation2 + $0x1c0] sm:$0xff]
    %v4846 = vld [vmem:[#allocation2 + $0x1c8] sm:$0xff]
    %v4847 = vld [vmem:[#allocation2 + $0x1d0] sm:$0xff]
    %v4848 = vld [vmem:[#allocation2 + $0x1d8] sm:$0xff]
    %v4849 = vld [vmem:[#allocation2 + $0x1e0] sm:$0xff]
    %v4850 = vld [vmem:[#allocation2 + $0x1e8] sm:$0xff]
    %v4851 = vld [vmem:[#allocation2 + $0x1f0] sm:$0xff]
    %v4852 = vld [vmem:[#allocation2 + $0x1f8] sm:$0xff]
    %v4853 = vld [vmem:[#allocation2 + $0x200] sm:$0xff]
    %v4854 = vld [vmem:[#allocation2 + $0x208] sm:$0xff]
    %v4855 = vld [vmem:[#allocation2 + $0x210] sm:$0xff]
    %v4856 = vld [vmem:[#allocation2 + $0x218] sm:$0xff]
    %v4857 = vld [vmem:[#allocation2 + $0x220] sm:$0xff]
    %v4858 = vld [vmem:[#allocation2 + $0x228] sm:$0xff]
    %v4859 = vld [vmem:[#allocation2 + $0x230] sm:$0xff]
    %v4860 = vld [vmem:[#allocation2 + $0x238] sm:$0xff]
    %v4861 = vld [vmem:[#allocation2 + $0x240] sm:$0xff]
    %v4862 = vld [vmem:[#allocation2 + $0x248] sm:$0xff]
    %v4863 = vld [vmem:[#allocation2 + $0x250] sm:$0xff]
    %v4864 = vld [vmem:[#allocation2 + $0x258] sm:$0xff]
    %v4865 = vld [vmem:[#allocation2 + $0x260] sm:$0xff]
    %v4866 = vld [vmem:[#allocation2 + $0x268] sm:$0xff]
    %v4867 = vld [vmem:[#allocation2 + $0x270] sm:$0xff]
    %v4868 = vld [vmem:[#allocation2 + $0x278] sm:$0xff]
    %v4869 = vld [vmem:[#allocation2 + $0x280] sm:$0xff]
    %v4870 = vld [vmem:[#allocation2 + $0x288] sm:$0xff]
    %v4871 = vld [vmem:[#allocation2 + $0x290] sm:$0xff]
    %v4872 = vld [vmem:[#allocation2 + $0x298] sm:$0xff]
    %v4873 = vld [vmem:[#allocation2 + $0x2a0] sm:$0xff]
    %v4874 = vld [vmem:[#allocation2 + $0x2a8] sm:$0xff]
    %v4875 = vld [vmem:[#allocation2 + $0x2b0] sm:$0xff]
    %v4876 = vld [vmem:[#allocation2 + $0x2b8] sm:$0xff]
    %v4877 = vld [vmem:[#allocation2 + $0x2c0] sm:$0xff]
    %v4878 = vld [vmem:[#allocation2 + $0x2c8] sm:$0xff]
    %v4879 = vld [vmem:[#allocation2 + $0x2d0] sm:$0xff]
    %v4880 = vld [vmem:[#allocation2 + $0x2d8] sm:$0xff]
    %v4881 = vld [vmem:[#allocation2 + $0x2e0] sm:$0xff]
    %v4882 = vld [vmem:[#allocation2 + $0x2e8] sm:$0xff]
    %v4883 = vld [vmem:[#allocation2 + $0x2f0] sm:$0xff]
    %v4884 = vld [vmem:[#allocation2 + $0x2f8] sm:$0xff]
    %v4885 = vld [vmem:[#allocation2 + $0x300] sm:$0xff]
    %v4886 = vld [vmem:[#allocation2 + $0x308] sm:$0xff]
    %v4887 = vld [vmem:[#allocation2 + $0x310] sm:$0xff]
    %v4888 = vld [vmem:[#allocation2 + $0x318] sm:$0xff]
    %v4889 = vld [vmem:[#allocation2 + $0x320] sm:$0xff]
    %v4890 = vld [vmem:[#allocation2 + $0x328] sm:$0xff]
    %v4891 = vld [vmem:[#allocation2 + $0x330] sm:$0xff]
    %v4892 = vld [vmem:[#allocation2 + $0x338] sm:$0xff]
    %v4893 = vld [vmem:[#allocation2 + $0x340] sm:$0xff]
    %v4894 = vld [vmem:[#allocation2 + $0x348] sm:$0xff]
    %v4895 = vld [vmem:[#allocation2 + $0x350] sm:$0xff]
    %v4896 = vld [vmem:[#allocation2 + $0x358] sm:$0xff]
    %v4897 = vld [vmem:[#allocation2 + $0x360] sm:$0xff]
    %v4898 = vld [vmem:[#allocation2 + $0x368] sm:$0xff]
    %v4899 = vld [vmem:[#allocation2 + $0x370] sm:$0xff]
    %v4900 = vld [vmem:[#allocation2 + $0x378] sm:$0xff]
    %v4901 = vld [vmem:[#allocation2 + $0x380] sm:$0xff]
    %v4902 = vld [vmem:[#allocation2 + $0x388] sm:$0xff]
    %v4903 = vld [vmem:[#allocation2 + $0x390] sm:$0xff]
    %v4904 = vld [vmem:[#allocation2 + $0x398] sm:$0xff]
    %v4905 = vld [vmem:[#allocation2 + $0x3a0] sm:$0xff]
    %v4906 = vld [vmem:[#allocation2 + $0x3a8] sm:$0xff]
    %v4907 = vld [vmem:[#allocation2 + $0x3b0] sm:$0xff]
    %v4908 = vld [vmem:[#allocation2 + $0x3b8] sm:$0xff]
    %v4909 = vld [vmem:[#allocation2 + $0x3c0] sm:$0xff]
    %v4910 = vld [vmem:[#allocation2 + $0x3c8] sm:$0xff]
    %v4911 = vld [vmem:[#allocation2 + $0x3d0] sm:$0xff]
    %v4912 = vld [vmem:[#allocation2 + $0x3d8] sm:$0xff]
    %v4913 = vld [vmem:[#allocation2 + $0x3e0] sm:$0xff]
    %v4914 = vld [vmem:[#allocation2 + $0x3e8] sm:$0xff]
    %v4915 = vld [vmem:[#allocation2 + $0x3f0] sm:$0xff]
    %v4916 = vld [vmem:[#allocation2 + $0x3f8] sm:$0xff]
    %v4917 = vld [vmem:[#allocation2 + $0x400] sm:$0xff]
    %v4918 = vld [vmem:[#allocation2 + $0x408] sm:$0xff]
    %v4919 = vld [vmem:[#allocation2 + $0x410] sm:$0xff]
    %v4920 = vld [vmem:[#allocation2 + $0x418] sm:$0xff]
    %v4921 = vld [vmem:[#allocation2 + $0x420] sm:$0xff]
    %v4922 = vld [vmem:[#allocation2 + $0x428] sm:$0xff]
    %v4923 = vld [vmem:[#allocation2 + $0x430] sm:$0xff]
    %v4924 = vld [vmem:[#allocation2 + $0x438] sm:$0xff]
    %v4925 = vld [vmem:[#allocation2 + $0x440] sm:$0xff]
    %v4926 = vld [vmem:[#allocation2 + $0x448] sm:$0xff]
    %v4927 = vld [vmem:[#allocation2 + $0x450] sm:$0xff]
    %v4928 = vld [vmem:[#allocation2 + $0x458] sm:$0xff]
    %v4929 = vld [vmem:[#allocation2 + $0x460] sm:$0xff]
    %v4930 = vld [vmem:[#allocation2 + $0x468] sm:$0xff]
    %v4931 = vld [vmem:[#allocation2 + $0x470] sm:$0xff]
    %v4932 = vld [vmem:[#allocation2 + $0x478] sm:$0xff]
    %v4933 = vld [vmem:[#allocation2 + $0x480] sm:$0xff]
    %v4934 = vld [vmem:[#allocation2 + $0x488] sm:$0xff]
    %v4935 = vld [vmem:[#allocation2 + $0x490] sm:$0xff]
    %v4936 = vld [vmem:[#allocation2 + $0x498] sm:$0xff]
    %v4937 = vld [vmem:[#allocation2 + $0x4a0] sm:$0xff]
    %v4938 = vld [vmem:[#allocation2 + $0x4a8] sm:$0xff]
    %v4939 = vld [vmem:[#allocation2 + $0x4b0] sm:$0xff]
    %v4940 = vld [vmem:[#allocation2 + $0x4b8] sm:$0xff]
    %v4941 = vld [vmem:[#allocation2 + $0x4c0] sm:$0xff]
    %v4942 = vld [vmem:[#allocation2 + $0x4c8] sm:$0xff]
    %v4943 = vld [vmem:[#allocation2 + $0x4d0] sm:$0xff]
    %v4944 = vld [vmem:[#allocation2 + $0x4d8] sm:$0xff]
    %v4945 = vld [vmem:[#allocation2 + $0x4e0] sm:$0xff]
    %v4946 = vld [vmem:[#allocation2 + $0x4e8] sm:$0xff]
    %v4947 = vld [vmem:[#allocation2 + $0x4f0] sm:$0xff]
    %v4948 = vld [vmem:[#allocation2 + $0x4f8] sm:$0xff]
    %v4949 = vld [vmem:[#allocation2 + $0x500] sm:$0xff]
    %v4950 = vld [vmem:[#allocation2 + $0x508] sm:$0xff]
    %v4951 = vld [vmem:[#allocation2 + $0x510] sm:$0xff]
    %v4952 = vld [vmem:[#allocation2 + $0x518] sm:$0xff]
    %v4953 = vld [vmem:[#allocation2 + $0x520] sm:$0xff]
    %v4954 = vld [vmem:[#allocation2 + $0x528] sm:$0xff]
    %v4955 = vld [vmem:[#allocation2 + $0x530] sm:$0xff]
    %v4956 = vld [vmem:[#allocation2 + $0x538] sm:$0xff]
    %v4957 = vld [vmem:[#allocation2 + $0x540] sm:$0xff]
    %v4958 = vld [vmem:[#allocation2 + $0x548] sm:$0xff]
    %v4959 = vld [vmem:[#allocation2 + $0x550] sm:$0xff]
    %v4960 = vld [vmem:[#allocation2 + $0x558] sm:$0xff]
    %v4961 = vld [vmem:[#allocation2 + $0x560] sm:$0xff]
    %v4962 = vld [vmem:[#allocation2 + $0x568] sm:$0xff]
    %v4963 = vld [vmem:[#allocation2 + $0x570] sm:$0xff]
    %v4964 = vld [vmem:[#allocation2 + $0x578] sm:$0xff]
    %v4965 = vld [vmem:[#allocation2 + $0x580] sm:$0xff]
    %v4966 = vld [vmem:[#allocation2 + $0x588] sm:$0xff]
    %v4967 = vld [vmem:[#allocation2 + $0x590] sm:$0xff]
    %v4968 = vld [vmem:[#allocation2 + $0x598] sm:$0xff]
    %v4969 = vld [vmem:[#allocation2 + $0x5a0] sm:$0xff]
    %v4970 = vld [vmem:[#allocation2 + $0x5a8] sm:$0xff]
    %v4971 = vld [vmem:[#allocation2 + $0x5b0] sm:$0xff]
    %v4972 = vld [vmem:[#allocation2 + $0x5b8] sm:$0xff]
    %v4973 = vld [vmem:[#allocation2 + $0x5c0] sm:$0xff]
    %v4974 = vld [vmem:[#allocation2 + $0x5c8] sm:$0xff]
    %v4975 = vld [vmem:[#allocation2 + $0x5d0] sm:$0xff]
    %v4976 = vld [vmem:[#allocation2 + $0x5d8] sm:$0xff]
    %v4977 = vld [vmem:[#allocation2 + $0x5e0] sm:$0xff]
    %v4978 = vld [vmem:[#allocation2 + $0x5e8] sm:$0xff]
    %v4979 = vld [vmem:[#allocation2 + $0x5f0] sm:$0xff]
    %v4980 = vld [vmem:[#allocation2 + $0x5f8] sm:$0xff]
    %v4981 = vld [vmem:[#allocation2 + $0x600] sm:$0xff]
    %v4982 = vld [vmem:[#allocation2 + $0x608] sm:$0xff]
    %v4983 = vld [vmem:[#allocation2 + $0x610] sm:$0xff]
    %v4984 = vld [vmem:[#allocation2 + $0x618] sm:$0xff]
    %v4985 = vld [vmem:[#allocation2 + $0x620] sm:$0xff]
    %v4986 = vld [vmem:[#allocation2 + $0x628] sm:$0xff]
    %v4987 = vld [vmem:[#allocation2 + $0x630] sm:$0xff]
    %v4988 = vld [vmem:[#allocation2 + $0x638] sm:$0xff]
    %v4989 = vld [vmem:[#allocation2 + $0x640] sm:$0xff]
    %v4990 = vld [vmem:[#allocation2 + $0x648] sm:$0xff]
    %v4991 = vld [vmem:[#allocation2 + $0x650] sm:$0xff]
    %v4992 = vld [vmem:[#allocation2 + $0x658] sm:$0xff]
    %v4993 = vld [vmem:[#allocation2 + $0x660] sm:$0xff]
    %v4994 = vld [vmem:[#allocation2 + $0x668] sm:$0xff]
    %v4995 = vld [vmem:[#allocation2 + $0x670] sm:$0xff]
    %v4996 = vld [vmem:[#allocation2 + $0x678] sm:$0xff]
    %v4997 = vld [vmem:[#allocation2 + $0x680] sm:$0xff]
    %v4998 = vld [vmem:[#allocation2 + $0x688] sm:$0xff]
    %v4999 = vld [vmem:[#allocation2 + $0x690] sm:$0xff]
    %v5000 = vld [vmem:[#allocation2 + $0x698] sm:$0xff]
    %v5001 = vld [vmem:[#allocation2 + $0x6a0] sm:$0xff]
    %v5002 = vld [vmem:[#allocation2 + $0x6a8] sm:$0xff]
    %v5003 = vld [vmem:[#allocation2 + $0x6b0] sm:$0xff]
    %v5004 = vld [vmem:[#allocation2 + $0x6b8] sm:$0xff]
    %v5005 = vld [vmem:[#allocation2 + $0x6c0] sm:$0xff]
    %v5006 = vld [vmem:[#allocation2 + $0x6c8] sm:$0xff]
    %v5007 = vld [vmem:[#allocation2 + $0x6d0] sm:$0xff]
    %v5008 = vld [vmem:[#allocation2 + $0x6d8] sm:$0xff]
    %v5009 = vld [vmem:[#allocation2 + $0x6e0] sm:$0xff]
    %v5010 = vld [vmem:[#allocation2 + $0x6e8] sm:$0xff]
    %v5011 = vld [vmem:[#allocation2 + $0x6f0] sm:$0xff]
    %v5012 = vld [vmem:[#allocation2 + $0x6f8] sm:$0xff]
    %v5013 = vld [vmem:[#allocation2 + $0x700] sm:$0xff]
    %v5014 = vld [vmem:[#allocation2 + $0x708] sm:$0xff]
    %v5015 = vld [vmem:[#allocation2 + $0x710] sm:$0xff]
    %v5016 = vld [vmem:[#allocation2 + $0x718] sm:$0xff]
    %v5017 = vld [vmem:[#allocation2 + $0x720] sm:$0xff]
    %v5018 = vld [vmem:[#allocation2 + $0x728] sm:$0xff]
    %v5019 = vld [vmem:[#allocation2 + $0x730] sm:$0xff]
    %v5020 = vld [vmem:[#allocation2 + $0x738] sm:$0xff]
    %v5021 = vld [vmem:[#allocation2 + $0x740] sm:$0xff]
    %v5022 = vld [vmem:[#allocation2 + $0x748] sm:$0xff]
    %v5023 = vld [vmem:[#allocation2 + $0x750] sm:$0xff]
    %v5024 = vld [vmem:[#allocation2 + $0x758] sm:$0xff]
    %v5025 = vld [vmem:[#allocation2 + $0x760] sm:$0xff]
    %v5026 = vld [vmem:[#allocation2 + $0x768] sm:$0xff]
    %v5027 = vld [vmem:[#allocation2 + $0x770] sm:$0xff]
    %v5028 = vld [vmem:[#allocation2 + $0x778] sm:$0xff]
    %v5029 = vld [vmem:[#allocation2 + $0x780] sm:$0xff]
    %v5030 = vld [vmem:[#allocation2 + $0x788] sm:$0xff]
    %v5031 = vld [vmem:[#allocation2 + $0x790] sm:$0xff]
    %v5032 = vld [vmem:[#allocation2 + $0x798] sm:$0xff]
    %v5033 = vld [vmem:[#allocation2 + $0x7a0] sm:$0xff]
    %v5034 = vld [vmem:[#allocation2 + $0x7a8] sm:$0xff]
    %v5035 = vld [vmem:[#allocation2 + $0x7b0] sm:$0xff]
    %v5036 = vld [vmem:[#allocation2 + $0x7b8] sm:$0xff]
    %v5037 = vld [vmem:[#allocation2 + $0x7c0] sm:$0xff]
    %v5038 = vld [vmem:[#allocation2 + $0x7c8] sm:$0xff]
    %v5039 = vld [vmem:[#allocation2 + $0x7d0] sm:$0xff]
    %v5040 = vld [vmem:[#allocation2 + $0x7d8] sm:$0xff]
    %v5041 = vld [vmem:[#allocation2 + $0x7e0] sm:$0xff]
    %v5042 = vld [vmem:[#allocation2 + $0x7e8] sm:$0xff]
    %v5043 = vld [vmem:[#allocation2 + $0x7f0] sm:$0xff]
    %v5044 = vld [vmem:[#allocation2 + $0x7f8] sm:$0xff]
    %v5045 = vld [vmem:[%s9] sm:$0x1]
    %5046 = vmatprep.subr.bf16.mxu0 0
    %5047 = vmatpush1.bf16.msra.mxu0 %v4789
    %5048 = vmatprep.subr.bf16.mxu0 0
    %5049 = vmatpush1.bf16.msra.mxu0 %v4790
    %5050 = vmatprep.subr.bf16.mxu0 0
    %5051 = vmatpush1.bf16.msra.mxu0 %v4791
    %5052 = vmatprep.subr.bf16.mxu0 0
    %5053 = vmatpush1.bf16.msra.mxu0 %v4792
    %5054 = vmatprep.subr.bf16.mxu0 0
    %5055 = vmatpush1.bf16.msra.mxu0 %v4793
    %5056 = vmatprep.subr.bf16.mxu0 0
    %5057 = vmatpush1.bf16.msra.mxu0 %v4794
    %5058 = vmatprep.subr.bf16.mxu0 0
    %5059 = vmatpush1.bf16.msra.mxu0 %v4795
    %5060 = vmatprep.subr.bf16.mxu0 0
    %5061 = vmatpush1.bf16.msra.mxu0 %v4796
    %5062 = vmatprep.subr.bf16.mxu0 0
    %5063 = vmatpush1.bf16.msra.mxu0 %v4797
    %5064 = vmatprep.subr.bf16.mxu0 0
    %5065 = vmatpush1.bf16.msra.mxu0 %v4798
    %5066 = vmatprep.subr.bf16.mxu0 0
    %5067 = vmatpush1.bf16.msra.mxu0 %v4799
    %5068 = vmatprep.subr.bf16.mxu0 0
    %5069 = vmatpush1.bf16.msra.mxu0 %v4800
    %5070 = vmatprep.subr.bf16.mxu0 0
    %5071 = vmatpush1.bf16.msra.mxu0 %v4801
    %5072 = vmatprep.subr.bf16.mxu0 0
    %5073 = vmatpush1.bf16.msra.mxu0 %v4802
    %5074 = vmatprep.subr.bf16.mxu0 0
    %5075 = vmatpush1.bf16.msra.mxu0 %v4803
    %5076 = vmatprep.subr.bf16.mxu0 0
    %5077 = vmatpush1.bf16.msra.mxu0 %v4804
    %5078 = vmatprep.mubr.bf16.mxu0 %v4758
    %5079 = vmatmul.mubr.bf16.gmra.mrb[0].mxu0 %v4757
    %v5080 = vpop.f32.mrb[0].mxu0
    %v5081 = vadd.f32 %v5045, %v5080
    %v5082 = vpop.f32.mrb[0].mxu0
    %v5083 = vpop.f32.mrb[0].mxu0
    %v5084 = vpop.f32.mrb[0].mxu0
    %5085 = vdwg.mxu0
    %5086 = vmatprep.subr.bf16.mxu0 0
    %5087 = vmatpush1.bf16.msra.mxu0 %v4805
    %5088 = vmatprep.subr.bf16.mxu0 0
    %5089 = vmatpush1.bf16.msra.mxu0 %v4806
    %5090 = vmatprep.subr.bf16.mxu0 0
    %5091 = vmatpush1.bf16.msra.mxu0 %v4807
    %5092 = vmatprep.subr.bf16.mxu0 0
    %5093 = vmatpush1.bf16.msra.mxu0 %v4808
    %5094 = vmatprep.subr.bf16.mxu0 0
    %5095 = vmatpush1.bf16.msra.mxu0 %v4809
    %5096 = vmatprep.subr.bf16.mxu0 0
    %5097 = vmatpush1.bf16.msra.mxu0 %v4810
    %5098 = vmatprep.subr.bf16.mxu0 0
    %5099 = vmatpush1.bf16.msra.mxu0 %v4811
    %5100 = vmatprep.subr.bf16.mxu0 0
    %5101 = vmatpush1.bf16.msra.mxu0 %v4812
    %5102 = vmatprep.subr.bf16.mxu0 0
    %5103 = vmatpush1.bf16.msra.mxu0 %v4813
    %5104 = vmatprep.subr.bf16.mxu0 0
    %5105 = vmatpush1.bf16.msra.mxu0 %v4814
    %5106 = vmatprep.subr.bf16.mxu0 0
    %5107 = vmatpush1.bf16.msra.mxu0 %v4815
    %5108 = vmatprep.subr.bf16.mxu0 0
    %5109 = vmatpush1.bf16.msra.mxu0 %v4816
    %5110 = vmatprep.subr.bf16.mxu0 0
    %5111 = vmatpush1.bf16.msra.mxu0 %v4817
    %5112 = vmatprep.subr.bf16.mxu0 0
    %5113 = vmatpush1.bf16.msra.mxu0 %v4818
    %5114 = vmatprep.subr.bf16.mxu0 0
    %5115 = vmatpush1.bf16.msra.mxu0 %v4819
    %5116 = vmatprep.subr.bf16.mxu0 0
    %5117 = vmatpush1.bf16.msra.mxu0 %v4820
    %5118 = vmatprep.mubr.bf16.mxu0 %v4760
    %5119 = vmatmul.mubr.bf16.gmra.mrb[0].mxu0 %v4759
    %v5120 = vpop.f32.mrb[0].mxu0
    %v5121 = vadd.f32 %v5081, %v5120
    %v5122 = vpop.f32.mrb[0].mxu0
    %v5123 = vpop.f32.mrb[0].mxu0
    %v5124 = vpop.f32.mrb[0].mxu0
    %5125 = vdwg.mxu0
    %5126 = vmatprep.subr.bf16.mxu0 0
    %5127 = vmatpush1.bf16.msra.mxu0 %v4821
    %5128 = vmatprep.subr.bf16.mxu0 0
    %5129 = vmatpush1.bf16.msra.mxu0 %v4822
    %5130 = vmatprep.subr.bf16.mxu0 0
    %5131 = vmatpush1.bf16.msra.mxu0 %v4823
    %5132 = vmatprep.subr.bf16.mxu0 0
    %5133 = vmatpush1.bf16.msra.mxu0 %v4824
    %5134 = vmatprep.subr.bf16.mxu0 0
    %5135 = vmatpush1.bf16.msra.mxu0 %v4825
    %5136 = vmatprep.subr.bf16.mxu0 0
    %5137 = vmatpush1.bf16.msra.mxu0 %v4826
    %5138 = vmatprep.subr.bf16.mxu0 0
    %5139 = vmatpush1.bf16.msra.mxu0 %v4827
    %5140 = vmatprep.subr.bf16.mxu0 0
    %5141 = vmatpush1.bf16.msra.mxu0 %v4828
    %5142 = vmatprep.subr.bf16.mxu0 0
    %5143 = vmatpush1.bf16.msra.mxu0 %v4829
    %5144 = vmatprep.subr.bf16.mxu0 0
    %5145 = vmatpush1.bf16.msra.mxu0 %v4830
    %5146 = vmatprep.subr.bf16.mxu0 0
    %5147 = vmatpush1.bf16.msra.mxu0 %v4831
    %5148 = vmatprep.subr.bf16.mxu0 0
    %5149 = vmatpush1.bf16.msra.mxu0 %v4832
    %5150 = vmatprep.subr.bf16.mxu0 0
    %5151 = vmatpush1.bf16.msra.mxu0 %v4833
    %5152 = vmatprep.subr.bf16.mxu0 0
    %5153 = vmatpush1.bf16.msra.mxu0 %v4834
    %5154 = vmatprep.subr.bf16.mxu0 0
    %5155 = vmatpush1.bf16.msra.mxu0 %v4835
    %5156 = vmatprep.subr.bf16.mxu0 0
    %5157 = vmatpush1.bf16.msra.mxu0 %v4836
    %5158 = vmatprep.mubr.bf16.mxu0 %v4762
    %5159 = vmatmul.mubr.bf16.gmra.mrb[0].mxu0 %v4761
    %v5160 = vpop.f32.mrb[0].mxu0
    %v5161 = vadd.f32 %v5121, %v5160
    %v5162 = vpop.f32.mrb[0].mxu0
    %v5163 = vpop.f32.mrb[0].mxu0
    %v5164 = vpop.f32.mrb[0].mxu0
    %5165 = vdwg.mxu0
    %5166 = vmatprep.subr.bf16.mxu0 0
    %5167 = vmatpush1.bf16.msra.mxu0 %v4837
    %5168 = vmatprep.subr.bf16.mxu0 0
    %5169 = vmatpush1.bf16.msra.mxu0 %v4838
    %5170 = vmatprep.subr.bf16.mxu0 0
    %5171 = vmatpush1.bf16.msra.mxu0 %v4839
    %5172 = vmatprep.subr.bf16.mxu0 0
    %5173 = vmatpush1.bf16.msra.mxu0 %v4840
    %5174 = vmatprep.subr.bf16.mxu0 0
    %5175 = vmatpush1.bf16.msra.mxu0 %v4841
    %5176 = vmatprep.subr.bf16.mxu0 0
    %5177 = vmatpush1.bf16.msra.mxu0 %v4842
    %5178 = vmatprep.subr.bf16.mxu0 0
    %5179 = vmatpush1.bf16.msra.mxu0 %v4843
    %5180 = vmatprep.subr.bf16.mxu0 0
    %5181 = vmatpush1.bf16.msra.mxu0 %v4844
    %5182 = vmatprep.subr.bf16.mxu0 0
    %5183 = vmatpush1.bf16.msra.mxu0 %v4845
    %5184 = vmatprep.subr.bf16.mxu0 0
    %5185 = vmatpush1.bf16.msra.mxu0 %v4846
    %5186 = vmatprep.subr.bf16.mxu0 0
    %5187 = vmatpush1.bf16.msra.mxu0 %v4847
    %5188 = vmatprep.subr.bf16.mxu0 0
    %5189 = vmatpush1.bf16.msra.mxu0 %v4848
    %5190 = vmatprep.subr.bf16.mxu0 0
    %5191 = vmatpush1.bf16.msra.mxu0 %v4849
    %5192 = vmatprep.subr.bf16.mxu0 0
    %5193 = vmatpush1.bf16.msra.mxu0 %v4850
    %5194 = vmatprep.subr.bf16.mxu0 0
    %5195 = vmatpush1.bf16.msra.mxu0 %v4851
    %5196 = vmatprep.subr.bf16.mxu0 0
    %5197 = vmatpush1.bf16.msra.mxu0 %v4852
    %5198 = vmatprep.mubr.bf16.mxu0 %v4764
    %5199 = vmatmul.mubr.bf16.gmra.mrb[0].mxu0 %v4763
    %v5200 = vpop.f32.mrb[0].mxu0
    %v5201 = vadd.f32 %v5161, %v5200
    %v5202 = vpop.f32.mrb[0].mxu0
    %v5203 = vpop.f32.mrb[0].mxu0
    %v5204 = vpop.f32.mrb[0].mxu0
    %5205 = vdwg.mxu0
    %5206 = vmatprep.subr.bf16.mxu0 0
    %5207 = vmatpush1.bf16.msra.mxu0 %v4853
    %5208 = vmatprep.subr.bf16.mxu0 0
    %5209 = vmatpush1.bf16.msra.mxu0 %v4854
    %5210 = vmatprep.subr.bf16.mxu0 0
    %5211 = vmatpush1.bf16.msra.mxu0 %v4855
    %5212 = vmatprep.subr.bf16.mxu0 0
    %5213 = vmatpush1.bf16.msra.mxu0 %v4856
    %5214 = vmatprep.subr.bf16.mxu0 0
    %5215 = vmatpush1.bf16.msra.mxu0 %v4857
    %5216 = vmatprep.subr.bf16.mxu0 0
    %5217 = vmatpush1.bf16.msra.mxu0 %v4858
    %5218 = vmatprep.subr.bf16.mxu0 0
    %5219 = vmatpush1.bf16.msra.mxu0 %v4859
    %5220 = vmatprep.subr.bf16.mxu0 0
    %5221 = vmatpush1.bf16.msra.mxu0 %v4860
    %5222 = vmatprep.subr.bf16.mxu0 0
    %5223 = vmatpush1.bf16.msra.mxu0 %v4861
    %5224 = vmatprep.subr.bf16.mxu0 0
    %5225 = vmatpush1.bf16.msra.mxu0 %v4862
    %5226 = vmatprep.subr.bf16.mxu0 0
    %5227 = vmatpush1.bf16.msra.mxu0 %v4863
    %5228 = vmatprep.subr.bf16.mxu0 0
    %5229 = vmatpush1.bf16.msra.mxu0 %v4864
    %5230 = vmatprep.subr.bf16.mxu0 0
    %5231 = vmatpush1.bf16.msra.mxu0 %v4865
    %5232 = vmatprep.subr.bf16.mxu0 0
    %5233 = vmatpush1.bf16.msra.mxu0 %v4866
    %5234 = vmatprep.subr.bf16.mxu0 0
    %5235 = vmatpush1.bf16.msra.mxu0 %v4867
    %5236 = vmatprep.subr.bf16.mxu0 0
    %5237 = vmatpush1.bf16.msra.mxu0 %v4868
    %5238 = vmatprep.mubr.bf16.mxu0 %v4766
    %5239 = vmatmul.mubr.bf16.gmra.mrb[0].mxu0 %v4765
    %v5240 = vpop.f32.mrb[0].mxu0
    %v5241 = vadd.f32 %v5201, %v5240
    %v5242 = vpop.f32.mrb[0].mxu0
    %v5243 = vpop.f32.mrb[0].mxu0
    %v5244 = vpop.f32.mrb[0].mxu0
    %5245 = vdwg.mxu0
    %5246 = vmatprep.subr.bf16.mxu0 0
    %5247 = vmatpush1.bf16.msra.mxu0 %v4869
    %5248 = vmatprep.subr.bf16.mxu0 0
    %5249 = vmatpush1.bf16.msra.mxu0 %v4870
    %5250 = vmatprep.subr.bf16.mxu0 0
    %5251 = vmatpush1.bf16.msra.mxu0 %v4871
    %5252 = vmatprep.subr.bf16.mxu0 0
    %5253 = vmatpush1.bf16.msra.mxu0 %v4872
    %5254 = vmatprep.subr.bf16.mxu0 0
    %5255 = vmatpush1.bf16.msra.mxu0 %v4873
    %5256 = vmatprep.subr.bf16.mxu0 0
    %5257 = vmatpush1.bf16.msra.mxu0 %v4874
    %5258 = vmatprep.subr.bf16.mxu0 0
    %5259 = vmatpush1.bf16.msra.mxu0 %v4875
    %5260 = vmatprep.subr.bf16.mxu0 0
    %5261 = vmatpush1.bf16.msra.mxu0 %v4876
    %5262 = vmatprep.subr.bf16.mxu0 0
    %5263 = vmatpush1.bf16.msra.mxu0 %v4877
    %5264 = vmatprep.subr.bf16.mxu0 0
    %5265 = vmatpush1.bf16.msra.mxu0 %v4878
    %5266 = vmatprep.subr.bf16.mxu0 0
    %5267 = vmatpush1.bf16.msra.mxu0 %v4879
    %5268 = vmatprep.subr.bf16.mxu0 0
    %5269 = vmatpush1.bf16.msra.mxu0 %v4880
    %5270 = vmatprep.subr.bf16.mxu0 0
    %5271 = vmatpush1.bf16.msra.mxu0 %v4881
    %5272 = vmatprep.subr.bf16.mxu0 0
    %5273 = vmatpush1.bf16.msra.mxu0 %v4882
    %5274 = vmatprep.subr.bf16.mxu0 0
    %5275 = vmatpush1.bf16.msra.mxu0 %v4883
    %5276 = vmatprep.subr.bf16.mxu0 0
    %5277 = vmatpush1.bf16.msra.mxu0 %v4884
    %5278 = vmatprep.mubr.bf16.mxu0 %v4768
    %5279 = vmatmul.mubr.bf16.gmra.mrb[0].mxu0 %v4767
    %v5280 = vpop.f32.mrb[0].mxu0
    %v5281 = vadd.f32 %v5241, %v5280
    %v5282 = vpop.f32.mrb[0].mxu0
    %v5283 = vpop.f32.mrb[0].mxu0
    %v5284 = vpop.f32.mrb[0].mxu0
    %5285 = vdwg.mxu0
    %5286 = vmatprep.subr.bf16.mxu0 0
    %5287 = vmatpush1.bf16.msra.mxu0 %v4885
    %5288 = vmatprep.subr.bf16.mxu0 0
    %5289 = vmatpush1.bf16.msra.mxu0 %v4886
    %5290 = vmatprep.subr.bf16.mxu0 0
    %5291 = vmatpush1.bf16.msra.mxu0 %v4887
    %5292 = vmatprep.subr.bf16.mxu0 0
    %5293 = vmatpush1.bf16.msra.mxu0 %v4888
    %5294 = vmatprep.subr.bf16.mxu0 0
    %5295 = vmatpush1.bf16.msra.mxu0 %v4889
    %5296 = vmatprep.subr.bf16.mxu0 0
    %5297 = vmatpush1.bf16.msra.mxu0 %v4890
    %5298 = vmatprep.subr.bf16.mxu0 0
    %5299 = vmatpush1.bf16.msra.mxu0 %v4891
    %5300 = vmatprep.subr.bf16.mxu0 0
    %5301 = vmatpush1.bf16.msra.mxu0 %v4892
    %5302 = vmatprep.subr.bf16.mxu0 0
    %5303 = vmatpush1.bf16.msra.mxu0 %v4893
    %5304 = vmatprep.subr.bf16.mxu0 0
    %5305 = vmatpush1.bf16.msra.mxu0 %v4894
    %5306 = vmatprep.subr.bf16.mxu0 0
    %5307 = vmatpush1.bf16.msra.mxu0 %v4895
    %5308 = vmatprep.subr.bf16.mxu0 0
    %5309 = vmatpush1.bf16.msra.mxu0 %v4896
    %5310 = vmatprep.subr.bf16.mxu0 0
    %5311 = vmatpush1.bf16.msra.mxu0 %v4897
    %5312 = vmatprep.subr.bf16.mxu0 0
    %5313 = vmatpush1.bf16.msra.mxu0 %v4898
    %5314 = vmatprep.subr.bf16.mxu0 0
    %5315 = vmatpush1.bf16.msra.mxu0 %v4899
    %5316 = vmatprep.subr.bf16.mxu0 0
    %5317 = vmatpush1.bf16.msra.mxu0 %v4900
    %5318 = vmatprep.mubr.bf16.mxu0 %v4770
    %5319 = vmatmul.mubr.bf16.gmra.mrb[0].mxu0 %v4769
    %v5320 = vpop.f32.mrb[0].mxu0
    %v5321 = vadd.f32 %v5281, %v5320
    %v5322 = vpop.f32.mrb[0].mxu0
    %v5323 = vpop.f32.mrb[0].mxu0
    %v5324 = vpop.f32.mrb[0].mxu0
    %5325 = vdwg.mxu0
    %5326 = vmatprep.subr.bf16.mxu0 0
    %5327 = vmatpush1.bf16.msra.mxu0 %v4901
    %5328 = vmatprep.subr.bf16.mxu0 0
    %5329 = vmatpush1.bf16.msra.mxu0 %v4902
    %5330 = vmatprep.subr.bf16.mxu0 0
    %5331 = vmatpush1.bf16.msra.mxu0 %v4903
    %5332 = vmatprep.subr.bf16.mxu0 0
    %5333 = vmatpush1.bf16.msra.mxu0 %v4904
    %5334 = vmatprep.subr.bf16.mxu0 0
    %5335 = vmatpush1.bf16.msra.mxu0 %v4905
    %5336 = vmatprep.subr.bf16.mxu0 0
    %5337 = vmatpush1.bf16.msra.mxu0 %v4906
    %5338 = vmatprep.subr.bf16.mxu0 0
    %5339 = vmatpush1.bf16.msra.mxu0 %v4907
    %5340 = vmatprep.subr.bf16.mxu0 0
    %5341 = vmatpush1.bf16.msra.mxu0 %v4908
    %5342 = vmatprep.subr.bf16.mxu0 0
    %5343 = vmatpush1.bf16.msra.mxu0 %v4909
    %5344 = vmatprep.subr.bf16.mxu0 0
    %5345 = vmatpush1.bf16.msra.mxu0 %v4910
    %5346 = vmatprep.subr.bf16.mxu0 0
    %5347 = vmatpush1.bf16.msra.mxu0 %v4911
    %5348 = vmatprep.subr.bf16.mxu0 0
    %5349 = vmatpush1.bf16.msra.mxu0 %v4912
    %5350 = vmatprep.subr.bf16.mxu0 0
    %5351 = vmatpush1.bf16.msra.mxu0 %v4913
    %5352 = vmatprep.subr.bf16.mxu0 0
    %5353 = vmatpush1.bf16.msra.mxu0 %v4914
    %5354 = vmatprep.subr.bf16.mxu0 0
    %5355 = vmatpush1.bf16.msra.mxu0 %v4915
    %5356 = vmatprep.subr.bf16.mxu0 0
    %5357 = vmatpush1.bf16.msra.mxu0 %v4916
    %5358 = vmatprep.mubr.bf16.mxu0 %v4772
    %5359 = vmatmul.mubr.bf16.gmra.mrb[0].mxu0 %v4771
    %v5360 = vpop.f32.mrb[0].mxu0
    %v5361 = vadd.f32 %v5321, %v5360
    %v5362 = vpop.f32.mrb[0].mxu0
    %v5363 = vpop.f32.mrb[0].mxu0
    %v5364 = vpop.f32.mrb[0].mxu0
    %5365 = vdwg.mxu0
    %5366 = vmatprep.subr.bf16.mxu0 0
    %5367 = vmatpush1.bf16.msra.mxu0 %v4917
    %5368 = vmatprep.subr.bf16.mxu0 0
    %5369 = vmatpush1.bf16.msra.mxu0 %v4918
    %5370 = vmatprep.subr.bf16.mxu0 0
    %5371 = vmatpush1.bf16.msra.mxu0 %v4919
    %5372 = vmatprep.subr.bf16.mxu0 0
    %5373 = vmatpush1.bf16.msra.mxu0 %v4920
    %5374 = vmatprep.subr.bf16.mxu0 0
    %5375 = vmatpush1.bf16.msra.mxu0 %v4921
    %5376 = vmatprep.subr.bf16.mxu0 0
    %5377 = vmatpush1.bf16.msra.mxu0 %v4922
    %5378 = vmatprep.subr.bf16.mxu0 0
    %5379 = vmatpush1.bf16.msra.mxu0 %v4923
    %5380 = vmatprep.subr.bf16.mxu0 0
    %5381 = vmatpush1.bf16.msra.mxu0 %v4924
    %5382 = vmatprep.subr.bf16.mxu0 0
    %5383 = vmatpush1.bf16.msra.mxu0 %v4925
    %5384 = vmatprep.subr.bf16.mxu0 0
    %5385 = vmatpush1.bf16.msra.mxu0 %v4926
    %5386 = vmatprep.subr.bf16.mxu0 0
    %5387 = vmatpush1.bf16.msra.mxu0 %v4927
    %5388 = vmatprep.subr.bf16.mxu0 0
    %5389 = vmatpush1.bf16.msra.mxu0 %v4928
    %5390 = vmatprep.subr.bf16.mxu0 0
    %5391 = vmatpush1.bf16.msra.mxu0 %v4929
    %5392 = vmatprep.subr.bf16.mxu0 0
    %5393 = vmatpush1.bf16.msra.mxu0 %v4930
    %5394 = vmatprep.subr.bf16.mxu0 0
    %5395 = vmatpush1.bf16.msra.mxu0 %v4931
    %5396 = vmatprep.subr.bf16.mxu0 0
    %5397 = vmatpush1.bf16.msra.mxu0 %v4932
    %5398 = vmatprep.mubr.bf16.mxu0 %v4774
    %5399 = vmatmul.mubr.bf16.gmra.mrb[0].mxu0 %v4773
    %v5400 = vpop.f32.mrb[0].mxu0
    %v5401 = vadd.f32 %v5361, %v5400
    %v5402 = vpop.f32.mrb[0].mxu0
    %v5403 = vpop.f32.mrb[0].mxu0
    %v5404 = vpop.f32.mrb[0].mxu0
    %5405 = vdwg.mxu0
    %5406 = vmatprep.subr.bf16.mxu0 0
    %5407 = vmatpush1.bf16.msra.mxu0 %v4933
    %5408 = vmatprep.subr.bf16.mxu0 0
    %5409 = vmatpush1.bf16.msra.mxu0 %v4934
    %5410 = vmatprep.subr.bf16.mxu0 0
    %5411 = vmatpush1.bf16.msra.mxu0 %v4935
    %5412 = vmatprep.subr.bf16.mxu0 0
    %5413 = vmatpush1.bf16.msra.mxu0 %v4936
    %5414 = vmatprep.subr.bf16.mxu0 0
    %5415 = vmatpush1.bf16.msra.mxu0 %v4937
    %5416 = vmatprep.subr.bf16.mxu0 0
    %5417 = vmatpush1.bf16.msra.mxu0 %v4938
    %5418 = vmatprep.subr.bf16.mxu0 0
    %5419 = vmatpush1.bf16.msra.mxu0 %v4939
    %5420 = vmatprep.subr.bf16.mxu0 0
    %5421 = vmatpush1.bf16.msra.mxu0 %v4940
    %5422 = vmatprep.subr.bf16.mxu0 0
    %5423 = vmatpush1.bf16.msra.mxu0 %v4941
    %5424 = vmatprep.subr.bf16.mxu0 0
    %5425 = vmatpush1.bf16.msra.mxu0 %v4942
    %5426 = vmatprep.subr.bf16.mxu0 0
    %5427 = vmatpush1.bf16.msra.mxu0 %v4943
    %5428 = vmatprep.subr.bf16.mxu0 0
    %5429 = vmatpush1.bf16.msra.mxu0 %v4944
    %5430 = vmatprep.subr.bf16.mxu0 0
    %5431 = vmatpush1.bf16.msra.mxu0 %v4945
    %5432 = vmatprep.subr.bf16.mxu0 0
    %5433 = vmatpush1.bf16.msra.mxu0 %v4946
    %5434 = vmatprep.subr.bf16.mxu0 0
    %5435 = vmatpush1.bf16.msra.mxu0 %v4947
    %5436 = vmatprep.subr.bf16.mxu0 0
    %5437 = vmatpush1.bf16.msra.mxu0 %v4948
    %5438 = vmatprep.mubr.bf16.mxu0 %v4776
    %5439 = vmatmul.mubr.bf16.gmra.mrb[0].mxu0 %v4775
    %v5440 = vpop.f32.mrb[0].mxu0
    %v5441 = vadd.f32 %v5401, %v5440
    %v5442 = vpop.f32.mrb[0].mxu0
    %v5443 = vpop.f32.mrb[0].mxu0
    %v5444 = vpop.f32.mrb[0].mxu0
    %5445 = vdwg.mxu0
    %5446 = vmatprep.subr.bf16.mxu0 0
    %5447 = vmatpush1.bf16.msra.mxu0 %v4949
    %5448 = vmatprep.subr.bf16.mxu0 0
    %5449 = vmatpush1.bf16.msra.mxu0 %v4950
    %5450 = vmatprep.subr.bf16.mxu0 0
    %5451 = vmatpush1.bf16.msra.mxu0 %v4951
    %5452 = vmatprep.subr.bf16.mxu0 0
    %5453 = vmatpush1.bf16.msra.mxu0 %v4952
    %5454 = vmatprep.subr.bf16.mxu0 0
    %5455 = vmatpush1.bf16.msra.mxu0 %v4953
    %5456 = vmatprep.subr.bf16.mxu0 0
    %5457 = vmatpush1.bf16.msra.mxu0 %v4954
    %5458 = vmatprep.subr.bf16.mxu0 0
    %5459 = vmatpush1.bf16.msra.mxu0 %v4955
    %5460 = vmatprep.subr.bf16.mxu0 0
    %5461 = vmatpush1.bf16.msra.mxu0 %v4956
    %5462 = vmatprep.subr.bf16.mxu0 0
    %5463 = vmatpush1.bf16.msra.mxu0 %v4957
    %5464 = vmatprep.subr.bf16.mxu0 0
    %5465 = vmatpush1.bf16.msra.mxu0 %v4958
    %5466 = vmatprep.subr.bf16.mxu0 0
    %5467 = vmatpush1.bf16.msra.mxu0 %v4959
    %5468 = vmatprep.subr.bf16.mxu0 0
    %5469 = vmatpush1.bf16.msra.mxu0 %v4960
    %5470 = vmatprep.subr.bf16.mxu0 0
    %5471 = vmatpush1.bf16.msra.mxu0 %v4961
    %5472 = vmatprep.subr.bf16.mxu0 0
    %5473 = vmatpush1.bf16.msra.mxu0 %v4962
    %5474 = vmatprep.subr.bf16.mxu0 0
    %5475 = vmatpush1.bf16.msra.mxu0 %v4963
    %5476 = vmatprep.subr.bf16.mxu0 0
    %5477 = vmatpush1.bf16.msra.mxu0 %v4964
    %5478 = vmatprep.mubr.bf16.mxu0 %v4778
    %5479 = vmatmul.mubr.bf16.gmra.mrb[0].mxu0 %v4777
    %v5480 = vpop.f32.mrb[0].mxu0
    %v5481 = vadd.f32 %v5441, %v5480
    %v5482 = vpop.f32.mrb[0].mxu0
    %v5483 = vpop.f32.mrb[0].mxu0
    %v5484 = vpop.f32.mrb[0].mxu0
    %5485 = vdwg.mxu0
    %5486 = vmatprep.subr.bf16.mxu0 0
    %5487 = vmatpush1.bf16.msra.mxu0 %v4965
    %5488 = vmatprep.subr.bf16.mxu0 0
    %5489 = vmatpush1.bf16.msra.mxu0 %v4966
    %5490 = vmatprep.subr.bf16.mxu0 0
    %5491 = vmatpush1.bf16.msra.mxu0 %v4967
    %5492 = vmatprep.subr.bf16.mxu0 0
    %5493 = vmatpush1.bf16.msra.mxu0 %v4968
    %5494 = vmatprep.subr.bf16.mxu0 0
    %5495 = vmatpush1.bf16.msra.mxu0 %v4969
    %5496 = vmatprep.subr.bf16.mxu0 0
    %5497 = vmatpush1.bf16.msra.mxu0 %v4970
    %5498 = vmatprep.subr.bf16.mxu0 0
    %5499 = vmatpush1.bf16.msra.mxu0 %v4971
    %5500 = vmatprep.subr.bf16.mxu0 0
    %5501 = vmatpush1.bf16.msra.mxu0 %v4972
    %5502 = vmatprep.subr.bf16.mxu0 0
    %5503 = vmatpush1.bf16.msra.mxu0 %v4973
    %5504 = vmatprep.subr.bf16.mxu0 0
    %5505 = vmatpush1.bf16.msra.mxu0 %v4974
    %5506 = vmatprep.subr.bf16.mxu0 0
    %5507 = vmatpush1.bf16.msra.mxu0 %v4975
    %5508 = vmatprep.subr.bf16.mxu0 0
    %5509 = vmatpush1.bf16.msra.mxu0 %v4976
    %5510 = vmatprep.subr.bf16.mxu0 0
    %5511 = vmatpush1.bf16.msra.mxu0 %v4977
    %5512 = vmatprep.subr.bf16.mxu0 0
    %5513 = vmatpush1.bf16.msra.mxu0 %v4978
    %5514 = vmatprep.subr.bf16.mxu0 0
    %5515 = vmatpush1.bf16.msra.mxu0 %v4979
    %5516 = vmatprep.subr.bf16.mxu0 0
    %5517 = vmatpush1.bf16.msra.mxu0 %v4980
    %5518 = vmatprep.mubr.bf16.mxu0 %v4780
    %5519 = vmatmul.mubr.bf16.gmra.mrb[0].mxu0 %v4779
    %v5520 = vpop.f32.mrb[0].mxu0
    %v5521 = vadd.f32 %v5481, %v5520
    %v5522 = vpop.f32.mrb[0].mxu0
    %v5523 = vpop.f32.mrb[0].mxu0
    %v5524 = vpop.f32.mrb[0].mxu0
    %5525 = vdwg.mxu0
    %5526 = vmatprep.subr.bf16.mxu0 0
    %5527 = vmatpush1.bf16.msra.mxu0 %v4981
    %5528 = vmatprep.subr.bf16.mxu0 0
    %5529 = vmatpush1.bf16.msra.mxu0 %v4982
    %5530 = vmatprep.subr.bf16.mxu0 0
    %5531 = vmatpush1.bf16.msra.mxu0 %v4983
    %5532 = vmatprep.subr.bf16.mxu0 0
    %5533 = vmatpush1.bf16.msra.mxu0 %v4984
    %5534 = vmatprep.subr.bf16.mxu0 0
    %5535 = vmatpush1.bf16.msra.mxu0 %v4985
    %5536 = vmatprep.subr.bf16.mxu0 0
    %5537 = vmatpush1.bf16.msra.mxu0 %v4986
    %5538 = vmatprep.subr.bf16.mxu0 0
    %5539 = vmatpush1.bf16.msra.mxu0 %v4987
    %5540 = vmatprep.subr.bf16.mxu0 0
    %5541 = vmatpush1.bf16.msra.mxu0 %v4988
    %5542 = vmatprep.subr.bf16.mxu0 0
    %5543 = vmatpush1.bf16.msra.mxu0 %v4989
    %5544 = vmatprep.subr.bf16.mxu0 0
    %5545 = vmatpush1.bf16.msra.mxu0 %v4990
    %5546 = vmatprep.subr.bf16.mxu0 0
    %5547 = vmatpush1.bf16.msra.mxu0 %v4991
    %5548 = vmatprep.subr.bf16.mxu0 0
    %5549 = vmatpush1.bf16.msra.mxu0 %v4992
    %5550 = vmatprep.subr.bf16.mxu0 0
    %5551 = vmatpush1.bf16.msra.mxu0 %v4993
    %5552 = vmatprep.subr.bf16.mxu0 0
    %5553 = vmatpush1.bf16.msra.mxu0 %v4994
    %5554 = vmatprep.subr.bf16.mxu0 0
    %5555 = vmatpush1.bf16.msra.mxu0 %v4995
    %5556 = vmatprep.subr.bf16.mxu0 0
    %5557 = vmatpush1.bf16.msra.mxu0 %v4996
    %5558 = vmatprep.mubr.bf16.mxu0 %v4782
    %5559 = vmatmul.mubr.bf16.gmra.mrb[0].mxu0 %v4781
    %v5560 = vpop.f32.mrb[0].mxu0
    %v5561 = vadd.f32 %v5521, %v5560
    %v5562 = vpop.f32.mrb[0].mxu0
    %v5563 = vpop.f32.mrb[0].mxu0
    %v5564 = vpop.f32.mrb[0].mxu0
    %5565 = vdwg.mxu0
    %5566 = vmatprep.subr.bf16.mxu0 0
    %5567 = vmatpush1.bf16.msra.mxu0 %v4997
    %5568 = vmatprep.subr.bf16.mxu0 0
    %5569 = vmatpush1.bf16.msra.mxu0 %v4998
    %5570 = vmatprep.subr.bf16.mxu0 0
    %5571 = vmatpush1.bf16.msra.mxu0 %v4999
    %5572 = vmatprep.subr.bf16.mxu0 0
    %5573 = vmatpush1.bf16.msra.mxu0 %v5000
    %5574 = vmatprep.subr.bf16.mxu0 0
    %5575 = vmatpush1.bf16.msra.mxu0 %v5001
    %5576 = vmatprep.subr.bf16.mxu0 0
    %5577 = vmatpush1.bf16.msra.mxu0 %v5002
    %5578 = vmatprep.subr.bf16.mxu0 0
    %5579 = vmatpush1.bf16.msra.mxu0 %v5003
    %5580 = vmatprep.subr.bf16.mxu0 0
    %5581 = vmatpush1.bf16.msra.mxu0 %v5004
    %5582 = vmatprep.subr.bf16.mxu0 0
    %5583 = vmatpush1.bf16.msra.mxu0 %v5005
    %5584 = vmatprep.subr.bf16.mxu0 0
    %5585 = vmatpush1.bf16.msra.mxu0 %v5006
    %5586 = vmatprep.subr.bf16.mxu0 0
    %5587 = vmatpush1.bf16.msra.mxu0 %v5007
    %5588 = vmatprep.subr.bf16.mxu0 0
    %5589 = vmatpush1.bf16.msra.mxu0 %v5008
    %5590 = vmatprep.subr.bf16.mxu0 0
    %5591 = vmatpush1.bf16.msra.mxu0 %v5009
    %5592 = vmatprep.subr.bf16.mxu0 0
    %5593 = vmatpush1.bf16.msra.mxu0 %v5010
    %5594 = vmatprep.subr.bf16.mxu0 0
    %5595 = vmatpush1.bf16.msra.mxu0 %v5011
    %5596 = vmatprep.subr.bf16.mxu0 0
    %5597 = vmatpush1.bf16.msra.mxu0 %v5012
    %5598 = vmatprep.mubr.bf16.mxu0 %v4784
    %5599 = vmatmul.mubr.bf16.gmra.mrb[0].mxu0 %v4783
    %v5600 = vpop.f32.mrb[0].mxu0
    %v5601 = vadd.f32 %v5561, %v5600
    %v5602 = vpop.f32.mrb[0].mxu0
    %v5603 = vpop.f32.mrb[0].mxu0
    %v5604 = vpop.f32.mrb[0].mxu0
    %5605 = vdwg.mxu0
    %5606 = vmatprep.subr.bf16.mxu0 0
    %5607 = vmatpush1.bf16.msra.mxu0 %v5013
    %5608 = vmatprep.subr.bf16.mxu0 0
    %5609 = vmatpush1.bf16.msra.mxu0 %v5014
    %5610 = vmatprep.subr.bf16.mxu0 0
    %5611 = vmatpush1.bf16.msra.mxu0 %v5015
    %5612 = vmatprep.subr.bf16.mxu0 0
    %5613 = vmatpush1.bf16.msra.mxu0 %v5016
    %5614 = vmatprep.subr.bf16.mxu0 0
    %5615 = vmatpush1.bf16.msra.mxu0 %v5017
    %5616 = vmatprep.subr.bf16.mxu0 0
    %5617 = vmatpush1.bf16.msra.mxu0 %v5018
    %5618 = vmatprep.subr.bf16.mxu0 0
    %5619 = vmatpush1.bf16.msra.mxu0 %v5019
    %5620 = vmatprep.subr.bf16.mxu0 0
    %5621 = vmatpush1.bf16.msra.mxu0 %v5020
    %5622 = vmatprep.subr.bf16.mxu0 0
    %5623 = vmatpush1.bf16.msra.mxu0 %v5021
    %5624 = vmatprep.subr.bf16.mxu0 0
    %5625 = vmatpush1.bf16.msra.mxu0 %v5022
    %5626 = vmatprep.subr.bf16.mxu0 0
    %5627 = vmatpush1.bf16.msra.mxu0 %v5023
    %5628 = vmatprep.subr.bf16.mxu0 0
    %5629 = vmatpush1.bf16.msra.mxu0 %v5024
    %5630 = vmatprep.subr.bf16.mxu0 0
    %5631 = vmatpush1.bf16.msra.mxu0 %v5025
    %5632 = vmatprep.subr.bf16.mxu0 0
    %5633 = vmatpush1.bf16.msra.mxu0 %v5026
    %5634 = vmatprep.subr.bf16.mxu0 0
    %5635 = vmatpush1.bf16.msra.mxu0 %v5027
    %5636 = vmatprep.subr.bf16.mxu0 0
    %5637 = vmatpush1.bf16.msra.mxu0 %v5028
    %5638 = vmatprep.mubr.bf16.mxu0 %v4786
    %5639 = vmatmul.mubr.bf16.gmra.mrb[0].mxu0 %v4785
    %v5640 = vpop.f32.mrb[0].mxu0
    %v5641 = vadd.f32 %v5601, %v5640
    %v5642 = vpop.f32.mrb[0].mxu0
    %v5643 = vpop.f32.mrb[0].mxu0
    %v5644 = vpop.f32.mrb[0].mxu0
    %5645 = vdwg.mxu0
    %5646 = vmatprep.subr.bf16.mxu0 0
    %5647 = vmatpush1.bf16.msra.mxu0 %v5029
    %5648 = vmatprep.subr.bf16.mxu0 0
    %5649 = vmatpush1.bf16.msra.mxu0 %v5030
    %5650 = vmatprep.subr.bf16.mxu0 0
    %5651 = vmatpush1.bf16.msra.mxu0 %v5031
    %5652 = vmatprep.subr.bf16.mxu0 0
    %5653 = vmatpush1.bf16.msra.mxu0 %v5032
    %5654 = vmatprep.subr.bf16.mxu0 0
    %5655 = vmatpush1.bf16.msra.mxu0 %v5033
    %5656 = vmatprep.subr.bf16.mxu0 0
    %5657 = vmatpush1.bf16.msra.mxu0 %v5034
    %5658 = vmatprep.subr.bf16.mxu0 0
    %5659 = vmatpush1.bf16.msra.mxu0 %v5035
    %5660 = vmatprep.subr.bf16.mxu0 0
    %5661 = vmatpush1.bf16.msra.mxu0 %v5036
    %5662 = vmatprep.subr.bf16.mxu0 0
    %5663 = vmatpush1.bf16.msra.mxu0 %v5037
    %5664 = vmatprep.subr.bf16.mxu0 0
    %5665 = vmatpush1.bf16.msra.mxu0 %v5038
    %5666 = vmatprep.subr.bf16.mxu0 0
    %5667 = vmatpush1.bf16.msra.mxu0 %v5039
    %5668 = vmatprep.subr.bf16.mxu0 0
    %5669 = vmatpush1.bf16.msra.mxu0 %v5040
    %5670 = vmatprep.subr.bf16.mxu0 0
    %5671 = vmatpush1.bf16.msra.mxu0 %v5041
    %5672 = vmatprep.subr.bf16.mxu0 0
    %5673 = vmatpush1.bf16.msra.mxu0 %v5042
    %5674 = vmatprep.subr.bf16.mxu0 0
    %5675 = vmatpush1.bf16.msra.mxu0 %v5043
    %5676 = vmatprep.subr.bf16.mxu0 0
    %5677 = vmatpush1.bf16.msra.mxu0 %v5044
    %5678 = vmatprep.mubr.bf16.mxu0 %v4788
    %5679 = vmatmul.mubr.bf16.gmra.mrb[0].mxu0 %v4787
    %v5680 = vpop.f32.mrb[0].mxu0
    %v5681 = vadd.f32 %v5641, %v5680
    %v5682 = vpop.f32.mrb[0].mxu0
    %v5683 = vpop.f32.mrb[0].mxu0
    %v5684 = vpop.f32.mrb[0].mxu0
    %5685 = vdwg.mxu0
    %v5686 = vpack.c.bf16 %v5681, %v5681
    %v5687 = vld [vmem:[#allocation19] sm:$0xf]
    %v5688 = vld [vmem:[#allocation19 + $0x4] sm:$0xf]
    %v5689 = vld [vmem:[#allocation19 + $0x8] sm:$0xf]
    %v5690 = vld [vmem:[#allocation19 + $0xc] sm:$0xf]
    %v5691 = vld [vmem:[#allocation19 + $0x10] sm:$0xf]
    %v5692 = vld [vmem:[#allocation19 + $0x14] sm:$0xf]
    %v5693 = vld [vmem:[#allocation19 + $0x18] sm:$0xf]
    %v5694 = vld [vmem:[#allocation19 + $0x1c] sm:$0xf]
    %v5695 = vld [vmem:[#allocation19 + $0x20] sm:$0xf]
    %v5696 = vld [vmem:[#allocation19 + $0x24] sm:$0xf]
    %v5697 = vld [vmem:[#allocation19 + $0x28] sm:$0xf]
    %v5698 = vld [vmem:[#allocation19 + $0x2c] sm:$0xf]
    %v5699 = vld [vmem:[#allocation19 + $0x30] sm:$0xf]
    %v5700 = vld [vmem:[#allocation19 + $0x34] sm:$0xf]
    %v5701 = vld [vmem:[#allocation19 + $0x38] sm:$0xf]
    %v5702 = vld [vmem:[#allocation19 + $0x3c] sm:$0xf]
    %v5719 = vunpack.c.l.b16 %v5687
    %v5720 = vunpack.c.l.b16 %v5688
    %v5721 = vunpack.c.l.b16 %v5689
    %v5722 = vunpack.c.l.b16 %v5690
    %v5723 = vunpack.c.l.b16 %v5691
    %v5724 = vunpack.c.l.b16 %v5692
    %v5725 = vunpack.c.l.b16 %v5693
    %v5726 = vunpack.c.l.b16 %v5694
    %v5727 = vunpack.c.l.b16 %v5695
    %v5728 = vunpack.c.l.b16 %v5696
    %v5729 = vunpack.c.l.b16 %v5697
    %v5730 = vunpack.c.l.b16 %v5698
    %v5731 = vunpack.c.l.b16 %v5699
    %v5732 = vunpack.c.l.b16 %v5700
    %v5733 = vunpack.c.l.b16 %v5701
    %v5734 = vunpack.c.l.b16 %v5702
    %v5735 = vpack.c.b16 %v5720, %v5719
    %v5736 = vpack.c.b16 %v5722, %v5721
    %v5737 = vpack.c.b16 %v5724, %v5723
    %v5738 = vpack.c.b16 %v5726, %v5725
    %v5739 = vpack.c.b16 %v5728, %v5727
    %v5740 = vpack.c.b16 %v5730, %v5729
    %v5741 = vpack.c.b16 %v5732, %v5731
    %v5742 = vpack.c.b16 %v5734, %v5733
    %5751 = vmatprep.subr.bf16.mxu0 0
    %5752 = vmatpush1.bf16.msra.mxu0 %v5735
    %5753 = vmatprep.subr.bf16.mxu0 0
    %5754 = vmatpush1.bf16.msra.mxu0 %v5736
    %5755 = vmatprep.subr.bf16.mxu0 0
    %5756 = vmatpush1.bf16.msra.mxu0 %v5737
    %5757 = vmatprep.subr.bf16.mxu0 0
    %5758 = vmatpush1.bf16.msra.mxu0 %v5738
    %5759 = vmatprep.subr.bf16.mxu0 0
    %5760 = vmatpush1.bf16.msra.mxu0 %v5739
    %5761 = vmatprep.subr.bf16.mxu0 0
    %5762 = vmatpush1.bf16.msra.mxu0 %v5740
    %5763 = vmatprep.subr.bf16.mxu0 0
    %5764 = vmatpush1.bf16.msra.mxu0 %v5741
    %5765 = vmatprep.subr.bf16.mxu0 0
    %5766 = vmatpush1.bf16.msra.mxu0 %v5742
    %5767 = vmatprep.subr.bf16.mxu0 0
    %5768 = vmatpush1.bf16.msra.mxu0 0
    %5769 = vmatprep.subr.bf16.mxu0 0
    %5770 = vmatpush1.bf16.msra.mxu0 0
    %5771 = vmatprep.subr.bf16.mxu0 0
    %5772 = vmatpush1.bf16.msra.mxu0 0
    %5773 = vmatprep.subr.bf16.mxu0 0
    %5774 = vmatpush1.bf16.msra.mxu0 0
    %5775 = vmatprep.subr.bf16.mxu0 0
    %5776 = vmatpush1.bf16.msra.mxu0 0
    %5777 = vmatprep.subr.bf16.mxu0 0
    %5778 = vmatpush1.bf16.msra.mxu0 0
    %5779 = vmatprep.subr.bf16.mxu0 0
    %5780 = vmatpush1.bf16.msra.mxu0 0
    %5781 = vmatprep.subr.bf16.mxu0 0
    %5782 = vmatpush1.bf16.msra.mxu0 0
    %5783 = vmatprep.mubr.bf16.mxu0 0
    %5784 = vmatmul.mubr.bf16.gmra.mrb[0].mxu0 %v5686
    %v5785 = vpop.f32.mrb[0].mxu0
    %v5786 = vadd.f32 0.0, %v5785
    %v5787 = vpop.f32.mrb[0].mxu0
    %v5788 = vpop.f32.mrb[0].mxu0
    %v5789 = vpop.f32.mrb[0].mxu0
    %5790 = vdwg.mxu0
    %v5807 = vunpack.c.l.b16 %v137
    %v5808 = vunpack.c.l.b16 %v138
    %v5809 = vunpack.c.l.b16 %v139
    %v5810 = vunpack.c.l.b16 %v140
    %v5811 = vunpack.c.l.b16 %v141
    %v5812 = vunpack.c.l.b16 %v142
    %v5813 = vunpack.c.l.b16 %v143
    %v5814 = vunpack.c.l.b16 %v144
    %v5815 = vunpack.c.l.b16 %v145
    %v5816 = vunpack.c.l.b16 %v146
    %v5817 = vunpack.c.l.b16 %v147
    %v5818 = vunpack.c.l.b16 %v148
    %v5819 = vunpack.c.l.b16 %v149
    %v5820 = vunpack.c.l.b16 %v150
    %v5821 = vunpack.c.l.b16 %v151
    %v5822 = vunpack.c.l.b16 %v152
    %v5823 = vpack.c.b16 %v5808, %v5807
    %v5824 = vpack.c.b16 %v5810, %v5809
    %v5825 = vpack.c.b16 %v5812, %v5811
    %v5826 = vpack.c.b16 %v5814, %v5813
    %v5827 = vpack.c.b16 %v5816, %v5815
    %v5828 = vpack.c.b16 %v5818, %v5817
    %v5829 = vpack.c.b16 %v5820, %v5819
    %v5830 = vpack.c.b16 %v5822, %v5821
    %5839 = vmatprep.subr.bf16.mxu0 0
    %5840 = vmatpush1.bf16.msra.mxu0 %v5823
    %5841 = vmatprep.subr.bf16.mxu0 0
    %5842 = vmatpush1.bf16.msra.mxu0 %v5824
    %5843 = vmatprep.subr.bf16.mxu0 0
    %5844 = vmatpush1.bf16.msra.mxu0 %v5825
    %5845 = vmatprep.subr.bf16.mxu0 0
    %5846 = vmatpush1.bf16.msra.mxu0 %v5826
    %5847 = vmatprep.subr.bf16.mxu0 0
    %5848 = vmatpush1.bf16.msra.mxu0 %v5827
    %5849 = vmatprep.subr.bf16.mxu0 0
    %5850 = vmatpush1.bf16.msra.mxu0 %v5828
    %5851 = vmatprep.subr.bf16.mxu0 0
    %5852 = vmatpush1.bf16.msra.mxu0 %v5829
    %5853 = vmatprep.subr.bf16.mxu0 0
    %5854 = vmatpush1.bf16.msra.mxu0 %v5830
    %5855 = vmatprep.subr.bf16.mxu0 0
    %5856 = vmatpush1.bf16.msra.mxu0 0
    %5857 = vmatprep.subr.bf16.mxu0 0
    %5858 = vmatpush1.bf16.msra.mxu0 0
    %5859 = vmatprep.subr.bf16.mxu0 0
    %5860 = vmatpush1.bf16.msra.mxu0 0
    %5861 = vmatprep.subr.bf16.mxu0 0
    %5862 = vmatpush1.bf16.msra.mxu0 0
    %5863 = vmatprep.subr.bf16.mxu0 0
    %5864 = vmatpush1.bf16.msra.mxu0 0
    %5865 = vmatprep.subr.bf16.mxu0 0
    %5866 = vmatpush1.bf16.msra.mxu0 0
    %5867 = vmatprep.subr.bf16.mxu0 0
    %5868 = vmatpush1.bf16.msra.mxu0 0
    %5869 = vmatprep.subr.bf16.mxu0 0
    %5870 = vmatpush1.bf16.msra.mxu0 0
    %5871 = vmatprep.mubr.bf16.mxu0 0
    %5872 = vmatmul.mubr.bf16.gmra.mrb[0].mxu0 %v136
    %v5873 = vpop.f32.mrb[0].mxu0
    %v5874 = vadd.f32 %v5786, %v5873
    %v5875 = vpop.f32.mrb[0].mxu0
    %v5876 = vpop.f32.mrb[0].mxu0
    %v5877 = vpop.f32.mrb[0].mxu0
    %5878 = vdwg.mxu0
    %v5879 = vld [vmem:[%s12] sm:$0x1]
    %v5880 = vadd.f32 %v5874, %v5879
    %vm5881 = vcmp.gt.f32.partialorder %v5880, 0.0
    %v5882 = vmin.f32 %v5880, 0.0
    %v5883 = vmul.f32 %v5882, 1.442695
    %v5884 = vpow.pop %v5883
    %v5885 = vsub.f32 %v5884, 1.0
    %v5886 = vsel %vm5881, %v5880, %v5885
    %5887 = vst [vmem:[#allocation20] sm:$0x1] %v5886
    // Predicated region
    $region78: #{fine_tuner_hyper_forward.1} parent=1 // pred_check
      _
    $region79: #{fine_tuner_hyper_forward.1} parent=1 // pred_check_branch
      %5889 = sbr.rel (0) target = $region81
    $region80: #{fine_tuner_hyper_forward.1} parent=1 // pred_region
      %s5891 = ssub.s32 16, 16
      %5892 = vsyncadd [#allocation11], %s5891
      %s5894 = sshll.u32 [#allocation20], 4
      %s5895 = int_to_ptr.vmem [resolvable:$true] %s5894
      %5897 = dma.vmem_to_hbm [thread:$0]  %s5895, 16, %s13, [#allocation11]
    $region81: #{fine_tuner_hyper_forward.1} parent=1 // pred_fallthru
      _
    // Predicated region
    $region82: #{fine_tuner_hyper_forward.1} parent=1 // pred_check
      _
    $region83: #{fine_tuner_hyper_forward.1} parent=1 // pred_check_branch
      %5899 = sbr.rel (0) target = $region85
    $region84: #{fine_tuner_hyper_forward.1} parent=1 // pred_region
      %5900 = dma.done [#allocation11], 16
    $region85: #{fine_tuner_hyper_forward.1} parent=1 // pred_fallthru
      _
    %5901 = vsyncpa [#allocation10], 1
    %5902 = vsyncpa [#allocation18], 1
    %5903 = vsyncpa [#allocation11], 1
    %5904 = vsyncpa [#allocation12], 1
    %5905 = vsyncpa [#allocation15], 1
  %5906 = vsyncmov [#allocation3]
  %s5907 = vpop.sfrf %5906
  %p5908 = scmp.eq.s32.totalorder %s5907, 0
  %p5909 = pneg %p5908
  %5911 = shalt.err (%p5909)

</llo_original>
